<compile_context>
chip_gen: v7x
topology: tpu7x:2x2x1
jax: 0.10.0
libtpu: 0.0.40
codegen_flags: <defaults>
</compile_context>

<pallas_src>
import jax
import jax.numpy as jnp
from jax.experimental import pallas as pl
from jax.experimental.pallas import tpu as pltpu

INPUT_SIZE = 23
HIDDEN_SIZE = 1024
OUTPUT_SIZE = 14

IN_PAD = 128     # lane-pad input features 23 -> 128
OUT_PAD = 128    # lane-pad output features 14 -> 128
MAX_TB = 512     # max batch tile (keeps TBx1024 f32 intermediates small)


def mlp_kernel(x_ref, w1_ref, b1_ref, w2_ref, b2_ref,
               w3_ref, b3_ref, w4_ref, b4_ref, o_ref):
    # fc1 + ReLU   (bf16 MXU operands, f32 accumulation)
    h = jnp.dot(x_ref[...], w1_ref[...], preferred_element_type=jnp.float32)
    h = jnp.maximum(h + b1_ref[...], 0.0)
    # fc2 + ReLU   (dropout = identity in eval mode)
    h = jnp.dot(h.astype(jnp.bfloat16), w2_ref[...],
                preferred_element_type=jnp.float32)
    h = jnp.maximum(h + b2_ref[...], 0.0)
    # fc3 + ReLU   (dropout = identity in eval mode)
    h = jnp.dot(h.astype(jnp.bfloat16), w3_ref[...],
                preferred_element_type=jnp.float32)
    h = jnp.maximum(h + b3_ref[...], 0.0)
    # fc4 (f32 bias epilogue; VPU work hides under MXU time)
    out = jnp.dot(h.astype(jnp.bfloat16), w4_ref[...],
                  preferred_element_type=jnp.float32)
    o_ref[...] = (out + b4_ref[...]).astype(o_ref.dtype)


def prepare_params(params):
    """Pad to lane-dense shapes and cast weights to bf16 (one-time cost)."""
    w1, b1, w2, b2, w3, b3, w4, b4 = params
    w1p = (jnp.zeros((IN_PAD, HIDDEN_SIZE), jnp.float32)
           .at[:INPUT_SIZE, :].set(w1).astype(jnp.bfloat16))
    w4p = (jnp.zeros((HIDDEN_SIZE, OUT_PAD), jnp.float32)
           .at[:, :OUTPUT_SIZE].set(w4).astype(jnp.bfloat16))
    b4p = jnp.zeros((1, OUT_PAD), jnp.float32).at[:, :OUTPUT_SIZE].set(b4)
    return (w1p, b1,
            w2.astype(jnp.bfloat16), b2,
            w3.astype(jnp.bfloat16), b3,
            w4p, b4p)


def _round_up(v, m):
    return -(-v // m) * m


def pick_batch_tile(batch):
    """Adaptive batch tile: multiple of 8 (sublane aligned), capped at MAX_TB.

    For moderate batches, split into two tiles so the "parallel" grid axis
    gives both v7x TensorCores work; tiny batches get a single minimal tile.
    """
    if batch <= 16:
        return _round_up(batch, 8)
    if batch <= 2 * MAX_TB:
        return _round_up(_round_up(batch, 2) // 2, 8)
    return MAX_TB


@jax.jit
def mlp_forward(x, prepped):
    B = x.shape[0]
    TB = pick_batch_tile(B)
    n_tiles = pl.cdiv(B, TB)
    Bp = n_tiles * TB

    # Batch-pad to a multiple of TB and lane-pad 23 -> 128, in bf16 (halves the
    # un-hidden wrapper pad + per-tile DMA vs f32).  Pads are zero -> exact.
    xp = (jnp.zeros((Bp, IN_PAD), jnp.bfloat16)
          .at[:B, :INPUT_SIZE].set(x.astype(jnp.bfloat16)))

    def resident(a):
        # Whole array, same block index every grid step -> stays VMEM-resident.
        # Single-buffered: the block never changes, so double-buffering would
        # only burn an extra ~4.5 MiB of VMEM.
        return pl.BlockSpec(a.shape, lambda i: (0,) * a.ndim,
                            pipeline_mode=pl.Buffered(1))

    flops = 2 * Bp * (IN_PAD * HIDDEN_SIZE
                      + HIDDEN_SIZE * HIDDEN_SIZE * 2
                      + HIDDEN_SIZE * OUT_PAD)
    bytes_accessed = (sum(a.size * a.dtype.itemsize for a in prepped)
                      + xp.size * xp.dtype.itemsize + Bp * OUT_PAD * 4)

    out = pl.pallas_call(
        mlp_kernel,
        out_shape=jax.ShapeDtypeStruct((Bp, OUT_PAD), jnp.float32),
        grid=(n_tiles,),
        in_specs=[pl.BlockSpec((TB, IN_PAD), lambda i: (i, 0))]
                 + [resident(a) for a in prepped],
        out_specs=pl.BlockSpec((TB, OUT_PAD), lambda i: (i, 0)),
        compiler_params=pltpu.CompilerParams(
            dimension_semantics=("parallel",),
            # ~20 MiB worst case at TB=512 (4.5 MiB single-buffered weights +
            # 2x in/out tiles + f32 intermediates); 48 MiB leaves >=16 MiB
            # headroom on v7x's 64 MiB physical VMEM, far under v5e/v6e.
            vmem_limit_bytes=48 << 20),
        cost_estimate=pl.CostEstimate(flops=flops, transcendentals=0,
                                      bytes_accessed=bytes_accessed),
    )(xp, *prepped)
    return out[:B, :OUTPUT_SIZE]


def init_params(key):
    """PyTorch nn.Linear-style init (uniform +/- 1/sqrt(fan_in)).
    Weights stored as (in_features, out_features)."""
    def linear(key, fan_in, fan_out):
        kw, kb = jax.random.split(key)
        bound = 1.0 / jnp.sqrt(fan_in)
        w = jax.random.uniform(kw, (fan_in, fan_out), jnp.float32, -bound, bound)
        b = jax.random.uniform(kb, (1, fan_out), jnp.float32, -bound, bound)
        return w, b

    k1, k2, k3, k4 = jax.random.split(key, 4)
    w1, b1 = linear(k1, INPUT_SIZE, HIDDEN_SIZE)
    w2, b2 = linear(k2, HIDDEN_SIZE, HIDDEN_SIZE)
    w3, b3 = linear(k3, HIDDEN_SIZE, HIDDEN_SIZE)
    w4, b4 = linear(k4, HIDDEN_SIZE, OUTPUT_SIZE)
    return (w1, b1, w2, b2, w3, b3, w4, b4)


def reference_forward(x, params):
    """Pure-JAX reference with the same dtype policy (bf16 operands, f32 accum)."""
    w1, b1, w2, b2, w3, b3, w4, b4 = params
    bf, f32 = jnp.bfloat16, jnp.float32

    def lin(h, w, b):
        return jnp.dot(h.astype(bf), w.astype(bf),
                       preferred_element_type=f32) + b

    h = jnp.maximum(lin(x, w1, b1), 0.0)
    h = jnp.maximum(lin(h, w2, b2), 0.0)
    h = jnp.maximum(lin(h, w3, b3), 0.0)
    return lin(h, w4, b4)


if __name__ == "__main__":
    key = jax.random.PRNGKey(0)
    kx, kp, kx2 = jax.random.split(key, 3)

    params = init_params(kp)
    prepped = prepare_params(params)

    # Small-batch path (single tile).
    batch = 8
    x = jax.random.normal(kx, (batch, INPUT_SIZE), jnp.float32)
    out = jax.block_until_ready(mlp_forward(x, prepped))
    ref = reference_forward(x, params)
    assert out.shape == (batch, OUTPUT_SIZE), out.shape
    assert jnp.allclose(out, ref, atol=5e-2, rtol=5e-2), "mismatch (batch=8)"

    # Multi-tile path (batch padding + 2 parallel grid steps).
    batch2 = 300
    x2 = jax.random.normal(kx2, (batch2, INPUT_SIZE), jnp.float32)
    out2 = jax.block_until_ready(mlp_forward(x2, prepped))
    ref2 = reference_forward(x2, params)
    assert out2.shape == (batch2, OUTPUT_SIZE), out2.shape
    assert jnp.allclose(out2, ref2, atol=5e-2, rtol=5e-2), "mismatch (batch=300)"

    print("KERNEL_OK")
</pallas_src>

<mosaic_0001>
module attributes {stable_mosaic.version = 11 : i64} {
  func.func @mlp_kernel(%arg0: i32, %arg1: memref<8x128xbf16, #tpu.memory_space<vmem>>, %arg2: memref<128x1024xbf16, #tpu.memory_space<vmem>>, %arg3: memref<1x1024xf32, #tpu.memory_space<vmem>>, %arg4: memref<1024x1024xbf16, #tpu.memory_space<vmem>>, %arg5: memref<1x1024xf32, #tpu.memory_space<vmem>>, %arg6: memref<1024x1024xbf16, #tpu.memory_space<vmem>>, %arg7: memref<1x1024xf32, #tpu.memory_space<vmem>>, %arg8: memref<1024x128xbf16, #tpu.memory_space<vmem>>, %arg9: memref<1x128xf32, #tpu.memory_space<vmem>>, %arg10: memref<8x128xf32, #tpu.memory_space<vmem>>) attributes {dimension_semantics = [#tpu.dimension_semantics<parallel>], iteration_bounds = array<i64: 1>, scalar_prefetch = 0 : i64, scratch_operands = 0 : i64, tpu.core_type = #tpu.core_type<tc>, window_params = [{transform_indices = @transform_0, window_bounds = array<i64: 8, 128>}, {pipeline_mode = #tpu.pipeline_mode<synchronous>, transform_indices = @transform_1, window_bounds = array<i64: 128, 1024>}, {pipeline_mode = #tpu.pipeline_mode<synchronous>, transform_indices = @transform_2, window_bounds = array<i64: 1, 1024>}, {pipeline_mode = #tpu.pipeline_mode<synchronous>, transform_indices = @transform_3, window_bounds = array<i64: 1024, 1024>}, {pipeline_mode = #tpu.pipeline_mode<synchronous>, transform_indices = @transform_4, window_bounds = array<i64: 1, 1024>}, {pipeline_mode = #tpu.pipeline_mode<synchronous>, transform_indices = @transform_5, window_bounds = array<i64: 1024, 1024>}, {pipeline_mode = #tpu.pipeline_mode<synchronous>, transform_indices = @transform_6, window_bounds = array<i64: 1, 1024>}, {pipeline_mode = #tpu.pipeline_mode<synchronous>, transform_indices = @transform_7, window_bounds = array<i64: 1024, 128>}, {pipeline_mode = #tpu.pipeline_mode<synchronous>, transform_indices = @transform_8, window_bounds = array<i64: 1, 128>}, {transform_indices = @transform_9, window_bounds = array<i64: 8, 128>}]} {
    %c0 = arith.constant 0 : index
    %c0_0 = arith.constant 0 : index
    %0 = vector.load %arg1[%c0, %c0_0] : memref<8x128xbf16, #tpu.memory_space<vmem>>, vector<8x128xbf16>
    %c0_1 = arith.constant 0 : index
    %c0_2 = arith.constant 0 : index
    %1 = vector.load %arg2[%c0_1, %c0_2] : memref<128x1024xbf16, #tpu.memory_space<vmem>>, vector<128x1024xbf16>
    %cst = arith.constant dense<0.000000e+00> : vector<8x1024xf32>
    %2 = tpu.matmul %0, %1, %cst {dimension_numbers = #tpu.dot_dimension_numbers<[1], [0], [0], [1], [0, 0, 1, 1], [], []>} : vector<8x128xbf16>, vector<128x1024xbf16>, vector<8x1024xf32> -> vector<8x1024xf32>
    %c0_3 = arith.constant 0 : index
    %c0_4 = arith.constant 0 : index
    %3 = vector.load %arg3[%c0_3, %c0_4] : memref<1x1024xf32, #tpu.memory_space<vmem>>, vector<1x1024xf32>
    %4 = vector.broadcast %3 : vector<1x1024xf32> to vector<8x1024xf32>
    %5 = arith.addf %2, %4 : vector<8x1024xf32>
    %cst_5 = arith.constant 0.000000e+00 : f32
    %6 = vector.broadcast %cst_5 : f32 to vector<8x1024xf32>
    %7 = arith.maximumf %5, %6 : vector<8x1024xf32>
    %8 = arith.truncf %7 : vector<8x1024xf32> to vector<8x1024xbf16>
    %c0_6 = arith.constant 0 : index
    %c0_7 = arith.constant 0 : index
    %9 = vector.load %arg4[%c0_6, %c0_7] : memref<1024x1024xbf16, #tpu.memory_space<vmem>>, vector<1024x1024xbf16>
    %cst_8 = arith.constant dense<0.000000e+00> : vector<8x1024xf32>
    %10 = tpu.matmul %8, %9, %cst_8 {dimension_numbers = #tpu.dot_dimension_numbers<[1], [0], [0], [1], [0, 0, 1, 1], [], []>} : vector<8x1024xbf16>, vector<1024x1024xbf16>, vector<8x1024xf32> -> vector<8x1024xf32>
    %c0_9 = arith.constant 0 : index
    %c0_10 = arith.constant 0 : index
    %11 = vector.load %arg5[%c0_9, %c0_10] : memref<1x1024xf32, #tpu.memory_space<vmem>>, vector<1x1024xf32>
    %12 = vector.broadcast %11 : vector<1x1024xf32> to vector<8x1024xf32>
    %13 = arith.addf %10, %12 : vector<8x1024xf32>
    %cst_11 = arith.constant 0.000000e+00 : f32
    %14 = vector.broadcast %cst_11 : f32 to vector<8x1024xf32>
    %15 = arith.maximumf %13, %14 : vector<8x1024xf32>
    %16 = arith.truncf %15 : vector<8x1024xf32> to vector<8x1024xbf16>
    %c0_12 = arith.constant 0 : index
    %c0_13 = arith.constant 0 : index
    %17 = vector.load %arg6[%c0_12, %c0_13] : memref<1024x1024xbf16, #tpu.memory_space<vmem>>, vector<1024x1024xbf16>
    %cst_14 = arith.constant dense<0.000000e+00> : vector<8x1024xf32>
    %18 = tpu.matmul %16, %17, %cst_14 {dimension_numbers = #tpu.dot_dimension_numbers<[1], [0], [0], [1], [0, 0, 1, 1], [], []>} : vector<8x1024xbf16>, vector<1024x1024xbf16>, vector<8x1024xf32> -> vector<8x1024xf32>
    %c0_15 = arith.constant 0 : index
    %c0_16 = arith.constant 0 : index
    %19 = vector.load %arg7[%c0_15, %c0_16] : memref<1x1024xf32, #tpu.memory_space<vmem>>, vector<1x1024xf32>
    %20 = vector.broadcast %19 : vector<1x1024xf32> to vector<8x1024xf32>
    %21 = arith.addf %18, %20 : vector<8x1024xf32>
    %cst_17 = arith.constant 0.000000e+00 : f32
    %22 = vector.broadcast %cst_17 : f32 to vector<8x1024xf32>
    %23 = arith.maximumf %21, %22 : vector<8x1024xf32>
    %24 = arith.truncf %23 : vector<8x1024xf32> to vector<8x1024xbf16>
    %c0_18 = arith.constant 0 : index
    %c0_19 = arith.constant 0 : index
    %25 = vector.load %arg8[%c0_18, %c0_19] : memref<1024x128xbf16, #tpu.memory_space<vmem>>, vector<1024x128xbf16>
    %cst_20 = arith.constant dense<0.000000e+00> : vector<8x128xf32>
    %26 = tpu.matmul %24, %25, %cst_20 {dimension_numbers = #tpu.dot_dimension_numbers<[1], [0], [0], [1], [0, 0, 1, 1], [], []>} : vector<8x1024xbf16>, vector<1024x128xbf16>, vector<8x128xf32> -> vector<8x128xf32>
    %c0_21 = arith.constant 0 : index
    %c0_22 = arith.constant 0 : index
    %27 = vector.load %arg9[%c0_21, %c0_22] : memref<1x128xf32, #tpu.memory_space<vmem>>, vector<1x128xf32>
    %28 = vector.broadcast %27 : vector<1x128xf32> to vector<8x128xf32>
    %29 = arith.addf %26, %28 : vector<8x128xf32>
    %c0_23 = arith.constant 0 : index
    %c0_24 = arith.constant 0 : index
    %30 = vector.load %arg10[%c0_23, %c0_24] : memref<8x128xf32, #tpu.memory_space<vmem>>, vector<8x128xf32>
    tpu.vector_store %arg10[%c0_23, %c0_24], %29 {strides = array<i32>} : memref<8x128xf32, #tpu.memory_space<vmem>>, vector<8x128xf32>,
    return
  }
  func.func @transform_0(%arg0: i32) -> (i32, i32) {
    %c0_i32 = arith.constant 0 : i32
    %c0_i32_0 = arith.constant 0 : i32
    return %arg0, %c0_i32 : i32, i32
  }
  func.func @transform_1(%arg0: i32) -> (i32, i32) {
    %c0_i32 = arith.constant 0 : i32
    %c0_i32_0 = arith.constant 0 : i32
    %c0_i32_1 = arith.constant 0 : i32
    return %c0_i32, %c0_i32_0 : i32, i32
  }
  func.func @transform_2(%arg0: i32) -> (i32, i32) {
    %c0_i32 = arith.constant 0 : i32
    %c0_i32_0 = arith.constant 0 : i32
    %c0_i32_1 = arith.constant 0 : i32
    return %c0_i32, %c0_i32_0 : i32, i32
  }
  func.func @transform_3(%arg0: i32) -> (i32, i32) {
    %c0_i32 = arith.constant 0 : i32
    %c0_i32_0 = arith.constant 0 : i32
    %c0_i32_1 = arith.constant 0 : i32
    return %c0_i32, %c0_i32_0 : i32, i32
  }
  func.func @transform_4(%arg0: i32) -> (i32, i32) {
    %c0_i32 = arith.constant 0 : i32
    %c0_i32_0 = arith.constant 0 : i32
    %c0_i32_1 = arith.constant 0 : i32
    return %c0_i32, %c0_i32_0 : i32, i32
  }
  func.func @transform_5(%arg0: i32) -> (i32, i32) {
    %c0_i32 = arith.constant 0 : i32
    %c0_i32_0 = arith.constant 0 : i32
    %c0_i32_1 = arith.constant 0 : i32
    return %c0_i32, %c0_i32_0 : i32, i32
  }
  func.func @transform_6(%arg0: i32) -> (i32, i32) {
    %c0_i32 = arith.constant 0 : i32
    %c0_i32_0 = arith.constant 0 : i32
    %c0_i32_1 = arith.constant 0 : i32
    return %c0_i32, %c0_i32_0 : i32, i32
  }
  func.func @transform_7(%arg0: i32) -> (i32, i32) {
    %c0_i32 = arith.constant 0 : i32
    %c0_i32_0 = arith.constant 0 : i32
    %c0_i32_1 = arith.constant 0 : i32
    return %c0_i32, %c0_i32_0 : i32, i32
  }
  func.func @transform_8(%arg0: i32) -> (i32, i32) {
    %c0_i32 = arith.constant 0 : i32
    %c0_i32_0 = arith.constant 0 : i32
    %c0_i32_1 = arith.constant 0 : i32
    return %c0_i32, %c0_i32_0 : i32, i32
  }
  func.func @transform_9(%arg0: i32) -> (i32, i32) {
    %c0_i32 = arith.constant 0 : i32
    %c0_i32_0 = arith.constant 0 : i32
    return %arg0, %c0_i32 : i32, i32
  }
}

</mosaic_0001>

<llo_original>
// kernel: mlp_forward.1
$region0: #{mlp_forward.1}
  #allocation0 [shape = 'u32[]', space=smem, size = 0x4, offset = 0x4, fixed_abs, tag = 'smem constant byte address 0x4 - core index']
  #allocation1 [shape = 'u32[144,128]{1,0:T(1,128)}', space=vmem, size = 0x12000, scoped, tag = 'internal scratch']
  %s0 = inlined_call_operand.vmem [shape: bf16[8,128], index: 0, kind: input, shape index: {}]
  %s1 = inlined_call_operand.hbm [shape: bf16[128,1024], index: 1, kind: input, shape index: {}]
  %s2 = inlined_call_operand.hbm [shape: f32[1,1024], index: 2, kind: input, shape index: {}]
  %s3 = inlined_call_operand.hbm [shape: bf16[1024,1024], index: 3, kind: input, shape index: {}]
  %s4 = inlined_call_operand.hbm [shape: f32[1,1024], index: 4, kind: input, shape index: {}]
  %s5 = inlined_call_operand.hbm [shape: bf16[1024,1024], index: 5, kind: input, shape index: {}]
  %s6 = inlined_call_operand.hbm [shape: f32[1,1024], index: 6, kind: input, shape index: {}]
  %s7 = inlined_call_operand.hbm [shape: bf16[1024,128], index: 7, kind: input, shape index: {}]
  %s8 = inlined_call_operand.hbm [shape: f32[1,128], index: 8, kind: input, shape index: {}]
  %s9 = inlined_call_operand.hbm [shape: f32[8,128], index: 9, kind: output, shape index: {}]
  %s10 = sld [smem:[#allocation0]]
  $region78: #{mlp_forward.1} parent=0
    _
  %s12 = ssub.s32 1, %s10
  %s13 = scalar_select 0, %s12, %s10
  $region1: #{mlp_forward.1} parent=0
    #allocation2 [shape = 'u8[262144]{0}', space=vmem, size = 0x40000, scoped, tag = 'input window, operand 1, single buffered']
    #allocation3 [shape = 's32[1]{0}', space=sflag, size = 0x4, scoped, tag = 'scoped memory for mlp_forward.1']
    #allocation4 [shape = 's32[1]{0}', space=sflag, size = 0x4, scoped, tag = 'scoped memory for mlp_forward.1']
    #allocation5 [shape = 'u8[4096]{0}', space=vmem, size = 0x1000, scoped, tag = 'input window, operand 2, single buffered']
    #allocation6 [shape = 's32[1]{0}', space=sflag, size = 0x4, scoped, tag = 'scoped memory for mlp_forward.1']
    #allocation7 [shape = 'u8[2097152]{0}', space=vmem, size = 0x200000, scoped, tag = 'input window, operand 3, single buffered']
    #allocation8 [shape = 'u8[4096]{0}', space=vmem, size = 0x1000, scoped, tag = 'input window, operand 4, single buffered']
    #allocation9 [shape = 's32[1]{0}', space=sflag, size = 0x4, scoped, tag = 'scoped memory for mlp_forward.1']
    #allocation10 [shape = 'u8[2097152]{0}', space=vmem, size = 0x200000, scoped, tag = 'input window, operand 5, single buffered']
    #allocation11 [shape = 'u8[4096]{0}', space=vmem, size = 0x1000, scoped, tag = 'input window, operand 6, single buffered']
    #allocation12 [shape = 's32[1]{0}', space=sflag, size = 0x4, scoped, tag = 'scoped memory for mlp_forward.1']
    #allocation13 [shape = 'u8[262144]{0}', space=vmem, size = 0x40000, scoped, tag = 'input window, operand 7, single buffered']
    #allocation14 [shape = 'u8[512]{0}', space=vmem, size = 0x400, scoped, tag = 'input window, operand 8, single buffered']
    #allocation15 [shape = 's32[1]{0}', space=sflag, size = 0x4, scoped, tag = 'scoped memory for mlp_forward.1']
    #allocation16 [shape = 'u8[4096]{0}', space=vmem, size = 0x1000, scoped, tag = 'output window, operand 0, single buffered']
    %14 = vsyncpa [#allocation3], 0
    %15 = vsyncpa [#allocation6], 0
    %16 = vsyncpa [#allocation9], 0
    %17 = vsyncpa [#allocation12], 0
    %18 = vsyncpa [#allocation15], 0
    %19 = vsyncpa [#allocation4], 0
    // Predicated region
    $region2: #{mlp_forward.1} parent=1 // pred_check
      _
    $region3: #{mlp_forward.1} parent=1 // pred_check_branch
      %21 = sbr.rel (0) target = $region5
    $region4: #{mlp_forward.1} parent=1 // pred_region
      _
    $region5: #{mlp_forward.1} parent=1 // pred_fallthru
      _
    // Predicated region
    $region6: #{mlp_forward.1} parent=1 // pred_check
      _
    $region7: #{mlp_forward.1} parent=1 // pred_check_branch
      %23 = sbr.rel (0) target = $region9
    $region8: #{mlp_forward.1} parent=1 // pred_region
      %s25 = ssub.s32 8192, 8192
      %26 = vsyncadd [#allocation3], %s25
      %s27 = sshll.u32 [#allocation2], 4
      %s28 = int_to_ptr.vmem [resolvable:$true] %s27
      %33 = dma.hbm_to_vmem [thread:$0]  %s1, 8192, %s28, [#allocation3], 512, 512, 32
    $region9: #{mlp_forward.1} parent=1 // pred_fallthru
      _
    // Predicated region
    $region10: #{mlp_forward.1} parent=1 // pred_check
      _
    $region11: #{mlp_forward.1} parent=1 // pred_check_branch
      %35 = sbr.rel (0) target = $region13
    $region12: #{mlp_forward.1} parent=1 // pred_region
      %s37 = ssub.s32 128, 128
      %38 = vsyncadd [#allocation6], %s37
      %s40 = sshll.u32 [#allocation5], 4
      %s41 = int_to_ptr.vmem [resolvable:$true] %s40
      %43 = dma.hbm_to_vmem [thread:$0]  %s2, 128, %s41, [#allocation6]
    $region13: #{mlp_forward.1} parent=1 // pred_fallthru
      _
    // Predicated region
    $region14: #{mlp_forward.1} parent=1 // pred_check
      _
    $region15: #{mlp_forward.1} parent=1 // pred_check_branch
      %45 = sbr.rel (0) target = $region17
    $region16: #{mlp_forward.1} parent=1 // pred_region
      %s47 = ssub.s32 65536, 65536
      %48 = vsyncadd [#allocation6], %s47
      %s49 = sshll.u32 [#allocation7], 4
      %s50 = int_to_ptr.vmem [resolvable:$true] %s49
      %55 = dma.hbm_to_vmem [thread:$0]  %s3, 65536, %s50, [#allocation6], 512, 512, 32
    $region17: #{mlp_forward.1} parent=1 // pred_fallthru
      _
    // Predicated region
    $region18: #{mlp_forward.1} parent=1 // pred_check
      _
    $region19: #{mlp_forward.1} parent=1 // pred_check_branch
      %57 = sbr.rel (0) target = $region21
    $region20: #{mlp_forward.1} parent=1 // pred_region
      %s59 = ssub.s32 128, 128
      %60 = vsyncadd [#allocation9], %s59
      %s62 = sshll.u32 [#allocation8], 4
      %s63 = int_to_ptr.vmem [resolvable:$true] %s62
      %65 = dma.hbm_to_vmem [thread:$0]  %s4, 128, %s63, [#allocation9]
    $region21: #{mlp_forward.1} parent=1 // pred_fallthru
      _
    // Predicated region
    $region22: #{mlp_forward.1} parent=1 // pred_check
      _
    $region23: #{mlp_forward.1} parent=1 // pred_check_branch
      %67 = sbr.rel (0) target = $region25
    $region24: #{mlp_forward.1} parent=1 // pred_region
      %s69 = ssub.s32 65536, 65536
      %70 = vsyncadd [#allocation9], %s69
      %s71 = sshll.u32 [#allocation10], 4
      %s72 = int_to_ptr.vmem [resolvable:$true] %s71
      %77 = dma.hbm_to_vmem [thread:$0]  %s5, 65536, %s72, [#allocation9], 512, 512, 32
    $region25: #{mlp_forward.1} parent=1 // pred_fallthru
      _
    // Predicated region
    $region26: #{mlp_forward.1} parent=1 // pred_check
      _
    $region27: #{mlp_forward.1} parent=1 // pred_check_branch
      %79 = sbr.rel (0) target = $region29
    $region28: #{mlp_forward.1} parent=1 // pred_region
      %s81 = ssub.s32 128, 128
      %82 = vsyncadd [#allocation12], %s81
      %s84 = sshll.u32 [#allocation11], 4
      %s85 = int_to_ptr.vmem [resolvable:$true] %s84
      %87 = dma.hbm_to_vmem [thread:$0]  %s6, 128, %s85, [#allocation12]
    $region29: #{mlp_forward.1} parent=1 // pred_fallthru
      _
    // Predicated region
    $region30: #{mlp_forward.1} parent=1 // pred_check
      _
    $region31: #{mlp_forward.1} parent=1 // pred_check_branch
      %89 = sbr.rel (0) target = $region33
    $region32: #{mlp_forward.1} parent=1 // pred_region
      %s91 = ssub.s32 8192, 8192
      %92 = vsyncadd [#allocation12], %s91
      %s93 = sshll.u32 [#allocation13], 4
      %s94 = int_to_ptr.vmem [resolvable:$true] %s93
      %99 = dma.hbm_to_vmem [thread:$0]  %s7, 8192, %s94, [#allocation12], 64, 64, 4
    $region33: #{mlp_forward.1} parent=1 // pred_fallthru
      _
    // Predicated region
    $region34: #{mlp_forward.1} parent=1 // pred_check
      _
    $region35: #{mlp_forward.1} parent=1 // pred_check_branch
      %101 = sbr.rel (0) target = $region37
    $region36: #{mlp_forward.1} parent=1 // pred_region
      %s103 = ssub.s32 16, 16
      %104 = vsyncadd [#allocation15], %s103
      %s106 = sshll.u32 [#allocation14], 4
      %s107 = int_to_ptr.vmem [resolvable:$true] %s106
      %109 = dma.hbm_to_vmem [thread:$0]  %s8, 16, %s107, [#allocation15]
    $region37: #{mlp_forward.1} parent=1 // pred_fallthru
      _
    // Predicated region
    $region38: #{mlp_forward.1} parent=1 // pred_check
      _
    $region39: #{mlp_forward.1} parent=1 // pred_check_branch
      %111 = sbr.rel (0) target = $region41
    $region40: #{mlp_forward.1} parent=1 // pred_region
      %112 = dma.done [#allocation3], 8192
    $region41: #{mlp_forward.1} parent=1 // pred_fallthru
      _
    // Predicated region
    $region42: #{mlp_forward.1} parent=1 // pred_check
      _
    $region43: #{mlp_forward.1} parent=1 // pred_check_branch
      %114 = sbr.rel (0) target = $region45
    $region44: #{mlp_forward.1} parent=1 // pred_region
      %115 = dma.done [#allocation6], 128
    $region45: #{mlp_forward.1} parent=1 // pred_fallthru
      _
    // Predicated region
    $region46: #{mlp_forward.1} parent=1 // pred_check
      _
    $region47: #{mlp_forward.1} parent=1 // pred_check_branch
      %117 = sbr.rel (0) target = $region49
    $region48: #{mlp_forward.1} parent=1 // pred_region
      %118 = dma.done [#allocation6], 65536
    $region49: #{mlp_forward.1} parent=1 // pred_fallthru
      _
    // Predicated region
    $region50: #{mlp_forward.1} parent=1 // pred_check
      _
    $region51: #{mlp_forward.1} parent=1 // pred_check_branch
      %120 = sbr.rel (0) target = $region53
    $region52: #{mlp_forward.1} parent=1 // pred_region
      %121 = dma.done [#allocation9], 128
    $region53: #{mlp_forward.1} parent=1 // pred_fallthru
      _
    // Predicated region
    $region54: #{mlp_forward.1} parent=1 // pred_check
      _
    $region55: #{mlp_forward.1} parent=1 // pred_check_branch
      %123 = sbr.rel (0) target = $region57
    $region56: #{mlp_forward.1} parent=1 // pred_region
      %124 = dma.done [#allocation9], 65536
    $region57: #{mlp_forward.1} parent=1 // pred_fallthru
      _
    // Predicated region
    $region58: #{mlp_forward.1} parent=1 // pred_check
      _
    $region59: #{mlp_forward.1} parent=1 // pred_check_branch
      %126 = sbr.rel (0) target = $region61
    $region60: #{mlp_forward.1} parent=1 // pred_region
      %127 = dma.done [#allocation12], 128
    $region61: #{mlp_forward.1} parent=1 // pred_fallthru
      _
    // Predicated region
    $region62: #{mlp_forward.1} parent=1 // pred_check
      _
    $region63: #{mlp_forward.1} parent=1 // pred_check_branch
      %129 = sbr.rel (0) target = $region65
    $region64: #{mlp_forward.1} parent=1 // pred_region
      %130 = dma.done [#allocation12], 8192
    $region65: #{mlp_forward.1} parent=1 // pred_fallthru
      _
    // Predicated region
    $region66: #{mlp_forward.1} parent=1 // pred_check
      _
    $region67: #{mlp_forward.1} parent=1 // pred_check_branch
      %132 = sbr.rel (0) target = $region69
    $region68: #{mlp_forward.1} parent=1 // pred_region
      %133 = dma.done [#allocation15], 16
    $region69: #{mlp_forward.1} parent=1 // pred_fallthru
      _
    %v135 = vld [vmem:[%s0] sm:$0xf]
    %v136 = vld [vmem:[#allocation2] sm:$0xff]
    %v137 = vld [vmem:[#allocation2 + $0x8] sm:$0xff]
    %v138 = vld [vmem:[#allocation2 + $0x10] sm:$0xff]
    %v139 = vld [vmem:[#allocation2 + $0x18] sm:$0xff]
    %v140 = vld [vmem:[#allocation2 + $0x20] sm:$0xff]
    %v141 = vld [vmem:[#allocation2 + $0x28] sm:$0xff]
    %v142 = vld [vmem:[#allocation2 + $0x30] sm:$0xff]
    %v143 = vld [vmem:[#allocation2 + $0x38] sm:$0xff]
    %v144 = vld [vmem:[#allocation2 + $0x40] sm:$0xff]
    %v145 = vld [vmem:[#allocation2 + $0x48] sm:$0xff]
    %v146 = vld [vmem:[#allocation2 + $0x50] sm:$0xff]
    %v147 = vld [vmem:[#allocation2 + $0x58] sm:$0xff]
    %v148 = vld [vmem:[#allocation2 + $0x60] sm:$0xff]
    %v149 = vld [vmem:[#allocation2 + $0x68] sm:$0xff]
    %v150 = vld [vmem:[#allocation2 + $0x70] sm:$0xff]
    %v151 = vld [vmem:[#allocation2 + $0x78] sm:$0xff]
    %v152 = vld [vmem:[#allocation2 + $0x80] sm:$0xff]
    %v153 = vld [vmem:[#allocation2 + $0x88] sm:$0xff]
    %v154 = vld [vmem:[#allocation2 + $0x90] sm:$0xff]
    %v155 = vld [vmem:[#allocation2 + $0x98] sm:$0xff]
    %v156 = vld [vmem:[#allocation2 + $0xa0] sm:$0xff]
    %v157 = vld [vmem:[#allocation2 + $0xa8] sm:$0xff]
    %v158 = vld [vmem:[#allocation2 + $0xb0] sm:$0xff]
    %v159 = vld [vmem:[#allocation2 + $0xb8] sm:$0xff]
    %v160 = vld [vmem:[#allocation2 + $0xc0] sm:$0xff]
    %v161 = vld [vmem:[#allocation2 + $0xc8] sm:$0xff]
    %v162 = vld [vmem:[#allocation2 + $0xd0] sm:$0xff]
    %v163 = vld [vmem:[#allocation2 + $0xd8] sm:$0xff]
    %v164 = vld [vmem:[#allocation2 + $0xe0] sm:$0xff]
    %v165 = vld [vmem:[#allocation2 + $0xe8] sm:$0xff]
    %v166 = vld [vmem:[#allocation2 + $0xf0] sm:$0xff]
    %v167 = vld [vmem:[#allocation2 + $0xf8] sm:$0xff]
    %v168 = vld [vmem:[#allocation2 + $0x100] sm:$0xff]
    %v169 = vld [vmem:[#allocation2 + $0x108] sm:$0xff]
    %v170 = vld [vmem:[#allocation2 + $0x110] sm:$0xff]
    %v171 = vld [vmem:[#allocation2 + $0x118] sm:$0xff]
    %v172 = vld [vmem:[#allocation2 + $0x120] sm:$0xff]
    %v173 = vld [vmem:[#allocation2 + $0x128] sm:$0xff]
    %v174 = vld [vmem:[#allocation2 + $0x130] sm:$0xff]
    %v175 = vld [vmem:[#allocation2 + $0x138] sm:$0xff]
    %v176 = vld [vmem:[#allocation2 + $0x140] sm:$0xff]
    %v177 = vld [vmem:[#allocation2 + $0x148] sm:$0xff]
    %v178 = vld [vmem:[#allocation2 + $0x150] sm:$0xff]
    %v179 = vld [vmem:[#allocation2 + $0x158] sm:$0xff]
    %v180 = vld [vmem:[#allocation2 + $0x160] sm:$0xff]
    %v181 = vld [vmem:[#allocation2 + $0x168] sm:$0xff]
    %v182 = vld [vmem:[#allocation2 + $0x170] sm:$0xff]
    %v183 = vld [vmem:[#allocation2 + $0x178] sm:$0xff]
    %v184 = vld [vmem:[#allocation2 + $0x180] sm:$0xff]
    %v185 = vld [vmem:[#allocation2 + $0x188] sm:$0xff]
    %v186 = vld [vmem:[#allocation2 + $0x190] sm:$0xff]
    %v187 = vld [vmem:[#allocation2 + $0x198] sm:$0xff]
    %v188 = vld [vmem:[#allocation2 + $0x1a0] sm:$0xff]
    %v189 = vld [vmem:[#allocation2 + $0x1a8] sm:$0xff]
    %v190 = vld [vmem:[#allocation2 + $0x1b0] sm:$0xff]
    %v191 = vld [vmem:[#allocation2 + $0x1b8] sm:$0xff]
    %v192 = vld [vmem:[#allocation2 + $0x1c0] sm:$0xff]
    %v193 = vld [vmem:[#allocation2 + $0x1c8] sm:$0xff]
    %v194 = vld [vmem:[#allocation2 + $0x1d0] sm:$0xff]
    %v195 = vld [vmem:[#allocation2 + $0x1d8] sm:$0xff]
    %v196 = vld [vmem:[#allocation2 + $0x1e0] sm:$0xff]
    %v197 = vld [vmem:[#allocation2 + $0x1e8] sm:$0xff]
    %v198 = vld [vmem:[#allocation2 + $0x1f0] sm:$0xff]
    %v199 = vld [vmem:[#allocation2 + $0x1f8] sm:$0xff]
    %v200 = vld [vmem:[#allocation5] sm:$0xff]
    %v202 = vlaneseq
    %v203 = vshrl.u32 %v202, 7
    %v204 = vsub.s32 0, %v203
    %v205 = vrot.slane %v200, %v204
    %v206 = vlaneseq
    %v207 = vshrl.u32 %v206, 7
    %v208 = vsub.s32 1, %v207
    %v209 = vrot.slane %v200, %v208
    %v210 = vlaneseq
    %v211 = vshrl.u32 %v210, 7
    %v212 = vsub.s32 2, %v211
    %v213 = vrot.slane %v200, %v212
    %v214 = vlaneseq
    %v215 = vshrl.u32 %v214, 7
    %v216 = vsub.s32 3, %v215
    %v217 = vrot.slane %v200, %v216
    %v218 = vlaneseq
    %v219 = vshrl.u32 %v218, 7
    %v220 = vsub.s32 4, %v219
    %v221 = vrot.slane %v200, %v220
    %v222 = vlaneseq
    %v223 = vshrl.u32 %v222, 7
    %v224 = vsub.s32 5, %v223
    %v225 = vrot.slane %v200, %v224
    %v226 = vlaneseq
    %v227 = vshrl.u32 %v226, 7
    %v228 = vsub.s32 6, %v227
    %v229 = vrot.slane %v200, %v228
    %v230 = vlaneseq
    %v231 = vshrl.u32 %v230, 7
    %v232 = vsub.s32 7, %v231
    %v233 = vrot.slane %v200, %v232
    %v306 = vunpack.c.l.b16 %v136
    %v307 = vunpack.c.h.b16 %v136
    %v308 = vunpack.c.l.b16 %v137
    %v309 = vunpack.c.h.b16 %v137
    %v310 = vunpack.c.l.b16 %v138
    %v311 = vunpack.c.h.b16 %v138
    %v312 = vunpack.c.l.b16 %v139
    %v313 = vunpack.c.h.b16 %v139
    %v314 = vunpack.c.l.b16 %v140
    %v315 = vunpack.c.h.b16 %v140
    %v316 = vunpack.c.l.b16 %v141
    %v317 = vunpack.c.h.b16 %v141
    %v318 = vunpack.c.l.b16 %v142
    %v319 = vunpack.c.h.b16 %v142
    %v320 = vunpack.c.l.b16 %v143
    %v321 = vunpack.c.h.b16 %v143
    %v322 = vunpack.c.l.b16 %v144
    %v323 = vunpack.c.h.b16 %v144
    %v324 = vunpack.c.l.b16 %v145
    %v325 = vunpack.c.h.b16 %v145
    %v326 = vunpack.c.l.b16 %v146
    %v327 = vunpack.c.h.b16 %v146
    %v328 = vunpack.c.l.b16 %v147
    %v329 = vunpack.c.h.b16 %v147
    %v330 = vunpack.c.l.b16 %v148
    %v331 = vunpack.c.h.b16 %v148
    %v332 = vunpack.c.l.b16 %v149
    %v333 = vunpack.c.h.b16 %v149
    %v334 = vunpack.c.l.b16 %v150
    %v335 = vunpack.c.h.b16 %v150
    %v336 = vunpack.c.l.b16 %v151
    %v337 = vunpack.c.h.b16 %v151
    %v338 = vunpack.c.l.b16 %v152
    %v339 = vunpack.c.h.b16 %v152
    %v340 = vunpack.c.l.b16 %v153
    %v341 = vunpack.c.h.b16 %v153
    %v342 = vunpack.c.l.b16 %v154
    %v343 = vunpack.c.h.b16 %v154
    %v344 = vunpack.c.l.b16 %v155
    %v345 = vunpack.c.h.b16 %v155
    %v346 = vunpack.c.l.b16 %v156
    %v347 = vunpack.c.h.b16 %v156
    %v348 = vunpack.c.l.b16 %v157
    %v349 = vunpack.c.h.b16 %v157
    %v350 = vunpack.c.l.b16 %v158
    %v351 = vunpack.c.h.b16 %v158
    %v352 = vunpack.c.l.b16 %v159
    %v353 = vunpack.c.h.b16 %v159
    %v354 = vunpack.c.l.b16 %v160
    %v355 = vunpack.c.h.b16 %v160
    %v356 = vunpack.c.l.b16 %v161
    %v357 = vunpack.c.h.b16 %v161
    %v358 = vunpack.c.l.b16 %v162
    %v359 = vunpack.c.h.b16 %v162
    %v360 = vunpack.c.l.b16 %v163
    %v361 = vunpack.c.h.b16 %v163
    %v362 = vunpack.c.l.b16 %v164
    %v363 = vunpack.c.h.b16 %v164
    %v364 = vunpack.c.l.b16 %v165
    %v365 = vunpack.c.h.b16 %v165
    %v366 = vunpack.c.l.b16 %v166
    %v367 = vunpack.c.h.b16 %v166
    %v368 = vunpack.c.l.b16 %v167
    %v369 = vunpack.c.h.b16 %v167
    %v370 = vunpack.c.l.b16 %v168
    %v371 = vunpack.c.h.b16 %v168
    %v372 = vunpack.c.l.b16 %v169
    %v373 = vunpack.c.h.b16 %v169
    %v374 = vunpack.c.l.b16 %v170
    %v375 = vunpack.c.h.b16 %v170
    %v376 = vunpack.c.l.b16 %v171
    %v377 = vunpack.c.h.b16 %v171
    %v378 = vunpack.c.l.b16 %v172
    %v379 = vunpack.c.h.b16 %v172
    %v380 = vunpack.c.l.b16 %v173
    %v381 = vunpack.c.h.b16 %v173
    %v382 = vunpack.c.l.b16 %v174
    %v383 = vunpack.c.h.b16 %v174
    %v384 = vunpack.c.l.b16 %v175
    %v385 = vunpack.c.h.b16 %v175
    %v386 = vunpack.c.l.b16 %v176
    %v387 = vunpack.c.h.b16 %v176
    %v388 = vunpack.c.l.b16 %v177
    %v389 = vunpack.c.h.b16 %v177
    %v390 = vunpack.c.l.b16 %v178
    %v391 = vunpack.c.h.b16 %v178
    %v392 = vunpack.c.l.b16 %v179
    %v393 = vunpack.c.h.b16 %v179
    %v394 = vunpack.c.l.b16 %v180
    %v395 = vunpack.c.h.b16 %v180
    %v396 = vunpack.c.l.b16 %v181
    %v397 = vunpack.c.h.b16 %v181
    %v398 = vunpack.c.l.b16 %v182
    %v399 = vunpack.c.h.b16 %v182
    %v400 = vunpack.c.l.b16 %v183
    %v401 = vunpack.c.h.b16 %v183
    %v402 = vunpack.c.l.b16 %v184
    %v403 = vunpack.c.h.b16 %v184
    %v404 = vunpack.c.l.b16 %v185
    %v405 = vunpack.c.h.b16 %v185
    %v406 = vunpack.c.l.b16 %v186
    %v407 = vunpack.c.h.b16 %v186
    %v408 = vunpack.c.l.b16 %v187
    %v409 = vunpack.c.h.b16 %v187
    %v410 = vunpack.c.l.b16 %v188
    %v411 = vunpack.c.h.b16 %v188
    %v412 = vunpack.c.l.b16 %v189
    %v413 = vunpack.c.h.b16 %v189
    %v414 = vunpack.c.l.b16 %v190
    %v415 = vunpack.c.h.b16 %v190
    %v416 = vunpack.c.l.b16 %v191
    %v417 = vunpack.c.h.b16 %v191
    %v418 = vunpack.c.l.b16 %v192
    %v419 = vunpack.c.h.b16 %v192
    %v420 = vunpack.c.l.b16 %v193
    %v421 = vunpack.c.h.b16 %v193
    %v422 = vunpack.c.l.b16 %v194
    %v423 = vunpack.c.h.b16 %v194
    %v424 = vunpack.c.l.b16 %v195
    %v425 = vunpack.c.h.b16 %v195
    %v426 = vunpack.c.l.b16 %v196
    %v427 = vunpack.c.h.b16 %v196
    %v428 = vunpack.c.l.b16 %v197
    %v429 = vunpack.c.h.b16 %v197
    %v430 = vunpack.c.l.b16 %v198
    %v431 = vunpack.c.h.b16 %v198
    %v432 = vunpack.c.l.b16 %v199
    %v433 = vunpack.c.h.b16 %v199
    %v434 = vpack.c.b16 %v314, %v306
    %v435 = vpack.c.b16 %v315, %v307
    %v436 = vpack.c.b16 %v316, %v308
    %v437 = vpack.c.b16 %v317, %v309
    %v438 = vpack.c.b16 %v318, %v310
    %v439 = vpack.c.b16 %v319, %v311
    %v440 = vpack.c.b16 %v320, %v312
    %v441 = vpack.c.b16 %v321, %v313
    %v442 = vpack.c.b16 %v330, %v322
    %v443 = vpack.c.b16 %v331, %v323
    %v444 = vpack.c.b16 %v332, %v324
    %v445 = vpack.c.b16 %v333, %v325
    %v446 = vpack.c.b16 %v334, %v326
    %v447 = vpack.c.b16 %v335, %v327
    %v448 = vpack.c.b16 %v336, %v328
    %v449 = vpack.c.b16 %v337, %v329
    %v450 = vpack.c.b16 %v346, %v338
    %v451 = vpack.c.b16 %v347, %v339
    %v452 = vpack.c.b16 %v348, %v340
    %v453 = vpack.c.b16 %v349, %v341
    %v454 = vpack.c.b16 %v350, %v342
    %v455 = vpack.c.b16 %v351, %v343
    %v456 = vpack.c.b16 %v352, %v344
    %v457 = vpack.c.b16 %v353, %v345
    %v458 = vpack.c.b16 %v362, %v354
    %v459 = vpack.c.b16 %v363, %v355
    %v460 = vpack.c.b16 %v364, %v356
    %v461 = vpack.c.b16 %v365, %v357
    %v462 = vpack.c.b16 %v366, %v358
    %v463 = vpack.c.b16 %v367, %v359
    %v464 = vpack.c.b16 %v368, %v360
    %v465 = vpack.c.b16 %v369, %v361
    %v466 = vpack.c.b16 %v378, %v370
    %v467 = vpack.c.b16 %v379, %v371
    %v468 = vpack.c.b16 %v380, %v372
    %v469 = vpack.c.b16 %v381, %v373
    %v470 = vpack.c.b16 %v382, %v374
    %v471 = vpack.c.b16 %v383, %v375
    %v472 = vpack.c.b16 %v384, %v376
    %v473 = vpack.c.b16 %v385, %v377
    %v474 = vpack.c.b16 %v394, %v386
    %v475 = vpack.c.b16 %v395, %v387
    %v476 = vpack.c.b16 %v396, %v388
    %v477 = vpack.c.b16 %v397, %v389
    %v478 = vpack.c.b16 %v398, %v390
    %v479 = vpack.c.b16 %v399, %v391
    %v480 = vpack.c.b16 %v400, %v392
    %v481 = vpack.c.b16 %v401, %v393
    %v482 = vpack.c.b16 %v410, %v402
    %v483 = vpack.c.b16 %v411, %v403
    %v484 = vpack.c.b16 %v412, %v404
    %v485 = vpack.c.b16 %v413, %v405
    %v486 = vpack.c.b16 %v414, %v406
    %v487 = vpack.c.b16 %v415, %v407
    %v488 = vpack.c.b16 %v416, %v408
    %v489 = vpack.c.b16 %v417, %v409
    %v490 = vpack.c.b16 %v426, %v418
    %v491 = vpack.c.b16 %v427, %v419
    %v492 = vpack.c.b16 %v428, %v420
    %v493 = vpack.c.b16 %v429, %v421
    %v494 = vpack.c.b16 %v430, %v422
    %v495 = vpack.c.b16 %v431, %v423
    %v496 = vpack.c.b16 %v432, %v424
    %v497 = vpack.c.b16 %v433, %v425
    %562 = vmatprep.subr.bf16.mxu0 %v435
    %563 = vmatpush1.bf16.msra.mxu0 %v434
    %564 = vmatprep.subr.bf16.mxu0 %v443
    %565 = vmatpush1.bf16.msra.mxu0 %v442
    %566 = vmatprep.subr.bf16.mxu0 %v451
    %567 = vmatpush1.bf16.msra.mxu0 %v450
    %568 = vmatprep.subr.bf16.mxu0 %v459
    %569 = vmatpush1.bf16.msra.mxu0 %v458
    %570 = vmatprep.subr.bf16.mxu0 %v467
    %571 = vmatpush1.bf16.msra.mxu0 %v466
    %572 = vmatprep.subr.bf16.mxu0 %v475
    %573 = vmatpush1.bf16.msra.mxu0 %v474
    %574 = vmatprep.subr.bf16.mxu0 %v483
    %575 = vmatpush1.bf16.msra.mxu0 %v482
    %576 = vmatprep.subr.bf16.mxu0 %v491
    %577 = vmatpush1.bf16.msra.mxu0 %v490
    %578 = vmatprep.subr.bf16.mxu0 0
    %579 = vmatpush1.bf16.msra.mxu0 0
    %580 = vmatprep.subr.bf16.mxu0 0
    %581 = vmatpush1.bf16.msra.mxu0 0
    %582 = vmatprep.subr.bf16.mxu0 0
    %583 = vmatpush1.bf16.msra.mxu0 0
    %584 = vmatprep.subr.bf16.mxu0 0
    %585 = vmatpush1.bf16.msra.mxu0 0
    %586 = vmatprep.subr.bf16.mxu0 0
    %587 = vmatpush1.bf16.msra.mxu0 0
    %588 = vmatprep.subr.bf16.mxu0 0
    %589 = vmatpush1.bf16.msra.mxu0 0
    %590 = vmatprep.subr.bf16.mxu0 0
    %591 = vmatpush1.bf16.msra.mxu0 0
    %592 = vmatprep.subr.bf16.mxu0 0
    %593 = vmatpush1.bf16.msra.mxu0 0
    %594 = vmatprep.mubr.bf16.mxu0 0
    %595 = vmatmul.mubr.bf16.gmra.mrb[0].mxu0 %v135
    %v596 = vpop.f32.mrb[0].mxu0
    %v597 = vadd.f32 %v205, %v596
    %v598 = vpop.f32.mrb[0].mxu0
    %v599 = vadd.f32 %v209, %v598
    %v600 = vpop.f32.mrb[0].mxu0
    %v601 = vpop.f32.mrb[0].mxu0
    %602 = vdwg.mxu0
    %603 = vmatprep.subr.bf16.mxu0 %v437
    %604 = vmatpush1.bf16.msra.mxu0 %v436
    %605 = vmatprep.subr.bf16.mxu0 %v445
    %606 = vmatpush1.bf16.msra.mxu0 %v444
    %607 = vmatprep.subr.bf16.mxu0 %v453
    %608 = vmatpush1.bf16.msra.mxu0 %v452
    %609 = vmatprep.subr.bf16.mxu0 %v461
    %610 = vmatpush1.bf16.msra.mxu0 %v460
    %611 = vmatprep.subr.bf16.mxu0 %v469
    %612 = vmatpush1.bf16.msra.mxu0 %v468
    %613 = vmatprep.subr.bf16.mxu0 %v477
    %614 = vmatpush1.bf16.msra.mxu0 %v476
    %615 = vmatprep.subr.bf16.mxu0 %v485
    %616 = vmatpush1.bf16.msra.mxu0 %v484
    %617 = vmatprep.subr.bf16.mxu0 %v493
    %618 = vmatpush1.bf16.msra.mxu0 %v492
    %619 = vmatprep.subr.bf16.mxu0 0
    %620 = vmatpush1.bf16.msra.mxu0 0
    %621 = vmatprep.subr.bf16.mxu0 0
    %622 = vmatpush1.bf16.msra.mxu0 0
    %623 = vmatprep.subr.bf16.mxu0 0
    %624 = vmatpush1.bf16.msra.mxu0 0
    %625 = vmatprep.subr.bf16.mxu0 0
    %626 = vmatpush1.bf16.msra.mxu0 0
    %627 = vmatprep.subr.bf16.mxu0 0
    %628 = vmatpush1.bf16.msra.mxu0 0
    %629 = vmatprep.subr.bf16.mxu0 0
    %630 = vmatpush1.bf16.msra.mxu0 0
    %631 = vmatprep.subr.bf16.mxu0 0
    %632 = vmatpush1.bf16.msra.mxu0 0
    %633 = vmatprep.subr.bf16.mxu0 0
    %634 = vmatpush1.bf16.msra.mxu0 0
    %635 = vmatprep.mubr.bf16.mxu0 0
    %636 = vmatmul.mubr.bf16.gmra.mrb[0].mxu0 %v135
    %v637 = vpop.f32.mrb[0].mxu0
    %v638 = vadd.f32 %v213, %v637
    %v639 = vpop.f32.mrb[0].mxu0
    %v640 = vadd.f32 %v217, %v639
    %v641 = vpop.f32.mrb[0].mxu0
    %v642 = vpop.f32.mrb[0].mxu0
    %643 = vdwg.mxu0
    %644 = vmatprep.subr.bf16.mxu0 %v439
    %645 = vmatpush1.bf16.msra.mxu0 %v438
    %646 = vmatprep.subr.bf16.mxu0 %v447
    %647 = vmatpush1.bf16.msra.mxu0 %v446
    %648 = vmatprep.subr.bf16.mxu0 %v455
    %649 = vmatpush1.bf16.msra.mxu0 %v454
    %650 = vmatprep.subr.bf16.mxu0 %v463
    %651 = vmatpush1.bf16.msra.mxu0 %v462
    %652 = vmatprep.subr.bf16.mxu0 %v471
    %653 = vmatpush1.bf16.msra.mxu0 %v470
    %654 = vmatprep.subr.bf16.mxu0 %v479
    %655 = vmatpush1.bf16.msra.mxu0 %v478
    %656 = vmatprep.subr.bf16.mxu0 %v487
    %657 = vmatpush1.bf16.msra.mxu0 %v486
    %658 = vmatprep.subr.bf16.mxu0 %v495
    %659 = vmatpush1.bf16.msra.mxu0 %v494
    %660 = vmatprep.subr.bf16.mxu0 0
    %661 = vmatpush1.bf16.msra.mxu0 0
    %662 = vmatprep.subr.bf16.mxu0 0
    %663 = vmatpush1.bf16.msra.mxu0 0
    %664 = vmatprep.subr.bf16.mxu0 0
    %665 = vmatpush1.bf16.msra.mxu0 0
    %666 = vmatprep.subr.bf16.mxu0 0
    %667 = vmatpush1.bf16.msra.mxu0 0
    %668 = vmatprep.subr.bf16.mxu0 0
    %669 = vmatpush1.bf16.msra.mxu0 0
    %670 = vmatprep.subr.bf16.mxu0 0
    %671 = vmatpush1.bf16.msra.mxu0 0
    %672 = vmatprep.subr.bf16.mxu0 0
    %673 = vmatpush1.bf16.msra.mxu0 0
    %674 = vmatprep.subr.bf16.mxu0 0
    %675 = vmatpush1.bf16.msra.mxu0 0
    %676 = vmatprep.mubr.bf16.mxu0 0
    %677 = vmatmul.mubr.bf16.gmra.mrb[0].mxu0 %v135
    %v678 = vpop.f32.mrb[0].mxu0
    %v679 = vadd.f32 %v221, %v678
    %v680 = vpop.f32.mrb[0].mxu0
    %v681 = vadd.f32 %v225, %v680
    %v682 = vpop.f32.mrb[0].mxu0
    %v683 = vpop.f32.mrb[0].mxu0
    %684 = vdwg.mxu0
    %685 = vmatprep.subr.bf16.mxu0 %v441
    %686 = vmatpush1.bf16.msra.mxu0 %v440
    %687 = vmatprep.subr.bf16.mxu0 %v449
    %688 = vmatpush1.bf16.msra.mxu0 %v448
    %689 = vmatprep.subr.bf16.mxu0 %v457
    %690 = vmatpush1.bf16.msra.mxu0 %v456
    %691 = vmatprep.subr.bf16.mxu0 %v465
    %692 = vmatpush1.bf16.msra.mxu0 %v464
    %693 = vmatprep.subr.bf16.mxu0 %v473
    %694 = vmatpush1.bf16.msra.mxu0 %v472
    %695 = vmatprep.subr.bf16.mxu0 %v481
    %696 = vmatpush1.bf16.msra.mxu0 %v480
    %697 = vmatprep.subr.bf16.mxu0 %v489
    %698 = vmatpush1.bf16.msra.mxu0 %v488
    %699 = vmatprep.subr.bf16.mxu0 %v497
    %700 = vmatpush1.bf16.msra.mxu0 %v496
    %701 = vmatprep.subr.bf16.mxu0 0
    %702 = vmatpush1.bf16.msra.mxu0 0
    %703 = vmatprep.subr.bf16.mxu0 0
    %704 = vmatpush1.bf16.msra.mxu0 0
    %705 = vmatprep.subr.bf16.mxu0 0
    %706 = vmatpush1.bf16.msra.mxu0 0
    %707 = vmatprep.subr.bf16.mxu0 0
    %708 = vmatpush1.bf16.msra.mxu0 0
    %709 = vmatprep.subr.bf16.mxu0 0
    %710 = vmatpush1.bf16.msra.mxu0 0
    %711 = vmatprep.subr.bf16.mxu0 0
    %712 = vmatpush1.bf16.msra.mxu0 0
    %713 = vmatprep.subr.bf16.mxu0 0
    %714 = vmatpush1.bf16.msra.mxu0 0
    %715 = vmatprep.subr.bf16.mxu0 0
    %716 = vmatpush1.bf16.msra.mxu0 0
    %717 = vmatprep.mubr.bf16.mxu0 0
    %718 = vmatmul.mubr.bf16.gmra.mrb[0].mxu0 %v135
    %v719 = vpop.f32.mrb[0].mxu0
    %v720 = vadd.f32 %v229, %v719
    %v721 = vpop.f32.mrb[0].mxu0
    %v722 = vadd.f32 %v233, %v721
    %v723 = vpop.f32.mrb[0].mxu0
    %v724 = vpop.f32.mrb[0].mxu0
    %725 = vdwg.mxu0
    %v726 = vmax.f32 %v597, 0.0
    %v727 = vmax.f32 %v599, 0.0
    %v728 = vmax.f32 %v638, 0.0
    %v729 = vmax.f32 %v640, 0.0
    %v730 = vmax.f32 %v679, 0.0
    %v731 = vmax.f32 %v681, 0.0
    %v732 = vmax.f32 %v720, 0.0
    %v733 = vmax.f32 %v722, 0.0
    %v734 = vpack.c.bf16 %v726, %v726
    %v735 = vpack.c.bf16 %v727, %v727
    %v736 = vpack.c.bf16 %v728, %v728
    %v737 = vpack.c.bf16 %v729, %v729
    %v738 = vpack.c.bf16 %v730, %v730
    %v739 = vpack.c.bf16 %v731, %v731
    %v740 = vpack.c.bf16 %v732, %v732
    %v741 = vpack.c.bf16 %v733, %v733
    %v742 = vld [vmem:[#allocation7] sm:$0xff]
    %v743 = vld [vmem:[#allocation7 + $0x8] sm:$0xff]
    %v744 = vld [vmem:[#allocation7 + $0x10] sm:$0xff]
    %v745 = vld [vmem:[#allocation7 + $0x18] sm:$0xff]
    %v746 = vld [vmem:[#allocation7 + $0x20] sm:$0xff]
    %v747 = vld [vmem:[#allocation7 + $0x28] sm:$0xff]
    %v748 = vld [vmem:[#allocation7 + $0x30] sm:$0xff]
    %v749 = vld [vmem:[#allocation7 + $0x38] sm:$0xff]
    %v750 = vld [vmem:[#allocation7 + $0x40] sm:$0xff]
    %v751 = vld [vmem:[#allocation7 + $0x48] sm:$0xff]
    %v752 = vld [vmem:[#allocation7 + $0x50] sm:$0xff]
    %v753 = vld [vmem:[#allocation7 + $0x58] sm:$0xff]
    %v754 = vld [vmem:[#allocation7 + $0x60] sm:$0xff]
    %v755 = vld [vmem:[#allocation7 + $0x68] sm:$0xff]
    %v756 = vld [vmem:[#allocation7 + $0x70] sm:$0xff]
    %v757 = vld [vmem:[#allocation7 + $0x78] sm:$0xff]
    %v758 = vld [vmem:[#allocation7 + $0x80] sm:$0xff]
    %v759 = vld [vmem:[#allocation7 + $0x88] sm:$0xff]
    %v760 = vld [vmem:[#allocation7 + $0x90] sm:$0xff]
    %v761 = vld [vmem:[#allocation7 + $0x98] sm:$0xff]
    %v762 = vld [vmem:[#allocation7 + $0xa0] sm:$0xff]
    %v763 = vld [vmem:[#allocation7 + $0xa8] sm:$0xff]
    %v764 = vld [vmem:[#allocation7 + $0xb0] sm:$0xff]
    %v765 = vld [vmem:[#allocation7 + $0xb8] sm:$0xff]
    %v766 = vld [vmem:[#allocation7 + $0xc0] sm:$0xff]
    %v767 = vld [vmem:[#allocation7 + $0xc8] sm:$0xff]
    %v768 = vld [vmem:[#allocation7 + $0xd0] sm:$0xff]
    %v769 = vld [vmem:[#allocation7 + $0xd8] sm:$0xff]
    %v770 = vld [vmem:[#allocation7 + $0xe0] sm:$0xff]
    %v771 = vld [vmem:[#allocation7 + $0xe8] sm:$0xff]
    %v772 = vld [vmem:[#allocation7 + $0xf0] sm:$0xff]
    %v773 = vld [vmem:[#allocation7 + $0xf8] sm:$0xff]
    %v774 = vld [vmem:[#allocation7 + $0x100] sm:$0xff]
    %v775 = vld [vmem:[#allocation7 + $0x108] sm:$0xff]
    %v776 = vld [vmem:[#allocation7 + $0x110] sm:$0xff]
    %v777 = vld [vmem:[#allocation7 + $0x118] sm:$0xff]
    %v778 = vld [vmem:[#allocation7 + $0x120] sm:$0xff]
    %v779 = vld [vmem:[#allocation7 + $0x128] sm:$0xff]
    %v780 = vld [vmem:[#allocation7 + $0x130] sm:$0xff]
    %v781 = vld [vmem:[#allocation7 + $0x138] sm:$0xff]
    %v782 = vld [vmem:[#allocation7 + $0x140] sm:$0xff]
    %v783 = vld [vmem:[#allocation7 + $0x148] sm:$0xff]
    %v784 = vld [vmem:[#allocation7 + $0x150] sm:$0xff]
    %v785 = vld [vmem:[#allocation7 + $0x158] sm:$0xff]
    %v786 = vld [vmem:[#allocation7 + $0x160] sm:$0xff]
    %v787 = vld [vmem:[#allocation7 + $0x168] sm:$0xff]
    %v788 = vld [vmem:[#allocation7 + $0x170] sm:$0xff]
    %v789 = vld [vmem:[#allocation7 + $0x178] sm:$0xff]
    %v790 = vld [vmem:[#allocation7 + $0x180] sm:$0xff]
    %v791 = vld [vmem:[#allocation7 + $0x188] sm:$0xff]
    %v792 = vld [vmem:[#allocation7 + $0x190] sm:$0xff]
    %v793 = vld [vmem:[#allocation7 + $0x198] sm:$0xff]
    %v794 = vld [vmem:[#allocation7 + $0x1a0] sm:$0xff]
    %v795 = vld [vmem:[#allocation7 + $0x1a8] sm:$0xff]
    %v796 = vld [vmem:[#allocation7 + $0x1b0] sm:$0xff]
    %v797 = vld [vmem:[#allocation7 + $0x1b8] sm:$0xff]
    %v798 = vld [vmem:[#allocation7 + $0x1c0] sm:$0xff]
    %v799 = vld [vmem:[#allocation7 + $0x1c8] sm:$0xff]
    %v800 = vld [vmem:[#allocation7 + $0x1d0] sm:$0xff]
    %v801 = vld [vmem:[#allocation7 + $0x1d8] sm:$0xff]
    %v802 = vld [vmem:[#allocation7 + $0x1e0] sm:$0xff]
    %v803 = vld [vmem:[#allocation7 + $0x1e8] sm:$0xff]
    %v804 = vld [vmem:[#allocation7 + $0x1f0] sm:$0xff]
    %v805 = vld [vmem:[#allocation7 + $0x1f8] sm:$0xff]
    %v806 = vld [vmem:[#allocation7 + $0x200] sm:$0xff]
    %v807 = vld [vmem:[#allocation7 + $0x208] sm:$0xff]
    %v808 = vld [vmem:[#allocation7 + $0x210] sm:$0xff]
    %v809 = vld [vmem:[#allocation7 + $0x218] sm:$0xff]
    %v810 = vld [vmem:[#allocation7 + $0x220] sm:$0xff]
    %v811 = vld [vmem:[#allocation7 + $0x228] sm:$0xff]
    %v812 = vld [vmem:[#allocation7 + $0x230] sm:$0xff]
    %v813 = vld [vmem:[#allocation7 + $0x238] sm:$0xff]
    %v814 = vld [vmem:[#allocation7 + $0x240] sm:$0xff]
    %v815 = vld [vmem:[#allocation7 + $0x248] sm:$0xff]
    %v816 = vld [vmem:[#allocation7 + $0x250] sm:$0xff]
    %v817 = vld [vmem:[#allocation7 + $0x258] sm:$0xff]
    %v818 = vld [vmem:[#allocation7 + $0x260] sm:$0xff]
    %v819 = vld [vmem:[#allocation7 + $0x268] sm:$0xff]
    %v820 = vld [vmem:[#allocation7 + $0x270] sm:$0xff]
    %v821 = vld [vmem:[#allocation7 + $0x278] sm:$0xff]
    %v822 = vld [vmem:[#allocation7 + $0x280] sm:$0xff]
    %v823 = vld [vmem:[#allocation7 + $0x288] sm:$0xff]
    %v824 = vld [vmem:[#allocation7 + $0x290] sm:$0xff]
    %v825 = vld [vmem:[#allocation7 + $0x298] sm:$0xff]
    %v826 = vld [vmem:[#allocation7 + $0x2a0] sm:$0xff]
    %v827 = vld [vmem:[#allocation7 + $0x2a8] sm:$0xff]
    %v828 = vld [vmem:[#allocation7 + $0x2b0] sm:$0xff]
    %v829 = vld [vmem:[#allocation7 + $0x2b8] sm:$0xff]
    %v830 = vld [vmem:[#allocation7 + $0x2c0] sm:$0xff]
    %v831 = vld [vmem:[#allocation7 + $0x2c8] sm:$0xff]
    %v832 = vld [vmem:[#allocation7 + $0x2d0] sm:$0xff]
    %v833 = vld [vmem:[#allocation7 + $0x2d8] sm:$0xff]
    %v834 = vld [vmem:[#allocation7 + $0x2e0] sm:$0xff]
    %v835 = vld [vmem:[#allocation7 + $0x2e8] sm:$0xff]
    %v836 = vld [vmem:[#allocation7 + $0x2f0] sm:$0xff]
    %v837 = vld [vmem:[#allocation7 + $0x2f8] sm:$0xff]
    %v838 = vld [vmem:[#allocation7 + $0x300] sm:$0xff]
    %v839 = vld [vmem:[#allocation7 + $0x308] sm:$0xff]
    %v840 = vld [vmem:[#allocation7 + $0x310] sm:$0xff]
    %v841 = vld [vmem:[#allocation7 + $0x318] sm:$0xff]
    %v842 = vld [vmem:[#allocation7 + $0x320] sm:$0xff]
    %v843 = vld [vmem:[#allocation7 + $0x328] sm:$0xff]
    %v844 = vld [vmem:[#allocation7 + $0x330] sm:$0xff]
    %v845 = vld [vmem:[#allocation7 + $0x338] sm:$0xff]
    %v846 = vld [vmem:[#allocation7 + $0x340] sm:$0xff]
    %v847 = vld [vmem:[#allocation7 + $0x348] sm:$0xff]
    %v848 = vld [vmem:[#allocation7 + $0x350] sm:$0xff]
    %v849 = vld [vmem:[#allocation7 + $0x358] sm:$0xff]
    %v850 = vld [vmem:[#allocation7 + $0x360] sm:$0xff]
    %v851 = vld [vmem:[#allocation7 + $0x368] sm:$0xff]
    %v852 = vld [vmem:[#allocation7 + $0x370] sm:$0xff]
    %v853 = vld [vmem:[#allocation7 + $0x378] sm:$0xff]
    %v854 = vld [vmem:[#allocation7 + $0x380] sm:$0xff]
    %v855 = vld [vmem:[#allocation7 + $0x388] sm:$0xff]
    %v856 = vld [vmem:[#allocation7 + $0x390] sm:$0xff]
    %v857 = vld [vmem:[#allocation7 + $0x398] sm:$0xff]
    %v858 = vld [vmem:[#allocation7 + $0x3a0] sm:$0xff]
    %v859 = vld [vmem:[#allocation7 + $0x3a8] sm:$0xff]
    %v860 = vld [vmem:[#allocation7 + $0x3b0] sm:$0xff]
    %v861 = vld [vmem:[#allocation7 + $0x3b8] sm:$0xff]
    %v862 = vld [vmem:[#allocation7 + $0x3c0] sm:$0xff]
    %v863 = vld [vmem:[#allocation7 + $0x3c8] sm:$0xff]
    %v864 = vld [vmem:[#allocation7 + $0x3d0] sm:$0xff]
    %v865 = vld [vmem:[#allocation7 + $0x3d8] sm:$0xff]
    %v866 = vld [vmem:[#allocation7 + $0x3e0] sm:$0xff]
    %v867 = vld [vmem:[#allocation7 + $0x3e8] sm:$0xff]
    %v868 = vld [vmem:[#allocation7 + $0x3f0] sm:$0xff]
    %v869 = vld [vmem:[#allocation7 + $0x3f8] sm:$0xff]
    %v870 = vld [vmem:[#allocation7 + $0x400] sm:$0xff]
    %v871 = vld [vmem:[#allocation7 + $0x408] sm:$0xff]
    %v872 = vld [vmem:[#allocation7 + $0x410] sm:$0xff]
    %v873 = vld [vmem:[#allocation7 + $0x418] sm:$0xff]
    %v874 = vld [vmem:[#allocation7 + $0x420] sm:$0xff]
    %v875 = vld [vmem:[#allocation7 + $0x428] sm:$0xff]
    %v876 = vld [vmem:[#allocation7 + $0x430] sm:$0xff]
    %v877 = vld [vmem:[#allocation7 + $0x438] sm:$0xff]
    %v878 = vld [vmem:[#allocation7 + $0x440] sm:$0xff]
    %v879 = vld [vmem:[#allocation7 + $0x448] sm:$0xff]
    %v880 = vld [vmem:[#allocation7 + $0x450] sm:$0xff]
    %v881 = vld [vmem:[#allocation7 + $0x458] sm:$0xff]
    %v882 = vld [vmem:[#allocation7 + $0x460] sm:$0xff]
    %v883 = vld [vmem:[#allocation7 + $0x468] sm:$0xff]
    %v884 = vld [vmem:[#allocation7 + $0x470] sm:$0xff]
    %v885 = vld [vmem:[#allocation7 + $0x478] sm:$0xff]
    %v886 = vld [vmem:[#allocation7 + $0x480] sm:$0xff]
    %v887 = vld [vmem:[#allocation7 + $0x488] sm:$0xff]
    %v888 = vld [vmem:[#allocation7 + $0x490] sm:$0xff]
    %v889 = vld [vmem:[#allocation7 + $0x498] sm:$0xff]
    %v890 = vld [vmem:[#allocation7 + $0x4a0] sm:$0xff]
    %v891 = vld [vmem:[#allocation7 + $0x4a8] sm:$0xff]
    %v892 = vld [vmem:[#allocation7 + $0x4b0] sm:$0xff]
    %v893 = vld [vmem:[#allocation7 + $0x4b8] sm:$0xff]
    %v894 = vld [vmem:[#allocation7 + $0x4c0] sm:$0xff]
    %v895 = vld [vmem:[#allocation7 + $0x4c8] sm:$0xff]
    %v896 = vld [vmem:[#allocation7 + $0x4d0] sm:$0xff]
    %v897 = vld [vmem:[#allocation7 + $0x4d8] sm:$0xff]
    %v898 = vld [vmem:[#allocation7 + $0x4e0] sm:$0xff]
    %v899 = vld [vmem:[#allocation7 + $0x4e8] sm:$0xff]
    %v900 = vld [vmem:[#allocation7 + $0x4f0] sm:$0xff]
    %v901 = vld [vmem:[#allocation7 + $0x4f8] sm:$0xff]
    %v902 = vld [vmem:[#allocation7 + $0x500] sm:$0xff]
    %v903 = vld [vmem:[#allocation7 + $0x508] sm:$0xff]
    %v904 = vld [vmem:[#allocation7 + $0x510] sm:$0xff]
    %v905 = vld [vmem:[#allocation7 + $0x518] sm:$0xff]
    %v906 = vld [vmem:[#allocation7 + $0x520] sm:$0xff]
    %v907 = vld [vmem:[#allocation7 + $0x528] sm:$0xff]
    %v908 = vld [vmem:[#allocation7 + $0x530] sm:$0xff]
    %v909 = vld [vmem:[#allocation7 + $0x538] sm:$0xff]
    %v910 = vld [vmem:[#allocation7 + $0x540] sm:$0xff]
    %v911 = vld [vmem:[#allocation7 + $0x548] sm:$0xff]
    %v912 = vld [vmem:[#allocation7 + $0x550] sm:$0xff]
    %v913 = vld [vmem:[#allocation7 + $0x558] sm:$0xff]
    %v914 = vld [vmem:[#allocation7 + $0x560] sm:$0xff]
    %v915 = vld [vmem:[#allocation7 + $0x568] sm:$0xff]
    %v916 = vld [vmem:[#allocation7 + $0x570] sm:$0xff]
    %v917 = vld [vmem:[#allocation7 + $0x578] sm:$0xff]
    %v918 = vld [vmem:[#allocation7 + $0x580] sm:$0xff]
    %v919 = vld [vmem:[#allocation7 + $0x588] sm:$0xff]
    %v920 = vld [vmem:[#allocation7 + $0x590] sm:$0xff]
    %v921 = vld [vmem:[#allocation7 + $0x598] sm:$0xff]
    %v922 = vld [vmem:[#allocation7 + $0x5a0] sm:$0xff]
    %v923 = vld [vmem:[#allocation7 + $0x5a8] sm:$0xff]
    %v924 = vld [vmem:[#allocation7 + $0x5b0] sm:$0xff]
    %v925 = vld [vmem:[#allocation7 + $0x5b8] sm:$0xff]
    %v926 = vld [vmem:[#allocation7 + $0x5c0] sm:$0xff]
    %v927 = vld [vmem:[#allocation7 + $0x5c8] sm:$0xff]
    %v928 = vld [vmem:[#allocation7 + $0x5d0] sm:$0xff]
    %v929 = vld [vmem:[#allocation7 + $0x5d8] sm:$0xff]
    %v930 = vld [vmem:[#allocation7 + $0x5e0] sm:$0xff]
    %v931 = vld [vmem:[#allocation7 + $0x5e8] sm:$0xff]
    %v932 = vld [vmem:[#allocation7 + $0x5f0] sm:$0xff]
    %v933 = vld [vmem:[#allocation7 + $0x5f8] sm:$0xff]
    %v934 = vld [vmem:[#allocation7 + $0x600] sm:$0xff]
    %v935 = vld [vmem:[#allocation7 + $0x608] sm:$0xff]
    %v936 = vld [vmem:[#allocation7 + $0x610] sm:$0xff]
    %v937 = vld [vmem:[#allocation7 + $0x618] sm:$0xff]
    %v938 = vld [vmem:[#allocation7 + $0x620] sm:$0xff]
    %v939 = vld [vmem:[#allocation7 + $0x628] sm:$0xff]
    %v940 = vld [vmem:[#allocation7 + $0x630] sm:$0xff]
    %v941 = vld [vmem:[#allocation7 + $0x638] sm:$0xff]
    %v942 = vld [vmem:[#allocation7 + $0x640] sm:$0xff]
    %v943 = vld [vmem:[#allocation7 + $0x648] sm:$0xff]
    %v944 = vld [vmem:[#allocation7 + $0x650] sm:$0xff]
    %v945 = vld [vmem:[#allocation7 + $0x658] sm:$0xff]
    %v946 = vld [vmem:[#allocation7 + $0x660] sm:$0xff]
    %v947 = vld [vmem:[#allocation7 + $0x668] sm:$0xff]
    %v948 = vld [vmem:[#allocation7 + $0x670] sm:$0xff]
    %v949 = vld [vmem:[#allocation7 + $0x678] sm:$0xff]
    %v950 = vld [vmem:[#allocation7 + $0x680] sm:$0xff]
    %v951 = vld [vmem:[#allocation7 + $0x688] sm:$0xff]
    %v952 = vld [vmem:[#allocation7 + $0x690] sm:$0xff]
    %v953 = vld [vmem:[#allocation7 + $0x698] sm:$0xff]
    %v954 = vld [vmem:[#allocation7 + $0x6a0] sm:$0xff]
    %v955 = vld [vmem:[#allocation7 + $0x6a8] sm:$0xff]
    %v956 = vld [vmem:[#allocation7 + $0x6b0] sm:$0xff]
    %v957 = vld [vmem:[#allocation7 + $0x6b8] sm:$0xff]
    %v958 = vld [vmem:[#allocation7 + $0x6c0] sm:$0xff]
    %v959 = vld [vmem:[#allocation7 + $0x6c8] sm:$0xff]
    %v960 = vld [vmem:[#allocation7 + $0x6d0] sm:$0xff]
    %v961 = vld [vmem:[#allocation7 + $0x6d8] sm:$0xff]
    %v962 = vld [vmem:[#allocation7 + $0x6e0] sm:$0xff]
    %v963 = vld [vmem:[#allocation7 + $0x6e8] sm:$0xff]
    %v964 = vld [vmem:[#allocation7 + $0x6f0] sm:$0xff]
    %v965 = vld [vmem:[#allocation7 + $0x6f8] sm:$0xff]
    %v966 = vld [vmem:[#allocation7 + $0x700] sm:$0xff]
    %v967 = vld [vmem:[#allocation7 + $0x708] sm:$0xff]
    %v968 = vld [vmem:[#allocation7 + $0x710] sm:$0xff]
    %v969 = vld [vmem:[#allocation7 + $0x718] sm:$0xff]
    %v970 = vld [vmem:[#allocation7 + $0x720] sm:$0xff]
    %v971 = vld [vmem:[#allocation7 + $0x728] sm:$0xff]
    %v972 = vld [vmem:[#allocation7 + $0x730] sm:$0xff]
    %v973 = vld [vmem:[#allocation7 + $0x738] sm:$0xff]
    %v974 = vld [vmem:[#allocation7 + $0x740] sm:$0xff]
    %v975 = vld [vmem:[#allocation7 + $0x748] sm:$0xff]
    %v976 = vld [vmem:[#allocation7 + $0x750] sm:$0xff]
    %v977 = vld [vmem:[#allocation7 + $0x758] sm:$0xff]
    %v978 = vld [vmem:[#allocation7 + $0x760] sm:$0xff]
    %v979 = vld [vmem:[#allocation7 + $0x768] sm:$0xff]
    %v980 = vld [vmem:[#allocation7 + $0x770] sm:$0xff]
    %v981 = vld [vmem:[#allocation7 + $0x778] sm:$0xff]
    %v982 = vld [vmem:[#allocation7 + $0x780] sm:$0xff]
    %v983 = vld [vmem:[#allocation7 + $0x788] sm:$0xff]
    %v984 = vld [vmem:[#allocation7 + $0x790] sm:$0xff]
    %v985 = vld [vmem:[#allocation7 + $0x798] sm:$0xff]
    %v986 = vld [vmem:[#allocation7 + $0x7a0] sm:$0xff]
    %v987 = vld [vmem:[#allocation7 + $0x7a8] sm:$0xff]
    %v988 = vld [vmem:[#allocation7 + $0x7b0] sm:$0xff]
    %v989 = vld [vmem:[#allocation7 + $0x7b8] sm:$0xff]
    %v990 = vld [vmem:[#allocation7 + $0x7c0] sm:$0xff]
    %v991 = vld [vmem:[#allocation7 + $0x7c8] sm:$0xff]
    %v992 = vld [vmem:[#allocation7 + $0x7d0] sm:$0xff]
    %v993 = vld [vmem:[#allocation7 + $0x7d8] sm:$0xff]
    %v994 = vld [vmem:[#allocation7 + $0x7e0] sm:$0xff]
    %v995 = vld [vmem:[#allocation7 + $0x7e8] sm:$0xff]
    %v996 = vld [vmem:[#allocation7 + $0x7f0] sm:$0xff]
    %v997 = vld [vmem:[#allocation7 + $0x7f8] sm:$0xff]
    %v998 = vld [vmem:[#allocation7 + $0x800] sm:$0xff]
    %v999 = vld [vmem:[#allocation7 + $0x808] sm:$0xff]
    %v1000 = vld [vmem:[#allocation7 + $0x810] sm:$0xff]
    %v1001 = vld [vmem:[#allocation7 + $0x818] sm:$0xff]
    %v1002 = vld [vmem:[#allocation7 + $0x820] sm:$0xff]
    %v1003 = vld [vmem:[#allocation7 + $0x828] sm:$0xff]
    %v1004 = vld [vmem:[#allocation7 + $0x830] sm:$0xff]
    %v1005 = vld [vmem:[#allocation7 + $0x838] sm:$0xff]
    %v1006 = vld [vmem:[#allocation7 + $0x840] sm:$0xff]
    %v1007 = vld [vmem:[#allocation7 + $0x848] sm:$0xff]
    %v1008 = vld [vmem:[#allocation7 + $0x850] sm:$0xff]
    %v1009 = vld [vmem:[#allocation7 + $0x858] sm:$0xff]
    %v1010 = vld [vmem:[#allocation7 + $0x860] sm:$0xff]
    %v1011 = vld [vmem:[#allocation7 + $0x868] sm:$0xff]
    %v1012 = vld [vmem:[#allocation7 + $0x870] sm:$0xff]
    %v1013 = vld [vmem:[#allocation7 + $0x878] sm:$0xff]
    %v1014 = vld [vmem:[#allocation7 + $0x880] sm:$0xff]
    %v1015 = vld [vmem:[#allocation7 + $0x888] sm:$0xff]
    %v1016 = vld [vmem:[#allocation7 + $0x890] sm:$0xff]
    %v1017 = vld [vmem:[#allocation7 + $0x898] sm:$0xff]
    %v1018 = vld [vmem:[#allocation7 + $0x8a0] sm:$0xff]
    %v1019 = vld [vmem:[#allocation7 + $0x8a8] sm:$0xff]
    %v1020 = vld [vmem:[#allocation7 + $0x8b0] sm:$0xff]
    %v1021 = vld [vmem:[#allocation7 + $0x8b8] sm:$0xff]
    %v1022 = vld [vmem:[#allocation7 + $0x8c0] sm:$0xff]
    %v1023 = vld [vmem:[#allocation7 + $0x8c8] sm:$0xff]
    %v1024 = vld [vmem:[#allocation7 + $0x8d0] sm:$0xff]
    %v1025 = vld [vmem:[#allocation7 + $0x8d8] sm:$0xff]
    %v1026 = vld [vmem:[#allocation7 + $0x8e0] sm:$0xff]
    %v1027 = vld [vmem:[#allocation7 + $0x8e8] sm:$0xff]
    %v1028 = vld [vmem:[#allocation7 + $0x8f0] sm:$0xff]
    %v1029 = vld [vmem:[#allocation7 + $0x8f8] sm:$0xff]
    %v1030 = vld [vmem:[#allocation7 + $0x900] sm:$0xff]
    %v1031 = vld [vmem:[#allocation7 + $0x908] sm:$0xff]
    %v1032 = vld [vmem:[#allocation7 + $0x910] sm:$0xff]
    %v1033 = vld [vmem:[#allocation7 + $0x918] sm:$0xff]
    %v1034 = vld [vmem:[#allocation7 + $0x920] sm:$0xff]
    %v1035 = vld [vmem:[#allocation7 + $0x928] sm:$0xff]
    %v1036 = vld [vmem:[#allocation7 + $0x930] sm:$0xff]
    %v1037 = vld [vmem:[#allocation7 + $0x938] sm:$0xff]
    %v1038 = vld [vmem:[#allocation7 + $0x940] sm:$0xff]
    %v1039 = vld [vmem:[#allocation7 + $0x948] sm:$0xff]
    %v1040 = vld [vmem:[#allocation7 + $0x950] sm:$0xff]
    %v1041 = vld [vmem:[#allocation7 + $0x958] sm:$0xff]
    %v1042 = vld [vmem:[#allocation7 + $0x960] sm:$0xff]
    %v1043 = vld [vmem:[#allocation7 + $0x968] sm:$0xff]
    %v1044 = vld [vmem:[#allocation7 + $0x970] sm:$0xff]
    %v1045 = vld [vmem:[#allocation7 + $0x978] sm:$0xff]
    %v1046 = vld [vmem:[#allocation7 + $0x980] sm:$0xff]
    %v1047 = vld [vmem:[#allocation7 + $0x988] sm:$0xff]
    %v1048 = vld [vmem:[#allocation7 + $0x990] sm:$0xff]
    %v1049 = vld [vmem:[#allocation7 + $0x998] sm:$0xff]
    %v1050 = vld [vmem:[#allocation7 + $0x9a0] sm:$0xff]
    %v1051 = vld [vmem:[#allocation7 + $0x9a8] sm:$0xff]
    %v1052 = vld [vmem:[#allocation7 + $0x9b0] sm:$0xff]
    %v1053 = vld [vmem:[#allocation7 + $0x9b8] sm:$0xff]
    %v1054 = vld [vmem:[#allocation7 + $0x9c0] sm:$0xff]
    %v1055 = vld [vmem:[#allocation7 + $0x9c8] sm:$0xff]
    %v1056 = vld [vmem:[#allocation7 + $0x9d0] sm:$0xff]
    %v1057 = vld [vmem:[#allocation7 + $0x9d8] sm:$0xff]
    %v1058 = vld [vmem:[#allocation7 + $0x9e0] sm:$0xff]
    %v1059 = vld [vmem:[#allocation7 + $0x9e8] sm:$0xff]
    %v1060 = vld [vmem:[#allocation7 + $0x9f0] sm:$0xff]
    %v1061 = vld [vmem:[#allocation7 + $0x9f8] sm:$0xff]
    %v1062 = vld [vmem:[#allocation7 + $0xa00] sm:$0xff]
    %v1063 = vld [vmem:[#allocation7 + $0xa08] sm:$0xff]
    %v1064 = vld [vmem:[#allocation7 + $0xa10] sm:$0xff]
    %v1065 = vld [vmem:[#allocation7 + $0xa18] sm:$0xff]
    %v1066 = vld [vmem:[#allocation7 + $0xa20] sm:$0xff]
    %v1067 = vld [vmem:[#allocation7 + $0xa28] sm:$0xff]
    %v1068 = vld [vmem:[#allocation7 + $0xa30] sm:$0xff]
    %v1069 = vld [vmem:[#allocation7 + $0xa38] sm:$0xff]
    %v1070 = vld [vmem:[#allocation7 + $0xa40] sm:$0xff]
    %v1071 = vld [vmem:[#allocation7 + $0xa48] sm:$0xff]
    %v1072 = vld [vmem:[#allocation7 + $0xa50] sm:$0xff]
    %v1073 = vld [vmem:[#allocation7 + $0xa58] sm:$0xff]
    %v1074 = vld [vmem:[#allocation7 + $0xa60] sm:$0xff]
    %v1075 = vld [vmem:[#allocation7 + $0xa68] sm:$0xff]
    %v1076 = vld [vmem:[#allocation7 + $0xa70] sm:$0xff]
    %v1077 = vld [vmem:[#allocation7 + $0xa78] sm:$0xff]
    %v1078 = vld [vmem:[#allocation7 + $0xa80] sm:$0xff]
    %v1079 = vld [vmem:[#allocation7 + $0xa88] sm:$0xff]
    %v1080 = vld [vmem:[#allocation7 + $0xa90] sm:$0xff]
    %v1081 = vld [vmem:[#allocation7 + $0xa98] sm:$0xff]
    %v1082 = vld [vmem:[#allocation7 + $0xaa0] sm:$0xff]
    %v1083 = vld [vmem:[#allocation7 + $0xaa8] sm:$0xff]
    %v1084 = vld [vmem:[#allocation7 + $0xab0] sm:$0xff]
    %v1085 = vld [vmem:[#allocation7 + $0xab8] sm:$0xff]
    %v1086 = vld [vmem:[#allocation7 + $0xac0] sm:$0xff]
    %v1087 = vld [vmem:[#allocation7 + $0xac8] sm:$0xff]
    %v1088 = vld [vmem:[#allocation7 + $0xad0] sm:$0xff]
    %v1089 = vld [vmem:[#allocation7 + $0xad8] sm:$0xff]
    %v1090 = vld [vmem:[#allocation7 + $0xae0] sm:$0xff]
    %v1091 = vld [vmem:[#allocation7 + $0xae8] sm:$0xff]
    %v1092 = vld [vmem:[#allocation7 + $0xaf0] sm:$0xff]
    %v1093 = vld [vmem:[#allocation7 + $0xaf8] sm:$0xff]
    %v1094 = vld [vmem:[#allocation7 + $0xb00] sm:$0xff]
    %v1095 = vld [vmem:[#allocation7 + $0xb08] sm:$0xff]
    %v1096 = vld [vmem:[#allocation7 + $0xb10] sm:$0xff]
    %v1097 = vld [vmem:[#allocation7 + $0xb18] sm:$0xff]
    %v1098 = vld [vmem:[#allocation7 + $0xb20] sm:$0xff]
    %v1099 = vld [vmem:[#allocation7 + $0xb28] sm:$0xff]
    %v1100 = vld [vmem:[#allocation7 + $0xb30] sm:$0xff]
    %v1101 = vld [vmem:[#allocation7 + $0xb38] sm:$0xff]
    %v1102 = vld [vmem:[#allocation7 + $0xb40] sm:$0xff]
    %v1103 = vld [vmem:[#allocation7 + $0xb48] sm:$0xff]
    %v1104 = vld [vmem:[#allocation7 + $0xb50] sm:$0xff]
    %v1105 = vld [vmem:[#allocation7 + $0xb58] sm:$0xff]
    %v1106 = vld [vmem:[#allocation7 + $0xb60] sm:$0xff]
    %v1107 = vld [vmem:[#allocation7 + $0xb68] sm:$0xff]
    %v1108 = vld [vmem:[#allocation7 + $0xb70] sm:$0xff]
    %v1109 = vld [vmem:[#allocation7 + $0xb78] sm:$0xff]
    %v1110 = vld [vmem:[#allocation7 + $0xb80] sm:$0xff]
    %v1111 = vld [vmem:[#allocation7 + $0xb88] sm:$0xff]
    %v1112 = vld [vmem:[#allocation7 + $0xb90] sm:$0xff]
    %v1113 = vld [vmem:[#allocation7 + $0xb98] sm:$0xff]
    %v1114 = vld [vmem:[#allocation7 + $0xba0] sm:$0xff]
    %v1115 = vld [vmem:[#allocation7 + $0xba8] sm:$0xff]
    %v1116 = vld [vmem:[#allocation7 + $0xbb0] sm:$0xff]
    %v1117 = vld [vmem:[#allocation7 + $0xbb8] sm:$0xff]
    %v1118 = vld [vmem:[#allocation7 + $0xbc0] sm:$0xff]
    %v1119 = vld [vmem:[#allocation7 + $0xbc8] sm:$0xff]
    %v1120 = vld [vmem:[#allocation7 + $0xbd0] sm:$0xff]
    %v1121 = vld [vmem:[#allocation7 + $0xbd8] sm:$0xff]
    %v1122 = vld [vmem:[#allocation7 + $0xbe0] sm:$0xff]
    %v1123 = vld [vmem:[#allocation7 + $0xbe8] sm:$0xff]
    %v1124 = vld [vmem:[#allocation7 + $0xbf0] sm:$0xff]
    %v1125 = vld [vmem:[#allocation7 + $0xbf8] sm:$0xff]
    %v1126 = vld [vmem:[#allocation7 + $0xc00] sm:$0xff]
    %v1127 = vld [vmem:[#allocation7 + $0xc08] sm:$0xff]
    %v1128 = vld [vmem:[#allocation7 + $0xc10] sm:$0xff]
    %v1129 = vld [vmem:[#allocation7 + $0xc18] sm:$0xff]
    %v1130 = vld [vmem:[#allocation7 + $0xc20] sm:$0xff]
    %v1131 = vld [vmem:[#allocation7 + $0xc28] sm:$0xff]
    %v1132 = vld [vmem:[#allocation7 + $0xc30] sm:$0xff]
    %v1133 = vld [vmem:[#allocation7 + $0xc38] sm:$0xff]
    %v1134 = vld [vmem:[#allocation7 + $0xc40] sm:$0xff]
    %v1135 = vld [vmem:[#allocation7 + $0xc48] sm:$0xff]
    %v1136 = vld [vmem:[#allocation7 + $0xc50] sm:$0xff]
    %v1137 = vld [vmem:[#allocation7 + $0xc58] sm:$0xff]
    %v1138 = vld [vmem:[#allocation7 + $0xc60] sm:$0xff]
    %v1139 = vld [vmem:[#allocation7 + $0xc68] sm:$0xff]
    %v1140 = vld [vmem:[#allocation7 + $0xc70] sm:$0xff]
    %v1141 = vld [vmem:[#allocation7 + $0xc78] sm:$0xff]
    %v1142 = vld [vmem:[#allocation7 + $0xc80] sm:$0xff]
    %v1143 = vld [vmem:[#allocation7 + $0xc88] sm:$0xff]
    %v1144 = vld [vmem:[#allocation7 + $0xc90] sm:$0xff]
    %v1145 = vld [vmem:[#allocation7 + $0xc98] sm:$0xff]
    %v1146 = vld [vmem:[#allocation7 + $0xca0] sm:$0xff]
    %v1147 = vld [vmem:[#allocation7 + $0xca8] sm:$0xff]
    %v1148 = vld [vmem:[#allocation7 + $0xcb0] sm:$0xff]
    %v1149 = vld [vmem:[#allocation7 + $0xcb8] sm:$0xff]
    %v1150 = vld [vmem:[#allocation7 + $0xcc0] sm:$0xff]
    %v1151 = vld [vmem:[#allocation7 + $0xcc8] sm:$0xff]
    %v1152 = vld [vmem:[#allocation7 + $0xcd0] sm:$0xff]
    %v1153 = vld [vmem:[#allocation7 + $0xcd8] sm:$0xff]
    %v1154 = vld [vmem:[#allocation7 + $0xce0] sm:$0xff]
    %v1155 = vld [vmem:[#allocation7 + $0xce8] sm:$0xff]
    %v1156 = vld [vmem:[#allocation7 + $0xcf0] sm:$0xff]
    %v1157 = vld [vmem:[#allocation7 + $0xcf8] sm:$0xff]
    %v1158 = vld [vmem:[#allocation7 + $0xd00] sm:$0xff]
    %v1159 = vld [vmem:[#allocation7 + $0xd08] sm:$0xff]
    %v1160 = vld [vmem:[#allocation7 + $0xd10] sm:$0xff]
    %v1161 = vld [vmem:[#allocation7 + $0xd18] sm:$0xff]
    %v1162 = vld [vmem:[#allocation7 + $0xd20] sm:$0xff]
    %v1163 = vld [vmem:[#allocation7 + $0xd28] sm:$0xff]
    %v1164 = vld [vmem:[#allocation7 + $0xd30] sm:$0xff]
    %v1165 = vld [vmem:[#allocation7 + $0xd38] sm:$0xff]
    %v1166 = vld [vmem:[#allocation7 + $0xd40] sm:$0xff]
    %v1167 = vld [vmem:[#allocation7 + $0xd48] sm:$0xff]
    %v1168 = vld [vmem:[#allocation7 + $0xd50] sm:$0xff]
    %v1169 = vld [vmem:[#allocation7 + $0xd58] sm:$0xff]
    %v1170 = vld [vmem:[#allocation7 + $0xd60] sm:$0xff]
    %v1171 = vld [vmem:[#allocation7 + $0xd68] sm:$0xff]
    %v1172 = vld [vmem:[#allocation7 + $0xd70] sm:$0xff]
    %v1173 = vld [vmem:[#allocation7 + $0xd78] sm:$0xff]
    %v1174 = vld [vmem:[#allocation7 + $0xd80] sm:$0xff]
    %v1175 = vld [vmem:[#allocation7 + $0xd88] sm:$0xff]
    %v1176 = vld [vmem:[#allocation7 + $0xd90] sm:$0xff]
    %v1177 = vld [vmem:[#allocation7 + $0xd98] sm:$0xff]
    %v1178 = vld [vmem:[#allocation7 + $0xda0] sm:$0xff]
    %v1179 = vld [vmem:[#allocation7 + $0xda8] sm:$0xff]
    %v1180 = vld [vmem:[#allocation7 + $0xdb0] sm:$0xff]
    %v1181 = vld [vmem:[#allocation7 + $0xdb8] sm:$0xff]
    %v1182 = vld [vmem:[#allocation7 + $0xdc0] sm:$0xff]
    %v1183 = vld [vmem:[#allocation7 + $0xdc8] sm:$0xff]
    %v1184 = vld [vmem:[#allocation7 + $0xdd0] sm:$0xff]
    %v1185 = vld [vmem:[#allocation7 + $0xdd8] sm:$0xff]
    %v1186 = vld [vmem:[#allocation7 + $0xde0] sm:$0xff]
    %v1187 = vld [vmem:[#allocation7 + $0xde8] sm:$0xff]
    %v1188 = vld [vmem:[#allocation7 + $0xdf0] sm:$0xff]
    %v1189 = vld [vmem:[#allocation7 + $0xdf8] sm:$0xff]
    %v1190 = vld [vmem:[#allocation7 + $0xe00] sm:$0xff]
    %v1191 = vld [vmem:[#allocation7 + $0xe08] sm:$0xff]
    %v1192 = vld [vmem:[#allocation7 + $0xe10] sm:$0xff]
    %v1193 = vld [vmem:[#allocation7 + $0xe18] sm:$0xff]
    %v1194 = vld [vmem:[#allocation7 + $0xe20] sm:$0xff]
    %v1195 = vld [vmem:[#allocation7 + $0xe28] sm:$0xff]
    %v1196 = vld [vmem:[#allocation7 + $0xe30] sm:$0xff]
    %v1197 = vld [vmem:[#allocation7 + $0xe38] sm:$0xff]
    %v1198 = vld [vmem:[#allocation7 + $0xe40] sm:$0xff]
    %v1199 = vld [vmem:[#allocation7 + $0xe48] sm:$0xff]
    %v1200 = vld [vmem:[#allocation7 + $0xe50] sm:$0xff]
    %v1201 = vld [vmem:[#allocation7 + $0xe58] sm:$0xff]
    %v1202 = vld [vmem:[#allocation7 + $0xe60] sm:$0xff]
    %v1203 = vld [vmem:[#allocation7 + $0xe68] sm:$0xff]
    %v1204 = vld [vmem:[#allocation7 + $0xe70] sm:$0xff]
    %v1205 = vld [vmem:[#allocation7 + $0xe78] sm:$0xff]
    %v1206 = vld [vmem:[#allocation7 + $0xe80] sm:$0xff]
    %v1207 = vld [vmem:[#allocation7 + $0xe88] sm:$0xff]
    %v1208 = vld [vmem:[#allocation7 + $0xe90] sm:$0xff]
    %v1209 = vld [vmem:[#allocation7 + $0xe98] sm:$0xff]
    %v1210 = vld [vmem:[#allocation7 + $0xea0] sm:$0xff]
    %v1211 = vld [vmem:[#allocation7 + $0xea8] sm:$0xff]
    %v1212 = vld [vmem:[#allocation7 + $0xeb0] sm:$0xff]
    %v1213 = vld [vmem:[#allocation7 + $0xeb8] sm:$0xff]
    %v1214 = vld [vmem:[#allocation7 + $0xec0] sm:$0xff]
    %v1215 = vld [vmem:[#allocation7 + $0xec8] sm:$0xff]
    %v1216 = vld [vmem:[#allocation7 + $0xed0] sm:$0xff]
    %v1217 = vld [vmem:[#allocation7 + $0xed8] sm:$0xff]
    %v1218 = vld [vmem:[#allocation7 + $0xee0] sm:$0xff]
    %v1219 = vld [vmem:[#allocation7 + $0xee8] sm:$0xff]
    %v1220 = vld [vmem:[#allocation7 + $0xef0] sm:$0xff]
    %v1221 = vld [vmem:[#allocation7 + $0xef8] sm:$0xff]
    %v1222 = vld [vmem:[#allocation7 + $0xf00] sm:$0xff]
    %v1223 = vld [vmem:[#allocation7 + $0xf08] sm:$0xff]
    %v1224 = vld [vmem:[#allocation7 + $0xf10] sm:$0xff]
    %v1225 = vld [vmem:[#allocation7 + $0xf18] sm:$0xff]
    %v1226 = vld [vmem:[#allocation7 + $0xf20] sm:$0xff]
    %v1227 = vld [vmem:[#allocation7 + $0xf28] sm:$0xff]
    %v1228 = vld [vmem:[#allocation7 + $0xf30] sm:$0xff]
    %v1229 = vld [vmem:[#allocation7 + $0xf38] sm:$0xff]
    %v1230 = vld [vmem:[#allocation7 + $0xf40] sm:$0xff]
    %v1231 = vld [vmem:[#allocation7 + $0xf48] sm:$0xff]
    %v1232 = vld [vmem:[#allocation7 + $0xf50] sm:$0xff]
    %v1233 = vld [vmem:[#allocation7 + $0xf58] sm:$0xff]
    %v1234 = vld [vmem:[#allocation7 + $0xf60] sm:$0xff]
    %v1235 = vld [vmem:[#allocation7 + $0xf68] sm:$0xff]
    %v1236 = vld [vmem:[#allocation7 + $0xf70] sm:$0xff]
    %v1237 = vld [vmem:[#allocation7 + $0xf78] sm:$0xff]
    %v1238 = vld [vmem:[#allocation7 + $0xf80] sm:$0xff]
    %v1239 = vld [vmem:[#allocation7 + $0xf88] sm:$0xff]
    %v1240 = vld [vmem:[#allocation7 + $0xf90] sm:$0xff]
    %v1241 = vld [vmem:[#allocation7 + $0xf98] sm:$0xff]
    %v1242 = vld [vmem:[#allocation7 + $0xfa0] sm:$0xff]
    %v1243 = vld [vmem:[#allocation7 + $0xfa8] sm:$0xff]
    %v1244 = vld [vmem:[#allocation7 + $0xfb0] sm:$0xff]
    %v1245 = vld [vmem:[#allocation7 + $0xfb8] sm:$0xff]
    %v1246 = vld [vmem:[#allocation7 + $0xfc0] sm:$0xff]
    %v1247 = vld [vmem:[#allocation7 + $0xfc8] sm:$0xff]
    %v1248 = vld [vmem:[#allocation7 + $0xfd0] sm:$0xff]
    %v1249 = vld [vmem:[#allocation7 + $0xfd8] sm:$0xff]
    %v1250 = vld [vmem:[#allocation7 + $0xfe0] sm:$0xff]
    %v1251 = vld [vmem:[#allocation7 + $0xfe8] sm:$0xff]
    %v1252 = vld [vmem:[#allocation7 + $0xff0] sm:$0xff]
    %v1253 = vld [vmem:[#allocation7 + $0xff8] sm:$0xff]
    %v1254 = vld [vmem:[#allocation8] sm:$0xff]
    %v1256 = vlaneseq
    %v1257 = vshrl.u32 %v1256, 7
    %v1258 = vsub.s32 0, %v1257
    %v1259 = vrot.slane %v1254, %v1258
    %v1260 = vlaneseq
    %v1261 = vshrl.u32 %v1260, 7
    %v1262 = vsub.s32 1, %v1261
    %v1263 = vrot.slane %v1254, %v1262
    %v1264 = vlaneseq
    %v1265 = vshrl.u32 %v1264, 7
    %v1266 = vsub.s32 2, %v1265
    %v1267 = vrot.slane %v1254, %v1266
    %v1268 = vlaneseq
    %v1269 = vshrl.u32 %v1268, 7
    %v1270 = vsub.s32 3, %v1269
    %v1271 = vrot.slane %v1254, %v1270
    %v1272 = vlaneseq
    %v1273 = vshrl.u32 %v1272, 7
    %v1274 = vsub.s32 4, %v1273
    %v1275 = vrot.slane %v1254, %v1274
    %v1276 = vlaneseq
    %v1277 = vshrl.u32 %v1276, 7
    %v1278 = vsub.s32 5, %v1277
    %v1279 = vrot.slane %v1254, %v1278
    %v1280 = vlaneseq
    %v1281 = vshrl.u32 %v1280, 7
    %v1282 = vsub.s32 6, %v1281
    %v1283 = vrot.slane %v1254, %v1282
    %v1284 = vlaneseq
    %v1285 = vshrl.u32 %v1284, 7
    %v1286 = vsub.s32 7, %v1285
    %v1287 = vrot.slane %v1254, %v1286
    %v1808 = vunpack.c.l.b16 %v742
    %v1809 = vunpack.c.h.b16 %v742
    %v1810 = vunpack.c.l.b16 %v743
    %v1811 = vunpack.c.h.b16 %v743
    %v1812 = vunpack.c.l.b16 %v744
    %v1813 = vunpack.c.h.b16 %v744
    %v1814 = vunpack.c.l.b16 %v745
    %v1815 = vunpack.c.h.b16 %v745
    %v1816 = vunpack.c.l.b16 %v746
    %v1817 = vunpack.c.h.b16 %v746
    %v1818 = vunpack.c.l.b16 %v747
    %v1819 = vunpack.c.h.b16 %v747
    %v1820 = vunpack.c.l.b16 %v748
    %v1821 = vunpack.c.h.b16 %v748
    %v1822 = vunpack.c.l.b16 %v749
    %v1823 = vunpack.c.h.b16 %v749
    %v1824 = vunpack.c.l.b16 %v750
    %v1825 = vunpack.c.h.b16 %v750
    %v1826 = vunpack.c.l.b16 %v751
    %v1827 = vunpack.c.h.b16 %v751
    %v1828 = vunpack.c.l.b16 %v752
    %v1829 = vunpack.c.h.b16 %v752
    %v1830 = vunpack.c.l.b16 %v753
    %v1831 = vunpack.c.h.b16 %v753
    %v1832 = vunpack.c.l.b16 %v754
    %v1833 = vunpack.c.h.b16 %v754
    %v1834 = vunpack.c.l.b16 %v755
    %v1835 = vunpack.c.h.b16 %v755
    %v1836 = vunpack.c.l.b16 %v756
    %v1837 = vunpack.c.h.b16 %v756
    %v1838 = vunpack.c.l.b16 %v757
    %v1839 = vunpack.c.h.b16 %v757
    %v1840 = vunpack.c.l.b16 %v758
    %v1841 = vunpack.c.h.b16 %v758
    %v1842 = vunpack.c.l.b16 %v759
    %v1843 = vunpack.c.h.b16 %v759
    %v1844 = vunpack.c.l.b16 %v760
    %v1845 = vunpack.c.h.b16 %v760
    %v1846 = vunpack.c.l.b16 %v761
    %v1847 = vunpack.c.h.b16 %v761
    %v1848 = vunpack.c.l.b16 %v762
    %v1849 = vunpack.c.h.b16 %v762
    %v1850 = vunpack.c.l.b16 %v763
    %v1851 = vunpack.c.h.b16 %v763
    %v1852 = vunpack.c.l.b16 %v764
    %v1853 = vunpack.c.h.b16 %v764
    %v1854 = vunpack.c.l.b16 %v765
    %v1855 = vunpack.c.h.b16 %v765
    %v1856 = vunpack.c.l.b16 %v766
    %v1857 = vunpack.c.h.b16 %v766
    %v1858 = vunpack.c.l.b16 %v767
    %v1859 = vunpack.c.h.b16 %v767
    %v1860 = vunpack.c.l.b16 %v768
    %v1861 = vunpack.c.h.b16 %v768
    %v1862 = vunpack.c.l.b16 %v769
    %v1863 = vunpack.c.h.b16 %v769
    %v1864 = vunpack.c.l.b16 %v770
    %v1865 = vunpack.c.h.b16 %v770
    %v1866 = vunpack.c.l.b16 %v771
    %v1867 = vunpack.c.h.b16 %v771
    %v1868 = vunpack.c.l.b16 %v772
    %v1869 = vunpack.c.h.b16 %v772
    %v1870 = vunpack.c.l.b16 %v773
    %v1871 = vunpack.c.h.b16 %v773
    %v1872 = vunpack.c.l.b16 %v774
    %v1873 = vunpack.c.h.b16 %v774
    %v1874 = vunpack.c.l.b16 %v775
    %v1875 = vunpack.c.h.b16 %v775
    %v1876 = vunpack.c.l.b16 %v776
    %v1877 = vunpack.c.h.b16 %v776
    %v1878 = vunpack.c.l.b16 %v777
    %v1879 = vunpack.c.h.b16 %v777
    %v1880 = vunpack.c.l.b16 %v778
    %v1881 = vunpack.c.h.b16 %v778
    %v1882 = vunpack.c.l.b16 %v779
    %v1883 = vunpack.c.h.b16 %v779
    %v1884 = vunpack.c.l.b16 %v780
    %v1885 = vunpack.c.h.b16 %v780
    %v1886 = vunpack.c.l.b16 %v781
    %v1887 = vunpack.c.h.b16 %v781
    %v1888 = vunpack.c.l.b16 %v782
    %v1889 = vunpack.c.h.b16 %v782
    %v1890 = vunpack.c.l.b16 %v783
    %v1891 = vunpack.c.h.b16 %v783
    %v1892 = vunpack.c.l.b16 %v784
    %v1893 = vunpack.c.h.b16 %v784
    %v1894 = vunpack.c.l.b16 %v785
    %v1895 = vunpack.c.h.b16 %v785
    %v1896 = vunpack.c.l.b16 %v786
    %v1897 = vunpack.c.h.b16 %v786
    %v1898 = vunpack.c.l.b16 %v787
    %v1899 = vunpack.c.h.b16 %v787
    %v1900 = vunpack.c.l.b16 %v788
    %v1901 = vunpack.c.h.b16 %v788
    %v1902 = vunpack.c.l.b16 %v789
    %v1903 = vunpack.c.h.b16 %v789
    %v1904 = vunpack.c.l.b16 %v790
    %v1905 = vunpack.c.h.b16 %v790
    %v1906 = vunpack.c.l.b16 %v791
    %v1907 = vunpack.c.h.b16 %v791
    %v1908 = vunpack.c.l.b16 %v792
    %v1909 = vunpack.c.h.b16 %v792
    %v1910 = vunpack.c.l.b16 %v793
    %v1911 = vunpack.c.h.b16 %v793
    %v1912 = vunpack.c.l.b16 %v794
    %v1913 = vunpack.c.h.b16 %v794
    %v1914 = vunpack.c.l.b16 %v795
    %v1915 = vunpack.c.h.b16 %v795
    %v1916 = vunpack.c.l.b16 %v796
    %v1917 = vunpack.c.h.b16 %v796
    %v1918 = vunpack.c.l.b16 %v797
    %v1919 = vunpack.c.h.b16 %v797
    %v1920 = vunpack.c.l.b16 %v798
    %v1921 = vunpack.c.h.b16 %v798
    %v1922 = vunpack.c.l.b16 %v799
    %v1923 = vunpack.c.h.b16 %v799
    %v1924 = vunpack.c.l.b16 %v800
    %v1925 = vunpack.c.h.b16 %v800
    %v1926 = vunpack.c.l.b16 %v801
    %v1927 = vunpack.c.h.b16 %v801
    %v1928 = vunpack.c.l.b16 %v802
    %v1929 = vunpack.c.h.b16 %v802
    %v1930 = vunpack.c.l.b16 %v803
    %v1931 = vunpack.c.h.b16 %v803
    %v1932 = vunpack.c.l.b16 %v804
    %v1933 = vunpack.c.h.b16 %v804
    %v1934 = vunpack.c.l.b16 %v805
    %v1935 = vunpack.c.h.b16 %v805
    %v1936 = vunpack.c.l.b16 %v806
    %v1937 = vunpack.c.h.b16 %v806
    %v1938 = vunpack.c.l.b16 %v807
    %v1939 = vunpack.c.h.b16 %v807
    %v1940 = vunpack.c.l.b16 %v808
    %v1941 = vunpack.c.h.b16 %v808
    %v1942 = vunpack.c.l.b16 %v809
    %v1943 = vunpack.c.h.b16 %v809
    %v1944 = vunpack.c.l.b16 %v810
    %v1945 = vunpack.c.h.b16 %v810
    %v1946 = vunpack.c.l.b16 %v811
    %v1947 = vunpack.c.h.b16 %v811
    %v1948 = vunpack.c.l.b16 %v812
    %v1949 = vunpack.c.h.b16 %v812
    %v1950 = vunpack.c.l.b16 %v813
    %v1951 = vunpack.c.h.b16 %v813
    %v1952 = vunpack.c.l.b16 %v814
    %v1953 = vunpack.c.h.b16 %v814
    %v1954 = vunpack.c.l.b16 %v815
    %v1955 = vunpack.c.h.b16 %v815
    %v1956 = vunpack.c.l.b16 %v816
    %v1957 = vunpack.c.h.b16 %v816
    %v1958 = vunpack.c.l.b16 %v817
    %v1959 = vunpack.c.h.b16 %v817
    %v1960 = vunpack.c.l.b16 %v818
    %v1961 = vunpack.c.h.b16 %v818
    %v1962 = vunpack.c.l.b16 %v819
    %v1963 = vunpack.c.h.b16 %v819
    %v1964 = vunpack.c.l.b16 %v820
    %v1965 = vunpack.c.h.b16 %v820
    %v1966 = vunpack.c.l.b16 %v821
    %v1967 = vunpack.c.h.b16 %v821
    %v1968 = vunpack.c.l.b16 %v822
    %v1969 = vunpack.c.h.b16 %v822
    %v1970 = vunpack.c.l.b16 %v823
    %v1971 = vunpack.c.h.b16 %v823
    %v1972 = vunpack.c.l.b16 %v824
    %v1973 = vunpack.c.h.b16 %v824
    %v1974 = vunpack.c.l.b16 %v825
    %v1975 = vunpack.c.h.b16 %v825
    %v1976 = vunpack.c.l.b16 %v826
    %v1977 = vunpack.c.h.b16 %v826
    %v1978 = vunpack.c.l.b16 %v827
    %v1979 = vunpack.c.h.b16 %v827
    %v1980 = vunpack.c.l.b16 %v828
    %v1981 = vunpack.c.h.b16 %v828
    %v1982 = vunpack.c.l.b16 %v829
    %v1983 = vunpack.c.h.b16 %v829
    %v1984 = vunpack.c.l.b16 %v830
    %v1985 = vunpack.c.h.b16 %v830
    %v1986 = vunpack.c.l.b16 %v831
    %v1987 = vunpack.c.h.b16 %v831
    %v1988 = vunpack.c.l.b16 %v832
    %v1989 = vunpack.c.h.b16 %v832
    %v1990 = vunpack.c.l.b16 %v833
    %v1991 = vunpack.c.h.b16 %v833
    %v1992 = vunpack.c.l.b16 %v834
    %v1993 = vunpack.c.h.b16 %v834
    %v1994 = vunpack.c.l.b16 %v835
    %v1995 = vunpack.c.h.b16 %v835
    %v1996 = vunpack.c.l.b16 %v836
    %v1997 = vunpack.c.h.b16 %v836
    %v1998 = vunpack.c.l.b16 %v837
    %v1999 = vunpack.c.h.b16 %v837
    %v2000 = vunpack.c.l.b16 %v838
    %v2001 = vunpack.c.h.b16 %v838
    %v2002 = vunpack.c.l.b16 %v839
    %v2003 = vunpack.c.h.b16 %v839
    %v2004 = vunpack.c.l.b16 %v840
    %v2005 = vunpack.c.h.b16 %v840
    %v2006 = vunpack.c.l.b16 %v841
    %v2007 = vunpack.c.h.b16 %v841
    %v2008 = vunpack.c.l.b16 %v842
    %v2009 = vunpack.c.h.b16 %v842
    %v2010 = vunpack.c.l.b16 %v843
    %v2011 = vunpack.c.h.b16 %v843
    %v2012 = vunpack.c.l.b16 %v844
    %v2013 = vunpack.c.h.b16 %v844
    %v2014 = vunpack.c.l.b16 %v845
    %v2015 = vunpack.c.h.b16 %v845
    %v2016 = vunpack.c.l.b16 %v846
    %v2017 = vunpack.c.h.b16 %v846
    %v2018 = vunpack.c.l.b16 %v847
    %v2019 = vunpack.c.h.b16 %v847
    %v2020 = vunpack.c.l.b16 %v848
    %v2021 = vunpack.c.h.b16 %v848
    %v2022 = vunpack.c.l.b16 %v849
    %v2023 = vunpack.c.h.b16 %v849
    %v2024 = vunpack.c.l.b16 %v850
    %v2025 = vunpack.c.h.b16 %v850
    %v2026 = vunpack.c.l.b16 %v851
    %v2027 = vunpack.c.h.b16 %v851
    %v2028 = vunpack.c.l.b16 %v852
    %v2029 = vunpack.c.h.b16 %v852
    %v2030 = vunpack.c.l.b16 %v853
    %v2031 = vunpack.c.h.b16 %v853
    %v2032 = vunpack.c.l.b16 %v854
    %v2033 = vunpack.c.h.b16 %v854
    %v2034 = vunpack.c.l.b16 %v855
    %v2035 = vunpack.c.h.b16 %v855
    %v2036 = vunpack.c.l.b16 %v856
    %v2037 = vunpack.c.h.b16 %v856
    %v2038 = vunpack.c.l.b16 %v857
    %v2039 = vunpack.c.h.b16 %v857
    %v2040 = vunpack.c.l.b16 %v858
    %v2041 = vunpack.c.h.b16 %v858
    %v2042 = vunpack.c.l.b16 %v859
    %v2043 = vunpack.c.h.b16 %v859
    %v2044 = vunpack.c.l.b16 %v860
    %v2045 = vunpack.c.h.b16 %v860
    %v2046 = vunpack.c.l.b16 %v861
    %v2047 = vunpack.c.h.b16 %v861
    %v2048 = vunpack.c.l.b16 %v862
    %v2049 = vunpack.c.h.b16 %v862
    %v2050 = vunpack.c.l.b16 %v863
    %v2051 = vunpack.c.h.b16 %v863
    %v2052 = vunpack.c.l.b16 %v864
    %v2053 = vunpack.c.h.b16 %v864
    %v2054 = vunpack.c.l.b16 %v865
    %v2055 = vunpack.c.h.b16 %v865
    %v2056 = vunpack.c.l.b16 %v866
    %v2057 = vunpack.c.h.b16 %v866
    %v2058 = vunpack.c.l.b16 %v867
    %v2059 = vunpack.c.h.b16 %v867
    %v2060 = vunpack.c.l.b16 %v868
    %v2061 = vunpack.c.h.b16 %v868
    %v2062 = vunpack.c.l.b16 %v869
    %v2063 = vunpack.c.h.b16 %v869
    %v2064 = vunpack.c.l.b16 %v870
    %v2065 = vunpack.c.h.b16 %v870
    %v2066 = vunpack.c.l.b16 %v871
    %v2067 = vunpack.c.h.b16 %v871
    %v2068 = vunpack.c.l.b16 %v872
    %v2069 = vunpack.c.h.b16 %v872
    %v2070 = vunpack.c.l.b16 %v873
    %v2071 = vunpack.c.h.b16 %v873
    %v2072 = vunpack.c.l.b16 %v874
    %v2073 = vunpack.c.h.b16 %v874
    %v2074 = vunpack.c.l.b16 %v875
    %v2075 = vunpack.c.h.b16 %v875
    %v2076 = vunpack.c.l.b16 %v876
    %v2077 = vunpack.c.h.b16 %v876
    %v2078 = vunpack.c.l.b16 %v877
    %v2079 = vunpack.c.h.b16 %v877
    %v2080 = vunpack.c.l.b16 %v878
    %v2081 = vunpack.c.h.b16 %v878
    %v2082 = vunpack.c.l.b16 %v879
    %v2083 = vunpack.c.h.b16 %v879
    %v2084 = vunpack.c.l.b16 %v880
    %v2085 = vunpack.c.h.b16 %v880
    %v2086 = vunpack.c.l.b16 %v881
    %v2087 = vunpack.c.h.b16 %v881
    %v2088 = vunpack.c.l.b16 %v882
    %v2089 = vunpack.c.h.b16 %v882
    %v2090 = vunpack.c.l.b16 %v883
    %v2091 = vunpack.c.h.b16 %v883
    %v2092 = vunpack.c.l.b16 %v884
    %v2093 = vunpack.c.h.b16 %v884
    %v2094 = vunpack.c.l.b16 %v885
    %v2095 = vunpack.c.h.b16 %v885
    %v2096 = vunpack.c.l.b16 %v886
    %v2097 = vunpack.c.h.b16 %v886
    %v2098 = vunpack.c.l.b16 %v887
    %v2099 = vunpack.c.h.b16 %v887
    %v2100 = vunpack.c.l.b16 %v888
    %v2101 = vunpack.c.h.b16 %v888
    %v2102 = vunpack.c.l.b16 %v889
    %v2103 = vunpack.c.h.b16 %v889
    %v2104 = vunpack.c.l.b16 %v890
    %v2105 = vunpack.c.h.b16 %v890
    %v2106 = vunpack.c.l.b16 %v891
    %v2107 = vunpack.c.h.b16 %v891
    %v2108 = vunpack.c.l.b16 %v892
    %v2109 = vunpack.c.h.b16 %v892
    %v2110 = vunpack.c.l.b16 %v893
    %v2111 = vunpack.c.h.b16 %v893
    %v2112 = vunpack.c.l.b16 %v894
    %v2113 = vunpack.c.h.b16 %v894
    %v2114 = vunpack.c.l.b16 %v895
    %v2115 = vunpack.c.h.b16 %v895
    %v2116 = vunpack.c.l.b16 %v896
    %v2117 = vunpack.c.h.b16 %v896
    %v2118 = vunpack.c.l.b16 %v897
    %v2119 = vunpack.c.h.b16 %v897
    %v2120 = vunpack.c.l.b16 %v898
    %v2121 = vunpack.c.h.b16 %v898
    %v2122 = vunpack.c.l.b16 %v899
    %v2123 = vunpack.c.h.b16 %v899
    %v2124 = vunpack.c.l.b16 %v900
    %v2125 = vunpack.c.h.b16 %v900
    %v2126 = vunpack.c.l.b16 %v901
    %v2127 = vunpack.c.h.b16 %v901
    %v2128 = vunpack.c.l.b16 %v902
    %v2129 = vunpack.c.h.b16 %v902
    %v2130 = vunpack.c.l.b16 %v903
    %v2131 = vunpack.c.h.b16 %v903
    %v2132 = vunpack.c.l.b16 %v904
    %v2133 = vunpack.c.h.b16 %v904
    %v2134 = vunpack.c.l.b16 %v905
    %v2135 = vunpack.c.h.b16 %v905
    %v2136 = vunpack.c.l.b16 %v906
    %v2137 = vunpack.c.h.b16 %v906
    %v2138 = vunpack.c.l.b16 %v907
    %v2139 = vunpack.c.h.b16 %v907
    %v2140 = vunpack.c.l.b16 %v908
    %v2141 = vunpack.c.h.b16 %v908
    %v2142 = vunpack.c.l.b16 %v909
    %v2143 = vunpack.c.h.b16 %v909
    %v2144 = vunpack.c.l.b16 %v910
    %v2145 = vunpack.c.h.b16 %v910
    %v2146 = vunpack.c.l.b16 %v911
    %v2147 = vunpack.c.h.b16 %v911
    %v2148 = vunpack.c.l.b16 %v912
    %v2149 = vunpack.c.h.b16 %v912
    %v2150 = vunpack.c.l.b16 %v913
    %v2151 = vunpack.c.h.b16 %v913
    %v2152 = vunpack.c.l.b16 %v914
    %v2153 = vunpack.c.h.b16 %v914
    %v2154 = vunpack.c.l.b16 %v915
    %v2155 = vunpack.c.h.b16 %v915
    %v2156 = vunpack.c.l.b16 %v916
    %v2157 = vunpack.c.h.b16 %v916
    %v2158 = vunpack.c.l.b16 %v917
    %v2159 = vunpack.c.h.b16 %v917
    %v2160 = vunpack.c.l.b16 %v918
    %v2161 = vunpack.c.h.b16 %v918
    %v2162 = vunpack.c.l.b16 %v919
    %v2163 = vunpack.c.h.b16 %v919
    %v2164 = vunpack.c.l.b16 %v920
    %v2165 = vunpack.c.h.b16 %v920
    %v2166 = vunpack.c.l.b16 %v921
    %v2167 = vunpack.c.h.b16 %v921
    %v2168 = vunpack.c.l.b16 %v922
    %v2169 = vunpack.c.h.b16 %v922
    %v2170 = vunpack.c.l.b16 %v923
    %v2171 = vunpack.c.h.b16 %v923
    %v2172 = vunpack.c.l.b16 %v924
    %v2173 = vunpack.c.h.b16 %v924
    %v2174 = vunpack.c.l.b16 %v925
    %v2175 = vunpack.c.h.b16 %v925
    %v2176 = vunpack.c.l.b16 %v926
    %v2177 = vunpack.c.h.b16 %v926
    %v2178 = vunpack.c.l.b16 %v927
    %v2179 = vunpack.c.h.b16 %v927
    %v2180 = vunpack.c.l.b16 %v928
    %v2181 = vunpack.c.h.b16 %v928
    %v2182 = vunpack.c.l.b16 %v929
    %v2183 = vunpack.c.h.b16 %v929
    %v2184 = vunpack.c.l.b16 %v930
    %v2185 = vunpack.c.h.b16 %v930
    %v2186 = vunpack.c.l.b16 %v931
    %v2187 = vunpack.c.h.b16 %v931
    %v2188 = vunpack.c.l.b16 %v932
    %v2189 = vunpack.c.h.b16 %v932
    %v2190 = vunpack.c.l.b16 %v933
    %v2191 = vunpack.c.h.b16 %v933
    %v2192 = vunpack.c.l.b16 %v934
    %v2193 = vunpack.c.h.b16 %v934
    %v2194 = vunpack.c.l.b16 %v935
    %v2195 = vunpack.c.h.b16 %v935
    %v2196 = vunpack.c.l.b16 %v936
    %v2197 = vunpack.c.h.b16 %v936
    %v2198 = vunpack.c.l.b16 %v937
    %v2199 = vunpack.c.h.b16 %v937
    %v2200 = vunpack.c.l.b16 %v938
    %v2201 = vunpack.c.h.b16 %v938
    %v2202 = vunpack.c.l.b16 %v939
    %v2203 = vunpack.c.h.b16 %v939
    %v2204 = vunpack.c.l.b16 %v940
    %v2205 = vunpack.c.h.b16 %v940
    %v2206 = vunpack.c.l.b16 %v941
    %v2207 = vunpack.c.h.b16 %v941
    %v2208 = vunpack.c.l.b16 %v942
    %v2209 = vunpack.c.h.b16 %v942
    %v2210 = vunpack.c.l.b16 %v943
    %v2211 = vunpack.c.h.b16 %v943
    %v2212 = vunpack.c.l.b16 %v944
    %v2213 = vunpack.c.h.b16 %v944
    %v2214 = vunpack.c.l.b16 %v945
    %v2215 = vunpack.c.h.b16 %v945
    %v2216 = vunpack.c.l.b16 %v946
    %v2217 = vunpack.c.h.b16 %v946
    %v2218 = vunpack.c.l.b16 %v947
    %v2219 = vunpack.c.h.b16 %v947
    %v2220 = vunpack.c.l.b16 %v948
    %v2221 = vunpack.c.h.b16 %v948
    %v2222 = vunpack.c.l.b16 %v949
    %v2223 = vunpack.c.h.b16 %v949
    %v2224 = vunpack.c.l.b16 %v950
    %v2225 = vunpack.c.h.b16 %v950
    %v2226 = vunpack.c.l.b16 %v951
    %v2227 = vunpack.c.h.b16 %v951
    %v2228 = vunpack.c.l.b16 %v952
    %v2229 = vunpack.c.h.b16 %v952
    %v2230 = vunpack.c.l.b16 %v953
    %v2231 = vunpack.c.h.b16 %v953
    %v2232 = vunpack.c.l.b16 %v954
    %v2233 = vunpack.c.h.b16 %v954
    %v2234 = vunpack.c.l.b16 %v955
    %v2235 = vunpack.c.h.b16 %v955
    %v2236 = vunpack.c.l.b16 %v956
    %v2237 = vunpack.c.h.b16 %v956
    %v2238 = vunpack.c.l.b16 %v957
    %v2239 = vunpack.c.h.b16 %v957
    %v2240 = vunpack.c.l.b16 %v958
    %v2241 = vunpack.c.h.b16 %v958
    %v2242 = vunpack.c.l.b16 %v959
    %v2243 = vunpack.c.h.b16 %v959
    %v2244 = vunpack.c.l.b16 %v960
    %v2245 = vunpack.c.h.b16 %v960
    %v2246 = vunpack.c.l.b16 %v961
    %v2247 = vunpack.c.h.b16 %v961
    %v2248 = vunpack.c.l.b16 %v962
    %v2249 = vunpack.c.h.b16 %v962
    %v2250 = vunpack.c.l.b16 %v963
    %v2251 = vunpack.c.h.b16 %v963
    %v2252 = vunpack.c.l.b16 %v964
    %v2253 = vunpack.c.h.b16 %v964
    %v2254 = vunpack.c.l.b16 %v965
    %v2255 = vunpack.c.h.b16 %v965
    %v2256 = vunpack.c.l.b16 %v966
    %v2257 = vunpack.c.h.b16 %v966
    %v2258 = vunpack.c.l.b16 %v967
    %v2259 = vunpack.c.h.b16 %v967
    %v2260 = vunpack.c.l.b16 %v968
    %v2261 = vunpack.c.h.b16 %v968
    %v2262 = vunpack.c.l.b16 %v969
    %v2263 = vunpack.c.h.b16 %v969
    %v2264 = vunpack.c.l.b16 %v970
    %v2265 = vunpack.c.h.b16 %v970
    %v2266 = vunpack.c.l.b16 %v971
    %v2267 = vunpack.c.h.b16 %v971
    %v2268 = vunpack.c.l.b16 %v972
    %v2269 = vunpack.c.h.b16 %v972
    %v2270 = vunpack.c.l.b16 %v973
    %v2271 = vunpack.c.h.b16 %v973
    %v2272 = vunpack.c.l.b16 %v974
    %v2273 = vunpack.c.h.b16 %v974
    %v2274 = vunpack.c.l.b16 %v975
    %v2275 = vunpack.c.h.b16 %v975
    %v2276 = vunpack.c.l.b16 %v976
    %v2277 = vunpack.c.h.b16 %v976
    %v2278 = vunpack.c.l.b16 %v977
    %v2279 = vunpack.c.h.b16 %v977
    %v2280 = vunpack.c.l.b16 %v978
    %v2281 = vunpack.c.h.b16 %v978
    %v2282 = vunpack.c.l.b16 %v979
    %v2283 = vunpack.c.h.b16 %v979
    %v2284 = vunpack.c.l.b16 %v980
    %v2285 = vunpack.c.h.b16 %v980
    %v2286 = vunpack.c.l.b16 %v981
    %v2287 = vunpack.c.h.b16 %v981
    %v2288 = vunpack.c.l.b16 %v982
    %v2289 = vunpack.c.h.b16 %v982
    %v2290 = vunpack.c.l.b16 %v983
    %v2291 = vunpack.c.h.b16 %v983
    %v2292 = vunpack.c.l.b16 %v984
    %v2293 = vunpack.c.h.b16 %v984
    %v2294 = vunpack.c.l.b16 %v985
    %v2295 = vunpack.c.h.b16 %v985
    %v2296 = vunpack.c.l.b16 %v986
    %v2297 = vunpack.c.h.b16 %v986
    %v2298 = vunpack.c.l.b16 %v987
    %v2299 = vunpack.c.h.b16 %v987
    %v2300 = vunpack.c.l.b16 %v988
    %v2301 = vunpack.c.h.b16 %v988
    %v2302 = vunpack.c.l.b16 %v989
    %v2303 = vunpack.c.h.b16 %v989
    %v2304 = vunpack.c.l.b16 %v990
    %v2305 = vunpack.c.h.b16 %v990
    %v2306 = vunpack.c.l.b16 %v991
    %v2307 = vunpack.c.h.b16 %v991
    %v2308 = vunpack.c.l.b16 %v992
    %v2309 = vunpack.c.h.b16 %v992
    %v2310 = vunpack.c.l.b16 %v993
    %v2311 = vunpack.c.h.b16 %v993
    %v2312 = vunpack.c.l.b16 %v994
    %v2313 = vunpack.c.h.b16 %v994
    %v2314 = vunpack.c.l.b16 %v995
    %v2315 = vunpack.c.h.b16 %v995
    %v2316 = vunpack.c.l.b16 %v996
    %v2317 = vunpack.c.h.b16 %v996
    %v2318 = vunpack.c.l.b16 %v997
    %v2319 = vunpack.c.h.b16 %v997
    %v2320 = vunpack.c.l.b16 %v998
    %v2321 = vunpack.c.h.b16 %v998
    %v2322 = vunpack.c.l.b16 %v999
    %v2323 = vunpack.c.h.b16 %v999
    %v2324 = vunpack.c.l.b16 %v1000
    %v2325 = vunpack.c.h.b16 %v1000
    %v2326 = vunpack.c.l.b16 %v1001
    %v2327 = vunpack.c.h.b16 %v1001
    %v2328 = vunpack.c.l.b16 %v1002
    %v2329 = vunpack.c.h.b16 %v1002
    %v2330 = vunpack.c.l.b16 %v1003
    %v2331 = vunpack.c.h.b16 %v1003
    %v2332 = vunpack.c.l.b16 %v1004
    %v2333 = vunpack.c.h.b16 %v1004
    %v2334 = vunpack.c.l.b16 %v1005
    %v2335 = vunpack.c.h.b16 %v1005
    %v2336 = vunpack.c.l.b16 %v1006
    %v2337 = vunpack.c.h.b16 %v1006
    %v2338 = vunpack.c.l.b16 %v1007
    %v2339 = vunpack.c.h.b16 %v1007
    %v2340 = vunpack.c.l.b16 %v1008
    %v2341 = vunpack.c.h.b16 %v1008
    %v2342 = vunpack.c.l.b16 %v1009
    %v2343 = vunpack.c.h.b16 %v1009
    %v2344 = vunpack.c.l.b16 %v1010
    %v2345 = vunpack.c.h.b16 %v1010
    %v2346 = vunpack.c.l.b16 %v1011
    %v2347 = vunpack.c.h.b16 %v1011
    %v2348 = vunpack.c.l.b16 %v1012
    %v2349 = vunpack.c.h.b16 %v1012
    %v2350 = vunpack.c.l.b16 %v1013
    %v2351 = vunpack.c.h.b16 %v1013
    %v2352 = vunpack.c.l.b16 %v1014
    %v2353 = vunpack.c.h.b16 %v1014
    %v2354 = vunpack.c.l.b16 %v1015
    %v2355 = vunpack.c.h.b16 %v1015
    %v2356 = vunpack.c.l.b16 %v1016
    %v2357 = vunpack.c.h.b16 %v1016
    %v2358 = vunpack.c.l.b16 %v1017
    %v2359 = vunpack.c.h.b16 %v1017
    %v2360 = vunpack.c.l.b16 %v1018
    %v2361 = vunpack.c.h.b16 %v1018
    %v2362 = vunpack.c.l.b16 %v1019
    %v2363 = vunpack.c.h.b16 %v1019
    %v2364 = vunpack.c.l.b16 %v1020
    %v2365 = vunpack.c.h.b16 %v1020
    %v2366 = vunpack.c.l.b16 %v1021
    %v2367 = vunpack.c.h.b16 %v1021
    %v2368 = vunpack.c.l.b16 %v1022
    %v2369 = vunpack.c.h.b16 %v1022
    %v2370 = vunpack.c.l.b16 %v1023
    %v2371 = vunpack.c.h.b16 %v1023
    %v2372 = vunpack.c.l.b16 %v1024
    %v2373 = vunpack.c.h.b16 %v1024
    %v2374 = vunpack.c.l.b16 %v1025
    %v2375 = vunpack.c.h.b16 %v1025
    %v2376 = vunpack.c.l.b16 %v1026
    %v2377 = vunpack.c.h.b16 %v1026
    %v2378 = vunpack.c.l.b16 %v1027
    %v2379 = vunpack.c.h.b16 %v1027
    %v2380 = vunpack.c.l.b16 %v1028
    %v2381 = vunpack.c.h.b16 %v1028
    %v2382 = vunpack.c.l.b16 %v1029
    %v2383 = vunpack.c.h.b16 %v1029
    %v2384 = vunpack.c.l.b16 %v1030
    %v2385 = vunpack.c.h.b16 %v1030
    %v2386 = vunpack.c.l.b16 %v1031
    %v2387 = vunpack.c.h.b16 %v1031
    %v2388 = vunpack.c.l.b16 %v1032
    %v2389 = vunpack.c.h.b16 %v1032
    %v2390 = vunpack.c.l.b16 %v1033
    %v2391 = vunpack.c.h.b16 %v1033
    %v2392 = vunpack.c.l.b16 %v1034
    %v2393 = vunpack.c.h.b16 %v1034
    %v2394 = vunpack.c.l.b16 %v1035
    %v2395 = vunpack.c.h.b16 %v1035
    %v2396 = vunpack.c.l.b16 %v1036
    %v2397 = vunpack.c.h.b16 %v1036
    %v2398 = vunpack.c.l.b16 %v1037
    %v2399 = vunpack.c.h.b16 %v1037
    %v2400 = vunpack.c.l.b16 %v1038
    %v2401 = vunpack.c.h.b16 %v1038
    %v2402 = vunpack.c.l.b16 %v1039
    %v2403 = vunpack.c.h.b16 %v1039
    %v2404 = vunpack.c.l.b16 %v1040
    %v2405 = vunpack.c.h.b16 %v1040
    %v2406 = vunpack.c.l.b16 %v1041
    %v2407 = vunpack.c.h.b16 %v1041
    %v2408 = vunpack.c.l.b16 %v1042
    %v2409 = vunpack.c.h.b16 %v1042
    %v2410 = vunpack.c.l.b16 %v1043
    %v2411 = vunpack.c.h.b16 %v1043
    %v2412 = vunpack.c.l.b16 %v1044
    %v2413 = vunpack.c.h.b16 %v1044
    %v2414 = vunpack.c.l.b16 %v1045
    %v2415 = vunpack.c.h.b16 %v1045
    %v2416 = vunpack.c.l.b16 %v1046
    %v2417 = vunpack.c.h.b16 %v1046
    %v2418 = vunpack.c.l.b16 %v1047
    %v2419 = vunpack.c.h.b16 %v1047
    %v2420 = vunpack.c.l.b16 %v1048
    %v2421 = vunpack.c.h.b16 %v1048
    %v2422 = vunpack.c.l.b16 %v1049
    %v2423 = vunpack.c.h.b16 %v1049
    %v2424 = vunpack.c.l.b16 %v1050
    %v2425 = vunpack.c.h.b16 %v1050
    %v2426 = vunpack.c.l.b16 %v1051
    %v2427 = vunpack.c.h.b16 %v1051
    %v2428 = vunpack.c.l.b16 %v1052
    %v2429 = vunpack.c.h.b16 %v1052
    %v2430 = vunpack.c.l.b16 %v1053
    %v2431 = vunpack.c.h.b16 %v1053
    %v2432 = vunpack.c.l.b16 %v1054
    %v2433 = vunpack.c.h.b16 %v1054
    %v2434 = vunpack.c.l.b16 %v1055
    %v2435 = vunpack.c.h.b16 %v1055
    %v2436 = vunpack.c.l.b16 %v1056
    %v2437 = vunpack.c.h.b16 %v1056
    %v2438 = vunpack.c.l.b16 %v1057
    %v2439 = vunpack.c.h.b16 %v1057
    %v2440 = vunpack.c.l.b16 %v1058
    %v2441 = vunpack.c.h.b16 %v1058
    %v2442 = vunpack.c.l.b16 %v1059
    %v2443 = vunpack.c.h.b16 %v1059
    %v2444 = vunpack.c.l.b16 %v1060
    %v2445 = vunpack.c.h.b16 %v1060
    %v2446 = vunpack.c.l.b16 %v1061
    %v2447 = vunpack.c.h.b16 %v1061
    %v2448 = vunpack.c.l.b16 %v1062
    %v2449 = vunpack.c.h.b16 %v1062
    %v2450 = vunpack.c.l.b16 %v1063
    %v2451 = vunpack.c.h.b16 %v1063
    %v2452 = vunpack.c.l.b16 %v1064
    %v2453 = vunpack.c.h.b16 %v1064
    %v2454 = vunpack.c.l.b16 %v1065
    %v2455 = vunpack.c.h.b16 %v1065
    %v2456 = vunpack.c.l.b16 %v1066
    %v2457 = vunpack.c.h.b16 %v1066
    %v2458 = vunpack.c.l.b16 %v1067
    %v2459 = vunpack.c.h.b16 %v1067
    %v2460 = vunpack.c.l.b16 %v1068
    %v2461 = vunpack.c.h.b16 %v1068
    %v2462 = vunpack.c.l.b16 %v1069
    %v2463 = vunpack.c.h.b16 %v1069
    %v2464 = vunpack.c.l.b16 %v1070
    %v2465 = vunpack.c.h.b16 %v1070
    %v2466 = vunpack.c.l.b16 %v1071
    %v2467 = vunpack.c.h.b16 %v1071
    %v2468 = vunpack.c.l.b16 %v1072
    %v2469 = vunpack.c.h.b16 %v1072
    %v2470 = vunpack.c.l.b16 %v1073
    %v2471 = vunpack.c.h.b16 %v1073
    %v2472 = vunpack.c.l.b16 %v1074
    %v2473 = vunpack.c.h.b16 %v1074
    %v2474 = vunpack.c.l.b16 %v1075
    %v2475 = vunpack.c.h.b16 %v1075
    %v2476 = vunpack.c.l.b16 %v1076
    %v2477 = vunpack.c.h.b16 %v1076
    %v2478 = vunpack.c.l.b16 %v1077
    %v2479 = vunpack.c.h.b16 %v1077
    %v2480 = vunpack.c.l.b16 %v1078
    %v2481 = vunpack.c.h.b16 %v1078
    %v2482 = vunpack.c.l.b16 %v1079
    %v2483 = vunpack.c.h.b16 %v1079
    %v2484 = vunpack.c.l.b16 %v1080
    %v2485 = vunpack.c.h.b16 %v1080
    %v2486 = vunpack.c.l.b16 %v1081
    %v2487 = vunpack.c.h.b16 %v1081
    %v2488 = vunpack.c.l.b16 %v1082
    %v2489 = vunpack.c.h.b16 %v1082
    %v2490 = vunpack.c.l.b16 %v1083
    %v2491 = vunpack.c.h.b16 %v1083
    %v2492 = vunpack.c.l.b16 %v1084
    %v2493 = vunpack.c.h.b16 %v1084
    %v2494 = vunpack.c.l.b16 %v1085
    %v2495 = vunpack.c.h.b16 %v1085
    %v2496 = vunpack.c.l.b16 %v1086
    %v2497 = vunpack.c.h.b16 %v1086
    %v2498 = vunpack.c.l.b16 %v1087
    %v2499 = vunpack.c.h.b16 %v1087
    %v2500 = vunpack.c.l.b16 %v1088
    %v2501 = vunpack.c.h.b16 %v1088
    %v2502 = vunpack.c.l.b16 %v1089
    %v2503 = vunpack.c.h.b16 %v1089
    %v2504 = vunpack.c.l.b16 %v1090
    %v2505 = vunpack.c.h.b16 %v1090
    %v2506 = vunpack.c.l.b16 %v1091
    %v2507 = vunpack.c.h.b16 %v1091
    %v2508 = vunpack.c.l.b16 %v1092
    %v2509 = vunpack.c.h.b16 %v1092
    %v2510 = vunpack.c.l.b16 %v1093
    %v2511 = vunpack.c.h.b16 %v1093
    %v2512 = vunpack.c.l.b16 %v1094
    %v2513 = vunpack.c.h.b16 %v1094
    %v2514 = vunpack.c.l.b16 %v1095
    %v2515 = vunpack.c.h.b16 %v1095
    %v2516 = vunpack.c.l.b16 %v1096
    %v2517 = vunpack.c.h.b16 %v1096
    %v2518 = vunpack.c.l.b16 %v1097
    %v2519 = vunpack.c.h.b16 %v1097
    %v2520 = vunpack.c.l.b16 %v1098
    %v2521 = vunpack.c.h.b16 %v1098
    %v2522 = vunpack.c.l.b16 %v1099
    %v2523 = vunpack.c.h.b16 %v1099
    %v2524 = vunpack.c.l.b16 %v1100
    %v2525 = vunpack.c.h.b16 %v1100
    %v2526 = vunpack.c.l.b16 %v1101
    %v2527 = vunpack.c.h.b16 %v1101
    %v2528 = vunpack.c.l.b16 %v1102
    %v2529 = vunpack.c.h.b16 %v1102
    %v2530 = vunpack.c.l.b16 %v1103
    %v2531 = vunpack.c.h.b16 %v1103
    %v2532 = vunpack.c.l.b16 %v1104
    %v2533 = vunpack.c.h.b16 %v1104
    %v2534 = vunpack.c.l.b16 %v1105
    %v2535 = vunpack.c.h.b16 %v1105
    %v2536 = vunpack.c.l.b16 %v1106
    %v2537 = vunpack.c.h.b16 %v1106
    %v2538 = vunpack.c.l.b16 %v1107
    %v2539 = vunpack.c.h.b16 %v1107
    %v2540 = vunpack.c.l.b16 %v1108
    %v2541 = vunpack.c.h.b16 %v1108
    %v2542 = vunpack.c.l.b16 %v1109
    %v2543 = vunpack.c.h.b16 %v1109
    %v2544 = vunpack.c.l.b16 %v1110
    %v2545 = vunpack.c.h.b16 %v1110
    %v2546 = vunpack.c.l.b16 %v1111
    %v2547 = vunpack.c.h.b16 %v1111
    %v2548 = vunpack.c.l.b16 %v1112
    %v2549 = vunpack.c.h.b16 %v1112
    %v2550 = vunpack.c.l.b16 %v1113
    %v2551 = vunpack.c.h.b16 %v1113
    %v2552 = vunpack.c.l.b16 %v1114
    %v2553 = vunpack.c.h.b16 %v1114
    %v2554 = vunpack.c.l.b16 %v1115
    %v2555 = vunpack.c.h.b16 %v1115
    %v2556 = vunpack.c.l.b16 %v1116
    %v2557 = vunpack.c.h.b16 %v1116
    %v2558 = vunpack.c.l.b16 %v1117
    %v2559 = vunpack.c.h.b16 %v1117
    %v2560 = vunpack.c.l.b16 %v1118
    %v2561 = vunpack.c.h.b16 %v1118
    %v2562 = vunpack.c.l.b16 %v1119
    %v2563 = vunpack.c.h.b16 %v1119
    %v2564 = vunpack.c.l.b16 %v1120
    %v2565 = vunpack.c.h.b16 %v1120
    %v2566 = vunpack.c.l.b16 %v1121
    %v2567 = vunpack.c.h.b16 %v1121
    %v2568 = vunpack.c.l.b16 %v1122
    %v2569 = vunpack.c.h.b16 %v1122
    %v2570 = vunpack.c.l.b16 %v1123
    %v2571 = vunpack.c.h.b16 %v1123
    %v2572 = vunpack.c.l.b16 %v1124
    %v2573 = vunpack.c.h.b16 %v1124
    %v2574 = vunpack.c.l.b16 %v1125
    %v2575 = vunpack.c.h.b16 %v1125
    %v2576 = vunpack.c.l.b16 %v1126
    %v2577 = vunpack.c.h.b16 %v1126
    %v2578 = vunpack.c.l.b16 %v1127
    %v2579 = vunpack.c.h.b16 %v1127
    %v2580 = vunpack.c.l.b16 %v1128
    %v2581 = vunpack.c.h.b16 %v1128
    %v2582 = vunpack.c.l.b16 %v1129
    %v2583 = vunpack.c.h.b16 %v1129
    %v2584 = vunpack.c.l.b16 %v1130
    %v2585 = vunpack.c.h.b16 %v1130
    %v2586 = vunpack.c.l.b16 %v1131
    %v2587 = vunpack.c.h.b16 %v1131
    %v2588 = vunpack.c.l.b16 %v1132
    %v2589 = vunpack.c.h.b16 %v1132
    %v2590 = vunpack.c.l.b16 %v1133
    %v2591 = vunpack.c.h.b16 %v1133
    %v2592 = vunpack.c.l.b16 %v1134
    %v2593 = vunpack.c.h.b16 %v1134
    %v2594 = vunpack.c.l.b16 %v1135
    %v2595 = vunpack.c.h.b16 %v1135
    %v2596 = vunpack.c.l.b16 %v1136
    %v2597 = vunpack.c.h.b16 %v1136
    %v2598 = vunpack.c.l.b16 %v1137
    %v2599 = vunpack.c.h.b16 %v1137
    %v2600 = vunpack.c.l.b16 %v1138
    %v2601 = vunpack.c.h.b16 %v1138
    %v2602 = vunpack.c.l.b16 %v1139
    %v2603 = vunpack.c.h.b16 %v1139
    %v2604 = vunpack.c.l.b16 %v1140
    %v2605 = vunpack.c.h.b16 %v1140
    %v2606 = vunpack.c.l.b16 %v1141
    %v2607 = vunpack.c.h.b16 %v1141
    %v2608 = vunpack.c.l.b16 %v1142
    %v2609 = vunpack.c.h.b16 %v1142
    %v2610 = vunpack.c.l.b16 %v1143
    %v2611 = vunpack.c.h.b16 %v1143
    %v2612 = vunpack.c.l.b16 %v1144
    %v2613 = vunpack.c.h.b16 %v1144
    %v2614 = vunpack.c.l.b16 %v1145
    %v2615 = vunpack.c.h.b16 %v1145
    %v2616 = vunpack.c.l.b16 %v1146
    %v2617 = vunpack.c.h.b16 %v1146
    %v2618 = vunpack.c.l.b16 %v1147
    %v2619 = vunpack.c.h.b16 %v1147
    %v2620 = vunpack.c.l.b16 %v1148
    %v2621 = vunpack.c.h.b16 %v1148
    %v2622 = vunpack.c.l.b16 %v1149
    %v2623 = vunpack.c.h.b16 %v1149
    %v2624 = vunpack.c.l.b16 %v1150
    %v2625 = vunpack.c.h.b16 %v1150
    %v2626 = vunpack.c.l.b16 %v1151
    %v2627 = vunpack.c.h.b16 %v1151
    %v2628 = vunpack.c.l.b16 %v1152
    %v2629 = vunpack.c.h.b16 %v1152
    %v2630 = vunpack.c.l.b16 %v1153
    %v2631 = vunpack.c.h.b16 %v1153
    %v2632 = vunpack.c.l.b16 %v1154
    %v2633 = vunpack.c.h.b16 %v1154
    %v2634 = vunpack.c.l.b16 %v1155
    %v2635 = vunpack.c.h.b16 %v1155
    %v2636 = vunpack.c.l.b16 %v1156
    %v2637 = vunpack.c.h.b16 %v1156
    %v2638 = vunpack.c.l.b16 %v1157
    %v2639 = vunpack.c.h.b16 %v1157
    %v2640 = vunpack.c.l.b16 %v1158
    %v2641 = vunpack.c.h.b16 %v1158
    %v2642 = vunpack.c.l.b16 %v1159
    %v2643 = vunpack.c.h.b16 %v1159
    %v2644 = vunpack.c.l.b16 %v1160
    %v2645 = vunpack.c.h.b16 %v1160
    %v2646 = vunpack.c.l.b16 %v1161
    %v2647 = vunpack.c.h.b16 %v1161
    %v2648 = vunpack.c.l.b16 %v1162
    %v2649 = vunpack.c.h.b16 %v1162
    %v2650 = vunpack.c.l.b16 %v1163
    %v2651 = vunpack.c.h.b16 %v1163
    %v2652 = vunpack.c.l.b16 %v1164
    %v2653 = vunpack.c.h.b16 %v1164
    %v2654 = vunpack.c.l.b16 %v1165
    %v2655 = vunpack.c.h.b16 %v1165
    %v2656 = vunpack.c.l.b16 %v1166
    %v2657 = vunpack.c.h.b16 %v1166
    %v2658 = vunpack.c.l.b16 %v1167
    %v2659 = vunpack.c.h.b16 %v1167
    %v2660 = vunpack.c.l.b16 %v1168
    %v2661 = vunpack.c.h.b16 %v1168
    %v2662 = vunpack.c.l.b16 %v1169
    %v2663 = vunpack.c.h.b16 %v1169
    %v2664 = vunpack.c.l.b16 %v1170
    %v2665 = vunpack.c.h.b16 %v1170
    %v2666 = vunpack.c.l.b16 %v1171
    %v2667 = vunpack.c.h.b16 %v1171
    %v2668 = vunpack.c.l.b16 %v1172
    %v2669 = vunpack.c.h.b16 %v1172
    %v2670 = vunpack.c.l.b16 %v1173
    %v2671 = vunpack.c.h.b16 %v1173
    %v2672 = vunpack.c.l.b16 %v1174
    %v2673 = vunpack.c.h.b16 %v1174
    %v2674 = vunpack.c.l.b16 %v1175
    %v2675 = vunpack.c.h.b16 %v1175
    %v2676 = vunpack.c.l.b16 %v1176
    %v2677 = vunpack.c.h.b16 %v1176
    %v2678 = vunpack.c.l.b16 %v1177
    %v2679 = vunpack.c.h.b16 %v1177
    %v2680 = vunpack.c.l.b16 %v1178
    %v2681 = vunpack.c.h.b16 %v1178
    %v2682 = vunpack.c.l.b16 %v1179
    %v2683 = vunpack.c.h.b16 %v1179
    %v2684 = vunpack.c.l.b16 %v1180
    %v2685 = vunpack.c.h.b16 %v1180
    %v2686 = vunpack.c.l.b16 %v1181
    %v2687 = vunpack.c.h.b16 %v1181
    %v2688 = vunpack.c.l.b16 %v1182
    %v2689 = vunpack.c.h.b16 %v1182
    %v2690 = vunpack.c.l.b16 %v1183
    %v2691 = vunpack.c.h.b16 %v1183
    %v2692 = vunpack.c.l.b16 %v1184
    %v2693 = vunpack.c.h.b16 %v1184
    %v2694 = vunpack.c.l.b16 %v1185
    %v2695 = vunpack.c.h.b16 %v1185
    %v2696 = vunpack.c.l.b16 %v1186
    %v2697 = vunpack.c.h.b16 %v1186
    %v2698 = vunpack.c.l.b16 %v1187
    %v2699 = vunpack.c.h.b16 %v1187
    %v2700 = vunpack.c.l.b16 %v1188
    %v2701 = vunpack.c.h.b16 %v1188
    %v2702 = vunpack.c.l.b16 %v1189
    %v2703 = vunpack.c.h.b16 %v1189
    %v2704 = vunpack.c.l.b16 %v1190
    %v2705 = vunpack.c.h.b16 %v1190
    %v2706 = vunpack.c.l.b16 %v1191
    %v2707 = vunpack.c.h.b16 %v1191
    %v2708 = vunpack.c.l.b16 %v1192
    %v2709 = vunpack.c.h.b16 %v1192
    %v2710 = vunpack.c.l.b16 %v1193
    %v2711 = vunpack.c.h.b16 %v1193
    %v2712 = vunpack.c.l.b16 %v1194
    %v2713 = vunpack.c.h.b16 %v1194
    %v2714 = vunpack.c.l.b16 %v1195
    %v2715 = vunpack.c.h.b16 %v1195
    %v2716 = vunpack.c.l.b16 %v1196
    %v2717 = vunpack.c.h.b16 %v1196
    %v2718 = vunpack.c.l.b16 %v1197
    %v2719 = vunpack.c.h.b16 %v1197
    %v2720 = vunpack.c.l.b16 %v1198
    %v2721 = vunpack.c.h.b16 %v1198
    %v2722 = vunpack.c.l.b16 %v1199
    %v2723 = vunpack.c.h.b16 %v1199
    %v2724 = vunpack.c.l.b16 %v1200
    %v2725 = vunpack.c.h.b16 %v1200
    %v2726 = vunpack.c.l.b16 %v1201
    %v2727 = vunpack.c.h.b16 %v1201
    %v2728 = vunpack.c.l.b16 %v1202
    %v2729 = vunpack.c.h.b16 %v1202
    %v2730 = vunpack.c.l.b16 %v1203
    %v2731 = vunpack.c.h.b16 %v1203
    %v2732 = vunpack.c.l.b16 %v1204
    %v2733 = vunpack.c.h.b16 %v1204
    %v2734 = vunpack.c.l.b16 %v1205
    %v2735 = vunpack.c.h.b16 %v1205
    %v2736 = vunpack.c.l.b16 %v1206
    %v2737 = vunpack.c.h.b16 %v1206
    %v2738 = vunpack.c.l.b16 %v1207
    %v2739 = vunpack.c.h.b16 %v1207
    %v2740 = vunpack.c.l.b16 %v1208
    %v2741 = vunpack.c.h.b16 %v1208
    %v2742 = vunpack.c.l.b16 %v1209
    %v2743 = vunpack.c.h.b16 %v1209
    %v2744 = vunpack.c.l.b16 %v1210
    %v2745 = vunpack.c.h.b16 %v1210
    %v2746 = vunpack.c.l.b16 %v1211
    %v2747 = vunpack.c.h.b16 %v1211
    %v2748 = vunpack.c.l.b16 %v1212
    %v2749 = vunpack.c.h.b16 %v1212
    %v2750 = vunpack.c.l.b16 %v1213
    %v2751 = vunpack.c.h.b16 %v1213
    %v2752 = vunpack.c.l.b16 %v1214
    %v2753 = vunpack.c.h.b16 %v1214
    %v2754 = vunpack.c.l.b16 %v1215
    %v2755 = vunpack.c.h.b16 %v1215
    %v2756 = vunpack.c.l.b16 %v1216
    %v2757 = vunpack.c.h.b16 %v1216
    %v2758 = vunpack.c.l.b16 %v1217
    %v2759 = vunpack.c.h.b16 %v1217
    %v2760 = vunpack.c.l.b16 %v1218
    %v2761 = vunpack.c.h.b16 %v1218
    %v2762 = vunpack.c.l.b16 %v1219
    %v2763 = vunpack.c.h.b16 %v1219
    %v2764 = vunpack.c.l.b16 %v1220
    %v2765 = vunpack.c.h.b16 %v1220
    %v2766 = vunpack.c.l.b16 %v1221
    %v2767 = vunpack.c.h.b16 %v1221
    %v2768 = vunpack.c.l.b16 %v1222
    %v2769 = vunpack.c.h.b16 %v1222
    %v2770 = vunpack.c.l.b16 %v1223
    %v2771 = vunpack.c.h.b16 %v1223
    %v2772 = vunpack.c.l.b16 %v1224
    %v2773 = vunpack.c.h.b16 %v1224
    %v2774 = vunpack.c.l.b16 %v1225
    %v2775 = vunpack.c.h.b16 %v1225
    %v2776 = vunpack.c.l.b16 %v1226
    %v2777 = vunpack.c.h.b16 %v1226
    %v2778 = vunpack.c.l.b16 %v1227
    %v2779 = vunpack.c.h.b16 %v1227
    %v2780 = vunpack.c.l.b16 %v1228
    %v2781 = vunpack.c.h.b16 %v1228
    %v2782 = vunpack.c.l.b16 %v1229
    %v2783 = vunpack.c.h.b16 %v1229
    %v2784 = vunpack.c.l.b16 %v1230
    %v2785 = vunpack.c.h.b16 %v1230
    %v2786 = vunpack.c.l.b16 %v1231
    %v2787 = vunpack.c.h.b16 %v1231
    %v2788 = vunpack.c.l.b16 %v1232
    %v2789 = vunpack.c.h.b16 %v1232
    %v2790 = vunpack.c.l.b16 %v1233
    %v2791 = vunpack.c.h.b16 %v1233
    %v2792 = vunpack.c.l.b16 %v1234
    %v2793 = vunpack.c.h.b16 %v1234
    %v2794 = vunpack.c.l.b16 %v1235
    %v2795 = vunpack.c.h.b16 %v1235
    %v2796 = vunpack.c.l.b16 %v1236
    %v2797 = vunpack.c.h.b16 %v1236
    %v2798 = vunpack.c.l.b16 %v1237
    %v2799 = vunpack.c.h.b16 %v1237
    %v2800 = vunpack.c.l.b16 %v1238
    %v2801 = vunpack.c.h.b16 %v1238
    %v2802 = vunpack.c.l.b16 %v1239
    %v2803 = vunpack.c.h.b16 %v1239
    %v2804 = vunpack.c.l.b16 %v1240
    %v2805 = vunpack.c.h.b16 %v1240
    %v2806 = vunpack.c.l.b16 %v1241
    %v2807 = vunpack.c.h.b16 %v1241
    %v2808 = vunpack.c.l.b16 %v1242
    %v2809 = vunpack.c.h.b16 %v1242
    %v2810 = vunpack.c.l.b16 %v1243
    %v2811 = vunpack.c.h.b16 %v1243
    %v2812 = vunpack.c.l.b16 %v1244
    %v2813 = vunpack.c.h.b16 %v1244
    %v2814 = vunpack.c.l.b16 %v1245
    %v2815 = vunpack.c.h.b16 %v1245
    %v2816 = vunpack.c.l.b16 %v1246
    %v2817 = vunpack.c.h.b16 %v1246
    %v2818 = vunpack.c.l.b16 %v1247
    %v2819 = vunpack.c.h.b16 %v1247
    %v2820 = vunpack.c.l.b16 %v1248
    %v2821 = vunpack.c.h.b16 %v1248
    %v2822 = vunpack.c.l.b16 %v1249
    %v2823 = vunpack.c.h.b16 %v1249
    %v2824 = vunpack.c.l.b16 %v1250
    %v2825 = vunpack.c.h.b16 %v1250
    %v2826 = vunpack.c.l.b16 %v1251
    %v2827 = vunpack.c.h.b16 %v1251
    %v2828 = vunpack.c.l.b16 %v1252
    %v2829 = vunpack.c.h.b16 %v1252
    %v2830 = vunpack.c.l.b16 %v1253
    %v2831 = vunpack.c.h.b16 %v1253
    %v2832 = vpack.c.b16 %v1816, %v1808
    %v2833 = vpack.c.b16 %v1817, %v1809
    %v2834 = vpack.c.b16 %v1818, %v1810
    %v2835 = vpack.c.b16 %v1819, %v1811
    %v2836 = vpack.c.b16 %v1820, %v1812
    %v2837 = vpack.c.b16 %v1821, %v1813
    %v2838 = vpack.c.b16 %v1822, %v1814
    %v2839 = vpack.c.b16 %v1823, %v1815
    %v2840 = vpack.c.b16 %v1832, %v1824
    %v2841 = vpack.c.b16 %v1833, %v1825
    %v2842 = vpack.c.b16 %v1834, %v1826
    %v2843 = vpack.c.b16 %v1835, %v1827
    %v2844 = vpack.c.b16 %v1836, %v1828
    %v2845 = vpack.c.b16 %v1837, %v1829
    %v2846 = vpack.c.b16 %v1838, %v1830
    %v2847 = vpack.c.b16 %v1839, %v1831
    %v2848 = vpack.c.b16 %v1848, %v1840
    %v2849 = vpack.c.b16 %v1849, %v1841
    %v2850 = vpack.c.b16 %v1850, %v1842
    %v2851 = vpack.c.b16 %v1851, %v1843
    %v2852 = vpack.c.b16 %v1852, %v1844
    %v2853 = vpack.c.b16 %v1853, %v1845
    %v2854 = vpack.c.b16 %v1854, %v1846
    %v2855 = vpack.c.b16 %v1855, %v1847
    %v2856 = vpack.c.b16 %v1864, %v1856
    %v2857 = vpack.c.b16 %v1865, %v1857
    %v2858 = vpack.c.b16 %v1866, %v1858
    %v2859 = vpack.c.b16 %v1867, %v1859
    %v2860 = vpack.c.b16 %v1868, %v1860
    %v2861 = vpack.c.b16 %v1869, %v1861
    %v2862 = vpack.c.b16 %v1870, %v1862
    %v2863 = vpack.c.b16 %v1871, %v1863
    %v2864 = vpack.c.b16 %v1880, %v1872
    %v2865 = vpack.c.b16 %v1881, %v1873
    %v2866 = vpack.c.b16 %v1882, %v1874
    %v2867 = vpack.c.b16 %v1883, %v1875
    %v2868 = vpack.c.b16 %v1884, %v1876
    %v2869 = vpack.c.b16 %v1885, %v1877
    %v2870 = vpack.c.b16 %v1886, %v1878
    %v2871 = vpack.c.b16 %v1887, %v1879
    %v2872 = vpack.c.b16 %v1896, %v1888
    %v2873 = vpack.c.b16 %v1897, %v1889
    %v2874 = vpack.c.b16 %v1898, %v1890
    %v2875 = vpack.c.b16 %v1899, %v1891
    %v2876 = vpack.c.b16 %v1900, %v1892
    %v2877 = vpack.c.b16 %v1901, %v1893
    %v2878 = vpack.c.b16 %v1902, %v1894
    %v2879 = vpack.c.b16 %v1903, %v1895
    %v2880 = vpack.c.b16 %v1912, %v1904
    %v2881 = vpack.c.b16 %v1913, %v1905
    %v2882 = vpack.c.b16 %v1914, %v1906
    %v2883 = vpack.c.b16 %v1915, %v1907
    %v2884 = vpack.c.b16 %v1916, %v1908
    %v2885 = vpack.c.b16 %v1917, %v1909
    %v2886 = vpack.c.b16 %v1918, %v1910
    %v2887 = vpack.c.b16 %v1919, %v1911
    %v2888 = vpack.c.b16 %v1928, %v1920
    %v2889 = vpack.c.b16 %v1929, %v1921
    %v2890 = vpack.c.b16 %v1930, %v1922
    %v2891 = vpack.c.b16 %v1931, %v1923
    %v2892 = vpack.c.b16 %v1932, %v1924
    %v2893 = vpack.c.b16 %v1933, %v1925
    %v2894 = vpack.c.b16 %v1934, %v1926
    %v2895 = vpack.c.b16 %v1935, %v1927
    %v2896 = vpack.c.b16 %v1944, %v1936
    %v2897 = vpack.c.b16 %v1945, %v1937
    %v2898 = vpack.c.b16 %v1946, %v1938
    %v2899 = vpack.c.b16 %v1947, %v1939
    %v2900 = vpack.c.b16 %v1948, %v1940
    %v2901 = vpack.c.b16 %v1949, %v1941
    %v2902 = vpack.c.b16 %v1950, %v1942
    %v2903 = vpack.c.b16 %v1951, %v1943
    %v2904 = vpack.c.b16 %v1960, %v1952
    %v2905 = vpack.c.b16 %v1961, %v1953
    %v2906 = vpack.c.b16 %v1962, %v1954
    %v2907 = vpack.c.b16 %v1963, %v1955
    %v2908 = vpack.c.b16 %v1964, %v1956
    %v2909 = vpack.c.b16 %v1965, %v1957
    %v2910 = vpack.c.b16 %v1966, %v1958
    %v2911 = vpack.c.b16 %v1967, %v1959
    %v2912 = vpack.c.b16 %v1976, %v1968
    %v2913 = vpack.c.b16 %v1977, %v1969
    %v2914 = vpack.c.b16 %v1978, %v1970
    %v2915 = vpack.c.b16 %v1979, %v1971
    %v2916 = vpack.c.b16 %v1980, %v1972
    %v2917 = vpack.c.b16 %v1981, %v1973
    %v2918 = vpack.c.b16 %v1982, %v1974
    %v2919 = vpack.c.b16 %v1983, %v1975
    %v2920 = vpack.c.b16 %v1992, %v1984
    %v2921 = vpack.c.b16 %v1993, %v1985
    %v2922 = vpack.c.b16 %v1994, %v1986
    %v2923 = vpack.c.b16 %v1995, %v1987
    %v2924 = vpack.c.b16 %v1996, %v1988
    %v2925 = vpack.c.b16 %v1997, %v1989
    %v2926 = vpack.c.b16 %v1998, %v1990
    %v2927 = vpack.c.b16 %v1999, %v1991
    %v2928 = vpack.c.b16 %v2008, %v2000
    %v2929 = vpack.c.b16 %v2009, %v2001
    %v2930 = vpack.c.b16 %v2010, %v2002
    %v2931 = vpack.c.b16 %v2011, %v2003
    %v2932 = vpack.c.b16 %v2012, %v2004
    %v2933 = vpack.c.b16 %v2013, %v2005
    %v2934 = vpack.c.b16 %v2014, %v2006
    %v2935 = vpack.c.b16 %v2015, %v2007
    %v2936 = vpack.c.b16 %v2024, %v2016
    %v2937 = vpack.c.b16 %v2025, %v2017
    %v2938 = vpack.c.b16 %v2026, %v2018
    %v2939 = vpack.c.b16 %v2027, %v2019
    %v2940 = vpack.c.b16 %v2028, %v2020
    %v2941 = vpack.c.b16 %v2029, %v2021
    %v2942 = vpack.c.b16 %v2030, %v2022
    %v2943 = vpack.c.b16 %v2031, %v2023
    %v2944 = vpack.c.b16 %v2040, %v2032
    %v2945 = vpack.c.b16 %v2041, %v2033
    %v2946 = vpack.c.b16 %v2042, %v2034
    %v2947 = vpack.c.b16 %v2043, %v2035
    %v2948 = vpack.c.b16 %v2044, %v2036
    %v2949 = vpack.c.b16 %v2045, %v2037
    %v2950 = vpack.c.b16 %v2046, %v2038
    %v2951 = vpack.c.b16 %v2047, %v2039
    %v2952 = vpack.c.b16 %v2056, %v2048
    %v2953 = vpack.c.b16 %v2057, %v2049
    %v2954 = vpack.c.b16 %v2058, %v2050
    %v2955 = vpack.c.b16 %v2059, %v2051
    %v2956 = vpack.c.b16 %v2060, %v2052
    %v2957 = vpack.c.b16 %v2061, %v2053
    %v2958 = vpack.c.b16 %v2062, %v2054
    %v2959 = vpack.c.b16 %v2063, %v2055
    %v2960 = vpack.c.b16 %v2072, %v2064
    %v2961 = vpack.c.b16 %v2073, %v2065
    %v2962 = vpack.c.b16 %v2074, %v2066
    %v2963 = vpack.c.b16 %v2075, %v2067
    %v2964 = vpack.c.b16 %v2076, %v2068
    %v2965 = vpack.c.b16 %v2077, %v2069
    %v2966 = vpack.c.b16 %v2078, %v2070
    %v2967 = vpack.c.b16 %v2079, %v2071
    %v2968 = vpack.c.b16 %v2088, %v2080
    %v2969 = vpack.c.b16 %v2089, %v2081
    %v2970 = vpack.c.b16 %v2090, %v2082
    %v2971 = vpack.c.b16 %v2091, %v2083
    %v2972 = vpack.c.b16 %v2092, %v2084
    %v2973 = vpack.c.b16 %v2093, %v2085
    %v2974 = vpack.c.b16 %v2094, %v2086
    %v2975 = vpack.c.b16 %v2095, %v2087
    %v2976 = vpack.c.b16 %v2104, %v2096
    %v2977 = vpack.c.b16 %v2105, %v2097
    %v2978 = vpack.c.b16 %v2106, %v2098
    %v2979 = vpack.c.b16 %v2107, %v2099
    %v2980 = vpack.c.b16 %v2108, %v2100
    %v2981 = vpack.c.b16 %v2109, %v2101
    %v2982 = vpack.c.b16 %v2110, %v2102
    %v2983 = vpack.c.b16 %v2111, %v2103
    %v2984 = vpack.c.b16 %v2120, %v2112
    %v2985 = vpack.c.b16 %v2121, %v2113
    %v2986 = vpack.c.b16 %v2122, %v2114
    %v2987 = vpack.c.b16 %v2123, %v2115
    %v2988 = vpack.c.b16 %v2124, %v2116
    %v2989 = vpack.c.b16 %v2125, %v2117
    %v2990 = vpack.c.b16 %v2126, %v2118
    %v2991 = vpack.c.b16 %v2127, %v2119
    %v2992 = vpack.c.b16 %v2136, %v2128
    %v2993 = vpack.c.b16 %v2137, %v2129
    %v2994 = vpack.c.b16 %v2138, %v2130
    %v2995 = vpack.c.b16 %v2139, %v2131
    %v2996 = vpack.c.b16 %v2140, %v2132
    %v2997 = vpack.c.b16 %v2141, %v2133
    %v2998 = vpack.c.b16 %v2142, %v2134
    %v2999 = vpack.c.b16 %v2143, %v2135
    %v3000 = vpack.c.b16 %v2152, %v2144
    %v3001 = vpack.c.b16 %v2153, %v2145
    %v3002 = vpack.c.b16 %v2154, %v2146
    %v3003 = vpack.c.b16 %v2155, %v2147
    %v3004 = vpack.c.b16 %v2156, %v2148
    %v3005 = vpack.c.b16 %v2157, %v2149
    %v3006 = vpack.c.b16 %v2158, %v2150
    %v3007 = vpack.c.b16 %v2159, %v2151
    %v3008 = vpack.c.b16 %v2168, %v2160
    %v3009 = vpack.c.b16 %v2169, %v2161
    %v3010 = vpack.c.b16 %v2170, %v2162
    %v3011 = vpack.c.b16 %v2171, %v2163
    %v3012 = vpack.c.b16 %v2172, %v2164
    %v3013 = vpack.c.b16 %v2173, %v2165
    %v3014 = vpack.c.b16 %v2174, %v2166
    %v3015 = vpack.c.b16 %v2175, %v2167
    %v3016 = vpack.c.b16 %v2184, %v2176
    %v3017 = vpack.c.b16 %v2185, %v2177
    %v3018 = vpack.c.b16 %v2186, %v2178
    %v3019 = vpack.c.b16 %v2187, %v2179
    %v3020 = vpack.c.b16 %v2188, %v2180
    %v3021 = vpack.c.b16 %v2189, %v2181
    %v3022 = vpack.c.b16 %v2190, %v2182
    %v3023 = vpack.c.b16 %v2191, %v2183
    %v3024 = vpack.c.b16 %v2200, %v2192
    %v3025 = vpack.c.b16 %v2201, %v2193
    %v3026 = vpack.c.b16 %v2202, %v2194
    %v3027 = vpack.c.b16 %v2203, %v2195
    %v3028 = vpack.c.b16 %v2204, %v2196
    %v3029 = vpack.c.b16 %v2205, %v2197
    %v3030 = vpack.c.b16 %v2206, %v2198
    %v3031 = vpack.c.b16 %v2207, %v2199
    %v3032 = vpack.c.b16 %v2216, %v2208
    %v3033 = vpack.c.b16 %v2217, %v2209
    %v3034 = vpack.c.b16 %v2218, %v2210
    %v3035 = vpack.c.b16 %v2219, %v2211
    %v3036 = vpack.c.b16 %v2220, %v2212
    %v3037 = vpack.c.b16 %v2221, %v2213
    %v3038 = vpack.c.b16 %v2222, %v2214
    %v3039 = vpack.c.b16 %v2223, %v2215
    %v3040 = vpack.c.b16 %v2232, %v2224
    %v3041 = vpack.c.b16 %v2233, %v2225
    %v3042 = vpack.c.b16 %v2234, %v2226
    %v3043 = vpack.c.b16 %v2235, %v2227
    %v3044 = vpack.c.b16 %v2236, %v2228
    %v3045 = vpack.c.b16 %v2237, %v2229
    %v3046 = vpack.c.b16 %v2238, %v2230
    %v3047 = vpack.c.b16 %v2239, %v2231
    %v3048 = vpack.c.b16 %v2248, %v2240
    %v3049 = vpack.c.b16 %v2249, %v2241
    %v3050 = vpack.c.b16 %v2250, %v2242
    %v3051 = vpack.c.b16 %v2251, %v2243
    %v3052 = vpack.c.b16 %v2252, %v2244
    %v3053 = vpack.c.b16 %v2253, %v2245
    %v3054 = vpack.c.b16 %v2254, %v2246
    %v3055 = vpack.c.b16 %v2255, %v2247
    %v3056 = vpack.c.b16 %v2264, %v2256
    %v3057 = vpack.c.b16 %v2265, %v2257
    %v3058 = vpack.c.b16 %v2266, %v2258
    %v3059 = vpack.c.b16 %v2267, %v2259
    %v3060 = vpack.c.b16 %v2268, %v2260
    %v3061 = vpack.c.b16 %v2269, %v2261
    %v3062 = vpack.c.b16 %v2270, %v2262
    %v3063 = vpack.c.b16 %v2271, %v2263
    %v3064 = vpack.c.b16 %v2280, %v2272
    %v3065 = vpack.c.b16 %v2281, %v2273
    %v3066 = vpack.c.b16 %v2282, %v2274
    %v3067 = vpack.c.b16 %v2283, %v2275
    %v3068 = vpack.c.b16 %v2284, %v2276
    %v3069 = vpack.c.b16 %v2285, %v2277
    %v3070 = vpack.c.b16 %v2286, %v2278
    %v3071 = vpack.c.b16 %v2287, %v2279
    %v3072 = vpack.c.b16 %v2296, %v2288
    %v3073 = vpack.c.b16 %v2297, %v2289
    %v3074 = vpack.c.b16 %v2298, %v2290
    %v3075 = vpack.c.b16 %v2299, %v2291
    %v3076 = vpack.c.b16 %v2300, %v2292
    %v3077 = vpack.c.b16 %v2301, %v2293
    %v3078 = vpack.c.b16 %v2302, %v2294
    %v3079 = vpack.c.b16 %v2303, %v2295
    %v3080 = vpack.c.b16 %v2312, %v2304
    %v3081 = vpack.c.b16 %v2313, %v2305
    %v3082 = vpack.c.b16 %v2314, %v2306
    %v3083 = vpack.c.b16 %v2315, %v2307
    %v3084 = vpack.c.b16 %v2316, %v2308
    %v3085 = vpack.c.b16 %v2317, %v2309
    %v3086 = vpack.c.b16 %v2318, %v2310
    %v3087 = vpack.c.b16 %v2319, %v2311
    %v3088 = vpack.c.b16 %v2328, %v2320
    %v3089 = vpack.c.b16 %v2329, %v2321
    %v3090 = vpack.c.b16 %v2330, %v2322
    %v3091 = vpack.c.b16 %v2331, %v2323
    %v3092 = vpack.c.b16 %v2332, %v2324
    %v3093 = vpack.c.b16 %v2333, %v2325
    %v3094 = vpack.c.b16 %v2334, %v2326
    %v3095 = vpack.c.b16 %v2335, %v2327
    %v3096 = vpack.c.b16 %v2344, %v2336
    %v3097 = vpack.c.b16 %v2345, %v2337
    %v3098 = vpack.c.b16 %v2346, %v2338
    %v3099 = vpack.c.b16 %v2347, %v2339
    %v3100 = vpack.c.b16 %v2348, %v2340
    %v3101 = vpack.c.b16 %v2349, %v2341
    %v3102 = vpack.c.b16 %v2350, %v2342
    %v3103 = vpack.c.b16 %v2351, %v2343
    %v3104 = vpack.c.b16 %v2360, %v2352
    %v3105 = vpack.c.b16 %v2361, %v2353
    %v3106 = vpack.c.b16 %v2362, %v2354
    %v3107 = vpack.c.b16 %v2363, %v2355
    %v3108 = vpack.c.b16 %v2364, %v2356
    %v3109 = vpack.c.b16 %v2365, %v2357
    %v3110 = vpack.c.b16 %v2366, %v2358
    %v3111 = vpack.c.b16 %v2367, %v2359
    %v3112 = vpack.c.b16 %v2376, %v2368
    %v3113 = vpack.c.b16 %v2377, %v2369
    %v3114 = vpack.c.b16 %v2378, %v2370
    %v3115 = vpack.c.b16 %v2379, %v2371
    %v3116 = vpack.c.b16 %v2380, %v2372
    %v3117 = vpack.c.b16 %v2381, %v2373
    %v3118 = vpack.c.b16 %v2382, %v2374
    %v3119 = vpack.c.b16 %v2383, %v2375
    %v3120 = vpack.c.b16 %v2392, %v2384
    %v3121 = vpack.c.b16 %v2393, %v2385
    %v3122 = vpack.c.b16 %v2394, %v2386
    %v3123 = vpack.c.b16 %v2395, %v2387
    %v3124 = vpack.c.b16 %v2396, %v2388
    %v3125 = vpack.c.b16 %v2397, %v2389
    %v3126 = vpack.c.b16 %v2398, %v2390
    %v3127 = vpack.c.b16 %v2399, %v2391
    %v3128 = vpack.c.b16 %v2408, %v2400
    %v3129 = vpack.c.b16 %v2409, %v2401
    %v3130 = vpack.c.b16 %v2410, %v2402
    %v3131 = vpack.c.b16 %v2411, %v2403
    %v3132 = vpack.c.b16 %v2412, %v2404
    %v3133 = vpack.c.b16 %v2413, %v2405
    %v3134 = vpack.c.b16 %v2414, %v2406
    %v3135 = vpack.c.b16 %v2415, %v2407
    %v3136 = vpack.c.b16 %v2424, %v2416
    %v3137 = vpack.c.b16 %v2425, %v2417
    %v3138 = vpack.c.b16 %v2426, %v2418
    %v3139 = vpack.c.b16 %v2427, %v2419
    %v3140 = vpack.c.b16 %v2428, %v2420
    %v3141 = vpack.c.b16 %v2429, %v2421
    %v3142 = vpack.c.b16 %v2430, %v2422
    %v3143 = vpack.c.b16 %v2431, %v2423
    %v3144 = vpack.c.b16 %v2440, %v2432
    %v3145 = vpack.c.b16 %v2441, %v2433
    %v3146 = vpack.c.b16 %v2442, %v2434
    %v3147 = vpack.c.b16 %v2443, %v2435
    %v3148 = vpack.c.b16 %v2444, %v2436
    %v3149 = vpack.c.b16 %v2445, %v2437
    %v3150 = vpack.c.b16 %v2446, %v2438
    %v3151 = vpack.c.b16 %v2447, %v2439
    %v3152 = vpack.c.b16 %v2456, %v2448
    %v3153 = vpack.c.b16 %v2457, %v2449
    %v3154 = vpack.c.b16 %v2458, %v2450
    %v3155 = vpack.c.b16 %v2459, %v2451
    %v3156 = vpack.c.b16 %v2460, %v2452
    %v3157 = vpack.c.b16 %v2461, %v2453
    %v3158 = vpack.c.b16 %v2462, %v2454
    %v3159 = vpack.c.b16 %v2463, %v2455
    %v3160 = vpack.c.b16 %v2472, %v2464
    %v3161 = vpack.c.b16 %v2473, %v2465
    %v3162 = vpack.c.b16 %v2474, %v2466
    %v3163 = vpack.c.b16 %v2475, %v2467
    %v3164 = vpack.c.b16 %v2476, %v2468
    %v3165 = vpack.c.b16 %v2477, %v2469
    %v3166 = vpack.c.b16 %v2478, %v2470
    %v3167 = vpack.c.b16 %v2479, %v2471
    %v3168 = vpack.c.b16 %v2488, %v2480
    %v3169 = vpack.c.b16 %v2489, %v2481
    %v3170 = vpack.c.b16 %v2490, %v2482
    %v3171 = vpack.c.b16 %v2491, %v2483
    %v3172 = vpack.c.b16 %v2492, %v2484
    %v3173 = vpack.c.b16 %v2493, %v2485
    %v3174 = vpack.c.b16 %v2494, %v2486
    %v3175 = vpack.c.b16 %v2495, %v2487
    %v3176 = vpack.c.b16 %v2504, %v2496
    %v3177 = vpack.c.b16 %v2505, %v2497
    %v3178 = vpack.c.b16 %v2506, %v2498
    %v3179 = vpack.c.b16 %v2507, %v2499
    %v3180 = vpack.c.b16 %v2508, %v2500
    %v3181 = vpack.c.b16 %v2509, %v2501
    %v3182 = vpack.c.b16 %v2510, %v2502
    %v3183 = vpack.c.b16 %v2511, %v2503
    %v3184 = vpack.c.b16 %v2520, %v2512
    %v3185 = vpack.c.b16 %v2521, %v2513
    %v3186 = vpack.c.b16 %v2522, %v2514
    %v3187 = vpack.c.b16 %v2523, %v2515
    %v3188 = vpack.c.b16 %v2524, %v2516
    %v3189 = vpack.c.b16 %v2525, %v2517
    %v3190 = vpack.c.b16 %v2526, %v2518
    %v3191 = vpack.c.b16 %v2527, %v2519
    %v3192 = vpack.c.b16 %v2536, %v2528
    %v3193 = vpack.c.b16 %v2537, %v2529
    %v3194 = vpack.c.b16 %v2538, %v2530
    %v3195 = vpack.c.b16 %v2539, %v2531
    %v3196 = vpack.c.b16 %v2540, %v2532
    %v3197 = vpack.c.b16 %v2541, %v2533
    %v3198 = vpack.c.b16 %v2542, %v2534
    %v3199 = vpack.c.b16 %v2543, %v2535
    %v3200 = vpack.c.b16 %v2552, %v2544
    %v3201 = vpack.c.b16 %v2553, %v2545
    %v3202 = vpack.c.b16 %v2554, %v2546
    %v3203 = vpack.c.b16 %v2555, %v2547
    %v3204 = vpack.c.b16 %v2556, %v2548
    %v3205 = vpack.c.b16 %v2557, %v2549
    %v3206 = vpack.c.b16 %v2558, %v2550
    %v3207 = vpack.c.b16 %v2559, %v2551
    %v3208 = vpack.c.b16 %v2568, %v2560
    %v3209 = vpack.c.b16 %v2569, %v2561
    %v3210 = vpack.c.b16 %v2570, %v2562
    %v3211 = vpack.c.b16 %v2571, %v2563
    %v3212 = vpack.c.b16 %v2572, %v2564
    %v3213 = vpack.c.b16 %v2573, %v2565
    %v3214 = vpack.c.b16 %v2574, %v2566
    %v3215 = vpack.c.b16 %v2575, %v2567
    %v3216 = vpack.c.b16 %v2584, %v2576
    %v3217 = vpack.c.b16 %v2585, %v2577
    %v3218 = vpack.c.b16 %v2586, %v2578
    %v3219 = vpack.c.b16 %v2587, %v2579
    %v3220 = vpack.c.b16 %v2588, %v2580
    %v3221 = vpack.c.b16 %v2589, %v2581
    %v3222 = vpack.c.b16 %v2590, %v2582
    %v3223 = vpack.c.b16 %v2591, %v2583
    %v3224 = vpack.c.b16 %v2600, %v2592
    %v3225 = vpack.c.b16 %v2601, %v2593
    %v3226 = vpack.c.b16 %v2602, %v2594
    %v3227 = vpack.c.b16 %v2603, %v2595
    %v3228 = vpack.c.b16 %v2604, %v2596
    %v3229 = vpack.c.b16 %v2605, %v2597
    %v3230 = vpack.c.b16 %v2606, %v2598
    %v3231 = vpack.c.b16 %v2607, %v2599
    %v3232 = vpack.c.b16 %v2616, %v2608
    %v3233 = vpack.c.b16 %v2617, %v2609
    %v3234 = vpack.c.b16 %v2618, %v2610
    %v3235 = vpack.c.b16 %v2619, %v2611
    %v3236 = vpack.c.b16 %v2620, %v2612
    %v3237 = vpack.c.b16 %v2621, %v2613
    %v3238 = vpack.c.b16 %v2622, %v2614
    %v3239 = vpack.c.b16 %v2623, %v2615
    %v3240 = vpack.c.b16 %v2632, %v2624
    %v3241 = vpack.c.b16 %v2633, %v2625
    %v3242 = vpack.c.b16 %v2634, %v2626
    %v3243 = vpack.c.b16 %v2635, %v2627
    %v3244 = vpack.c.b16 %v2636, %v2628
    %v3245 = vpack.c.b16 %v2637, %v2629
    %v3246 = vpack.c.b16 %v2638, %v2630
    %v3247 = vpack.c.b16 %v2639, %v2631
    %v3248 = vpack.c.b16 %v2648, %v2640
    %v3249 = vpack.c.b16 %v2649, %v2641
    %v3250 = vpack.c.b16 %v2650, %v2642
    %v3251 = vpack.c.b16 %v2651, %v2643
    %v3252 = vpack.c.b16 %v2652, %v2644
    %v3253 = vpack.c.b16 %v2653, %v2645
    %v3254 = vpack.c.b16 %v2654, %v2646
    %v3255 = vpack.c.b16 %v2655, %v2647
    %v3256 = vpack.c.b16 %v2664, %v2656
    %v3257 = vpack.c.b16 %v2665, %v2657
    %v3258 = vpack.c.b16 %v2666, %v2658
    %v3259 = vpack.c.b16 %v2667, %v2659
    %v3260 = vpack.c.b16 %v2668, %v2660
    %v3261 = vpack.c.b16 %v2669, %v2661
    %v3262 = vpack.c.b16 %v2670, %v2662
    %v3263 = vpack.c.b16 %v2671, %v2663
    %v3264 = vpack.c.b16 %v2680, %v2672
    %v3265 = vpack.c.b16 %v2681, %v2673
    %v3266 = vpack.c.b16 %v2682, %v2674
    %v3267 = vpack.c.b16 %v2683, %v2675
    %v3268 = vpack.c.b16 %v2684, %v2676
    %v3269 = vpack.c.b16 %v2685, %v2677
    %v3270 = vpack.c.b16 %v2686, %v2678
    %v3271 = vpack.c.b16 %v2687, %v2679
    %v3272 = vpack.c.b16 %v2696, %v2688
    %v3273 = vpack.c.b16 %v2697, %v2689
    %v3274 = vpack.c.b16 %v2698, %v2690
    %v3275 = vpack.c.b16 %v2699, %v2691
    %v3276 = vpack.c.b16 %v2700, %v2692
    %v3277 = vpack.c.b16 %v2701, %v2693
    %v3278 = vpack.c.b16 %v2702, %v2694
    %v3279 = vpack.c.b16 %v2703, %v2695
    %v3280 = vpack.c.b16 %v2712, %v2704
    %v3281 = vpack.c.b16 %v2713, %v2705
    %v3282 = vpack.c.b16 %v2714, %v2706
    %v3283 = vpack.c.b16 %v2715, %v2707
    %v3284 = vpack.c.b16 %v2716, %v2708
    %v3285 = vpack.c.b16 %v2717, %v2709
    %v3286 = vpack.c.b16 %v2718, %v2710
    %v3287 = vpack.c.b16 %v2719, %v2711
    %v3288 = vpack.c.b16 %v2728, %v2720
    %v3289 = vpack.c.b16 %v2729, %v2721
    %v3290 = vpack.c.b16 %v2730, %v2722
    %v3291 = vpack.c.b16 %v2731, %v2723
    %v3292 = vpack.c.b16 %v2732, %v2724
    %v3293 = vpack.c.b16 %v2733, %v2725
    %v3294 = vpack.c.b16 %v2734, %v2726
    %v3295 = vpack.c.b16 %v2735, %v2727
    %v3296 = vpack.c.b16 %v2744, %v2736
    %v3297 = vpack.c.b16 %v2745, %v2737
    %v3298 = vpack.c.b16 %v2746, %v2738
    %v3299 = vpack.c.b16 %v2747, %v2739
    %v3300 = vpack.c.b16 %v2748, %v2740
    %v3301 = vpack.c.b16 %v2749, %v2741
    %v3302 = vpack.c.b16 %v2750, %v2742
    %v3303 = vpack.c.b16 %v2751, %v2743
    %v3304 = vpack.c.b16 %v2760, %v2752
    %v3305 = vpack.c.b16 %v2761, %v2753
    %v3306 = vpack.c.b16 %v2762, %v2754
    %v3307 = vpack.c.b16 %v2763, %v2755
    %v3308 = vpack.c.b16 %v2764, %v2756
    %v3309 = vpack.c.b16 %v2765, %v2757
    %v3310 = vpack.c.b16 %v2766, %v2758
    %v3311 = vpack.c.b16 %v2767, %v2759
    %v3312 = vpack.c.b16 %v2776, %v2768
    %v3313 = vpack.c.b16 %v2777, %v2769
    %v3314 = vpack.c.b16 %v2778, %v2770
    %v3315 = vpack.c.b16 %v2779, %v2771
    %v3316 = vpack.c.b16 %v2780, %v2772
    %v3317 = vpack.c.b16 %v2781, %v2773
    %v3318 = vpack.c.b16 %v2782, %v2774
    %v3319 = vpack.c.b16 %v2783, %v2775
    %v3320 = vpack.c.b16 %v2792, %v2784
    %v3321 = vpack.c.b16 %v2793, %v2785
    %v3322 = vpack.c.b16 %v2794, %v2786
    %v3323 = vpack.c.b16 %v2795, %v2787
    %v3324 = vpack.c.b16 %v2796, %v2788
    %v3325 = vpack.c.b16 %v2797, %v2789
    %v3326 = vpack.c.b16 %v2798, %v2790
    %v3327 = vpack.c.b16 %v2799, %v2791
    %v3328 = vpack.c.b16 %v2808, %v2800
    %v3329 = vpack.c.b16 %v2809, %v2801
    %v3330 = vpack.c.b16 %v2810, %v2802
    %v3331 = vpack.c.b16 %v2811, %v2803
    %v3332 = vpack.c.b16 %v2812, %v2804
    %v3333 = vpack.c.b16 %v2813, %v2805
    %v3334 = vpack.c.b16 %v2814, %v2806
    %v3335 = vpack.c.b16 %v2815, %v2807
    %v3336 = vpack.c.b16 %v2824, %v2816
    %v3337 = vpack.c.b16 %v2825, %v2817
    %v3338 = vpack.c.b16 %v2826, %v2818
    %v3339 = vpack.c.b16 %v2827, %v2819
    %v3340 = vpack.c.b16 %v2828, %v2820
    %v3341 = vpack.c.b16 %v2829, %v2821
    %v3342 = vpack.c.b16 %v2830, %v2822
    %v3343 = vpack.c.b16 %v2831, %v2823
    %3856 = vmatprep.subr.bf16.mxu0 %v2833
    %3857 = vmatpush1.bf16.msra.mxu0 %v2832
    %3858 = vmatprep.subr.bf16.mxu0 %v2841
    %3859 = vmatpush1.bf16.msra.mxu0 %v2840
    %3860 = vmatprep.subr.bf16.mxu0 %v2849
    %3861 = vmatpush1.bf16.msra.mxu0 %v2848
    %3862 = vmatprep.subr.bf16.mxu0 %v2857
    %3863 = vmatpush1.bf16.msra.mxu0 %v2856
    %3864 = vmatprep.subr.bf16.mxu0 %v2865
    %3865 = vmatpush1.bf16.msra.mxu0 %v2864
    %3866 = vmatprep.subr.bf16.mxu0 %v2873
    %3867 = vmatpush1.bf16.msra.mxu0 %v2872
    %3868 = vmatprep.subr.bf16.mxu0 %v2881
    %3869 = vmatpush1.bf16.msra.mxu0 %v2880
    %3870 = vmatprep.subr.bf16.mxu0 %v2889
    %3871 = vmatpush1.bf16.msra.mxu0 %v2888
    %3872 = vmatprep.subr.bf16.mxu0 %v2897
    %3873 = vmatpush1.bf16.msra.mxu0 %v2896
    %3874 = vmatprep.subr.bf16.mxu0 %v2905
    %3875 = vmatpush1.bf16.msra.mxu0 %v2904
    %3876 = vmatprep.subr.bf16.mxu0 %v2913
    %3877 = vmatpush1.bf16.msra.mxu0 %v2912
    %3878 = vmatprep.subr.bf16.mxu0 %v2921
    %3879 = vmatpush1.bf16.msra.mxu0 %v2920
    %3880 = vmatprep.subr.bf16.mxu0 %v2929
    %3881 = vmatpush1.bf16.msra.mxu0 %v2928
    %3882 = vmatprep.subr.bf16.mxu0 %v2937
    %3883 = vmatpush1.bf16.msra.mxu0 %v2936
    %3884 = vmatprep.subr.bf16.mxu0 %v2945
    %3885 = vmatpush1.bf16.msra.mxu0 %v2944
    %3886 = vmatprep.subr.bf16.mxu0 %v2953
    %3887 = vmatpush1.bf16.msra.mxu0 %v2952
    %3888 = vmatprep.mubr.bf16.mxu0 %v735
    %3889 = vmatmul.mubr.bf16.gmra.mrb[0].mxu0 %v734
    %v3890 = vpop.f32.mrb[0].mxu0
    %v3891 = vadd.f32 %v1259, %v3890
    %v3892 = vpop.f32.mrb[0].mxu0
    %v3893 = vadd.f32 %v1263, %v3892
    %v3894 = vpop.f32.mrb[0].mxu0
    %v3895 = vpop.f32.mrb[0].mxu0
    %3896 = vdwg.mxu0
    %3897 = vmatprep.subr.bf16.mxu0 %v2961
    %3898 = vmatpush1.bf16.msra.mxu0 %v2960
    %3899 = vmatprep.subr.bf16.mxu0 %v2969
    %3900 = vmatpush1.bf16.msra.mxu0 %v2968
    %3901 = vmatprep.subr.bf16.mxu0 %v2977
    %3902 = vmatpush1.bf16.msra.mxu0 %v2976
    %3903 = vmatprep.subr.bf16.mxu0 %v2985
    %3904 = vmatpush1.bf16.msra.mxu0 %v2984
    %3905 = vmatprep.subr.bf16.mxu0 %v2993
    %3906 = vmatpush1.bf16.msra.mxu0 %v2992
    %3907 = vmatprep.subr.bf16.mxu0 %v3001
    %3908 = vmatpush1.bf16.msra.mxu0 %v3000
    %3909 = vmatprep.subr.bf16.mxu0 %v3009
    %3910 = vmatpush1.bf16.msra.mxu0 %v3008
    %3911 = vmatprep.subr.bf16.mxu0 %v3017
    %3912 = vmatpush1.bf16.msra.mxu0 %v3016
    %3913 = vmatprep.subr.bf16.mxu0 %v3025
    %3914 = vmatpush1.bf16.msra.mxu0 %v3024
    %3915 = vmatprep.subr.bf16.mxu0 %v3033
    %3916 = vmatpush1.bf16.msra.mxu0 %v3032
    %3917 = vmatprep.subr.bf16.mxu0 %v3041
    %3918 = vmatpush1.bf16.msra.mxu0 %v3040
    %3919 = vmatprep.subr.bf16.mxu0 %v3049
    %3920 = vmatpush1.bf16.msra.mxu0 %v3048
    %3921 = vmatprep.subr.bf16.mxu0 %v3057
    %3922 = vmatpush1.bf16.msra.mxu0 %v3056
    %3923 = vmatprep.subr.bf16.mxu0 %v3065
    %3924 = vmatpush1.bf16.msra.mxu0 %v3064
    %3925 = vmatprep.subr.bf16.mxu0 %v3073
    %3926 = vmatpush1.bf16.msra.mxu0 %v3072
    %3927 = vmatprep.subr.bf16.mxu0 %v3081
    %3928 = vmatpush1.bf16.msra.mxu0 %v3080
    %3929 = vmatprep.mubr.bf16.mxu0 %v737
    %3930 = vmatmul.mubr.bf16.gmra.mrb[0].mxu0 %v736
    %v3931 = vpop.f32.mrb[0].mxu0
    %v3932 = vadd.f32 %v3891, %v3931
    %v3933 = vpop.f32.mrb[0].mxu0
    %v3934 = vadd.f32 %v3893, %v3933
    %v3935 = vpop.f32.mrb[0].mxu0
    %v3936 = vpop.f32.mrb[0].mxu0
    %3937 = vdwg.mxu0
    %3938 = vmatprep.subr.bf16.mxu0 %v3089
    %3939 = vmatpush1.bf16.msra.mxu0 %v3088
    %3940 = vmatprep.subr.bf16.mxu0 %v3097
    %3941 = vmatpush1.bf16.msra.mxu0 %v3096
    %3942 = vmatprep.subr.bf16.mxu0 %v3105
    %3943 = vmatpush1.bf16.msra.mxu0 %v3104
    %3944 = vmatprep.subr.bf16.mxu0 %v3113
    %3945 = vmatpush1.bf16.msra.mxu0 %v3112
    %3946 = vmatprep.subr.bf16.mxu0 %v3121
    %3947 = vmatpush1.bf16.msra.mxu0 %v3120
    %3948 = vmatprep.subr.bf16.mxu0 %v3129
    %3949 = vmatpush1.bf16.msra.mxu0 %v3128
    %3950 = vmatprep.subr.bf16.mxu0 %v3137
    %3951 = vmatpush1.bf16.msra.mxu0 %v3136
    %3952 = vmatprep.subr.bf16.mxu0 %v3145
    %3953 = vmatpush1.bf16.msra.mxu0 %v3144
    %3954 = vmatprep.subr.bf16.mxu0 %v3153
    %3955 = vmatpush1.bf16.msra.mxu0 %v3152
    %3956 = vmatprep.subr.bf16.mxu0 %v3161
    %3957 = vmatpush1.bf16.msra.mxu0 %v3160
    %3958 = vmatprep.subr.bf16.mxu0 %v3169
    %3959 = vmatpush1.bf16.msra.mxu0 %v3168
    %3960 = vmatprep.subr.bf16.mxu0 %v3177
    %3961 = vmatpush1.bf16.msra.mxu0 %v3176
    %3962 = vmatprep.subr.bf16.mxu0 %v3185
    %3963 = vmatpush1.bf16.msra.mxu0 %v3184
    %3964 = vmatprep.subr.bf16.mxu0 %v3193
    %3965 = vmatpush1.bf16.msra.mxu0 %v3192
    %3966 = vmatprep.subr.bf16.mxu0 %v3201
    %3967 = vmatpush1.bf16.msra.mxu0 %v3200
    %3968 = vmatprep.subr.bf16.mxu0 %v3209
    %3969 = vmatpush1.bf16.msra.mxu0 %v3208
    %3970 = vmatprep.mubr.bf16.mxu0 %v739
    %3971 = vmatmul.mubr.bf16.gmra.mrb[0].mxu0 %v738
    %v3972 = vpop.f32.mrb[0].mxu0
    %v3973 = vadd.f32 %v3932, %v3972
    %v3974 = vpop.f32.mrb[0].mxu0
    %v3975 = vadd.f32 %v3934, %v3974
    %v3976 = vpop.f32.mrb[0].mxu0
    %v3977 = vpop.f32.mrb[0].mxu0
    %3978 = vdwg.mxu0
    %3979 = vmatprep.subr.bf16.mxu0 %v3217
    %3980 = vmatpush1.bf16.msra.mxu0 %v3216
    %3981 = vmatprep.subr.bf16.mxu0 %v3225
    %3982 = vmatpush1.bf16.msra.mxu0 %v3224
    %3983 = vmatprep.subr.bf16.mxu0 %v3233
    %3984 = vmatpush1.bf16.msra.mxu0 %v3232
    %3985 = vmatprep.subr.bf16.mxu0 %v3241
    %3986 = vmatpush1.bf16.msra.mxu0 %v3240
    %3987 = vmatprep.subr.bf16.mxu0 %v3249
    %3988 = vmatpush1.bf16.msra.mxu0 %v3248
    %3989 = vmatprep.subr.bf16.mxu0 %v3257
    %3990 = vmatpush1.bf16.msra.mxu0 %v3256
    %3991 = vmatprep.subr.bf16.mxu0 %v3265
    %3992 = vmatpush1.bf16.msra.mxu0 %v3264
    %3993 = vmatprep.subr.bf16.mxu0 %v3273
    %3994 = vmatpush1.bf16.msra.mxu0 %v3272
    %3995 = vmatprep.subr.bf16.mxu0 %v3281
    %3996 = vmatpush1.bf16.msra.mxu0 %v3280
    %3997 = vmatprep.subr.bf16.mxu0 %v3289
    %3998 = vmatpush1.bf16.msra.mxu0 %v3288
    %3999 = vmatprep.subr.bf16.mxu0 %v3297
    %4000 = vmatpush1.bf16.msra.mxu0 %v3296
    %4001 = vmatprep.subr.bf16.mxu0 %v3305
    %4002 = vmatpush1.bf16.msra.mxu0 %v3304
    %4003 = vmatprep.subr.bf16.mxu0 %v3313
    %4004 = vmatpush1.bf16.msra.mxu0 %v3312
    %4005 = vmatprep.subr.bf16.mxu0 %v3321
    %4006 = vmatpush1.bf16.msra.mxu0 %v3320
    %4007 = vmatprep.subr.bf16.mxu0 %v3329
    %4008 = vmatpush1.bf16.msra.mxu0 %v3328
    %4009 = vmatprep.subr.bf16.mxu0 %v3337
    %4010 = vmatpush1.bf16.msra.mxu0 %v3336
    %4011 = vmatprep.mubr.bf16.mxu0 %v741
    %4012 = vmatmul.mubr.bf16.gmra.mrb[0].mxu0 %v740
    %v4013 = vpop.f32.mrb[0].mxu0
    %v4014 = vadd.f32 %v3973, %v4013
    %v4015 = vpop.f32.mrb[0].mxu0
    %v4016 = vadd.f32 %v3975, %v4015
    %v4017 = vpop.f32.mrb[0].mxu0
    %v4018 = vpop.f32.mrb[0].mxu0
    %4019 = vdwg.mxu0
    %4020 = vmatprep.subr.bf16.mxu0 %v2835
    %4021 = vmatpush1.bf16.msra.mxu0 %v2834
    %4022 = vmatprep.subr.bf16.mxu0 %v2843
    %4023 = vmatpush1.bf16.msra.mxu0 %v2842
    %4024 = vmatprep.subr.bf16.mxu0 %v2851
    %4025 = vmatpush1.bf16.msra.mxu0 %v2850
    %4026 = vmatprep.subr.bf16.mxu0 %v2859
    %4027 = vmatpush1.bf16.msra.mxu0 %v2858
    %4028 = vmatprep.subr.bf16.mxu0 %v2867
    %4029 = vmatpush1.bf16.msra.mxu0 %v2866
    %4030 = vmatprep.subr.bf16.mxu0 %v2875
    %4031 = vmatpush1.bf16.msra.mxu0 %v2874
    %4032 = vmatprep.subr.bf16.mxu0 %v2883
    %4033 = vmatpush1.bf16.msra.mxu0 %v2882
    %4034 = vmatprep.subr.bf16.mxu0 %v2891
    %4035 = vmatpush1.bf16.msra.mxu0 %v2890
    %4036 = vmatprep.subr.bf16.mxu0 %v2899
    %4037 = vmatpush1.bf16.msra.mxu0 %v2898
    %4038 = vmatprep.subr.bf16.mxu0 %v2907
    %4039 = vmatpush1.bf16.msra.mxu0 %v2906
    %4040 = vmatprep.subr.bf16.mxu0 %v2915
    %4041 = vmatpush1.bf16.msra.mxu0 %v2914
    %4042 = vmatprep.subr.bf16.mxu0 %v2923
    %4043 = vmatpush1.bf16.msra.mxu0 %v2922
    %4044 = vmatprep.subr.bf16.mxu0 %v2931
    %4045 = vmatpush1.bf16.msra.mxu0 %v2930
    %4046 = vmatprep.subr.bf16.mxu0 %v2939
    %4047 = vmatpush1.bf16.msra.mxu0 %v2938
    %4048 = vmatprep.subr.bf16.mxu0 %v2947
    %4049 = vmatpush1.bf16.msra.mxu0 %v2946
    %4050 = vmatprep.subr.bf16.mxu0 %v2955
    %4051 = vmatpush1.bf16.msra.mxu0 %v2954
    %4052 = vmatprep.mubr.bf16.mxu0 %v735
    %4053 = vmatmul.mubr.bf16.gmra.mrb[0].mxu0 %v734
    %v4054 = vpop.f32.mrb[0].mxu0
    %v4055 = vadd.f32 %v1267, %v4054
    %v4056 = vpop.f32.mrb[0].mxu0
    %v4057 = vadd.f32 %v1271, %v4056
    %v4058 = vpop.f32.mrb[0].mxu0
    %v4059 = vpop.f32.mrb[0].mxu0
    %4060 = vdwg.mxu0
    %4061 = vmatprep.subr.bf16.mxu0 %v2963
    %4062 = vmatpush1.bf16.msra.mxu0 %v2962
    %4063 = vmatprep.subr.bf16.mxu0 %v2971
    %4064 = vmatpush1.bf16.msra.mxu0 %v2970
    %4065 = vmatprep.subr.bf16.mxu0 %v2979
    %4066 = vmatpush1.bf16.msra.mxu0 %v2978
    %4067 = vmatprep.subr.bf16.mxu0 %v2987
    %4068 = vmatpush1.bf16.msra.mxu0 %v2986
    %4069 = vmatprep.subr.bf16.mxu0 %v2995
    %4070 = vmatpush1.bf16.msra.mxu0 %v2994
    %4071 = vmatprep.subr.bf16.mxu0 %v3003
    %4072 = vmatpush1.bf16.msra.mxu0 %v3002
    %4073 = vmatprep.subr.bf16.mxu0 %v3011
    %4074 = vmatpush1.bf16.msra.mxu0 %v3010
    %4075 = vmatprep.subr.bf16.mxu0 %v3019
    %4076 = vmatpush1.bf16.msra.mxu0 %v3018
    %4077 = vmatprep.subr.bf16.mxu0 %v3027
    %4078 = vmatpush1.bf16.msra.mxu0 %v3026
    %4079 = vmatprep.subr.bf16.mxu0 %v3035
    %4080 = vmatpush1.bf16.msra.mxu0 %v3034
    %4081 = vmatprep.subr.bf16.mxu0 %v3043
    %4082 = vmatpush1.bf16.msra.mxu0 %v3042
    %4083 = vmatprep.subr.bf16.mxu0 %v3051
    %4084 = vmatpush1.bf16.msra.mxu0 %v3050
    %4085 = vmatprep.subr.bf16.mxu0 %v3059
    %4086 = vmatpush1.bf16.msra.mxu0 %v3058
    %4087 = vmatprep.subr.bf16.mxu0 %v3067
    %4088 = vmatpush1.bf16.msra.mxu0 %v3066
    %4089 = vmatprep.subr.bf16.mxu0 %v3075
    %4090 = vmatpush1.bf16.msra.mxu0 %v3074
    %4091 = vmatprep.subr.bf16.mxu0 %v3083
    %4092 = vmatpush1.bf16.msra.mxu0 %v3082
    %4093 = vmatprep.mubr.bf16.mxu0 %v737
    %4094 = vmatmul.mubr.bf16.gmra.mrb[0].mxu0 %v736
    %v4095 = vpop.f32.mrb[0].mxu0
    %v4096 = vadd.f32 %v4055, %v4095
    %v4097 = vpop.f32.mrb[0].mxu0
    %v4098 = vadd.f32 %v4057, %v4097
    %v4099 = vpop.f32.mrb[0].mxu0
    %v4100 = vpop.f32.mrb[0].mxu0
    %4101 = vdwg.mxu0
    %4102 = vmatprep.subr.bf16.mxu0 %v3091
    %4103 = vmatpush1.bf16.msra.mxu0 %v3090
    %4104 = vmatprep.subr.bf16.mxu0 %v3099
    %4105 = vmatpush1.bf16.msra.mxu0 %v3098
    %4106 = vmatprep.subr.bf16.mxu0 %v3107
    %4107 = vmatpush1.bf16.msra.mxu0 %v3106
    %4108 = vmatprep.subr.bf16.mxu0 %v3115
    %4109 = vmatpush1.bf16.msra.mxu0 %v3114
    %4110 = vmatprep.subr.bf16.mxu0 %v3123
    %4111 = vmatpush1.bf16.msra.mxu0 %v3122
    %4112 = vmatprep.subr.bf16.mxu0 %v3131
    %4113 = vmatpush1.bf16.msra.mxu0 %v3130
    %4114 = vmatprep.subr.bf16.mxu0 %v3139
    %4115 = vmatpush1.bf16.msra.mxu0 %v3138
    %4116 = vmatprep.subr.bf16.mxu0 %v3147
    %4117 = vmatpush1.bf16.msra.mxu0 %v3146
    %4118 = vmatprep.subr.bf16.mxu0 %v3155
    %4119 = vmatpush1.bf16.msra.mxu0 %v3154
    %4120 = vmatprep.subr.bf16.mxu0 %v3163
    %4121 = vmatpush1.bf16.msra.mxu0 %v3162
    %4122 = vmatprep.subr.bf16.mxu0 %v3171
    %4123 = vmatpush1.bf16.msra.mxu0 %v3170
    %4124 = vmatprep.subr.bf16.mxu0 %v3179
    %4125 = vmatpush1.bf16.msra.mxu0 %v3178
    %4126 = vmatprep.subr.bf16.mxu0 %v3187
    %4127 = vmatpush1.bf16.msra.mxu0 %v3186
    %4128 = vmatprep.subr.bf16.mxu0 %v3195
    %4129 = vmatpush1.bf16.msra.mxu0 %v3194
    %4130 = vmatprep.subr.bf16.mxu0 %v3203
    %4131 = vmatpush1.bf16.msra.mxu0 %v3202
    %4132 = vmatprep.subr.bf16.mxu0 %v3211
    %4133 = vmatpush1.bf16.msra.mxu0 %v3210
    %4134 = vmatprep.mubr.bf16.mxu0 %v739
    %4135 = vmatmul.mubr.bf16.gmra.mrb[0].mxu0 %v738
    %v4136 = vpop.f32.mrb[0].mxu0
    %v4137 = vadd.f32 %v4096, %v4136
    %v4138 = vpop.f32.mrb[0].mxu0
    %v4139 = vadd.f32 %v4098, %v4138
    %v4140 = vpop.f32.mrb[0].mxu0
    %v4141 = vpop.f32.mrb[0].mxu0
    %4142 = vdwg.mxu0
    %4143 = vmatprep.subr.bf16.mxu0 %v3219
    %4144 = vmatpush1.bf16.msra.mxu0 %v3218
    %4145 = vmatprep.subr.bf16.mxu0 %v3227
    %4146 = vmatpush1.bf16.msra.mxu0 %v3226
    %4147 = vmatprep.subr.bf16.mxu0 %v3235
    %4148 = vmatpush1.bf16.msra.mxu0 %v3234
    %4149 = vmatprep.subr.bf16.mxu0 %v3243
    %4150 = vmatpush1.bf16.msra.mxu0 %v3242
    %4151 = vmatprep.subr.bf16.mxu0 %v3251
    %4152 = vmatpush1.bf16.msra.mxu0 %v3250
    %4153 = vmatprep.subr.bf16.mxu0 %v3259
    %4154 = vmatpush1.bf16.msra.mxu0 %v3258
    %4155 = vmatprep.subr.bf16.mxu0 %v3267
    %4156 = vmatpush1.bf16.msra.mxu0 %v3266
    %4157 = vmatprep.subr.bf16.mxu0 %v3275
    %4158 = vmatpush1.bf16.msra.mxu0 %v3274
    %4159 = vmatprep.subr.bf16.mxu0 %v3283
    %4160 = vmatpush1.bf16.msra.mxu0 %v3282
    %4161 = vmatprep.subr.bf16.mxu0 %v3291
    %4162 = vmatpush1.bf16.msra.mxu0 %v3290
    %4163 = vmatprep.subr.bf16.mxu0 %v3299
    %4164 = vmatpush1.bf16.msra.mxu0 %v3298
    %4165 = vmatprep.subr.bf16.mxu0 %v3307
    %4166 = vmatpush1.bf16.msra.mxu0 %v3306
    %4167 = vmatprep.subr.bf16.mxu0 %v3315
    %4168 = vmatpush1.bf16.msra.mxu0 %v3314
    %4169 = vmatprep.subr.bf16.mxu0 %v3323
    %4170 = vmatpush1.bf16.msra.mxu0 %v3322
    %4171 = vmatprep.subr.bf16.mxu0 %v3331
    %4172 = vmatpush1.bf16.msra.mxu0 %v3330
    %4173 = vmatprep.subr.bf16.mxu0 %v3339
    %4174 = vmatpush1.bf16.msra.mxu0 %v3338
    %4175 = vmatprep.mubr.bf16.mxu0 %v741
    %4176 = vmatmul.mubr.bf16.gmra.mrb[0].mxu0 %v740
    %v4177 = vpop.f32.mrb[0].mxu0
    %v4178 = vadd.f32 %v4137, %v4177
    %v4179 = vpop.f32.mrb[0].mxu0
    %v4180 = vadd.f32 %v4139, %v4179
    %v4181 = vpop.f32.mrb[0].mxu0
    %v4182 = vpop.f32.mrb[0].mxu0
    %4183 = vdwg.mxu0
    %4184 = vmatprep.subr.bf16.mxu0 %v2837
    %4185 = vmatpush1.bf16.msra.mxu0 %v2836
    %4186 = vmatprep.subr.bf16.mxu0 %v2845
    %4187 = vmatpush1.bf16.msra.mxu0 %v2844
    %4188 = vmatprep.subr.bf16.mxu0 %v2853
    %4189 = vmatpush1.bf16.msra.mxu0 %v2852
    %4190 = vmatprep.subr.bf16.mxu0 %v2861
    %4191 = vmatpush1.bf16.msra.mxu0 %v2860
    %4192 = vmatprep.subr.bf16.mxu0 %v2869
    %4193 = vmatpush1.bf16.msra.mxu0 %v2868
    %4194 = vmatprep.subr.bf16.mxu0 %v2877
    %4195 = vmatpush1.bf16.msra.mxu0 %v2876
    %4196 = vmatprep.subr.bf16.mxu0 %v2885
    %4197 = vmatpush1.bf16.msra.mxu0 %v2884
    %4198 = vmatprep.subr.bf16.mxu0 %v2893
    %4199 = vmatpush1.bf16.msra.mxu0 %v2892
    %4200 = vmatprep.subr.bf16.mxu0 %v2901
    %4201 = vmatpush1.bf16.msra.mxu0 %v2900
    %4202 = vmatprep.subr.bf16.mxu0 %v2909
    %4203 = vmatpush1.bf16.msra.mxu0 %v2908
    %4204 = vmatprep.subr.bf16.mxu0 %v2917
    %4205 = vmatpush1.bf16.msra.mxu0 %v2916
    %4206 = vmatprep.subr.bf16.mxu0 %v2925
    %4207 = vmatpush1.bf16.msra.mxu0 %v2924
    %4208 = vmatprep.subr.bf16.mxu0 %v2933
    %4209 = vmatpush1.bf16.msra.mxu0 %v2932
    %4210 = vmatprep.subr.bf16.mxu0 %v2941
    %4211 = vmatpush1.bf16.msra.mxu0 %v2940
    %4212 = vmatprep.subr.bf16.mxu0 %v2949
    %4213 = vmatpush1.bf16.msra.mxu0 %v2948
    %4214 = vmatprep.subr.bf16.mxu0 %v2957
    %4215 = vmatpush1.bf16.msra.mxu0 %v2956
    %4216 = vmatprep.mubr.bf16.mxu0 %v735
    %4217 = vmatmul.mubr.bf16.gmra.mrb[0].mxu0 %v734
    %v4218 = vpop.f32.mrb[0].mxu0
    %v4219 = vadd.f32 %v1275, %v4218
    %v4220 = vpop.f32.mrb[0].mxu0
    %v4221 = vadd.f32 %v1279, %v4220
    %v4222 = vpop.f32.mrb[0].mxu0
    %v4223 = vpop.f32.mrb[0].mxu0
    %4224 = vdwg.mxu0
    %4225 = vmatprep.subr.bf16.mxu0 %v2965
    %4226 = vmatpush1.bf16.msra.mxu0 %v2964
    %4227 = vmatprep.subr.bf16.mxu0 %v2973
    %4228 = vmatpush1.bf16.msra.mxu0 %v2972
    %4229 = vmatprep.subr.bf16.mxu0 %v2981
    %4230 = vmatpush1.bf16.msra.mxu0 %v2980
    %4231 = vmatprep.subr.bf16.mxu0 %v2989
    %4232 = vmatpush1.bf16.msra.mxu0 %v2988
    %4233 = vmatprep.subr.bf16.mxu0 %v2997
    %4234 = vmatpush1.bf16.msra.mxu0 %v2996
    %4235 = vmatprep.subr.bf16.mxu0 %v3005
    %4236 = vmatpush1.bf16.msra.mxu0 %v3004
    %4237 = vmatprep.subr.bf16.mxu0 %v3013
    %4238 = vmatpush1.bf16.msra.mxu0 %v3012
    %4239 = vmatprep.subr.bf16.mxu0 %v3021
    %4240 = vmatpush1.bf16.msra.mxu0 %v3020
    %4241 = vmatprep.subr.bf16.mxu0 %v3029
    %4242 = vmatpush1.bf16.msra.mxu0 %v3028
    %4243 = vmatprep.subr.bf16.mxu0 %v3037
    %4244 = vmatpush1.bf16.msra.mxu0 %v3036
    %4245 = vmatprep.subr.bf16.mxu0 %v3045
    %4246 = vmatpush1.bf16.msra.mxu0 %v3044
    %4247 = vmatprep.subr.bf16.mxu0 %v3053
    %4248 = vmatpush1.bf16.msra.mxu0 %v3052
    %4249 = vmatprep.subr.bf16.mxu0 %v3061
    %4250 = vmatpush1.bf16.msra.mxu0 %v3060
    %4251 = vmatprep.subr.bf16.mxu0 %v3069
    %4252 = vmatpush1.bf16.msra.mxu0 %v3068
    %4253 = vmatprep.subr.bf16.mxu0 %v3077
    %4254 = vmatpush1.bf16.msra.mxu0 %v3076
    %4255 = vmatprep.subr.bf16.mxu0 %v3085
    %4256 = vmatpush1.bf16.msra.mxu0 %v3084
    %4257 = vmatprep.mubr.bf16.mxu0 %v737
    %4258 = vmatmul.mubr.bf16.gmra.mrb[0].mxu0 %v736
    %v4259 = vpop.f32.mrb[0].mxu0
    %v4260 = vadd.f32 %v4219, %v4259
    %v4261 = vpop.f32.mrb[0].mxu0
    %v4262 = vadd.f32 %v4221, %v4261
    %v4263 = vpop.f32.mrb[0].mxu0
    %v4264 = vpop.f32.mrb[0].mxu0
    %4265 = vdwg.mxu0
    %4266 = vmatprep.subr.bf16.mxu0 %v3093
    %4267 = vmatpush1.bf16.msra.mxu0 %v3092
    %4268 = vmatprep.subr.bf16.mxu0 %v3101
    %4269 = vmatpush1.bf16.msra.mxu0 %v3100
    %4270 = vmatprep.subr.bf16.mxu0 %v3109
    %4271 = vmatpush1.bf16.msra.mxu0 %v3108
    %4272 = vmatprep.subr.bf16.mxu0 %v3117
    %4273 = vmatpush1.bf16.msra.mxu0 %v3116
    %4274 = vmatprep.subr.bf16.mxu0 %v3125
    %4275 = vmatpush1.bf16.msra.mxu0 %v3124
    %4276 = vmatprep.subr.bf16.mxu0 %v3133
    %4277 = vmatpush1.bf16.msra.mxu0 %v3132
    %4278 = vmatprep.subr.bf16.mxu0 %v3141
    %4279 = vmatpush1.bf16.msra.mxu0 %v3140
    %4280 = vmatprep.subr.bf16.mxu0 %v3149
    %4281 = vmatpush1.bf16.msra.mxu0 %v3148
    %4282 = vmatprep.subr.bf16.mxu0 %v3157
    %4283 = vmatpush1.bf16.msra.mxu0 %v3156
    %4284 = vmatprep.subr.bf16.mxu0 %v3165
    %4285 = vmatpush1.bf16.msra.mxu0 %v3164
    %4286 = vmatprep.subr.bf16.mxu0 %v3173
    %4287 = vmatpush1.bf16.msra.mxu0 %v3172
    %4288 = vmatprep.subr.bf16.mxu0 %v3181
    %4289 = vmatpush1.bf16.msra.mxu0 %v3180
    %4290 = vmatprep.subr.bf16.mxu0 %v3189
    %4291 = vmatpush1.bf16.msra.mxu0 %v3188
    %4292 = vmatprep.subr.bf16.mxu0 %v3197
    %4293 = vmatpush1.bf16.msra.mxu0 %v3196
    %4294 = vmatprep.subr.bf16.mxu0 %v3205
    %4295 = vmatpush1.bf16.msra.mxu0 %v3204
    %4296 = vmatprep.subr.bf16.mxu0 %v3213
    %4297 = vmatpush1.bf16.msra.mxu0 %v3212
    %4298 = vmatprep.mubr.bf16.mxu0 %v739
    %4299 = vmatmul.mubr.bf16.gmra.mrb[0].mxu0 %v738
    %v4300 = vpop.f32.mrb[0].mxu0
    %v4301 = vadd.f32 %v4260, %v4300
    %v4302 = vpop.f32.mrb[0].mxu0
    %v4303 = vadd.f32 %v4262, %v4302
    %v4304 = vpop.f32.mrb[0].mxu0
    %v4305 = vpop.f32.mrb[0].mxu0
    %4306 = vdwg.mxu0
    %4307 = vmatprep.subr.bf16.mxu0 %v3221
    %4308 = vmatpush1.bf16.msra.mxu0 %v3220
    %4309 = vmatprep.subr.bf16.mxu0 %v3229
    %4310 = vmatpush1.bf16.msra.mxu0 %v3228
    %4311 = vmatprep.subr.bf16.mxu0 %v3237
    %4312 = vmatpush1.bf16.msra.mxu0 %v3236
    %4313 = vmatprep.subr.bf16.mxu0 %v3245
    %4314 = vmatpush1.bf16.msra.mxu0 %v3244
    %4315 = vmatprep.subr.bf16.mxu0 %v3253
    %4316 = vmatpush1.bf16.msra.mxu0 %v3252
    %4317 = vmatprep.subr.bf16.mxu0 %v3261
    %4318 = vmatpush1.bf16.msra.mxu0 %v3260
    %4319 = vmatprep.subr.bf16.mxu0 %v3269
    %4320 = vmatpush1.bf16.msra.mxu0 %v3268
    %4321 = vmatprep.subr.bf16.mxu0 %v3277
    %4322 = vmatpush1.bf16.msra.mxu0 %v3276
    %4323 = vmatprep.subr.bf16.mxu0 %v3285
    %4324 = vmatpush1.bf16.msra.mxu0 %v3284
    %4325 = vmatprep.subr.bf16.mxu0 %v3293
    %4326 = vmatpush1.bf16.msra.mxu0 %v3292
    %4327 = vmatprep.subr.bf16.mxu0 %v3301
    %4328 = vmatpush1.bf16.msra.mxu0 %v3300
    %4329 = vmatprep.subr.bf16.mxu0 %v3309
    %4330 = vmatpush1.bf16.msra.mxu0 %v3308
    %4331 = vmatprep.subr.bf16.mxu0 %v3317
    %4332 = vmatpush1.bf16.msra.mxu0 %v3316
    %4333 = vmatprep.subr.bf16.mxu0 %v3325
    %4334 = vmatpush1.bf16.msra.mxu0 %v3324
    %4335 = vmatprep.subr.bf16.mxu0 %v3333
    %4336 = vmatpush1.bf16.msra.mxu0 %v3332
    %4337 = vmatprep.subr.bf16.mxu0 %v3341
    %4338 = vmatpush1.bf16.msra.mxu0 %v3340
    %4339 = vmatprep.mubr.bf16.mxu0 %v741
    %4340 = vmatmul.mubr.bf16.gmra.mrb[0].mxu0 %v740
    %v4341 = vpop.f32.mrb[0].mxu0
    %v4342 = vadd.f32 %v4301, %v4341
    %v4343 = vpop.f32.mrb[0].mxu0
    %v4344 = vadd.f32 %v4303, %v4343
    %v4345 = vpop.f32.mrb[0].mxu0
    %v4346 = vpop.f32.mrb[0].mxu0
    %4347 = vdwg.mxu0
    %4348 = vmatprep.subr.bf16.mxu0 %v2839
    %4349 = vmatpush1.bf16.msra.mxu0 %v2838
    %4350 = vmatprep.subr.bf16.mxu0 %v2847
    %4351 = vmatpush1.bf16.msra.mxu0 %v2846
    %4352 = vmatprep.subr.bf16.mxu0 %v2855
    %4353 = vmatpush1.bf16.msra.mxu0 %v2854
    %4354 = vmatprep.subr.bf16.mxu0 %v2863
    %4355 = vmatpush1.bf16.msra.mxu0 %v2862
    %4356 = vmatprep.subr.bf16.mxu0 %v2871
    %4357 = vmatpush1.bf16.msra.mxu0 %v2870
    %4358 = vmatprep.subr.bf16.mxu0 %v2879
    %4359 = vmatpush1.bf16.msra.mxu0 %v2878
    %4360 = vmatprep.subr.bf16.mxu0 %v2887
    %4361 = vmatpush1.bf16.msra.mxu0 %v2886
    %4362 = vmatprep.subr.bf16.mxu0 %v2895
    %4363 = vmatpush1.bf16.msra.mxu0 %v2894
    %4364 = vmatprep.subr.bf16.mxu0 %v2903
    %4365 = vmatpush1.bf16.msra.mxu0 %v2902
    %4366 = vmatprep.subr.bf16.mxu0 %v2911
    %4367 = vmatpush1.bf16.msra.mxu0 %v2910
    %4368 = vmatprep.subr.bf16.mxu0 %v2919
    %4369 = vmatpush1.bf16.msra.mxu0 %v2918
    %4370 = vmatprep.subr.bf16.mxu0 %v2927
    %4371 = vmatpush1.bf16.msra.mxu0 %v2926
    %4372 = vmatprep.subr.bf16.mxu0 %v2935
    %4373 = vmatpush1.bf16.msra.mxu0 %v2934
    %4374 = vmatprep.subr.bf16.mxu0 %v2943
    %4375 = vmatpush1.bf16.msra.mxu0 %v2942
    %4376 = vmatprep.subr.bf16.mxu0 %v2951
    %4377 = vmatpush1.bf16.msra.mxu0 %v2950
    %4378 = vmatprep.subr.bf16.mxu0 %v2959
    %4379 = vmatpush1.bf16.msra.mxu0 %v2958
    %4380 = vmatprep.mubr.bf16.mxu0 %v735
    %4381 = vmatmul.mubr.bf16.gmra.mrb[0].mxu0 %v734
    %v4382 = vpop.f32.mrb[0].mxu0
    %v4383 = vadd.f32 %v1283, %v4382
    %v4384 = vpop.f32.mrb[0].mxu0
    %v4385 = vadd.f32 %v1287, %v4384
    %v4386 = vpop.f32.mrb[0].mxu0
    %v4387 = vpop.f32.mrb[0].mxu0
    %4388 = vdwg.mxu0
    %4389 = vmatprep.subr.bf16.mxu0 %v2967
    %4390 = vmatpush1.bf16.msra.mxu0 %v2966
    %4391 = vmatprep.subr.bf16.mxu0 %v2975
    %4392 = vmatpush1.bf16.msra.mxu0 %v2974
    %4393 = vmatprep.subr.bf16.mxu0 %v2983
    %4394 = vmatpush1.bf16.msra.mxu0 %v2982
    %4395 = vmatprep.subr.bf16.mxu0 %v2991
    %4396 = vmatpush1.bf16.msra.mxu0 %v2990
    %4397 = vmatprep.subr.bf16.mxu0 %v2999
    %4398 = vmatpush1.bf16.msra.mxu0 %v2998
    %4399 = vmatprep.subr.bf16.mxu0 %v3007
    %4400 = vmatpush1.bf16.msra.mxu0 %v3006
    %4401 = vmatprep.subr.bf16.mxu0 %v3015
    %4402 = vmatpush1.bf16.msra.mxu0 %v3014
    %4403 = vmatprep.subr.bf16.mxu0 %v3023
    %4404 = vmatpush1.bf16.msra.mxu0 %v3022
    %4405 = vmatprep.subr.bf16.mxu0 %v3031
    %4406 = vmatpush1.bf16.msra.mxu0 %v3030
    %4407 = vmatprep.subr.bf16.mxu0 %v3039
    %4408 = vmatpush1.bf16.msra.mxu0 %v3038
    %4409 = vmatprep.subr.bf16.mxu0 %v3047
    %4410 = vmatpush1.bf16.msra.mxu0 %v3046
    %4411 = vmatprep.subr.bf16.mxu0 %v3055
    %4412 = vmatpush1.bf16.msra.mxu0 %v3054
    %4413 = vmatprep.subr.bf16.mxu0 %v3063
    %4414 = vmatpush1.bf16.msra.mxu0 %v3062
    %4415 = vmatprep.subr.bf16.mxu0 %v3071
    %4416 = vmatpush1.bf16.msra.mxu0 %v3070
    %4417 = vmatprep.subr.bf16.mxu0 %v3079
    %4418 = vmatpush1.bf16.msra.mxu0 %v3078
    %4419 = vmatprep.subr.bf16.mxu0 %v3087
    %4420 = vmatpush1.bf16.msra.mxu0 %v3086
    %4421 = vmatprep.mubr.bf16.mxu0 %v737
    %4422 = vmatmul.mubr.bf16.gmra.mrb[0].mxu0 %v736
    %v4423 = vpop.f32.mrb[0].mxu0
    %v4424 = vadd.f32 %v4383, %v4423
    %v4425 = vpop.f32.mrb[0].mxu0
    %v4426 = vadd.f32 %v4385, %v4425
    %v4427 = vpop.f32.mrb[0].mxu0
    %v4428 = vpop.f32.mrb[0].mxu0
    %4429 = vdwg.mxu0
    %4430 = vmatprep.subr.bf16.mxu0 %v3095
    %4431 = vmatpush1.bf16.msra.mxu0 %v3094
    %4432 = vmatprep.subr.bf16.mxu0 %v3103
    %4433 = vmatpush1.bf16.msra.mxu0 %v3102
    %4434 = vmatprep.subr.bf16.mxu0 %v3111
    %4435 = vmatpush1.bf16.msra.mxu0 %v3110
    %4436 = vmatprep.subr.bf16.mxu0 %v3119
    %4437 = vmatpush1.bf16.msra.mxu0 %v3118
    %4438 = vmatprep.subr.bf16.mxu0 %v3127
    %4439 = vmatpush1.bf16.msra.mxu0 %v3126
    %4440 = vmatprep.subr.bf16.mxu0 %v3135
    %4441 = vmatpush1.bf16.msra.mxu0 %v3134
    %4442 = vmatprep.subr.bf16.mxu0 %v3143
    %4443 = vmatpush1.bf16.msra.mxu0 %v3142
    %4444 = vmatprep.subr.bf16.mxu0 %v3151
    %4445 = vmatpush1.bf16.msra.mxu0 %v3150
    %4446 = vmatprep.subr.bf16.mxu0 %v3159
    %4447 = vmatpush1.bf16.msra.mxu0 %v3158
    %4448 = vmatprep.subr.bf16.mxu0 %v3167
    %4449 = vmatpush1.bf16.msra.mxu0 %v3166
    %4450 = vmatprep.subr.bf16.mxu0 %v3175
    %4451 = vmatpush1.bf16.msra.mxu0 %v3174
    %4452 = vmatprep.subr.bf16.mxu0 %v3183
    %4453 = vmatpush1.bf16.msra.mxu0 %v3182
    %4454 = vmatprep.subr.bf16.mxu0 %v3191
    %4455 = vmatpush1.bf16.msra.mxu0 %v3190
    %4456 = vmatprep.subr.bf16.mxu0 %v3199
    %4457 = vmatpush1.bf16.msra.mxu0 %v3198
    %4458 = vmatprep.subr.bf16.mxu0 %v3207
    %4459 = vmatpush1.bf16.msra.mxu0 %v3206
    %4460 = vmatprep.subr.bf16.mxu0 %v3215
    %4461 = vmatpush1.bf16.msra.mxu0 %v3214
    %4462 = vmatprep.mubr.bf16.mxu0 %v739
    %4463 = vmatmul.mubr.bf16.gmra.mrb[0].mxu0 %v738
    %v4464 = vpop.f32.mrb[0].mxu0
    %v4465 = vadd.f32 %v4424, %v4464
    %v4466 = vpop.f32.mrb[0].mxu0
    %v4467 = vadd.f32 %v4426, %v4466
    %v4468 = vpop.f32.mrb[0].mxu0
    %v4469 = vpop.f32.mrb[0].mxu0
    %4470 = vdwg.mxu0
    %4471 = vmatprep.subr.bf16.mxu0 %v3223
    %4472 = vmatpush1.bf16.msra.mxu0 %v3222
    %4473 = vmatprep.subr.bf16.mxu0 %v3231
    %4474 = vmatpush1.bf16.msra.mxu0 %v3230
    %4475 = vmatprep.subr.bf16.mxu0 %v3239
    %4476 = vmatpush1.bf16.msra.mxu0 %v3238
    %4477 = vmatprep.subr.bf16.mxu0 %v3247
    %4478 = vmatpush1.bf16.msra.mxu0 %v3246
    %4479 = vmatprep.subr.bf16.mxu0 %v3255
    %4480 = vmatpush1.bf16.msra.mxu0 %v3254
    %4481 = vmatprep.subr.bf16.mxu0 %v3263
    %4482 = vmatpush1.bf16.msra.mxu0 %v3262
    %4483 = vmatprep.subr.bf16.mxu0 %v3271
    %4484 = vmatpush1.bf16.msra.mxu0 %v3270
    %4485 = vmatprep.subr.bf16.mxu0 %v3279
    %4486 = vmatpush1.bf16.msra.mxu0 %v3278
    %4487 = vmatprep.subr.bf16.mxu0 %v3287
    %4488 = vmatpush1.bf16.msra.mxu0 %v3286
    %4489 = vmatprep.subr.bf16.mxu0 %v3295
    %4490 = vmatpush1.bf16.msra.mxu0 %v3294
    %4491 = vmatprep.subr.bf16.mxu0 %v3303
    %4492 = vmatpush1.bf16.msra.mxu0 %v3302
    %4493 = vmatprep.subr.bf16.mxu0 %v3311
    %4494 = vmatpush1.bf16.msra.mxu0 %v3310
    %4495 = vmatprep.subr.bf16.mxu0 %v3319
    %4496 = vmatpush1.bf16.msra.mxu0 %v3318
    %4497 = vmatprep.subr.bf16.mxu0 %v3327
    %4498 = vmatpush1.bf16.msra.mxu0 %v3326
    %4499 = vmatprep.subr.bf16.mxu0 %v3335
    %4500 = vmatpush1.bf16.msra.mxu0 %v3334
    %4501 = vmatprep.subr.bf16.mxu0 %v3343
    %4502 = vmatpush1.bf16.msra.mxu0 %v3342
    %4503 = vmatprep.mubr.bf16.mxu0 %v741
    %4504 = vmatmul.mubr.bf16.gmra.mrb[0].mxu0 %v740
    %v4505 = vpop.f32.mrb[0].mxu0
    %v4506 = vadd.f32 %v4465, %v4505
    %v4507 = vpop.f32.mrb[0].mxu0
    %v4508 = vadd.f32 %v4467, %v4507
    %v4509 = vpop.f32.mrb[0].mxu0
    %v4510 = vpop.f32.mrb[0].mxu0
    %4511 = vdwg.mxu0
    %v4512 = vmax.f32 %v4014, 0.0
    %v4513 = vmax.f32 %v4016, 0.0
    %v4514 = vmax.f32 %v4178, 0.0
    %v4515 = vmax.f32 %v4180, 0.0
    %v4516 = vmax.f32 %v4342, 0.0
    %v4517 = vmax.f32 %v4344, 0.0
    %v4518 = vmax.f32 %v4506, 0.0
    %v4519 = vmax.f32 %v4508, 0.0
    %v4520 = vpack.c.bf16 %v4512, %v4512
    %v4521 = vpack.c.bf16 %v4513, %v4513
    %v4522 = vpack.c.bf16 %v4514, %v4514
    %v4523 = vpack.c.bf16 %v4515, %v4515
    %v4524 = vpack.c.bf16 %v4516, %v4516
    %v4525 = vpack.c.bf16 %v4517, %v4517
    %v4526 = vpack.c.bf16 %v4518, %v4518
    %v4527 = vpack.c.bf16 %v4519, %v4519
    %v4528 = vld [vmem:[#allocation10] sm:$0xff]
    %v4529 = vld [vmem:[#allocation10 + $0x8] sm:$0xff]
    %v4530 = vld [vmem:[#allocation10 + $0x10] sm:$0xff]
    %v4531 = vld [vmem:[#allocation10 + $0x18] sm:$0xff]
    %v4532 = vld [vmem:[#allocation10 + $0x20] sm:$0xff]
    %v4533 = vld [vmem:[#allocation10 + $0x28] sm:$0xff]
    %v4534 = vld [vmem:[#allocation10 + $0x30] sm:$0xff]
    %v4535 = vld [vmem:[#allocation10 + $0x38] sm:$0xff]
    %v4536 = vld [vmem:[#allocation10 + $0x40] sm:$0xff]
    %v4537 = vld [vmem:[#allocation10 + $0x48] sm:$0xff]
    %v4538 = vld [vmem:[#allocation10 + $0x50] sm:$0xff]
    %v4539 = vld [vmem:[#allocation10 + $0x58] sm:$0xff]
    %v4540 = vld [vmem:[#allocation10 + $0x60] sm:$0xff]
    %v4541 = vld [vmem:[#allocation10 + $0x68] sm:$0xff]
    %v4542 = vld [vmem:[#allocation10 + $0x70] sm:$0xff]
    %v4543 = vld [vmem:[#allocation10 + $0x78] sm:$0xff]
    %v4544 = vld [vmem:[#allocation10 + $0x80] sm:$0xff]
    %v4545 = vld [vmem:[#allocation10 + $0x88] sm:$0xff]
    %v4546 = vld [vmem:[#allocation10 + $0x90] sm:$0xff]
    %v4547 = vld [vmem:[#allocation10 + $0x98] sm:$0xff]
    %v4548 = vld [vmem:[#allocation10 + $0xa0] sm:$0xff]
    %v4549 = vld [vmem:[#allocation10 + $0xa8] sm:$0xff]
    %v4550 = vld [vmem:[#allocation10 + $0xb0] sm:$0xff]
    %v4551 = vld [vmem:[#allocation10 + $0xb8] sm:$0xff]
    %v4552 = vld [vmem:[#allocation10 + $0xc0] sm:$0xff]
    %v4553 = vld [vmem:[#allocation10 + $0xc8] sm:$0xff]
    %v4554 = vld [vmem:[#allocation10 + $0xd0] sm:$0xff]
    %v4555 = vld [vmem:[#allocation10 + $0xd8] sm:$0xff]
    %v4556 = vld [vmem:[#allocation10 + $0xe0] sm:$0xff]
    %v4557 = vld [vmem:[#allocation10 + $0xe8] sm:$0xff]
    %v4558 = vld [vmem:[#allocation10 + $0xf0] sm:$0xff]
    %v4559 = vld [vmem:[#allocation10 + $0xf8] sm:$0xff]
    %v4560 = vld [vmem:[#allocation10 + $0x100] sm:$0xff]
    %v4561 = vld [vmem:[#allocation10 + $0x108] sm:$0xff]
    %v4562 = vld [vmem:[#allocation10 + $0x110] sm:$0xff]
    %v4563 = vld [vmem:[#allocation10 + $0x118] sm:$0xff]
    %v4564 = vld [vmem:[#allocation10 + $0x120] sm:$0xff]
    %v4565 = vld [vmem:[#allocation10 + $0x128] sm:$0xff]
    %v4566 = vld [vmem:[#allocation10 + $0x130] sm:$0xff]
    %v4567 = vld [vmem:[#allocation10 + $0x138] sm:$0xff]
    %v4568 = vld [vmem:[#allocation10 + $0x140] sm:$0xff]
    %v4569 = vld [vmem:[#allocation10 + $0x148] sm:$0xff]
    %v4570 = vld [vmem:[#allocation10 + $0x150] sm:$0xff]
    %v4571 = vld [vmem:[#allocation10 + $0x158] sm:$0xff]
    %v4572 = vld [vmem:[#allocation10 + $0x160] sm:$0xff]
    %v4573 = vld [vmem:[#allocation10 + $0x168] sm:$0xff]
    %v4574 = vld [vmem:[#allocation10 + $0x170] sm:$0xff]
    %v4575 = vld [vmem:[#allocation10 + $0x178] sm:$0xff]
    %v4576 = vld [vmem:[#allocation10 + $0x180] sm:$0xff]
    %v4577 = vld [vmem:[#allocation10 + $0x188] sm:$0xff]
    %v4578 = vld [vmem:[#allocation10 + $0x190] sm:$0xff]
    %v4579 = vld [vmem:[#allocation10 + $0x198] sm:$0xff]
    %v4580 = vld [vmem:[#allocation10 + $0x1a0] sm:$0xff]
    %v4581 = vld [vmem:[#allocation10 + $0x1a8] sm:$0xff]
    %v4582 = vld [vmem:[#allocation10 + $0x1b0] sm:$0xff]
    %v4583 = vld [vmem:[#allocation10 + $0x1b8] sm:$0xff]
    %v4584 = vld [vmem:[#allocation10 + $0x1c0] sm:$0xff]
    %v4585 = vld [vmem:[#allocation10 + $0x1c8] sm:$0xff]
    %v4586 = vld [vmem:[#allocation10 + $0x1d0] sm:$0xff]
    %v4587 = vld [vmem:[#allocation10 + $0x1d8] sm:$0xff]
    %v4588 = vld [vmem:[#allocation10 + $0x1e0] sm:$0xff]
    %v4589 = vld [vmem:[#allocation10 + $0x1e8] sm:$0xff]
    %v4590 = vld [vmem:[#allocation10 + $0x1f0] sm:$0xff]
    %v4591 = vld [vmem:[#allocation10 + $0x1f8] sm:$0xff]
    %v4592 = vld [vmem:[#allocation10 + $0x200] sm:$0xff]
    %v4593 = vld [vmem:[#allocation10 + $0x208] sm:$0xff]
    %v4594 = vld [vmem:[#allocation10 + $0x210] sm:$0xff]
    %v4595 = vld [vmem:[#allocation10 + $0x218] sm:$0xff]
    %v4596 = vld [vmem:[#allocation10 + $0x220] sm:$0xff]
    %v4597 = vld [vmem:[#allocation10 + $0x228] sm:$0xff]
    %v4598 = vld [vmem:[#allocation10 + $0x230] sm:$0xff]
    %v4599 = vld [vmem:[#allocation10 + $0x238] sm:$0xff]
    %v4600 = vld [vmem:[#allocation10 + $0x240] sm:$0xff]
    %v4601 = vld [vmem:[#allocation10 + $0x248] sm:$0xff]
    %v4602 = vld [vmem:[#allocation10 + $0x250] sm:$0xff]
    %v4603 = vld [vmem:[#allocation10 + $0x258] sm:$0xff]
    %v4604 = vld [vmem:[#allocation10 + $0x260] sm:$0xff]
    %v4605 = vld [vmem:[#allocation10 + $0x268] sm:$0xff]
    %v4606 = vld [vmem:[#allocation10 + $0x270] sm:$0xff]
    %v4607 = vld [vmem:[#allocation10 + $0x278] sm:$0xff]
    %v4608 = vld [vmem:[#allocation10 + $0x280] sm:$0xff]
    %v4609 = vld [vmem:[#allocation10 + $0x288] sm:$0xff]
    %v4610 = vld [vmem:[#allocation10 + $0x290] sm:$0xff]
    %v4611 = vld [vmem:[#allocation10 + $0x298] sm:$0xff]
    %v4612 = vld [vmem:[#allocation10 + $0x2a0] sm:$0xff]
    %v4613 = vld [vmem:[#allocation10 + $0x2a8] sm:$0xff]
    %v4614 = vld [vmem:[#allocation10 + $0x2b0] sm:$0xff]
    %v4615 = vld [vmem:[#allocation10 + $0x2b8] sm:$0xff]
    %v4616 = vld [vmem:[#allocation10 + $0x2c0] sm:$0xff]
    %v4617 = vld [vmem:[#allocation10 + $0x2c8] sm:$0xff]
    %v4618 = vld [vmem:[#allocation10 + $0x2d0] sm:$0xff]
    %v4619 = vld [vmem:[#allocation10 + $0x2d8] sm:$0xff]
    %v4620 = vld [vmem:[#allocation10 + $0x2e0] sm:$0xff]
    %v4621 = vld [vmem:[#allocation10 + $0x2e8] sm:$0xff]
    %v4622 = vld [vmem:[#allocation10 + $0x2f0] sm:$0xff]
    %v4623 = vld [vmem:[#allocation10 + $0x2f8] sm:$0xff]
    %v4624 = vld [vmem:[#allocation10 + $0x300] sm:$0xff]
    %v4625 = vld [vmem:[#allocation10 + $0x308] sm:$0xff]
    %v4626 = vld [vmem:[#allocation10 + $0x310] sm:$0xff]
    %v4627 = vld [vmem:[#allocation10 + $0x318] sm:$0xff]
    %v4628 = vld [vmem:[#allocation10 + $0x320] sm:$0xff]
    %v4629 = vld [vmem:[#allocation10 + $0x328] sm:$0xff]
    %v4630 = vld [vmem:[#allocation10 + $0x330] sm:$0xff]
    %v4631 = vld [vmem:[#allocation10 + $0x338] sm:$0xff]
    %v4632 = vld [vmem:[#allocation10 + $0x340] sm:$0xff]
    %v4633 = vld [vmem:[#allocation10 + $0x348] sm:$0xff]
    %v4634 = vld [vmem:[#allocation10 + $0x350] sm:$0xff]
    %v4635 = vld [vmem:[#allocation10 + $0x358] sm:$0xff]
    %v4636 = vld [vmem:[#allocation10 + $0x360] sm:$0xff]
    %v4637 = vld [vmem:[#allocation10 + $0x368] sm:$0xff]
    %v4638 = vld [vmem:[#allocation10 + $0x370] sm:$0xff]
    %v4639 = vld [vmem:[#allocation10 + $0x378] sm:$0xff]
    %v4640 = vld [vmem:[#allocation10 + $0x380] sm:$0xff]
    %v4641 = vld [vmem:[#allocation10 + $0x388] sm:$0xff]
    %v4642 = vld [vmem:[#allocation10 + $0x390] sm:$0xff]
    %v4643 = vld [vmem:[#allocation10 + $0x398] sm:$0xff]
    %v4644 = vld [vmem:[#allocation10 + $0x3a0] sm:$0xff]
    %v4645 = vld [vmem:[#allocation10 + $0x3a8] sm:$0xff]
    %v4646 = vld [vmem:[#allocation10 + $0x3b0] sm:$0xff]
    %v4647 = vld [vmem:[#allocation10 + $0x3b8] sm:$0xff]
    %v4648 = vld [vmem:[#allocation10 + $0x3c0] sm:$0xff]
    %v4649 = vld [vmem:[#allocation10 + $0x3c8] sm:$0xff]
    %v4650 = vld [vmem:[#allocation10 + $0x3d0] sm:$0xff]
    %v4651 = vld [vmem:[#allocation10 + $0x3d8] sm:$0xff]
    %v4652 = vld [vmem:[#allocation10 + $0x3e0] sm:$0xff]
    %v4653 = vld [vmem:[#allocation10 + $0x3e8] sm:$0xff]
    %v4654 = vld [vmem:[#allocation10 + $0x3f0] sm:$0xff]
    %v4655 = vld [vmem:[#allocation10 + $0x3f8] sm:$0xff]
    %v4656 = vld [vmem:[#allocation10 + $0x400] sm:$0xff]
    %v4657 = vld [vmem:[#allocation10 + $0x408] sm:$0xff]
    %v4658 = vld [vmem:[#allocation10 + $0x410] sm:$0xff]
    %v4659 = vld [vmem:[#allocation10 + $0x418] sm:$0xff]
    %v4660 = vld [vmem:[#allocation10 + $0x420] sm:$0xff]
    %v4661 = vld [vmem:[#allocation10 + $0x428] sm:$0xff]
    %v4662 = vld [vmem:[#allocation10 + $0x430] sm:$0xff]
    %v4663 = vld [vmem:[#allocation10 + $0x438] sm:$0xff]
    %v4664 = vld [vmem:[#allocation10 + $0x440] sm:$0xff]
    %v4665 = vld [vmem:[#allocation10 + $0x448] sm:$0xff]
    %v4666 = vld [vmem:[#allocation10 + $0x450] sm:$0xff]
    %v4667 = vld [vmem:[#allocation10 + $0x458] sm:$0xff]
    %v4668 = vld [vmem:[#allocation10 + $0x460] sm:$0xff]
    %v4669 = vld [vmem:[#allocation10 + $0x468] sm:$0xff]
    %v4670 = vld [vmem:[#allocation10 + $0x470] sm:$0xff]
    %v4671 = vld [vmem:[#allocation10 + $0x478] sm:$0xff]
    %v4672 = vld [vmem:[#allocation10 + $0x480] sm:$0xff]
    %v4673 = vld [vmem:[#allocation10 + $0x488] sm:$0xff]
    %v4674 = vld [vmem:[#allocation10 + $0x490] sm:$0xff]
    %v4675 = vld [vmem:[#allocation10 + $0x498] sm:$0xff]
    %v4676 = vld [vmem:[#allocation10 + $0x4a0] sm:$0xff]
    %v4677 = vld [vmem:[#allocation10 + $0x4a8] sm:$0xff]
    %v4678 = vld [vmem:[#allocation10 + $0x4b0] sm:$0xff]
    %v4679 = vld [vmem:[#allocation10 + $0x4b8] sm:$0xff]
    %v4680 = vld [vmem:[#allocation10 + $0x4c0] sm:$0xff]
    %v4681 = vld [vmem:[#allocation10 + $0x4c8] sm:$0xff]
    %v4682 = vld [vmem:[#allocation10 + $0x4d0] sm:$0xff]
    %v4683 = vld [vmem:[#allocation10 + $0x4d8] sm:$0xff]
    %v4684 = vld [vmem:[#allocation10 + $0x4e0] sm:$0xff]
    %v4685 = vld [vmem:[#allocation10 + $0x4e8] sm:$0xff]
    %v4686 = vld [vmem:[#allocation10 + $0x4f0] sm:$0xff]
    %v4687 = vld [vmem:[#allocation10 + $0x4f8] sm:$0xff]
    %v4688 = vld [vmem:[#allocation10 + $0x500] sm:$0xff]
    %v4689 = vld [vmem:[#allocation10 + $0x508] sm:$0xff]
    %v4690 = vld [vmem:[#allocation10 + $0x510] sm:$0xff]
    %v4691 = vld [vmem:[#allocation10 + $0x518] sm:$0xff]
    %v4692 = vld [vmem:[#allocation10 + $0x520] sm:$0xff]
    %v4693 = vld [vmem:[#allocation10 + $0x528] sm:$0xff]
    %v4694 = vld [vmem:[#allocation10 + $0x530] sm:$0xff]
    %v4695 = vld [vmem:[#allocation10 + $0x538] sm:$0xff]
    %v4696 = vld [vmem:[#allocation10 + $0x540] sm:$0xff]
    %v4697 = vld [vmem:[#allocation10 + $0x548] sm:$0xff]
    %v4698 = vld [vmem:[#allocation10 + $0x550] sm:$0xff]
    %v4699 = vld [vmem:[#allocation10 + $0x558] sm:$0xff]
    %v4700 = vld [vmem:[#allocation10 + $0x560] sm:$0xff]
    %v4701 = vld [vmem:[#allocation10 + $0x568] sm:$0xff]
    %v4702 = vld [vmem:[#allocation10 + $0x570] sm:$0xff]
    %v4703 = vld [vmem:[#allocation10 + $0x578] sm:$0xff]
    %v4704 = vld [vmem:[#allocation10 + $0x580] sm:$0xff]
    %v4705 = vld [vmem:[#allocation10 + $0x588] sm:$0xff]
    %v4706 = vld [vmem:[#allocation10 + $0x590] sm:$0xff]
    %v4707 = vld [vmem:[#allocation10 + $0x598] sm:$0xff]
    %v4708 = vld [vmem:[#allocation10 + $0x5a0] sm:$0xff]
    %v4709 = vld [vmem:[#allocation10 + $0x5a8] sm:$0xff]
    %v4710 = vld [vmem:[#allocation10 + $0x5b0] sm:$0xff]
    %v4711 = vld [vmem:[#allocation10 + $0x5b8] sm:$0xff]
    %v4712 = vld [vmem:[#allocation10 + $0x5c0] sm:$0xff]
    %v4713 = vld [vmem:[#allocation10 + $0x5c8] sm:$0xff]
    %v4714 = vld [vmem:[#allocation10 + $0x5d0] sm:$0xff]
    %v4715 = vld [vmem:[#allocation10 + $0x5d8] sm:$0xff]
    %v4716 = vld [vmem:[#allocation10 + $0x5e0] sm:$0xff]
    %v4717 = vld [vmem:[#allocation10 + $0x5e8] sm:$0xff]
    %v4718 = vld [vmem:[#allocation10 + $0x5f0] sm:$0xff]
    %v4719 = vld [vmem:[#allocation10 + $0x5f8] sm:$0xff]
    %v4720 = vld [vmem:[#allocation10 + $0x600] sm:$0xff]
    %v4721 = vld [vmem:[#allocation10 + $0x608] sm:$0xff]
    %v4722 = vld [vmem:[#allocation10 + $0x610] sm:$0xff]
    %v4723 = vld [vmem:[#allocation10 + $0x618] sm:$0xff]
    %v4724 = vld [vmem:[#allocation10 + $0x620] sm:$0xff]
    %v4725 = vld [vmem:[#allocation10 + $0x628] sm:$0xff]
    %v4726 = vld [vmem:[#allocation10 + $0x630] sm:$0xff]
    %v4727 = vld [vmem:[#allocation10 + $0x638] sm:$0xff]
    %v4728 = vld [vmem:[#allocation10 + $0x640] sm:$0xff]
    %v4729 = vld [vmem:[#allocation10 + $0x648] sm:$0xff]
    %v4730 = vld [vmem:[#allocation10 + $0x650] sm:$0xff]
    %v4731 = vld [vmem:[#allocation10 + $0x658] sm:$0xff]
    %v4732 = vld [vmem:[#allocation10 + $0x660] sm:$0xff]
    %v4733 = vld [vmem:[#allocation10 + $0x668] sm:$0xff]
    %v4734 = vld [vmem:[#allocation10 + $0x670] sm:$0xff]
    %v4735 = vld [vmem:[#allocation10 + $0x678] sm:$0xff]
    %v4736 = vld [vmem:[#allocation10 + $0x680] sm:$0xff]
    %v4737 = vld [vmem:[#allocation10 + $0x688] sm:$0xff]
    %v4738 = vld [vmem:[#allocation10 + $0x690] sm:$0xff]
    %v4739 = vld [vmem:[#allocation10 + $0x698] sm:$0xff]
    %v4740 = vld [vmem:[#allocation10 + $0x6a0] sm:$0xff]
    %v4741 = vld [vmem:[#allocation10 + $0x6a8] sm:$0xff]
    %v4742 = vld [vmem:[#allocation10 + $0x6b0] sm:$0xff]
    %v4743 = vld [vmem:[#allocation10 + $0x6b8] sm:$0xff]
    %v4744 = vld [vmem:[#allocation10 + $0x6c0] sm:$0xff]
    %v4745 = vld [vmem:[#allocation10 + $0x6c8] sm:$0xff]
    %v4746 = vld [vmem:[#allocation10 + $0x6d0] sm:$0xff]
    %v4747 = vld [vmem:[#allocation10 + $0x6d8] sm:$0xff]
    %v4748 = vld [vmem:[#allocation10 + $0x6e0] sm:$0xff]
    %v4749 = vld [vmem:[#allocation10 + $0x6e8] sm:$0xff]
    %v4750 = vld [vmem:[#allocation10 + $0x6f0] sm:$0xff]
    %v4751 = vld [vmem:[#allocation10 + $0x6f8] sm:$0xff]
    %v4752 = vld [vmem:[#allocation10 + $0x700] sm:$0xff]
    %v4753 = vld [vmem:[#allocation10 + $0x708] sm:$0xff]
    %v4754 = vld [vmem:[#allocation10 + $0x710] sm:$0xff]
    %v4755 = vld [vmem:[#allocation10 + $0x718] sm:$0xff]
    %v4756 = vld [vmem:[#allocation10 + $0x720] sm:$0xff]
    %v4757 = vld [vmem:[#allocation10 + $0x728] sm:$0xff]
    %v4758 = vld [vmem:[#allocation10 + $0x730] sm:$0xff]
    %v4759 = vld [vmem:[#allocation10 + $0x738] sm:$0xff]
    %v4760 = vld [vmem:[#allocation10 + $0x740] sm:$0xff]
    %v4761 = vld [vmem:[#allocation10 + $0x748] sm:$0xff]
    %v4762 = vld [vmem:[#allocation10 + $0x750] sm:$0xff]
    %v4763 = vld [vmem:[#allocation10 + $0x758] sm:$0xff]
    %v4764 = vld [vmem:[#allocation10 + $0x760] sm:$0xff]
    %v4765 = vld [vmem:[#allocation10 + $0x768] sm:$0xff]
    %v4766 = vld [vmem:[#allocation10 + $0x770] sm:$0xff]
    %v4767 = vld [vmem:[#allocation10 + $0x778] sm:$0xff]
    %v4768 = vld [vmem:[#allocation10 + $0x780] sm:$0xff]
    %v4769 = vld [vmem:[#allocation10 + $0x788] sm:$0xff]
    %v4770 = vld [vmem:[#allocation10 + $0x790] sm:$0xff]
    %v4771 = vld [vmem:[#allocation10 + $0x798] sm:$0xff]
    %v4772 = vld [vmem:[#allocation10 + $0x7a0] sm:$0xff]
    %v4773 = vld [vmem:[#allocation10 + $0x7a8] sm:$0xff]
    %v4774 = vld [vmem:[#allocation10 + $0x7b0] sm:$0xff]
    %v4775 = vld [vmem:[#allocation10 + $0x7b8] sm:$0xff]
    %v4776 = vld [vmem:[#allocation10 + $0x7c0] sm:$0xff]
    %v4777 = vld [vmem:[#allocation10 + $0x7c8] sm:$0xff]
    %v4778 = vld [vmem:[#allocation10 + $0x7d0] sm:$0xff]
    %v4779 = vld [vmem:[#allocation10 + $0x7d8] sm:$0xff]
    %v4780 = vld [vmem:[#allocation10 + $0x7e0] sm:$0xff]
    %v4781 = vld [vmem:[#allocation10 + $0x7e8] sm:$0xff]
    %v4782 = vld [vmem:[#allocation10 + $0x7f0] sm:$0xff]
    %v4783 = vld [vmem:[#allocation10 + $0x7f8] sm:$0xff]
    %v4784 = vld [vmem:[#allocation10 + $0x800] sm:$0xff]
    %v4785 = vld [vmem:[#allocation10 + $0x808] sm:$0xff]
    %v4786 = vld [vmem:[#allocation10 + $0x810] sm:$0xff]
    %v4787 = vld [vmem:[#allocation10 + $0x818] sm:$0xff]
    %v4788 = vld [vmem:[#allocation10 + $0x820] sm:$0xff]
    %v4789 = vld [vmem:[#allocation10 + $0x828] sm:$0xff]
    %v4790 = vld [vmem:[#allocation10 + $0x830] sm:$0xff]
    %v4791 = vld [vmem:[#allocation10 + $0x838] sm:$0xff]
    %v4792 = vld [vmem:[#allocation10 + $0x840] sm:$0xff]
    %v4793 = vld [vmem:[#allocation10 + $0x848] sm:$0xff]
    %v4794 = vld [vmem:[#allocation10 + $0x850] sm:$0xff]
    %v4795 = vld [vmem:[#allocation10 + $0x858] sm:$0xff]
    %v4796 = vld [vmem:[#allocation10 + $0x860] sm:$0xff]
    %v4797 = vld [vmem:[#allocation10 + $0x868] sm:$0xff]
    %v4798 = vld [vmem:[#allocation10 + $0x870] sm:$0xff]
    %v4799 = vld [vmem:[#allocation10 + $0x878] sm:$0xff]
    %v4800 = vld [vmem:[#allocation10 + $0x880] sm:$0xff]
    %v4801 = vld [vmem:[#allocation10 + $0x888] sm:$0xff]
    %v4802 = vld [vmem:[#allocation10 + $0x890] sm:$0xff]
    %v4803 = vld [vmem:[#allocation10 + $0x898] sm:$0xff]
    %v4804 = vld [vmem:[#allocation10 + $0x8a0] sm:$0xff]
    %v4805 = vld [vmem:[#allocation10 + $0x8a8] sm:$0xff]
    %v4806 = vld [vmem:[#allocation10 + $0x8b0] sm:$0xff]
    %v4807 = vld [vmem:[#allocation10 + $0x8b8] sm:$0xff]
    %v4808 = vld [vmem:[#allocation10 + $0x8c0] sm:$0xff]
    %v4809 = vld [vmem:[#allocation10 + $0x8c8] sm:$0xff]
    %v4810 = vld [vmem:[#allocation10 + $0x8d0] sm:$0xff]
    %v4811 = vld [vmem:[#allocation10 + $0x8d8] sm:$0xff]
    %v4812 = vld [vmem:[#allocation10 + $0x8e0] sm:$0xff]
    %v4813 = vld [vmem:[#allocation10 + $0x8e8] sm:$0xff]
    %v4814 = vld [vmem:[#allocation10 + $0x8f0] sm:$0xff]
    %v4815 = vld [vmem:[#allocation10 + $0x8f8] sm:$0xff]
    %v4816 = vld [vmem:[#allocation10 + $0x900] sm:$0xff]
    %v4817 = vld [vmem:[#allocation10 + $0x908] sm:$0xff]
    %v4818 = vld [vmem:[#allocation10 + $0x910] sm:$0xff]
    %v4819 = vld [vmem:[#allocation10 + $0x918] sm:$0xff]
    %v4820 = vld [vmem:[#allocation10 + $0x920] sm:$0xff]
    %v4821 = vld [vmem:[#allocation10 + $0x928] sm:$0xff]
    %v4822 = vld [vmem:[#allocation10 + $0x930] sm:$0xff]
    %v4823 = vld [vmem:[#allocation10 + $0x938] sm:$0xff]
    %v4824 = vld [vmem:[#allocation10 + $0x940] sm:$0xff]
    %v4825 = vld [vmem:[#allocation10 + $0x948] sm:$0xff]
    %v4826 = vld [vmem:[#allocation10 + $0x950] sm:$0xff]
    %v4827 = vld [vmem:[#allocation10 + $0x958] sm:$0xff]
    %v4828 = vld [vmem:[#allocation10 + $0x960] sm:$0xff]
    %v4829 = vld [vmem:[#allocation10 + $0x968] sm:$0xff]
    %v4830 = vld [vmem:[#allocation10 + $0x970] sm:$0xff]
    %v4831 = vld [vmem:[#allocation10 + $0x978] sm:$0xff]
    %v4832 = vld [vmem:[#allocation10 + $0x980] sm:$0xff]
    %v4833 = vld [vmem:[#allocation10 + $0x988] sm:$0xff]
    %v4834 = vld [vmem:[#allocation10 + $0x990] sm:$0xff]
    %v4835 = vld [vmem:[#allocation10 + $0x998] sm:$0xff]
    %v4836 = vld [vmem:[#allocation10 + $0x9a0] sm:$0xff]
    %v4837 = vld [vmem:[#allocation10 + $0x9a8] sm:$0xff]
    %v4838 = vld [vmem:[#allocation10 + $0x9b0] sm:$0xff]
    %v4839 = vld [vmem:[#allocation10 + $0x9b8] sm:$0xff]
    %v4840 = vld [vmem:[#allocation10 + $0x9c0] sm:$0xff]
    %v4841 = vld [vmem:[#allocation10 + $0x9c8] sm:$0xff]
    %v4842 = vld [vmem:[#allocation10 + $0x9d0] sm:$0xff]
    %v4843 = vld [vmem:[#allocation10 + $0x9d8] sm:$0xff]
    %v4844 = vld [vmem:[#allocation10 + $0x9e0] sm:$0xff]
    %v4845 = vld [vmem:[#allocation10 + $0x9e8] sm:$0xff]
    %v4846 = vld [vmem:[#allocation10 + $0x9f0] sm:$0xff]
    %v4847 = vld [vmem:[#allocation10 + $0x9f8] sm:$0xff]
    %v4848 = vld [vmem:[#allocation10 + $0xa00] sm:$0xff]
    %v4849 = vld [vmem:[#allocation10 + $0xa08] sm:$0xff]
    %v4850 = vld [vmem:[#allocation10 + $0xa10] sm:$0xff]
    %v4851 = vld [vmem:[#allocation10 + $0xa18] sm:$0xff]
    %v4852 = vld [vmem:[#allocation10 + $0xa20] sm:$0xff]
    %v4853 = vld [vmem:[#allocation10 + $0xa28] sm:$0xff]
    %v4854 = vld [vmem:[#allocation10 + $0xa30] sm:$0xff]
    %v4855 = vld [vmem:[#allocation10 + $0xa38] sm:$0xff]
    %v4856 = vld [vmem:[#allocation10 + $0xa40] sm:$0xff]
    %v4857 = vld [vmem:[#allocation10 + $0xa48] sm:$0xff]
    %v4858 = vld [vmem:[#allocation10 + $0xa50] sm:$0xff]
    %v4859 = vld [vmem:[#allocation10 + $0xa58] sm:$0xff]
    %v4860 = vld [vmem:[#allocation10 + $0xa60] sm:$0xff]
    %v4861 = vld [vmem:[#allocation10 + $0xa68] sm:$0xff]
    %v4862 = vld [vmem:[#allocation10 + $0xa70] sm:$0xff]
    %v4863 = vld [vmem:[#allocation10 + $0xa78] sm:$0xff]
    %v4864 = vld [vmem:[#allocation10 + $0xa80] sm:$0xff]
    %v4865 = vld [vmem:[#allocation10 + $0xa88] sm:$0xff]
    %v4866 = vld [vmem:[#allocation10 + $0xa90] sm:$0xff]
    %v4867 = vld [vmem:[#allocation10 + $0xa98] sm:$0xff]
    %v4868 = vld [vmem:[#allocation10 + $0xaa0] sm:$0xff]
    %v4869 = vld [vmem:[#allocation10 + $0xaa8] sm:$0xff]
    %v4870 = vld [vmem:[#allocation10 + $0xab0] sm:$0xff]
    %v4871 = vld [vmem:[#allocation10 + $0xab8] sm:$0xff]
    %v4872 = vld [vmem:[#allocation10 + $0xac0] sm:$0xff]
    %v4873 = vld [vmem:[#allocation10 + $0xac8] sm:$0xff]
    %v4874 = vld [vmem:[#allocation10 + $0xad0] sm:$0xff]
    %v4875 = vld [vmem:[#allocation10 + $0xad8] sm:$0xff]
    %v4876 = vld [vmem:[#allocation10 + $0xae0] sm:$0xff]
    %v4877 = vld [vmem:[#allocation10 + $0xae8] sm:$0xff]
    %v4878 = vld [vmem:[#allocation10 + $0xaf0] sm:$0xff]
    %v4879 = vld [vmem:[#allocation10 + $0xaf8] sm:$0xff]
    %v4880 = vld [vmem:[#allocation10 + $0xb00] sm:$0xff]
    %v4881 = vld [vmem:[#allocation10 + $0xb08] sm:$0xff]
    %v4882 = vld [vmem:[#allocation10 + $0xb10] sm:$0xff]
    %v4883 = vld [vmem:[#allocation10 + $0xb18] sm:$0xff]
    %v4884 = vld [vmem:[#allocation10 + $0xb20] sm:$0xff]
    %v4885 = vld [vmem:[#allocation10 + $0xb28] sm:$0xff]
    %v4886 = vld [vmem:[#allocation10 + $0xb30] sm:$0xff]
    %v4887 = vld [vmem:[#allocation10 + $0xb38] sm:$0xff]
    %v4888 = vld [vmem:[#allocation10 + $0xb40] sm:$0xff]
    %v4889 = vld [vmem:[#allocation10 + $0xb48] sm:$0xff]
    %v4890 = vld [vmem:[#allocation10 + $0xb50] sm:$0xff]
    %v4891 = vld [vmem:[#allocation10 + $0xb58] sm:$0xff]
    %v4892 = vld [vmem:[#allocation10 + $0xb60] sm:$0xff]
    %v4893 = vld [vmem:[#allocation10 + $0xb68] sm:$0xff]
    %v4894 = vld [vmem:[#allocation10 + $0xb70] sm:$0xff]
    %v4895 = vld [vmem:[#allocation10 + $0xb78] sm:$0xff]
    %v4896 = vld [vmem:[#allocation10 + $0xb80] sm:$0xff]
    %v4897 = vld [vmem:[#allocation10 + $0xb88] sm:$0xff]
    %v4898 = vld [vmem:[#allocation10 + $0xb90] sm:$0xff]
    %v4899 = vld [vmem:[#allocation10 + $0xb98] sm:$0xff]
    %v4900 = vld [vmem:[#allocation10 + $0xba0] sm:$0xff]
    %v4901 = vld [vmem:[#allocation10 + $0xba8] sm:$0xff]
    %v4902 = vld [vmem:[#allocation10 + $0xbb0] sm:$0xff]
    %v4903 = vld [vmem:[#allocation10 + $0xbb8] sm:$0xff]
    %v4904 = vld [vmem:[#allocation10 + $0xbc0] sm:$0xff]
    %v4905 = vld [vmem:[#allocation10 + $0xbc8] sm:$0xff]
    %v4906 = vld [vmem:[#allocation10 + $0xbd0] sm:$0xff]
    %v4907 = vld [vmem:[#allocation10 + $0xbd8] sm:$0xff]
    %v4908 = vld [vmem:[#allocation10 + $0xbe0] sm:$0xff]
    %v4909 = vld [vmem:[#allocation10 + $0xbe8] sm:$0xff]
    %v4910 = vld [vmem:[#allocation10 + $0xbf0] sm:$0xff]
    %v4911 = vld [vmem:[#allocation10 + $0xbf8] sm:$0xff]
    %v4912 = vld [vmem:[#allocation10 + $0xc00] sm:$0xff]
    %v4913 = vld [vmem:[#allocation10 + $0xc08] sm:$0xff]
    %v4914 = vld [vmem:[#allocation10 + $0xc10] sm:$0xff]
    %v4915 = vld [vmem:[#allocation10 + $0xc18] sm:$0xff]
    %v4916 = vld [vmem:[#allocation10 + $0xc20] sm:$0xff]
    %v4917 = vld [vmem:[#allocation10 + $0xc28] sm:$0xff]
    %v4918 = vld [vmem:[#allocation10 + $0xc30] sm:$0xff]
    %v4919 = vld [vmem:[#allocation10 + $0xc38] sm:$0xff]
    %v4920 = vld [vmem:[#allocation10 + $0xc40] sm:$0xff]
    %v4921 = vld [vmem:[#allocation10 + $0xc48] sm:$0xff]
    %v4922 = vld [vmem:[#allocation10 + $0xc50] sm:$0xff]
    %v4923 = vld [vmem:[#allocation10 + $0xc58] sm:$0xff]
    %v4924 = vld [vmem:[#allocation10 + $0xc60] sm:$0xff]
    %v4925 = vld [vmem:[#allocation10 + $0xc68] sm:$0xff]
    %v4926 = vld [vmem:[#allocation10 + $0xc70] sm:$0xff]
    %v4927 = vld [vmem:[#allocation10 + $0xc78] sm:$0xff]
    %v4928 = vld [vmem:[#allocation10 + $0xc80] sm:$0xff]
    %v4929 = vld [vmem:[#allocation10 + $0xc88] sm:$0xff]
    %v4930 = vld [vmem:[#allocation10 + $0xc90] sm:$0xff]
    %v4931 = vld [vmem:[#allocation10 + $0xc98] sm:$0xff]
    %v4932 = vld [vmem:[#allocation10 + $0xca0] sm:$0xff]
    %v4933 = vld [vmem:[#allocation10 + $0xca8] sm:$0xff]
    %v4934 = vld [vmem:[#allocation10 + $0xcb0] sm:$0xff]
    %v4935 = vld [vmem:[#allocation10 + $0xcb8] sm:$0xff]
    %v4936 = vld [vmem:[#allocation10 + $0xcc0] sm:$0xff]
    %v4937 = vld [vmem:[#allocation10 + $0xcc8] sm:$0xff]
    %v4938 = vld [vmem:[#allocation10 + $0xcd0] sm:$0xff]
    %v4939 = vld [vmem:[#allocation10 + $0xcd8] sm:$0xff]
    %v4940 = vld [vmem:[#allocation10 + $0xce0] sm:$0xff]
    %v4941 = vld [vmem:[#allocation10 + $0xce8] sm:$0xff]
    %v4942 = vld [vmem:[#allocation10 + $0xcf0] sm:$0xff]
    %v4943 = vld [vmem:[#allocation10 + $0xcf8] sm:$0xff]
    %v4944 = vld [vmem:[#allocation10 + $0xd00] sm:$0xff]
    %v4945 = vld [vmem:[#allocation10 + $0xd08] sm:$0xff]
    %v4946 = vld [vmem:[#allocation10 + $0xd10] sm:$0xff]
    %v4947 = vld [vmem:[#allocation10 + $0xd18] sm:$0xff]
    %v4948 = vld [vmem:[#allocation10 + $0xd20] sm:$0xff]
    %v4949 = vld [vmem:[#allocation10 + $0xd28] sm:$0xff]
    %v4950 = vld [vmem:[#allocation10 + $0xd30] sm:$0xff]
    %v4951 = vld [vmem:[#allocation10 + $0xd38] sm:$0xff]
    %v4952 = vld [vmem:[#allocation10 + $0xd40] sm:$0xff]
    %v4953 = vld [vmem:[#allocation10 + $0xd48] sm:$0xff]
    %v4954 = vld [vmem:[#allocation10 + $0xd50] sm:$0xff]
    %v4955 = vld [vmem:[#allocation10 + $0xd58] sm:$0xff]
    %v4956 = vld [vmem:[#allocation10 + $0xd60] sm:$0xff]
    %v4957 = vld [vmem:[#allocation10 + $0xd68] sm:$0xff]
    %v4958 = vld [vmem:[#allocation10 + $0xd70] sm:$0xff]
    %v4959 = vld [vmem:[#allocation10 + $0xd78] sm:$0xff]
    %v4960 = vld [vmem:[#allocation10 + $0xd80] sm:$0xff]
    %v4961 = vld [vmem:[#allocation10 + $0xd88] sm:$0xff]
    %v4962 = vld [vmem:[#allocation10 + $0xd90] sm:$0xff]
    %v4963 = vld [vmem:[#allocation10 + $0xd98] sm:$0xff]
    %v4964 = vld [vmem:[#allocation10 + $0xda0] sm:$0xff]
    %v4965 = vld [vmem:[#allocation10 + $0xda8] sm:$0xff]
    %v4966 = vld [vmem:[#allocation10 + $0xdb0] sm:$0xff]
    %v4967 = vld [vmem:[#allocation10 + $0xdb8] sm:$0xff]
    %v4968 = vld [vmem:[#allocation10 + $0xdc0] sm:$0xff]
    %v4969 = vld [vmem:[#allocation10 + $0xdc8] sm:$0xff]
    %v4970 = vld [vmem:[#allocation10 + $0xdd0] sm:$0xff]
    %v4971 = vld [vmem:[#allocation10 + $0xdd8] sm:$0xff]
    %v4972 = vld [vmem:[#allocation10 + $0xde0] sm:$0xff]
    %v4973 = vld [vmem:[#allocation10 + $0xde8] sm:$0xff]
    %v4974 = vld [vmem:[#allocation10 + $0xdf0] sm:$0xff]
    %v4975 = vld [vmem:[#allocation10 + $0xdf8] sm:$0xff]
    %v4976 = vld [vmem:[#allocation10 + $0xe00] sm:$0xff]
    %v4977 = vld [vmem:[#allocation10 + $0xe08] sm:$0xff]
    %v4978 = vld [vmem:[#allocation10 + $0xe10] sm:$0xff]
    %v4979 = vld [vmem:[#allocation10 + $0xe18] sm:$0xff]
    %v4980 = vld [vmem:[#allocation10 + $0xe20] sm:$0xff]
    %v4981 = vld [vmem:[#allocation10 + $0xe28] sm:$0xff]
    %v4982 = vld [vmem:[#allocation10 + $0xe30] sm:$0xff]
    %v4983 = vld [vmem:[#allocation10 + $0xe38] sm:$0xff]
    %v4984 = vld [vmem:[#allocation10 + $0xe40] sm:$0xff]
    %v4985 = vld [vmem:[#allocation10 + $0xe48] sm:$0xff]
    %v4986 = vld [vmem:[#allocation10 + $0xe50] sm:$0xff]
    %v4987 = vld [vmem:[#allocation10 + $0xe58] sm:$0xff]
    %v4988 = vld [vmem:[#allocation10 + $0xe60] sm:$0xff]
    %v4989 = vld [vmem:[#allocation10 + $0xe68] sm:$0xff]
    %v4990 = vld [vmem:[#allocation10 + $0xe70] sm:$0xff]
    %v4991 = vld [vmem:[#allocation10 + $0xe78] sm:$0xff]
    %v4992 = vld [vmem:[#allocation10 + $0xe80] sm:$0xff]
    %v4993 = vld [vmem:[#allocation10 + $0xe88] sm:$0xff]
    %v4994 = vld [vmem:[#allocation10 + $0xe90] sm:$0xff]
    %v4995 = vld [vmem:[#allocation10 + $0xe98] sm:$0xff]
    %v4996 = vld [vmem:[#allocation10 + $0xea0] sm:$0xff]
    %v4997 = vld [vmem:[#allocation10 + $0xea8] sm:$0xff]
    %v4998 = vld [vmem:[#allocation10 + $0xeb0] sm:$0xff]
    %v4999 = vld [vmem:[#allocation10 + $0xeb8] sm:$0xff]
    %v5000 = vld [vmem:[#allocation10 + $0xec0] sm:$0xff]
    %v5001 = vld [vmem:[#allocation10 + $0xec8] sm:$0xff]
    %v5002 = vld [vmem:[#allocation10 + $0xed0] sm:$0xff]
    %v5003 = vld [vmem:[#allocation10 + $0xed8] sm:$0xff]
    %v5004 = vld [vmem:[#allocation10 + $0xee0] sm:$0xff]
    %v5005 = vld [vmem:[#allocation10 + $0xee8] sm:$0xff]
    %v5006 = vld [vmem:[#allocation10 + $0xef0] sm:$0xff]
    %v5007 = vld [vmem:[#allocation10 + $0xef8] sm:$0xff]
    %v5008 = vld [vmem:[#allocation10 + $0xf00] sm:$0xff]
    %v5009 = vld [vmem:[#allocation10 + $0xf08] sm:$0xff]
    %v5010 = vld [vmem:[#allocation10 + $0xf10] sm:$0xff]
    %v5011 = vld [vmem:[#allocation10 + $0xf18] sm:$0xff]
    %v5012 = vld [vmem:[#allocation10 + $0xf20] sm:$0xff]
    %v5013 = vld [vmem:[#allocation10 + $0xf28] sm:$0xff]
    %v5014 = vld [vmem:[#allocation10 + $0xf30] sm:$0xff]
    %v5015 = vld [vmem:[#allocation10 + $0xf38] sm:$0xff]
    %v5016 = vld [vmem:[#allocation10 + $0xf40] sm:$0xff]
    %v5017 = vld [vmem:[#allocation10 + $0xf48] sm:$0xff]
    %v5018 = vld [vmem:[#allocation10 + $0xf50] sm:$0xff]
    %v5019 = vld [vmem:[#allocation10 + $0xf58] sm:$0xff]
    %v5020 = vld [vmem:[#allocation10 + $0xf60] sm:$0xff]
    %v5021 = vld [vmem:[#allocation10 + $0xf68] sm:$0xff]
    %v5022 = vld [vmem:[#allocation10 + $0xf70] sm:$0xff]
    %v5023 = vld [vmem:[#allocation10 + $0xf78] sm:$0xff]
    %v5024 = vld [vmem:[#allocation10 + $0xf80] sm:$0xff]
    %v5025 = vld [vmem:[#allocation10 + $0xf88] sm:$0xff]
    %v5026 = vld [vmem:[#allocation10 + $0xf90] sm:$0xff]
    %v5027 = vld [vmem:[#allocation10 + $0xf98] sm:$0xff]
    %v5028 = vld [vmem:[#allocation10 + $0xfa0] sm:$0xff]
    %v5029 = vld [vmem:[#allocation10 + $0xfa8] sm:$0xff]
    %v5030 = vld [vmem:[#allocation10 + $0xfb0] sm:$0xff]
    %v5031 = vld [vmem:[#allocation10 + $0xfb8] sm:$0xff]
    %v5032 = vld [vmem:[#allocation10 + $0xfc0] sm:$0xff]
    %v5033 = vld [vmem:[#allocation10 + $0xfc8] sm:$0xff]
    %v5034 = vld [vmem:[#allocation10 + $0xfd0] sm:$0xff]
    %v5035 = vld [vmem:[#allocation10 + $0xfd8] sm:$0xff]
    %v5036 = vld [vmem:[#allocation10 + $0xfe0] sm:$0xff]
    %v5037 = vld [vmem:[#allocation10 + $0xfe8] sm:$0xff]
    %v5038 = vld [vmem:[#allocation10 + $0xff0] sm:$0xff]
    %v5039 = vld [vmem:[#allocation10 + $0xff8] sm:$0xff]
    %v5040 = vld [vmem:[#allocation11] sm:$0xff]
    %v5042 = vlaneseq
    %v5043 = vshrl.u32 %v5042, 7
    %v5044 = vsub.s32 0, %v5043
    %v5045 = vrot.slane %v5040, %v5044
    %v5046 = vlaneseq
    %v5047 = vshrl.u32 %v5046, 7
    %v5048 = vsub.s32 1, %v5047
    %v5049 = vrot.slane %v5040, %v5048
    %v5050 = vlaneseq
    %v5051 = vshrl.u32 %v5050, 7
    %v5052 = vsub.s32 2, %v5051
    %v5053 = vrot.slane %v5040, %v5052
    %v5054 = vlaneseq
    %v5055 = vshrl.u32 %v5054, 7
    %v5056 = vsub.s32 3, %v5055
    %v5057 = vrot.slane %v5040, %v5056
    %v5058 = vlaneseq
    %v5059 = vshrl.u32 %v5058, 7
    %v5060 = vsub.s32 4, %v5059
    %v5061 = vrot.slane %v5040, %v5060
    %v5062 = vlaneseq
    %v5063 = vshrl.u32 %v5062, 7
    %v5064 = vsub.s32 5, %v5063
    %v5065 = vrot.slane %v5040, %v5064
    %v5066 = vlaneseq
    %v5067 = vshrl.u32 %v5066, 7
    %v5068 = vsub.s32 6, %v5067
    %v5069 = vrot.slane %v5040, %v5068
    %v5070 = vlaneseq
    %v5071 = vshrl.u32 %v5070, 7
    %v5072 = vsub.s32 7, %v5071
    %v5073 = vrot.slane %v5040, %v5072
    %v5594 = vunpack.c.l.b16 %v4528
    %v5595 = vunpack.c.h.b16 %v4528
    %v5596 = vunpack.c.l.b16 %v4529
    %v5597 = vunpack.c.h.b16 %v4529
    %v5598 = vunpack.c.l.b16 %v4530
    %v5599 = vunpack.c.h.b16 %v4530
    %v5600 = vunpack.c.l.b16 %v4531
    %v5601 = vunpack.c.h.b16 %v4531
    %v5602 = vunpack.c.l.b16 %v4532
    %v5603 = vunpack.c.h.b16 %v4532
    %v5604 = vunpack.c.l.b16 %v4533
    %v5605 = vunpack.c.h.b16 %v4533
    %v5606 = vunpack.c.l.b16 %v4534
    %v5607 = vunpack.c.h.b16 %v4534
    %v5608 = vunpack.c.l.b16 %v4535
    %v5609 = vunpack.c.h.b16 %v4535
    %v5610 = vunpack.c.l.b16 %v4536
    %v5611 = vunpack.c.h.b16 %v4536
    %v5612 = vunpack.c.l.b16 %v4537
    %v5613 = vunpack.c.h.b16 %v4537
    %v5614 = vunpack.c.l.b16 %v4538
    %v5615 = vunpack.c.h.b16 %v4538
    %v5616 = vunpack.c.l.b16 %v4539
    %v5617 = vunpack.c.h.b16 %v4539
    %v5618 = vunpack.c.l.b16 %v4540
    %v5619 = vunpack.c.h.b16 %v4540
    %v5620 = vunpack.c.l.b16 %v4541
    %v5621 = vunpack.c.h.b16 %v4541
    %v5622 = vunpack.c.l.b16 %v4542
    %v5623 = vunpack.c.h.b16 %v4542
    %v5624 = vunpack.c.l.b16 %v4543
    %v5625 = vunpack.c.h.b16 %v4543
    %v5626 = vunpack.c.l.b16 %v4544
    %v5627 = vunpack.c.h.b16 %v4544
    %v5628 = vunpack.c.l.b16 %v4545
    %v5629 = vunpack.c.h.b16 %v4545
    %v5630 = vunpack.c.l.b16 %v4546
    %v5631 = vunpack.c.h.b16 %v4546
    %v5632 = vunpack.c.l.b16 %v4547
    %v5633 = vunpack.c.h.b16 %v4547
    %v5634 = vunpack.c.l.b16 %v4548
    %v5635 = vunpack.c.h.b16 %v4548
    %v5636 = vunpack.c.l.b16 %v4549
    %v5637 = vunpack.c.h.b16 %v4549
    %v5638 = vunpack.c.l.b16 %v4550
    %v5639 = vunpack.c.h.b16 %v4550
    %v5640 = vunpack.c.l.b16 %v4551
    %v5641 = vunpack.c.h.b16 %v4551
    %v5642 = vunpack.c.l.b16 %v4552
    %v5643 = vunpack.c.h.b16 %v4552
    %v5644 = vunpack.c.l.b16 %v4553
    %v5645 = vunpack.c.h.b16 %v4553
    %v5646 = vunpack.c.l.b16 %v4554
    %v5647 = vunpack.c.h.b16 %v4554
    %v5648 = vunpack.c.l.b16 %v4555
    %v5649 = vunpack.c.h.b16 %v4555
    %v5650 = vunpack.c.l.b16 %v4556
    %v5651 = vunpack.c.h.b16 %v4556
    %v5652 = vunpack.c.l.b16 %v4557
    %v5653 = vunpack.c.h.b16 %v4557
    %v5654 = vunpack.c.l.b16 %v4558
    %v5655 = vunpack.c.h.b16 %v4558
    %v5656 = vunpack.c.l.b16 %v4559
    %v5657 = vunpack.c.h.b16 %v4559
    %v5658 = vunpack.c.l.b16 %v4560
    %v5659 = vunpack.c.h.b16 %v4560
    %v5660 = vunpack.c.l.b16 %v4561
    %v5661 = vunpack.c.h.b16 %v4561
    %v5662 = vunpack.c.l.b16 %v4562
    %v5663 = vunpack.c.h.b16 %v4562
    %v5664 = vunpack.c.l.b16 %v4563
    %v5665 = vunpack.c.h.b16 %v4563
    %v5666 = vunpack.c.l.b16 %v4564
    %v5667 = vunpack.c.h.b16 %v4564
    %v5668 = vunpack.c.l.b16 %v4565
    %v5669 = vunpack.c.h.b16 %v4565
    %v5670 = vunpack.c.l.b16 %v4566
    %v5671 = vunpack.c.h.b16 %v4566
    %v5672 = vunpack.c.l.b16 %v4567
    %v5673 = vunpack.c.h.b16 %v4567
    %v5674 = vunpack.c.l.b16 %v4568
    %v5675 = vunpack.c.h.b16 %v4568
    %v5676 = vunpack.c.l.b16 %v4569
    %v5677 = vunpack.c.h.b16 %v4569
    %v5678 = vunpack.c.l.b16 %v4570
    %v5679 = vunpack.c.h.b16 %v4570
    %v5680 = vunpack.c.l.b16 %v4571
    %v5681 = vunpack.c.h.b16 %v4571
    %v5682 = vunpack.c.l.b16 %v4572
    %v5683 = vunpack.c.h.b16 %v4572
    %v5684 = vunpack.c.l.b16 %v4573
    %v5685 = vunpack.c.h.b16 %v4573
    %v5686 = vunpack.c.l.b16 %v4574
    %v5687 = vunpack.c.h.b16 %v4574
    %v5688 = vunpack.c.l.b16 %v4575
    %v5689 = vunpack.c.h.b16 %v4575
    %v5690 = vunpack.c.l.b16 %v4576
    %v5691 = vunpack.c.h.b16 %v4576
    %v5692 = vunpack.c.l.b16 %v4577
    %v5693 = vunpack.c.h.b16 %v4577
    %v5694 = vunpack.c.l.b16 %v4578
    %v5695 = vunpack.c.h.b16 %v4578
    %v5696 = vunpack.c.l.b16 %v4579
    %v5697 = vunpack.c.h.b16 %v4579
    %v5698 = vunpack.c.l.b16 %v4580
    %v5699 = vunpack.c.h.b16 %v4580
    %v5700 = vunpack.c.l.b16 %v4581
    %v5701 = vunpack.c.h.b16 %v4581
    %v5702 = vunpack.c.l.b16 %v4582
    %v5703 = vunpack.c.h.b16 %v4582
    %v5704 = vunpack.c.l.b16 %v4583
    %v5705 = vunpack.c.h.b16 %v4583
    %v5706 = vunpack.c.l.b16 %v4584
    %v5707 = vunpack.c.h.b16 %v4584
    %v5708 = vunpack.c.l.b16 %v4585
    %v5709 = vunpack.c.h.b16 %v4585
    %v5710 = vunpack.c.l.b16 %v4586
    %v5711 = vunpack.c.h.b16 %v4586
    %v5712 = vunpack.c.l.b16 %v4587
    %v5713 = vunpack.c.h.b16 %v4587
    %v5714 = vunpack.c.l.b16 %v4588
    %v5715 = vunpack.c.h.b16 %v4588
    %v5716 = vunpack.c.l.b16 %v4589
    %v5717 = vunpack.c.h.b16 %v4589
    %v5718 = vunpack.c.l.b16 %v4590
    %v5719 = vunpack.c.h.b16 %v4590
    %v5720 = vunpack.c.l.b16 %v4591
    %v5721 = vunpack.c.h.b16 %v4591
    %v5722 = vunpack.c.l.b16 %v4592
    %v5723 = vunpack.c.h.b16 %v4592
    %v5724 = vunpack.c.l.b16 %v4593
    %v5725 = vunpack.c.h.b16 %v4593
    %v5726 = vunpack.c.l.b16 %v4594
    %v5727 = vunpack.c.h.b16 %v4594
    %v5728 = vunpack.c.l.b16 %v4595
    %v5729 = vunpack.c.h.b16 %v4595
    %v5730 = vunpack.c.l.b16 %v4596
    %v5731 = vunpack.c.h.b16 %v4596
    %v5732 = vunpack.c.l.b16 %v4597
    %v5733 = vunpack.c.h.b16 %v4597
    %v5734 = vunpack.c.l.b16 %v4598
    %v5735 = vunpack.c.h.b16 %v4598
    %v5736 = vunpack.c.l.b16 %v4599
    %v5737 = vunpack.c.h.b16 %v4599
    %v5738 = vunpack.c.l.b16 %v4600
    %v5739 = vunpack.c.h.b16 %v4600
    %v5740 = vunpack.c.l.b16 %v4601
    %v5741 = vunpack.c.h.b16 %v4601
    %v5742 = vunpack.c.l.b16 %v4602
    %v5743 = vunpack.c.h.b16 %v4602
    %v5744 = vunpack.c.l.b16 %v4603
    %v5745 = vunpack.c.h.b16 %v4603
    %v5746 = vunpack.c.l.b16 %v4604
    %v5747 = vunpack.c.h.b16 %v4604
    %v5748 = vunpack.c.l.b16 %v4605
    %v5749 = vunpack.c.h.b16 %v4605
    %v5750 = vunpack.c.l.b16 %v4606
    %v5751 = vunpack.c.h.b16 %v4606
    %v5752 = vunpack.c.l.b16 %v4607
    %v5753 = vunpack.c.h.b16 %v4607
    %v5754 = vunpack.c.l.b16 %v4608
    %v5755 = vunpack.c.h.b16 %v4608
    %v5756 = vunpack.c.l.b16 %v4609
    %v5757 = vunpack.c.h.b16 %v4609
    %v5758 = vunpack.c.l.b16 %v4610
    %v5759 = vunpack.c.h.b16 %v4610
    %v5760 = vunpack.c.l.b16 %v4611
    %v5761 = vunpack.c.h.b16 %v4611
    %v5762 = vunpack.c.l.b16 %v4612
    %v5763 = vunpack.c.h.b16 %v4612
    %v5764 = vunpack.c.l.b16 %v4613
    %v5765 = vunpack.c.h.b16 %v4613
    %v5766 = vunpack.c.l.b16 %v4614
    %v5767 = vunpack.c.h.b16 %v4614
    %v5768 = vunpack.c.l.b16 %v4615
    %v5769 = vunpack.c.h.b16 %v4615
    %v5770 = vunpack.c.l.b16 %v4616
    %v5771 = vunpack.c.h.b16 %v4616
    %v5772 = vunpack.c.l.b16 %v4617
    %v5773 = vunpack.c.h.b16 %v4617
    %v5774 = vunpack.c.l.b16 %v4618
    %v5775 = vunpack.c.h.b16 %v4618
    %v5776 = vunpack.c.l.b16 %v4619
    %v5777 = vunpack.c.h.b16 %v4619
    %v5778 = vunpack.c.l.b16 %v4620
    %v5779 = vunpack.c.h.b16 %v4620
    %v5780 = vunpack.c.l.b16 %v4621
    %v5781 = vunpack.c.h.b16 %v4621
    %v5782 = vunpack.c.l.b16 %v4622
    %v5783 = vunpack.c.h.b16 %v4622
    %v5784 = vunpack.c.l.b16 %v4623
    %v5785 = vunpack.c.h.b16 %v4623
    %v5786 = vunpack.c.l.b16 %v4624
    %v5787 = vunpack.c.h.b16 %v4624
    %v5788 = vunpack.c.l.b16 %v4625
    %v5789 = vunpack.c.h.b16 %v4625
    %v5790 = vunpack.c.l.b16 %v4626
    %v5791 = vunpack.c.h.b16 %v4626
    %v5792 = vunpack.c.l.b16 %v4627
    %v5793 = vunpack.c.h.b16 %v4627
    %v5794 = vunpack.c.l.b16 %v4628
    %v5795 = vunpack.c.h.b16 %v4628
    %v5796 = vunpack.c.l.b16 %v4629
    %v5797 = vunpack.c.h.b16 %v4629
    %v5798 = vunpack.c.l.b16 %v4630
    %v5799 = vunpack.c.h.b16 %v4630
    %v5800 = vunpack.c.l.b16 %v4631
    %v5801 = vunpack.c.h.b16 %v4631
    %v5802 = vunpack.c.l.b16 %v4632
    %v5803 = vunpack.c.h.b16 %v4632
    %v5804 = vunpack.c.l.b16 %v4633
    %v5805 = vunpack.c.h.b16 %v4633
    %v5806 = vunpack.c.l.b16 %v4634
    %v5807 = vunpack.c.h.b16 %v4634
    %v5808 = vunpack.c.l.b16 %v4635
    %v5809 = vunpack.c.h.b16 %v4635
    %v5810 = vunpack.c.l.b16 %v4636
    %v5811 = vunpack.c.h.b16 %v4636
    %v5812 = vunpack.c.l.b16 %v4637
    %v5813 = vunpack.c.h.b16 %v4637
    %v5814 = vunpack.c.l.b16 %v4638
    %v5815 = vunpack.c.h.b16 %v4638
    %v5816 = vunpack.c.l.b16 %v4639
    %v5817 = vunpack.c.h.b16 %v4639
    %v5818 = vunpack.c.l.b16 %v4640
    %v5819 = vunpack.c.h.b16 %v4640
    %v5820 = vunpack.c.l.b16 %v4641
    %v5821 = vunpack.c.h.b16 %v4641
    %v5822 = vunpack.c.l.b16 %v4642
    %v5823 = vunpack.c.h.b16 %v4642
    %v5824 = vunpack.c.l.b16 %v4643
    %v5825 = vunpack.c.h.b16 %v4643
    %v5826 = vunpack.c.l.b16 %v4644
    %v5827 = vunpack.c.h.b16 %v4644
    %v5828 = vunpack.c.l.b16 %v4645
    %v5829 = vunpack.c.h.b16 %v4645
    %v5830 = vunpack.c.l.b16 %v4646
    %v5831 = vunpack.c.h.b16 %v4646
    %v5832 = vunpack.c.l.b16 %v4647
    %v5833 = vunpack.c.h.b16 %v4647
    %v5834 = vunpack.c.l.b16 %v4648
    %v5835 = vunpack.c.h.b16 %v4648
    %v5836 = vunpack.c.l.b16 %v4649
    %v5837 = vunpack.c.h.b16 %v4649
    %v5838 = vunpack.c.l.b16 %v4650
    %v5839 = vunpack.c.h.b16 %v4650
    %v5840 = vunpack.c.l.b16 %v4651
    %v5841 = vunpack.c.h.b16 %v4651
    %v5842 = vunpack.c.l.b16 %v4652
    %v5843 = vunpack.c.h.b16 %v4652
    %v5844 = vunpack.c.l.b16 %v4653
    %v5845 = vunpack.c.h.b16 %v4653
    %v5846 = vunpack.c.l.b16 %v4654
    %v5847 = vunpack.c.h.b16 %v4654
    %v5848 = vunpack.c.l.b16 %v4655
    %v5849 = vunpack.c.h.b16 %v4655
    %v5850 = vunpack.c.l.b16 %v4656
    %v5851 = vunpack.c.h.b16 %v4656
    %v5852 = vunpack.c.l.b16 %v4657
    %v5853 = vunpack.c.h.b16 %v4657
    %v5854 = vunpack.c.l.b16 %v4658
    %v5855 = vunpack.c.h.b16 %v4658
    %v5856 = vunpack.c.l.b16 %v4659
    %v5857 = vunpack.c.h.b16 %v4659
    %v5858 = vunpack.c.l.b16 %v4660
    %v5859 = vunpack.c.h.b16 %v4660
    %v5860 = vunpack.c.l.b16 %v4661
    %v5861 = vunpack.c.h.b16 %v4661
    %v5862 = vunpack.c.l.b16 %v4662
    %v5863 = vunpack.c.h.b16 %v4662
    %v5864 = vunpack.c.l.b16 %v4663
    %v5865 = vunpack.c.h.b16 %v4663
    %v5866 = vunpack.c.l.b16 %v4664
    %v5867 = vunpack.c.h.b16 %v4664
    %v5868 = vunpack.c.l.b16 %v4665
    %v5869 = vunpack.c.h.b16 %v4665
    %v5870 = vunpack.c.l.b16 %v4666
    %v5871 = vunpack.c.h.b16 %v4666
    %v5872 = vunpack.c.l.b16 %v4667
    %v5873 = vunpack.c.h.b16 %v4667
    %v5874 = vunpack.c.l.b16 %v4668
    %v5875 = vunpack.c.h.b16 %v4668
    %v5876 = vunpack.c.l.b16 %v4669
    %v5877 = vunpack.c.h.b16 %v4669
    %v5878 = vunpack.c.l.b16 %v4670
    %v5879 = vunpack.c.h.b16 %v4670
    %v5880 = vunpack.c.l.b16 %v4671
    %v5881 = vunpack.c.h.b16 %v4671
    %v5882 = vunpack.c.l.b16 %v4672
    %v5883 = vunpack.c.h.b16 %v4672
    %v5884 = vunpack.c.l.b16 %v4673
    %v5885 = vunpack.c.h.b16 %v4673
    %v5886 = vunpack.c.l.b16 %v4674
    %v5887 = vunpack.c.h.b16 %v4674
    %v5888 = vunpack.c.l.b16 %v4675
    %v5889 = vunpack.c.h.b16 %v4675
    %v5890 = vunpack.c.l.b16 %v4676
    %v5891 = vunpack.c.h.b16 %v4676
    %v5892 = vunpack.c.l.b16 %v4677
    %v5893 = vunpack.c.h.b16 %v4677
    %v5894 = vunpack.c.l.b16 %v4678
    %v5895 = vunpack.c.h.b16 %v4678
    %v5896 = vunpack.c.l.b16 %v4679
    %v5897 = vunpack.c.h.b16 %v4679
    %v5898 = vunpack.c.l.b16 %v4680
    %v5899 = vunpack.c.h.b16 %v4680
    %v5900 = vunpack.c.l.b16 %v4681
    %v5901 = vunpack.c.h.b16 %v4681
    %v5902 = vunpack.c.l.b16 %v4682
    %v5903 = vunpack.c.h.b16 %v4682
    %v5904 = vunpack.c.l.b16 %v4683
    %v5905 = vunpack.c.h.b16 %v4683
    %v5906 = vunpack.c.l.b16 %v4684
    %v5907 = vunpack.c.h.b16 %v4684
    %v5908 = vunpack.c.l.b16 %v4685
    %v5909 = vunpack.c.h.b16 %v4685
    %v5910 = vunpack.c.l.b16 %v4686
    %v5911 = vunpack.c.h.b16 %v4686
    %v5912 = vunpack.c.l.b16 %v4687
    %v5913 = vunpack.c.h.b16 %v4687
    %v5914 = vunpack.c.l.b16 %v4688
    %v5915 = vunpack.c.h.b16 %v4688
    %v5916 = vunpack.c.l.b16 %v4689
    %v5917 = vunpack.c.h.b16 %v4689
    %v5918 = vunpack.c.l.b16 %v4690
    %v5919 = vunpack.c.h.b16 %v4690
    %v5920 = vunpack.c.l.b16 %v4691
    %v5921 = vunpack.c.h.b16 %v4691
    %v5922 = vunpack.c.l.b16 %v4692
    %v5923 = vunpack.c.h.b16 %v4692
    %v5924 = vunpack.c.l.b16 %v4693
    %v5925 = vunpack.c.h.b16 %v4693
    %v5926 = vunpack.c.l.b16 %v4694
    %v5927 = vunpack.c.h.b16 %v4694
    %v5928 = vunpack.c.l.b16 %v4695
    %v5929 = vunpack.c.h.b16 %v4695
    %v5930 = vunpack.c.l.b16 %v4696
    %v5931 = vunpack.c.h.b16 %v4696
    %v5932 = vunpack.c.l.b16 %v4697
    %v5933 = vunpack.c.h.b16 %v4697
    %v5934 = vunpack.c.l.b16 %v4698
    %v5935 = vunpack.c.h.b16 %v4698
    %v5936 = vunpack.c.l.b16 %v4699
    %v5937 = vunpack.c.h.b16 %v4699
    %v5938 = vunpack.c.l.b16 %v4700
    %v5939 = vunpack.c.h.b16 %v4700
    %v5940 = vunpack.c.l.b16 %v4701
    %v5941 = vunpack.c.h.b16 %v4701
    %v5942 = vunpack.c.l.b16 %v4702
    %v5943 = vunpack.c.h.b16 %v4702
    %v5944 = vunpack.c.l.b16 %v4703
    %v5945 = vunpack.c.h.b16 %v4703
    %v5946 = vunpack.c.l.b16 %v4704
    %v5947 = vunpack.c.h.b16 %v4704
    %v5948 = vunpack.c.l.b16 %v4705
    %v5949 = vunpack.c.h.b16 %v4705
    %v5950 = vunpack.c.l.b16 %v4706
    %v5951 = vunpack.c.h.b16 %v4706
    %v5952 = vunpack.c.l.b16 %v4707
    %v5953 = vunpack.c.h.b16 %v4707
    %v5954 = vunpack.c.l.b16 %v4708
    %v5955 = vunpack.c.h.b16 %v4708
    %v5956 = vunpack.c.l.b16 %v4709
    %v5957 = vunpack.c.h.b16 %v4709
    %v5958 = vunpack.c.l.b16 %v4710
    %v5959 = vunpack.c.h.b16 %v4710
    %v5960 = vunpack.c.l.b16 %v4711
    %v5961 = vunpack.c.h.b16 %v4711
    %v5962 = vunpack.c.l.b16 %v4712
    %v5963 = vunpack.c.h.b16 %v4712
    %v5964 = vunpack.c.l.b16 %v4713
    %v5965 = vunpack.c.h.b16 %v4713
    %v5966 = vunpack.c.l.b16 %v4714
    %v5967 = vunpack.c.h.b16 %v4714
    %v5968 = vunpack.c.l.b16 %v4715
    %v5969 = vunpack.c.h.b16 %v4715
    %v5970 = vunpack.c.l.b16 %v4716
    %v5971 = vunpack.c.h.b16 %v4716
    %v5972 = vunpack.c.l.b16 %v4717
    %v5973 = vunpack.c.h.b16 %v4717
    %v5974 = vunpack.c.l.b16 %v4718
    %v5975 = vunpack.c.h.b16 %v4718
    %v5976 = vunpack.c.l.b16 %v4719
    %v5977 = vunpack.c.h.b16 %v4719
    %v5978 = vunpack.c.l.b16 %v4720
    %v5979 = vunpack.c.h.b16 %v4720
    %v5980 = vunpack.c.l.b16 %v4721
    %v5981 = vunpack.c.h.b16 %v4721
    %v5982 = vunpack.c.l.b16 %v4722
    %v5983 = vunpack.c.h.b16 %v4722
    %v5984 = vunpack.c.l.b16 %v4723
    %v5985 = vunpack.c.h.b16 %v4723
    %v5986 = vunpack.c.l.b16 %v4724
    %v5987 = vunpack.c.h.b16 %v4724
    %v5988 = vunpack.c.l.b16 %v4725
    %v5989 = vunpack.c.h.b16 %v4725
    %v5990 = vunpack.c.l.b16 %v4726
    %v5991 = vunpack.c.h.b16 %v4726
    %v5992 = vunpack.c.l.b16 %v4727
    %v5993 = vunpack.c.h.b16 %v4727
    %v5994 = vunpack.c.l.b16 %v4728
    %v5995 = vunpack.c.h.b16 %v4728
    %v5996 = vunpack.c.l.b16 %v4729
    %v5997 = vunpack.c.h.b16 %v4729
    %v5998 = vunpack.c.l.b16 %v4730
    %v5999 = vunpack.c.h.b16 %v4730
    %v6000 = vunpack.c.l.b16 %v4731
    %v6001 = vunpack.c.h.b16 %v4731
    %v6002 = vunpack.c.l.b16 %v4732
    %v6003 = vunpack.c.h.b16 %v4732
    %v6004 = vunpack.c.l.b16 %v4733
    %v6005 = vunpack.c.h.b16 %v4733
    %v6006 = vunpack.c.l.b16 %v4734
    %v6007 = vunpack.c.h.b16 %v4734
    %v6008 = vunpack.c.l.b16 %v4735
    %v6009 = vunpack.c.h.b16 %v4735
    %v6010 = vunpack.c.l.b16 %v4736
    %v6011 = vunpack.c.h.b16 %v4736
    %v6012 = vunpack.c.l.b16 %v4737
    %v6013 = vunpack.c.h.b16 %v4737
    %v6014 = vunpack.c.l.b16 %v4738
    %v6015 = vunpack.c.h.b16 %v4738
    %v6016 = vunpack.c.l.b16 %v4739
    %v6017 = vunpack.c.h.b16 %v4739
    %v6018 = vunpack.c.l.b16 %v4740
    %v6019 = vunpack.c.h.b16 %v4740
    %v6020 = vunpack.c.l.b16 %v4741
    %v6021 = vunpack.c.h.b16 %v4741
    %v6022 = vunpack.c.l.b16 %v4742
    %v6023 = vunpack.c.h.b16 %v4742
    %v6024 = vunpack.c.l.b16 %v4743
    %v6025 = vunpack.c.h.b16 %v4743
    %v6026 = vunpack.c.l.b16 %v4744
    %v6027 = vunpack.c.h.b16 %v4744
    %v6028 = vunpack.c.l.b16 %v4745
    %v6029 = vunpack.c.h.b16 %v4745
    %v6030 = vunpack.c.l.b16 %v4746
    %v6031 = vunpack.c.h.b16 %v4746
    %v6032 = vunpack.c.l.b16 %v4747
    %v6033 = vunpack.c.h.b16 %v4747
    %v6034 = vunpack.c.l.b16 %v4748
    %v6035 = vunpack.c.h.b16 %v4748
    %v6036 = vunpack.c.l.b16 %v4749
    %v6037 = vunpack.c.h.b16 %v4749
    %v6038 = vunpack.c.l.b16 %v4750
    %v6039 = vunpack.c.h.b16 %v4750
    %v6040 = vunpack.c.l.b16 %v4751
    %v6041 = vunpack.c.h.b16 %v4751
    %v6042 = vunpack.c.l.b16 %v4752
    %v6043 = vunpack.c.h.b16 %v4752
    %v6044 = vunpack.c.l.b16 %v4753
    %v6045 = vunpack.c.h.b16 %v4753
    %v6046 = vunpack.c.l.b16 %v4754
    %v6047 = vunpack.c.h.b16 %v4754
    %v6048 = vunpack.c.l.b16 %v4755
    %v6049 = vunpack.c.h.b16 %v4755
    %v6050 = vunpack.c.l.b16 %v4756
    %v6051 = vunpack.c.h.b16 %v4756
    %v6052 = vunpack.c.l.b16 %v4757
    %v6053 = vunpack.c.h.b16 %v4757
    %v6054 = vunpack.c.l.b16 %v4758
    %v6055 = vunpack.c.h.b16 %v4758
    %v6056 = vunpack.c.l.b16 %v4759
    %v6057 = vunpack.c.h.b16 %v4759
    %v6058 = vunpack.c.l.b16 %v4760
    %v6059 = vunpack.c.h.b16 %v4760
    %v6060 = vunpack.c.l.b16 %v4761
    %v6061 = vunpack.c.h.b16 %v4761
    %v6062 = vunpack.c.l.b16 %v4762
    %v6063 = vunpack.c.h.b16 %v4762
    %v6064 = vunpack.c.l.b16 %v4763
    %v6065 = vunpack.c.h.b16 %v4763
    %v6066 = vunpack.c.l.b16 %v4764
    %v6067 = vunpack.c.h.b16 %v4764
    %v6068 = vunpack.c.l.b16 %v4765
    %v6069 = vunpack.c.h.b16 %v4765
    %v6070 = vunpack.c.l.b16 %v4766
    %v6071 = vunpack.c.h.b16 %v4766
    %v6072 = vunpack.c.l.b16 %v4767
    %v6073 = vunpack.c.h.b16 %v4767
    %v6074 = vunpack.c.l.b16 %v4768
    %v6075 = vunpack.c.h.b16 %v4768
    %v6076 = vunpack.c.l.b16 %v4769
    %v6077 = vunpack.c.h.b16 %v4769
    %v6078 = vunpack.c.l.b16 %v4770
    %v6079 = vunpack.c.h.b16 %v4770
    %v6080 = vunpack.c.l.b16 %v4771
    %v6081 = vunpack.c.h.b16 %v4771
    %v6082 = vunpack.c.l.b16 %v4772
    %v6083 = vunpack.c.h.b16 %v4772
    %v6084 = vunpack.c.l.b16 %v4773
    %v6085 = vunpack.c.h.b16 %v4773
    %v6086 = vunpack.c.l.b16 %v4774
    %v6087 = vunpack.c.h.b16 %v4774
    %v6088 = vunpack.c.l.b16 %v4775
    %v6089 = vunpack.c.h.b16 %v4775
    %v6090 = vunpack.c.l.b16 %v4776
    %v6091 = vunpack.c.h.b16 %v4776
    %v6092 = vunpack.c.l.b16 %v4777
    %v6093 = vunpack.c.h.b16 %v4777
    %v6094 = vunpack.c.l.b16 %v4778
    %v6095 = vunpack.c.h.b16 %v4778
    %v6096 = vunpack.c.l.b16 %v4779
    %v6097 = vunpack.c.h.b16 %v4779
    %v6098 = vunpack.c.l.b16 %v4780
    %v6099 = vunpack.c.h.b16 %v4780
    %v6100 = vunpack.c.l.b16 %v4781
    %v6101 = vunpack.c.h.b16 %v4781
    %v6102 = vunpack.c.l.b16 %v4782
    %v6103 = vunpack.c.h.b16 %v4782
    %v6104 = vunpack.c.l.b16 %v4783
    %v6105 = vunpack.c.h.b16 %v4783
    %v6106 = vunpack.c.l.b16 %v4784
    %v6107 = vunpack.c.h.b16 %v4784
    %v6108 = vunpack.c.l.b16 %v4785
    %v6109 = vunpack.c.h.b16 %v4785
    %v6110 = vunpack.c.l.b16 %v4786
    %v6111 = vunpack.c.h.b16 %v4786
    %v6112 = vunpack.c.l.b16 %v4787
    %v6113 = vunpack.c.h.b16 %v4787
    %v6114 = vunpack.c.l.b16 %v4788
    %v6115 = vunpack.c.h.b16 %v4788
    %v6116 = vunpack.c.l.b16 %v4789
    %v6117 = vunpack.c.h.b16 %v4789
    %v6118 = vunpack.c.l.b16 %v4790
    %v6119 = vunpack.c.h.b16 %v4790
    %v6120 = vunpack.c.l.b16 %v4791
    %v6121 = vunpack.c.h.b16 %v4791
    %v6122 = vunpack.c.l.b16 %v4792
    %v6123 = vunpack.c.h.b16 %v4792
    %v6124 = vunpack.c.l.b16 %v4793
    %v6125 = vunpack.c.h.b16 %v4793
    %v6126 = vunpack.c.l.b16 %v4794
    %v6127 = vunpack.c.h.b16 %v4794
    %v6128 = vunpack.c.l.b16 %v4795
    %v6129 = vunpack.c.h.b16 %v4795
    %v6130 = vunpack.c.l.b16 %v4796
    %v6131 = vunpack.c.h.b16 %v4796
    %v6132 = vunpack.c.l.b16 %v4797
    %v6133 = vunpack.c.h.b16 %v4797
    %v6134 = vunpack.c.l.b16 %v4798
    %v6135 = vunpack.c.h.b16 %v4798
    %v6136 = vunpack.c.l.b16 %v4799
    %v6137 = vunpack.c.h.b16 %v4799
    %v6138 = vunpack.c.l.b16 %v4800
    %v6139 = vunpack.c.h.b16 %v4800
    %v6140 = vunpack.c.l.b16 %v4801
    %v6141 = vunpack.c.h.b16 %v4801
    %v6142 = vunpack.c.l.b16 %v4802
    %v6143 = vunpack.c.h.b16 %v4802
    %v6144 = vunpack.c.l.b16 %v4803
    %v6145 = vunpack.c.h.b16 %v4803
    %v6146 = vunpack.c.l.b16 %v4804
    %v6147 = vunpack.c.h.b16 %v4804
    %v6148 = vunpack.c.l.b16 %v4805
    %v6149 = vunpack.c.h.b16 %v4805
    %v6150 = vunpack.c.l.b16 %v4806
    %v6151 = vunpack.c.h.b16 %v4806
    %v6152 = vunpack.c.l.b16 %v4807
    %v6153 = vunpack.c.h.b16 %v4807
    %v6154 = vunpack.c.l.b16 %v4808
    %v6155 = vunpack.c.h.b16 %v4808
    %v6156 = vunpack.c.l.b16 %v4809
    %v6157 = vunpack.c.h.b16 %v4809
    %v6158 = vunpack.c.l.b16 %v4810
    %v6159 = vunpack.c.h.b16 %v4810
    %v6160 = vunpack.c.l.b16 %v4811
    %v6161 = vunpack.c.h.b16 %v4811
    %v6162 = vunpack.c.l.b16 %v4812
    %v6163 = vunpack.c.h.b16 %v4812
    %v6164 = vunpack.c.l.b16 %v4813
    %v6165 = vunpack.c.h.b16 %v4813
    %v6166 = vunpack.c.l.b16 %v4814
    %v6167 = vunpack.c.h.b16 %v4814
    %v6168 = vunpack.c.l.b16 %v4815
    %v6169 = vunpack.c.h.b16 %v4815
    %v6170 = vunpack.c.l.b16 %v4816
    %v6171 = vunpack.c.h.b16 %v4816
    %v6172 = vunpack.c.l.b16 %v4817
    %v6173 = vunpack.c.h.b16 %v4817
    %v6174 = vunpack.c.l.b16 %v4818
    %v6175 = vunpack.c.h.b16 %v4818
    %v6176 = vunpack.c.l.b16 %v4819
    %v6177 = vunpack.c.h.b16 %v4819
    %v6178 = vunpack.c.l.b16 %v4820
    %v6179 = vunpack.c.h.b16 %v4820
    %v6180 = vunpack.c.l.b16 %v4821
    %v6181 = vunpack.c.h.b16 %v4821
    %v6182 = vunpack.c.l.b16 %v4822
    %v6183 = vunpack.c.h.b16 %v4822
    %v6184 = vunpack.c.l.b16 %v4823
    %v6185 = vunpack.c.h.b16 %v4823
    %v6186 = vunpack.c.l.b16 %v4824
    %v6187 = vunpack.c.h.b16 %v4824
    %v6188 = vunpack.c.l.b16 %v4825
    %v6189 = vunpack.c.h.b16 %v4825
    %v6190 = vunpack.c.l.b16 %v4826
    %v6191 = vunpack.c.h.b16 %v4826
    %v6192 = vunpack.c.l.b16 %v4827
    %v6193 = vunpack.c.h.b16 %v4827
    %v6194 = vunpack.c.l.b16 %v4828
    %v6195 = vunpack.c.h.b16 %v4828
    %v6196 = vunpack.c.l.b16 %v4829
    %v6197 = vunpack.c.h.b16 %v4829
    %v6198 = vunpack.c.l.b16 %v4830
    %v6199 = vunpack.c.h.b16 %v4830
    %v6200 = vunpack.c.l.b16 %v4831
    %v6201 = vunpack.c.h.b16 %v4831
    %v6202 = vunpack.c.l.b16 %v4832
    %v6203 = vunpack.c.h.b16 %v4832
    %v6204 = vunpack.c.l.b16 %v4833
    %v6205 = vunpack.c.h.b16 %v4833
    %v6206 = vunpack.c.l.b16 %v4834
    %v6207 = vunpack.c.h.b16 %v4834
    %v6208 = vunpack.c.l.b16 %v4835
    %v6209 = vunpack.c.h.b16 %v4835
    %v6210 = vunpack.c.l.b16 %v4836
    %v6211 = vunpack.c.h.b16 %v4836
    %v6212 = vunpack.c.l.b16 %v4837
    %v6213 = vunpack.c.h.b16 %v4837
    %v6214 = vunpack.c.l.b16 %v4838
    %v6215 = vunpack.c.h.b16 %v4838
    %v6216 = vunpack.c.l.b16 %v4839
    %v6217 = vunpack.c.h.b16 %v4839
    %v6218 = vunpack.c.l.b16 %v4840
    %v6219 = vunpack.c.h.b16 %v4840
    %v6220 = vunpack.c.l.b16 %v4841
    %v6221 = vunpack.c.h.b16 %v4841
    %v6222 = vunpack.c.l.b16 %v4842
    %v6223 = vunpack.c.h.b16 %v4842
    %v6224 = vunpack.c.l.b16 %v4843
    %v6225 = vunpack.c.h.b16 %v4843
    %v6226 = vunpack.c.l.b16 %v4844
    %v6227 = vunpack.c.h.b16 %v4844
    %v6228 = vunpack.c.l.b16 %v4845
    %v6229 = vunpack.c.h.b16 %v4845
    %v6230 = vunpack.c.l.b16 %v4846
    %v6231 = vunpack.c.h.b16 %v4846
    %v6232 = vunpack.c.l.b16 %v4847
    %v6233 = vunpack.c.h.b16 %v4847
    %v6234 = vunpack.c.l.b16 %v4848
    %v6235 = vunpack.c.h.b16 %v4848
    %v6236 = vunpack.c.l.b16 %v4849
    %v6237 = vunpack.c.h.b16 %v4849
    %v6238 = vunpack.c.l.b16 %v4850
    %v6239 = vunpack.c.h.b16 %v4850
    %v6240 = vunpack.c.l.b16 %v4851
    %v6241 = vunpack.c.h.b16 %v4851
    %v6242 = vunpack.c.l.b16 %v4852
    %v6243 = vunpack.c.h.b16 %v4852
    %v6244 = vunpack.c.l.b16 %v4853
    %v6245 = vunpack.c.h.b16 %v4853
    %v6246 = vunpack.c.l.b16 %v4854
    %v6247 = vunpack.c.h.b16 %v4854
    %v6248 = vunpack.c.l.b16 %v4855
    %v6249 = vunpack.c.h.b16 %v4855
    %v6250 = vunpack.c.l.b16 %v4856
    %v6251 = vunpack.c.h.b16 %v4856
    %v6252 = vunpack.c.l.b16 %v4857
    %v6253 = vunpack.c.h.b16 %v4857
    %v6254 = vunpack.c.l.b16 %v4858
    %v6255 = vunpack.c.h.b16 %v4858
    %v6256 = vunpack.c.l.b16 %v4859
    %v6257 = vunpack.c.h.b16 %v4859
    %v6258 = vunpack.c.l.b16 %v4860
    %v6259 = vunpack.c.h.b16 %v4860
    %v6260 = vunpack.c.l.b16 %v4861
    %v6261 = vunpack.c.h.b16 %v4861
    %v6262 = vunpack.c.l.b16 %v4862
    %v6263 = vunpack.c.h.b16 %v4862
    %v6264 = vunpack.c.l.b16 %v4863
    %v6265 = vunpack.c.h.b16 %v4863
    %v6266 = vunpack.c.l.b16 %v4864
    %v6267 = vunpack.c.h.b16 %v4864
    %v6268 = vunpack.c.l.b16 %v4865
    %v6269 = vunpack.c.h.b16 %v4865
    %v6270 = vunpack.c.l.b16 %v4866
    %v6271 = vunpack.c.h.b16 %v4866
    %v6272 = vunpack.c.l.b16 %v4867
    %v6273 = vunpack.c.h.b16 %v4867
    %v6274 = vunpack.c.l.b16 %v4868
    %v6275 = vunpack.c.h.b16 %v4868
    %v6276 = vunpack.c.l.b16 %v4869
    %v6277 = vunpack.c.h.b16 %v4869
    %v6278 = vunpack.c.l.b16 %v4870
    %v6279 = vunpack.c.h.b16 %v4870
    %v6280 = vunpack.c.l.b16 %v4871
    %v6281 = vunpack.c.h.b16 %v4871
    %v6282 = vunpack.c.l.b16 %v4872
    %v6283 = vunpack.c.h.b16 %v4872
    %v6284 = vunpack.c.l.b16 %v4873
    %v6285 = vunpack.c.h.b16 %v4873
    %v6286 = vunpack.c.l.b16 %v4874
    %v6287 = vunpack.c.h.b16 %v4874
    %v6288 = vunpack.c.l.b16 %v4875
    %v6289 = vunpack.c.h.b16 %v4875
    %v6290 = vunpack.c.l.b16 %v4876
    %v6291 = vunpack.c.h.b16 %v4876
    %v6292 = vunpack.c.l.b16 %v4877
    %v6293 = vunpack.c.h.b16 %v4877
    %v6294 = vunpack.c.l.b16 %v4878
    %v6295 = vunpack.c.h.b16 %v4878
    %v6296 = vunpack.c.l.b16 %v4879
    %v6297 = vunpack.c.h.b16 %v4879
    %v6298 = vunpack.c.l.b16 %v4880
    %v6299 = vunpack.c.h.b16 %v4880
    %v6300 = vunpack.c.l.b16 %v4881
    %v6301 = vunpack.c.h.b16 %v4881
    %v6302 = vunpack.c.l.b16 %v4882
    %v6303 = vunpack.c.h.b16 %v4882
    %v6304 = vunpack.c.l.b16 %v4883
    %v6305 = vunpack.c.h.b16 %v4883
    %v6306 = vunpack.c.l.b16 %v4884
    %v6307 = vunpack.c.h.b16 %v4884
    %v6308 = vunpack.c.l.b16 %v4885
    %v6309 = vunpack.c.h.b16 %v4885
    %v6310 = vunpack.c.l.b16 %v4886
    %v6311 = vunpack.c.h.b16 %v4886
    %v6312 = vunpack.c.l.b16 %v4887
    %v6313 = vunpack.c.h.b16 %v4887
    %v6314 = vunpack.c.l.b16 %v4888
    %v6315 = vunpack.c.h.b16 %v4888
    %v6316 = vunpack.c.l.b16 %v4889
    %v6317 = vunpack.c.h.b16 %v4889
    %v6318 = vunpack.c.l.b16 %v4890
    %v6319 = vunpack.c.h.b16 %v4890
    %v6320 = vunpack.c.l.b16 %v4891
    %v6321 = vunpack.c.h.b16 %v4891
    %v6322 = vunpack.c.l.b16 %v4892
    %v6323 = vunpack.c.h.b16 %v4892
    %v6324 = vunpack.c.l.b16 %v4893
    %v6325 = vunpack.c.h.b16 %v4893
    %v6326 = vunpack.c.l.b16 %v4894
    %v6327 = vunpack.c.h.b16 %v4894
    %v6328 = vunpack.c.l.b16 %v4895
    %v6329 = vunpack.c.h.b16 %v4895
    %v6330 = vunpack.c.l.b16 %v4896
    %v6331 = vunpack.c.h.b16 %v4896
    %v6332 = vunpack.c.l.b16 %v4897
    %v6333 = vunpack.c.h.b16 %v4897
    %v6334 = vunpack.c.l.b16 %v4898
    %v6335 = vunpack.c.h.b16 %v4898
    %v6336 = vunpack.c.l.b16 %v4899
    %v6337 = vunpack.c.h.b16 %v4899
    %v6338 = vunpack.c.l.b16 %v4900
    %v6339 = vunpack.c.h.b16 %v4900
    %v6340 = vunpack.c.l.b16 %v4901
    %v6341 = vunpack.c.h.b16 %v4901
    %v6342 = vunpack.c.l.b16 %v4902
    %v6343 = vunpack.c.h.b16 %v4902
    %v6344 = vunpack.c.l.b16 %v4903
    %v6345 = vunpack.c.h.b16 %v4903
    %v6346 = vunpack.c.l.b16 %v4904
    %v6347 = vunpack.c.h.b16 %v4904
    %v6348 = vunpack.c.l.b16 %v4905
    %v6349 = vunpack.c.h.b16 %v4905
    %v6350 = vunpack.c.l.b16 %v4906
    %v6351 = vunpack.c.h.b16 %v4906
    %v6352 = vunpack.c.l.b16 %v4907
    %v6353 = vunpack.c.h.b16 %v4907
    %v6354 = vunpack.c.l.b16 %v4908
    %v6355 = vunpack.c.h.b16 %v4908
    %v6356 = vunpack.c.l.b16 %v4909
    %v6357 = vunpack.c.h.b16 %v4909
    %v6358 = vunpack.c.l.b16 %v4910
    %v6359 = vunpack.c.h.b16 %v4910
    %v6360 = vunpack.c.l.b16 %v4911
    %v6361 = vunpack.c.h.b16 %v4911
    %v6362 = vunpack.c.l.b16 %v4912
    %v6363 = vunpack.c.h.b16 %v4912
    %v6364 = vunpack.c.l.b16 %v4913
    %v6365 = vunpack.c.h.b16 %v4913
    %v6366 = vunpack.c.l.b16 %v4914
    %v6367 = vunpack.c.h.b16 %v4914
    %v6368 = vunpack.c.l.b16 %v4915
    %v6369 = vunpack.c.h.b16 %v4915
    %v6370 = vunpack.c.l.b16 %v4916
    %v6371 = vunpack.c.h.b16 %v4916
    %v6372 = vunpack.c.l.b16 %v4917
    %v6373 = vunpack.c.h.b16 %v4917
    %v6374 = vunpack.c.l.b16 %v4918
    %v6375 = vunpack.c.h.b16 %v4918
    %v6376 = vunpack.c.l.b16 %v4919
    %v6377 = vunpack.c.h.b16 %v4919
    %v6378 = vunpack.c.l.b16 %v4920
    %v6379 = vunpack.c.h.b16 %v4920
    %v6380 = vunpack.c.l.b16 %v4921
    %v6381 = vunpack.c.h.b16 %v4921
    %v6382 = vunpack.c.l.b16 %v4922
    %v6383 = vunpack.c.h.b16 %v4922
    %v6384 = vunpack.c.l.b16 %v4923
    %v6385 = vunpack.c.h.b16 %v4923
    %v6386 = vunpack.c.l.b16 %v4924
    %v6387 = vunpack.c.h.b16 %v4924
    %v6388 = vunpack.c.l.b16 %v4925
    %v6389 = vunpack.c.h.b16 %v4925
    %v6390 = vunpack.c.l.b16 %v4926
    %v6391 = vunpack.c.h.b16 %v4926
    %v6392 = vunpack.c.l.b16 %v4927
    %v6393 = vunpack.c.h.b16 %v4927
    %v6394 = vunpack.c.l.b16 %v4928
    %v6395 = vunpack.c.h.b16 %v4928
    %v6396 = vunpack.c.l.b16 %v4929
    %v6397 = vunpack.c.h.b16 %v4929
    %v6398 = vunpack.c.l.b16 %v4930
    %v6399 = vunpack.c.h.b16 %v4930
    %v6400 = vunpack.c.l.b16 %v4931
    %v6401 = vunpack.c.h.b16 %v4931
    %v6402 = vunpack.c.l.b16 %v4932
    %v6403 = vunpack.c.h.b16 %v4932
    %v6404 = vunpack.c.l.b16 %v4933
    %v6405 = vunpack.c.h.b16 %v4933
    %v6406 = vunpack.c.l.b16 %v4934
    %v6407 = vunpack.c.h.b16 %v4934
    %v6408 = vunpack.c.l.b16 %v4935
    %v6409 = vunpack.c.h.b16 %v4935
    %v6410 = vunpack.c.l.b16 %v4936
    %v6411 = vunpack.c.h.b16 %v4936
    %v6412 = vunpack.c.l.b16 %v4937
    %v6413 = vunpack.c.h.b16 %v4937
    %v6414 = vunpack.c.l.b16 %v4938
    %v6415 = vunpack.c.h.b16 %v4938
    %v6416 = vunpack.c.l.b16 %v4939
    %v6417 = vunpack.c.h.b16 %v4939
    %v6418 = vunpack.c.l.b16 %v4940
    %v6419 = vunpack.c.h.b16 %v4940
    %v6420 = vunpack.c.l.b16 %v4941
    %v6421 = vunpack.c.h.b16 %v4941
    %v6422 = vunpack.c.l.b16 %v4942
    %v6423 = vunpack.c.h.b16 %v4942
    %v6424 = vunpack.c.l.b16 %v4943
    %v6425 = vunpack.c.h.b16 %v4943
    %v6426 = vunpack.c.l.b16 %v4944
    %v6427 = vunpack.c.h.b16 %v4944
    %v6428 = vunpack.c.l.b16 %v4945
    %v6429 = vunpack.c.h.b16 %v4945
    %v6430 = vunpack.c.l.b16 %v4946
    %v6431 = vunpack.c.h.b16 %v4946
    %v6432 = vunpack.c.l.b16 %v4947
    %v6433 = vunpack.c.h.b16 %v4947
    %v6434 = vunpack.c.l.b16 %v4948
    %v6435 = vunpack.c.h.b16 %v4948
    %v6436 = vunpack.c.l.b16 %v4949
    %v6437 = vunpack.c.h.b16 %v4949
    %v6438 = vunpack.c.l.b16 %v4950
    %v6439 = vunpack.c.h.b16 %v4950
    %v6440 = vunpack.c.l.b16 %v4951
    %v6441 = vunpack.c.h.b16 %v4951
    %v6442 = vunpack.c.l.b16 %v4952
    %v6443 = vunpack.c.h.b16 %v4952
    %v6444 = vunpack.c.l.b16 %v4953
    %v6445 = vunpack.c.h.b16 %v4953
    %v6446 = vunpack.c.l.b16 %v4954
    %v6447 = vunpack.c.h.b16 %v4954
    %v6448 = vunpack.c.l.b16 %v4955
    %v6449 = vunpack.c.h.b16 %v4955
    %v6450 = vunpack.c.l.b16 %v4956
    %v6451 = vunpack.c.h.b16 %v4956
    %v6452 = vunpack.c.l.b16 %v4957
    %v6453 = vunpack.c.h.b16 %v4957
    %v6454 = vunpack.c.l.b16 %v4958
    %v6455 = vunpack.c.h.b16 %v4958
    %v6456 = vunpack.c.l.b16 %v4959
    %v6457 = vunpack.c.h.b16 %v4959
    %v6458 = vunpack.c.l.b16 %v4960
    %v6459 = vunpack.c.h.b16 %v4960
    %v6460 = vunpack.c.l.b16 %v4961
    %v6461 = vunpack.c.h.b16 %v4961
    %v6462 = vunpack.c.l.b16 %v4962
    %v6463 = vunpack.c.h.b16 %v4962
    %v6464 = vunpack.c.l.b16 %v4963
    %v6465 = vunpack.c.h.b16 %v4963
    %v6466 = vunpack.c.l.b16 %v4964
    %v6467 = vunpack.c.h.b16 %v4964
    %v6468 = vunpack.c.l.b16 %v4965
    %v6469 = vunpack.c.h.b16 %v4965
    %v6470 = vunpack.c.l.b16 %v4966
    %v6471 = vunpack.c.h.b16 %v4966
    %v6472 = vunpack.c.l.b16 %v4967
    %v6473 = vunpack.c.h.b16 %v4967
    %v6474 = vunpack.c.l.b16 %v4968
    %v6475 = vunpack.c.h.b16 %v4968
    %v6476 = vunpack.c.l.b16 %v4969
    %v6477 = vunpack.c.h.b16 %v4969
    %v6478 = vunpack.c.l.b16 %v4970
    %v6479 = vunpack.c.h.b16 %v4970
    %v6480 = vunpack.c.l.b16 %v4971
    %v6481 = vunpack.c.h.b16 %v4971
    %v6482 = vunpack.c.l.b16 %v4972
    %v6483 = vunpack.c.h.b16 %v4972
    %v6484 = vunpack.c.l.b16 %v4973
    %v6485 = vunpack.c.h.b16 %v4973
    %v6486 = vunpack.c.l.b16 %v4974
    %v6487 = vunpack.c.h.b16 %v4974
    %v6488 = vunpack.c.l.b16 %v4975
    %v6489 = vunpack.c.h.b16 %v4975
    %v6490 = vunpack.c.l.b16 %v4976
    %v6491 = vunpack.c.h.b16 %v4976
    %v6492 = vunpack.c.l.b16 %v4977
    %v6493 = vunpack.c.h.b16 %v4977
    %v6494 = vunpack.c.l.b16 %v4978
    %v6495 = vunpack.c.h.b16 %v4978
    %v6496 = vunpack.c.l.b16 %v4979
    %v6497 = vunpack.c.h.b16 %v4979
    %v6498 = vunpack.c.l.b16 %v4980
    %v6499 = vunpack.c.h.b16 %v4980
    %v6500 = vunpack.c.l.b16 %v4981
    %v6501 = vunpack.c.h.b16 %v4981
    %v6502 = vunpack.c.l.b16 %v4982
    %v6503 = vunpack.c.h.b16 %v4982
    %v6504 = vunpack.c.l.b16 %v4983
    %v6505 = vunpack.c.h.b16 %v4983
    %v6506 = vunpack.c.l.b16 %v4984
    %v6507 = vunpack.c.h.b16 %v4984
    %v6508 = vunpack.c.l.b16 %v4985
    %v6509 = vunpack.c.h.b16 %v4985
    %v6510 = vunpack.c.l.b16 %v4986
    %v6511 = vunpack.c.h.b16 %v4986
    %v6512 = vunpack.c.l.b16 %v4987
    %v6513 = vunpack.c.h.b16 %v4987
    %v6514 = vunpack.c.l.b16 %v4988
    %v6515 = vunpack.c.h.b16 %v4988
    %v6516 = vunpack.c.l.b16 %v4989
    %v6517 = vunpack.c.h.b16 %v4989
    %v6518 = vunpack.c.l.b16 %v4990
    %v6519 = vunpack.c.h.b16 %v4990
    %v6520 = vunpack.c.l.b16 %v4991
    %v6521 = vunpack.c.h.b16 %v4991
    %v6522 = vunpack.c.l.b16 %v4992
    %v6523 = vunpack.c.h.b16 %v4992
    %v6524 = vunpack.c.l.b16 %v4993
    %v6525 = vunpack.c.h.b16 %v4993
    %v6526 = vunpack.c.l.b16 %v4994
    %v6527 = vunpack.c.h.b16 %v4994
    %v6528 = vunpack.c.l.b16 %v4995
    %v6529 = vunpack.c.h.b16 %v4995
    %v6530 = vunpack.c.l.b16 %v4996
    %v6531 = vunpack.c.h.b16 %v4996
    %v6532 = vunpack.c.l.b16 %v4997
    %v6533 = vunpack.c.h.b16 %v4997
    %v6534 = vunpack.c.l.b16 %v4998
    %v6535 = vunpack.c.h.b16 %v4998
    %v6536 = vunpack.c.l.b16 %v4999
    %v6537 = vunpack.c.h.b16 %v4999
    %v6538 = vunpack.c.l.b16 %v5000
    %v6539 = vunpack.c.h.b16 %v5000
    %v6540 = vunpack.c.l.b16 %v5001
    %v6541 = vunpack.c.h.b16 %v5001
    %v6542 = vunpack.c.l.b16 %v5002
    %v6543 = vunpack.c.h.b16 %v5002
    %v6544 = vunpack.c.l.b16 %v5003
    %v6545 = vunpack.c.h.b16 %v5003
    %v6546 = vunpack.c.l.b16 %v5004
    %v6547 = vunpack.c.h.b16 %v5004
    %v6548 = vunpack.c.l.b16 %v5005
    %v6549 = vunpack.c.h.b16 %v5005
    %v6550 = vunpack.c.l.b16 %v5006
    %v6551 = vunpack.c.h.b16 %v5006
    %v6552 = vunpack.c.l.b16 %v5007
    %v6553 = vunpack.c.h.b16 %v5007
    %v6554 = vunpack.c.l.b16 %v5008
    %v6555 = vunpack.c.h.b16 %v5008
    %v6556 = vunpack.c.l.b16 %v5009
    %v6557 = vunpack.c.h.b16 %v5009
    %v6558 = vunpack.c.l.b16 %v5010
    %v6559 = vunpack.c.h.b16 %v5010
    %v6560 = vunpack.c.l.b16 %v5011
    %v6561 = vunpack.c.h.b16 %v5011
    %v6562 = vunpack.c.l.b16 %v5012
    %v6563 = vunpack.c.h.b16 %v5012
    %v6564 = vunpack.c.l.b16 %v5013
    %v6565 = vunpack.c.h.b16 %v5013
    %v6566 = vunpack.c.l.b16 %v5014
    %v6567 = vunpack.c.h.b16 %v5014
    %v6568 = vunpack.c.l.b16 %v5015
    %v6569 = vunpack.c.h.b16 %v5015
    %v6570 = vunpack.c.l.b16 %v5016
    %v6571 = vunpack.c.h.b16 %v5016
    %v6572 = vunpack.c.l.b16 %v5017
    %v6573 = vunpack.c.h.b16 %v5017
    %v6574 = vunpack.c.l.b16 %v5018
    %v6575 = vunpack.c.h.b16 %v5018
    %v6576 = vunpack.c.l.b16 %v5019
    %v6577 = vunpack.c.h.b16 %v5019
    %v6578 = vunpack.c.l.b16 %v5020
    %v6579 = vunpack.c.h.b16 %v5020
    %v6580 = vunpack.c.l.b16 %v5021
    %v6581 = vunpack.c.h.b16 %v5021
    %v6582 = vunpack.c.l.b16 %v5022
    %v6583 = vunpack.c.h.b16 %v5022
    %v6584 = vunpack.c.l.b16 %v5023
    %v6585 = vunpack.c.h.b16 %v5023
    %v6586 = vunpack.c.l.b16 %v5024
    %v6587 = vunpack.c.h.b16 %v5024
    %v6588 = vunpack.c.l.b16 %v5025
    %v6589 = vunpack.c.h.b16 %v5025
    %v6590 = vunpack.c.l.b16 %v5026
    %v6591 = vunpack.c.h.b16 %v5026
    %v6592 = vunpack.c.l.b16 %v5027
    %v6593 = vunpack.c.h.b16 %v5027
    %v6594 = vunpack.c.l.b16 %v5028
    %v6595 = vunpack.c.h.b16 %v5028
    %v6596 = vunpack.c.l.b16 %v5029
    %v6597 = vunpack.c.h.b16 %v5029
    %v6598 = vunpack.c.l.b16 %v5030
    %v6599 = vunpack.c.h.b16 %v5030
    %v6600 = vunpack.c.l.b16 %v5031
    %v6601 = vunpack.c.h.b16 %v5031
    %v6602 = vunpack.c.l.b16 %v5032
    %v6603 = vunpack.c.h.b16 %v5032
    %v6604 = vunpack.c.l.b16 %v5033
    %v6605 = vunpack.c.h.b16 %v5033
    %v6606 = vunpack.c.l.b16 %v5034
    %v6607 = vunpack.c.h.b16 %v5034
    %v6608 = vunpack.c.l.b16 %v5035
    %v6609 = vunpack.c.h.b16 %v5035
    %v6610 = vunpack.c.l.b16 %v5036
    %v6611 = vunpack.c.h.b16 %v5036
    %v6612 = vunpack.c.l.b16 %v5037
    %v6613 = vunpack.c.h.b16 %v5037
    %v6614 = vunpack.c.l.b16 %v5038
    %v6615 = vunpack.c.h.b16 %v5038
    %v6616 = vunpack.c.l.b16 %v5039
    %v6617 = vunpack.c.h.b16 %v5039
    %v6618 = vpack.c.b16 %v5602, %v5594
    %v6619 = vpack.c.b16 %v5603, %v5595
    %v6620 = vpack.c.b16 %v5604, %v5596
    %v6621 = vpack.c.b16 %v5605, %v5597
    %v6622 = vpack.c.b16 %v5606, %v5598
    %v6623 = vpack.c.b16 %v5607, %v5599
    %v6624 = vpack.c.b16 %v5608, %v5600
    %v6625 = vpack.c.b16 %v5609, %v5601
    %v6626 = vpack.c.b16 %v5618, %v5610
    %v6627 = vpack.c.b16 %v5619, %v5611
    %v6628 = vpack.c.b16 %v5620, %v5612
    %v6629 = vpack.c.b16 %v5621, %v5613
    %v6630 = vpack.c.b16 %v5622, %v5614
    %v6631 = vpack.c.b16 %v5623, %v5615
    %v6632 = vpack.c.b16 %v5624, %v5616
    %v6633 = vpack.c.b16 %v5625, %v5617
    %v6634 = vpack.c.b16 %v5634, %v5626
    %v6635 = vpack.c.b16 %v5635, %v5627
    %v6636 = vpack.c.b16 %v5636, %v5628
    %v6637 = vpack.c.b16 %v5637, %v5629
    %v6638 = vpack.c.b16 %v5638, %v5630
    %v6639 = vpack.c.b16 %v5639, %v5631
    %v6640 = vpack.c.b16 %v5640, %v5632
    %v6641 = vpack.c.b16 %v5641, %v5633
    %v6642 = vpack.c.b16 %v5650, %v5642
    %v6643 = vpack.c.b16 %v5651, %v5643
    %v6644 = vpack.c.b16 %v5652, %v5644
    %v6645 = vpack.c.b16 %v5653, %v5645
    %v6646 = vpack.c.b16 %v5654, %v5646
    %v6647 = vpack.c.b16 %v5655, %v5647
    %v6648 = vpack.c.b16 %v5656, %v5648
    %v6649 = vpack.c.b16 %v5657, %v5649
    %v6650 = vpack.c.b16 %v5666, %v5658
    %v6651 = vpack.c.b16 %v5667, %v5659
    %v6652 = vpack.c.b16 %v5668, %v5660
    %v6653 = vpack.c.b16 %v5669, %v5661
    %v6654 = vpack.c.b16 %v5670, %v5662
    %v6655 = vpack.c.b16 %v5671, %v5663
    %v6656 = vpack.c.b16 %v5672, %v5664
    %v6657 = vpack.c.b16 %v5673, %v5665
    %v6658 = vpack.c.b16 %v5682, %v5674
    %v6659 = vpack.c.b16 %v5683, %v5675
    %v6660 = vpack.c.b16 %v5684, %v5676
    %v6661 = vpack.c.b16 %v5685, %v5677
    %v6662 = vpack.c.b16 %v5686, %v5678
    %v6663 = vpack.c.b16 %v5687, %v5679
    %v6664 = vpack.c.b16 %v5688, %v5680
    %v6665 = vpack.c.b16 %v5689, %v5681
    %v6666 = vpack.c.b16 %v5698, %v5690
    %v6667 = vpack.c.b16 %v5699, %v5691
    %v6668 = vpack.c.b16 %v5700, %v5692
    %v6669 = vpack.c.b16 %v5701, %v5693
    %v6670 = vpack.c.b16 %v5702, %v5694
    %v6671 = vpack.c.b16 %v5703, %v5695
    %v6672 = vpack.c.b16 %v5704, %v5696
    %v6673 = vpack.c.b16 %v5705, %v5697
    %v6674 = vpack.c.b16 %v5714, %v5706
    %v6675 = vpack.c.b16 %v5715, %v5707
    %v6676 = vpack.c.b16 %v5716, %v5708
    %v6677 = vpack.c.b16 %v5717, %v5709
    %v6678 = vpack.c.b16 %v5718, %v5710
    %v6679 = vpack.c.b16 %v5719, %v5711
    %v6680 = vpack.c.b16 %v5720, %v5712
    %v6681 = vpack.c.b16 %v5721, %v5713
    %v6682 = vpack.c.b16 %v5730, %v5722
    %v6683 = vpack.c.b16 %v5731, %v5723
    %v6684 = vpack.c.b16 %v5732, %v5724
    %v6685 = vpack.c.b16 %v5733, %v5725
    %v6686 = vpack.c.b16 %v5734, %v5726
    %v6687 = vpack.c.b16 %v5735, %v5727
    %v6688 = vpack.c.b16 %v5736, %v5728
    %v6689 = vpack.c.b16 %v5737, %v5729
    %v6690 = vpack.c.b16 %v5746, %v5738
    %v6691 = vpack.c.b16 %v5747, %v5739
    %v6692 = vpack.c.b16 %v5748, %v5740
    %v6693 = vpack.c.b16 %v5749, %v5741
    %v6694 = vpack.c.b16 %v5750, %v5742
    %v6695 = vpack.c.b16 %v5751, %v5743
    %v6696 = vpack.c.b16 %v5752, %v5744
    %v6697 = vpack.c.b16 %v5753, %v5745
    %v6698 = vpack.c.b16 %v5762, %v5754
    %v6699 = vpack.c.b16 %v5763, %v5755
    %v6700 = vpack.c.b16 %v5764, %v5756
    %v6701 = vpack.c.b16 %v5765, %v5757
    %v6702 = vpack.c.b16 %v5766, %v5758
    %v6703 = vpack.c.b16 %v5767, %v5759
    %v6704 = vpack.c.b16 %v5768, %v5760
    %v6705 = vpack.c.b16 %v5769, %v5761
    %v6706 = vpack.c.b16 %v5778, %v5770
    %v6707 = vpack.c.b16 %v5779, %v5771
    %v6708 = vpack.c.b16 %v5780, %v5772
    %v6709 = vpack.c.b16 %v5781, %v5773
    %v6710 = vpack.c.b16 %v5782, %v5774
    %v6711 = vpack.c.b16 %v5783, %v5775
    %v6712 = vpack.c.b16 %v5784, %v5776
    %v6713 = vpack.c.b16 %v5785, %v5777
    %v6714 = vpack.c.b16 %v5794, %v5786
    %v6715 = vpack.c.b16 %v5795, %v5787
    %v6716 = vpack.c.b16 %v5796, %v5788
    %v6717 = vpack.c.b16 %v5797, %v5789
    %v6718 = vpack.c.b16 %v5798, %v5790
    %v6719 = vpack.c.b16 %v5799, %v5791
    %v6720 = vpack.c.b16 %v5800, %v5792
    %v6721 = vpack.c.b16 %v5801, %v5793
    %v6722 = vpack.c.b16 %v5810, %v5802
    %v6723 = vpack.c.b16 %v5811, %v5803
    %v6724 = vpack.c.b16 %v5812, %v5804
    %v6725 = vpack.c.b16 %v5813, %v5805
    %v6726 = vpack.c.b16 %v5814, %v5806
    %v6727 = vpack.c.b16 %v5815, %v5807
    %v6728 = vpack.c.b16 %v5816, %v5808
    %v6729 = vpack.c.b16 %v5817, %v5809
    %v6730 = vpack.c.b16 %v5826, %v5818
    %v6731 = vpack.c.b16 %v5827, %v5819
    %v6732 = vpack.c.b16 %v5828, %v5820
    %v6733 = vpack.c.b16 %v5829, %v5821
    %v6734 = vpack.c.b16 %v5830, %v5822
    %v6735 = vpack.c.b16 %v5831, %v5823
    %v6736 = vpack.c.b16 %v5832, %v5824
    %v6737 = vpack.c.b16 %v5833, %v5825
    %v6738 = vpack.c.b16 %v5842, %v5834
    %v6739 = vpack.c.b16 %v5843, %v5835
    %v6740 = vpack.c.b16 %v5844, %v5836
    %v6741 = vpack.c.b16 %v5845, %v5837
    %v6742 = vpack.c.b16 %v5846, %v5838
    %v6743 = vpack.c.b16 %v5847, %v5839
    %v6744 = vpack.c.b16 %v5848, %v5840
    %v6745 = vpack.c.b16 %v5849, %v5841
    %v6746 = vpack.c.b16 %v5858, %v5850
    %v6747 = vpack.c.b16 %v5859, %v5851
    %v6748 = vpack.c.b16 %v5860, %v5852
    %v6749 = vpack.c.b16 %v5861, %v5853
    %v6750 = vpack.c.b16 %v5862, %v5854
    %v6751 = vpack.c.b16 %v5863, %v5855
    %v6752 = vpack.c.b16 %v5864, %v5856
    %v6753 = vpack.c.b16 %v5865, %v5857
    %v6754 = vpack.c.b16 %v5874, %v5866
    %v6755 = vpack.c.b16 %v5875, %v5867
    %v6756 = vpack.c.b16 %v5876, %v5868
    %v6757 = vpack.c.b16 %v5877, %v5869
    %v6758 = vpack.c.b16 %v5878, %v5870
    %v6759 = vpack.c.b16 %v5879, %v5871
    %v6760 = vpack.c.b16 %v5880, %v5872
    %v6761 = vpack.c.b16 %v5881, %v5873
    %v6762 = vpack.c.b16 %v5890, %v5882
    %v6763 = vpack.c.b16 %v5891, %v5883
    %v6764 = vpack.c.b16 %v5892, %v5884
    %v6765 = vpack.c.b16 %v5893, %v5885
    %v6766 = vpack.c.b16 %v5894, %v5886
    %v6767 = vpack.c.b16 %v5895, %v5887
    %v6768 = vpack.c.b16 %v5896, %v5888
    %v6769 = vpack.c.b16 %v5897, %v5889
    %v6770 = vpack.c.b16 %v5906, %v5898
    %v6771 = vpack.c.b16 %v5907, %v5899
    %v6772 = vpack.c.b16 %v5908, %v5900
    %v6773 = vpack.c.b16 %v5909, %v5901
    %v6774 = vpack.c.b16 %v5910, %v5902
    %v6775 = vpack.c.b16 %v5911, %v5903
    %v6776 = vpack.c.b16 %v5912, %v5904
    %v6777 = vpack.c.b16 %v5913, %v5905
    %v6778 = vpack.c.b16 %v5922, %v5914
    %v6779 = vpack.c.b16 %v5923, %v5915
    %v6780 = vpack.c.b16 %v5924, %v5916
    %v6781 = vpack.c.b16 %v5925, %v5917
    %v6782 = vpack.c.b16 %v5926, %v5918
    %v6783 = vpack.c.b16 %v5927, %v5919
    %v6784 = vpack.c.b16 %v5928, %v5920
    %v6785 = vpack.c.b16 %v5929, %v5921
    %v6786 = vpack.c.b16 %v5938, %v5930
    %v6787 = vpack.c.b16 %v5939, %v5931
    %v6788 = vpack.c.b16 %v5940, %v5932
    %v6789 = vpack.c.b16 %v5941, %v5933
    %v6790 = vpack.c.b16 %v5942, %v5934
    %v6791 = vpack.c.b16 %v5943, %v5935
    %v6792 = vpack.c.b16 %v5944, %v5936
    %v6793 = vpack.c.b16 %v5945, %v5937
    %v6794 = vpack.c.b16 %v5954, %v5946
    %v6795 = vpack.c.b16 %v5955, %v5947
    %v6796 = vpack.c.b16 %v5956, %v5948
    %v6797 = vpack.c.b16 %v5957, %v5949
    %v6798 = vpack.c.b16 %v5958, %v5950
    %v6799 = vpack.c.b16 %v5959, %v5951
    %v6800 = vpack.c.b16 %v5960, %v5952
    %v6801 = vpack.c.b16 %v5961, %v5953
    %v6802 = vpack.c.b16 %v5970, %v5962
    %v6803 = vpack.c.b16 %v5971, %v5963
    %v6804 = vpack.c.b16 %v5972, %v5964
    %v6805 = vpack.c.b16 %v5973, %v5965
    %v6806 = vpack.c.b16 %v5974, %v5966
    %v6807 = vpack.c.b16 %v5975, %v5967
    %v6808 = vpack.c.b16 %v5976, %v5968
    %v6809 = vpack.c.b16 %v5977, %v5969
    %v6810 = vpack.c.b16 %v5986, %v5978
    %v6811 = vpack.c.b16 %v5987, %v5979
    %v6812 = vpack.c.b16 %v5988, %v5980
    %v6813 = vpack.c.b16 %v5989, %v5981
    %v6814 = vpack.c.b16 %v5990, %v5982
    %v6815 = vpack.c.b16 %v5991, %v5983
    %v6816 = vpack.c.b16 %v5992, %v5984
    %v6817 = vpack.c.b16 %v5993, %v5985
    %v6818 = vpack.c.b16 %v6002, %v5994
    %v6819 = vpack.c.b16 %v6003, %v5995
    %v6820 = vpack.c.b16 %v6004, %v5996
    %v6821 = vpack.c.b16 %v6005, %v5997
    %v6822 = vpack.c.b16 %v6006, %v5998
    %v6823 = vpack.c.b16 %v6007, %v5999
    %v6824 = vpack.c.b16 %v6008, %v6000
    %v6825 = vpack.c.b16 %v6009, %v6001
    %v6826 = vpack.c.b16 %v6018, %v6010
    %v6827 = vpack.c.b16 %v6019, %v6011
    %v6828 = vpack.c.b16 %v6020, %v6012
    %v6829 = vpack.c.b16 %v6021, %v6013
    %v6830 = vpack.c.b16 %v6022, %v6014
    %v6831 = vpack.c.b16 %v6023, %v6015
    %v6832 = vpack.c.b16 %v6024, %v6016
    %v6833 = vpack.c.b16 %v6025, %v6017
    %v6834 = vpack.c.b16 %v6034, %v6026
    %v6835 = vpack.c.b16 %v6035, %v6027
    %v6836 = vpack.c.b16 %v6036, %v6028
    %v6837 = vpack.c.b16 %v6037, %v6029
    %v6838 = vpack.c.b16 %v6038, %v6030
    %v6839 = vpack.c.b16 %v6039, %v6031
    %v6840 = vpack.c.b16 %v6040, %v6032
    %v6841 = vpack.c.b16 %v6041, %v6033
    %v6842 = vpack.c.b16 %v6050, %v6042
    %v6843 = vpack.c.b16 %v6051, %v6043
    %v6844 = vpack.c.b16 %v6052, %v6044
    %v6845 = vpack.c.b16 %v6053, %v6045
    %v6846 = vpack.c.b16 %v6054, %v6046
    %v6847 = vpack.c.b16 %v6055, %v6047
    %v6848 = vpack.c.b16 %v6056, %v6048
    %v6849 = vpack.c.b16 %v6057, %v6049
    %v6850 = vpack.c.b16 %v6066, %v6058
    %v6851 = vpack.c.b16 %v6067, %v6059
    %v6852 = vpack.c.b16 %v6068, %v6060
    %v6853 = vpack.c.b16 %v6069, %v6061
    %v6854 = vpack.c.b16 %v6070, %v6062
    %v6855 = vpack.c.b16 %v6071, %v6063
    %v6856 = vpack.c.b16 %v6072, %v6064
    %v6857 = vpack.c.b16 %v6073, %v6065
    %v6858 = vpack.c.b16 %v6082, %v6074
    %v6859 = vpack.c.b16 %v6083, %v6075
    %v6860 = vpack.c.b16 %v6084, %v6076
    %v6861 = vpack.c.b16 %v6085, %v6077
    %v6862 = vpack.c.b16 %v6086, %v6078
    %v6863 = vpack.c.b16 %v6087, %v6079
    %v6864 = vpack.c.b16 %v6088, %v6080
    %v6865 = vpack.c.b16 %v6089, %v6081
    %v6866 = vpack.c.b16 %v6098, %v6090
    %v6867 = vpack.c.b16 %v6099, %v6091
    %v6868 = vpack.c.b16 %v6100, %v6092
    %v6869 = vpack.c.b16 %v6101, %v6093
    %v6870 = vpack.c.b16 %v6102, %v6094
    %v6871 = vpack.c.b16 %v6103, %v6095
    %v6872 = vpack.c.b16 %v6104, %v6096
    %v6873 = vpack.c.b16 %v6105, %v6097
    %v6874 = vpack.c.b16 %v6114, %v6106
    %v6875 = vpack.c.b16 %v6115, %v6107
    %v6876 = vpack.c.b16 %v6116, %v6108
    %v6877 = vpack.c.b16 %v6117, %v6109
    %v6878 = vpack.c.b16 %v6118, %v6110
    %v6879 = vpack.c.b16 %v6119, %v6111
    %v6880 = vpack.c.b16 %v6120, %v6112
    %v6881 = vpack.c.b16 %v6121, %v6113
    %v6882 = vpack.c.b16 %v6130, %v6122
    %v6883 = vpack.c.b16 %v6131, %v6123
    %v6884 = vpack.c.b16 %v6132, %v6124
    %v6885 = vpack.c.b16 %v6133, %v6125
    %v6886 = vpack.c.b16 %v6134, %v6126
    %v6887 = vpack.c.b16 %v6135, %v6127
    %v6888 = vpack.c.b16 %v6136, %v6128
    %v6889 = vpack.c.b16 %v6137, %v6129
    %v6890 = vpack.c.b16 %v6146, %v6138
    %v6891 = vpack.c.b16 %v6147, %v6139
    %v6892 = vpack.c.b16 %v6148, %v6140
    %v6893 = vpack.c.b16 %v6149, %v6141
    %v6894 = vpack.c.b16 %v6150, %v6142
    %v6895 = vpack.c.b16 %v6151, %v6143
    %v6896 = vpack.c.b16 %v6152, %v6144
    %v6897 = vpack.c.b16 %v6153, %v6145
    %v6898 = vpack.c.b16 %v6162, %v6154
    %v6899 = vpack.c.b16 %v6163, %v6155
    %v6900 = vpack.c.b16 %v6164, %v6156
    %v6901 = vpack.c.b16 %v6165, %v6157
    %v6902 = vpack.c.b16 %v6166, %v6158
    %v6903 = vpack.c.b16 %v6167, %v6159
    %v6904 = vpack.c.b16 %v6168, %v6160
    %v6905 = vpack.c.b16 %v6169, %v6161
    %v6906 = vpack.c.b16 %v6178, %v6170
    %v6907 = vpack.c.b16 %v6179, %v6171
    %v6908 = vpack.c.b16 %v6180, %v6172
    %v6909 = vpack.c.b16 %v6181, %v6173
    %v6910 = vpack.c.b16 %v6182, %v6174
    %v6911 = vpack.c.b16 %v6183, %v6175
    %v6912 = vpack.c.b16 %v6184, %v6176
    %v6913 = vpack.c.b16 %v6185, %v6177
    %v6914 = vpack.c.b16 %v6194, %v6186
    %v6915 = vpack.c.b16 %v6195, %v6187
    %v6916 = vpack.c.b16 %v6196, %v6188
    %v6917 = vpack.c.b16 %v6197, %v6189
    %v6918 = vpack.c.b16 %v6198, %v6190
    %v6919 = vpack.c.b16 %v6199, %v6191
    %v6920 = vpack.c.b16 %v6200, %v6192
    %v6921 = vpack.c.b16 %v6201, %v6193
    %v6922 = vpack.c.b16 %v6210, %v6202
    %v6923 = vpack.c.b16 %v6211, %v6203
    %v6924 = vpack.c.b16 %v6212, %v6204
    %v6925 = vpack.c.b16 %v6213, %v6205
    %v6926 = vpack.c.b16 %v6214, %v6206
    %v6927 = vpack.c.b16 %v6215, %v6207
    %v6928 = vpack.c.b16 %v6216, %v6208
    %v6929 = vpack.c.b16 %v6217, %v6209
    %v6930 = vpack.c.b16 %v6226, %v6218
    %v6931 = vpack.c.b16 %v6227, %v6219
    %v6932 = vpack.c.b16 %v6228, %v6220
    %v6933 = vpack.c.b16 %v6229, %v6221
    %v6934 = vpack.c.b16 %v6230, %v6222
    %v6935 = vpack.c.b16 %v6231, %v6223
    %v6936 = vpack.c.b16 %v6232, %v6224
    %v6937 = vpack.c.b16 %v6233, %v6225
    %v6938 = vpack.c.b16 %v6242, %v6234
    %v6939 = vpack.c.b16 %v6243, %v6235
    %v6940 = vpack.c.b16 %v6244, %v6236
    %v6941 = vpack.c.b16 %v6245, %v6237
    %v6942 = vpack.c.b16 %v6246, %v6238
    %v6943 = vpack.c.b16 %v6247, %v6239
    %v6944 = vpack.c.b16 %v6248, %v6240
    %v6945 = vpack.c.b16 %v6249, %v6241
    %v6946 = vpack.c.b16 %v6258, %v6250
    %v6947 = vpack.c.b16 %v6259, %v6251
    %v6948 = vpack.c.b16 %v6260, %v6252
    %v6949 = vpack.c.b16 %v6261, %v6253
    %v6950 = vpack.c.b16 %v6262, %v6254
    %v6951 = vpack.c.b16 %v6263, %v6255
    %v6952 = vpack.c.b16 %v6264, %v6256
    %v6953 = vpack.c.b16 %v6265, %v6257
    %v6954 = vpack.c.b16 %v6274, %v6266
    %v6955 = vpack.c.b16 %v6275, %v6267
    %v6956 = vpack.c.b16 %v6276, %v6268
    %v6957 = vpack.c.b16 %v6277, %v6269
    %v6958 = vpack.c.b16 %v6278, %v6270
    %v6959 = vpack.c.b16 %v6279, %v6271
    %v6960 = vpack.c.b16 %v6280, %v6272
    %v6961 = vpack.c.b16 %v6281, %v6273
    %v6962 = vpack.c.b16 %v6290, %v6282
    %v6963 = vpack.c.b16 %v6291, %v6283
    %v6964 = vpack.c.b16 %v6292, %v6284
    %v6965 = vpack.c.b16 %v6293, %v6285
    %v6966 = vpack.c.b16 %v6294, %v6286
    %v6967 = vpack.c.b16 %v6295, %v6287
    %v6968 = vpack.c.b16 %v6296, %v6288
    %v6969 = vpack.c.b16 %v6297, %v6289
    %v6970 = vpack.c.b16 %v6306, %v6298
    %v6971 = vpack.c.b16 %v6307, %v6299
    %v6972 = vpack.c.b16 %v6308, %v6300
    %v6973 = vpack.c.b16 %v6309, %v6301
    %v6974 = vpack.c.b16 %v6310, %v6302
    %v6975 = vpack.c.b16 %v6311, %v6303
    %v6976 = vpack.c.b16 %v6312, %v6304
    %v6977 = vpack.c.b16 %v6313, %v6305
    %v6978 = vpack.c.b16 %v6322, %v6314
    %v6979 = vpack.c.b16 %v6323, %v6315
    %v6980 = vpack.c.b16 %v6324, %v6316
    %v6981 = vpack.c.b16 %v6325, %v6317
    %v6982 = vpack.c.b16 %v6326, %v6318
    %v6983 = vpack.c.b16 %v6327, %v6319
    %v6984 = vpack.c.b16 %v6328, %v6320
    %v6985 = vpack.c.b16 %v6329, %v6321
    %v6986 = vpack.c.b16 %v6338, %v6330
    %v6987 = vpack.c.b16 %v6339, %v6331
    %v6988 = vpack.c.b16 %v6340, %v6332
    %v6989 = vpack.c.b16 %v6341, %v6333
    %v6990 = vpack.c.b16 %v6342, %v6334
    %v6991 = vpack.c.b16 %v6343, %v6335
    %v6992 = vpack.c.b16 %v6344, %v6336
    %v6993 = vpack.c.b16 %v6345, %v6337
    %v6994 = vpack.c.b16 %v6354, %v6346
    %v6995 = vpack.c.b16 %v6355, %v6347
    %v6996 = vpack.c.b16 %v6356, %v6348
    %v6997 = vpack.c.b16 %v6357, %v6349
    %v6998 = vpack.c.b16 %v6358, %v6350
    %v6999 = vpack.c.b16 %v6359, %v6351
    %v7000 = vpack.c.b16 %v6360, %v6352
    %v7001 = vpack.c.b16 %v6361, %v6353
    %v7002 = vpack.c.b16 %v6370, %v6362
    %v7003 = vpack.c.b16 %v6371, %v6363
    %v7004 = vpack.c.b16 %v6372, %v6364
    %v7005 = vpack.c.b16 %v6373, %v6365
    %v7006 = vpack.c.b16 %v6374, %v6366
    %v7007 = vpack.c.b16 %v6375, %v6367
    %v7008 = vpack.c.b16 %v6376, %v6368
    %v7009 = vpack.c.b16 %v6377, %v6369
    %v7010 = vpack.c.b16 %v6386, %v6378
    %v7011 = vpack.c.b16 %v6387, %v6379
    %v7012 = vpack.c.b16 %v6388, %v6380
    %v7013 = vpack.c.b16 %v6389, %v6381
    %v7014 = vpack.c.b16 %v6390, %v6382
    %v7015 = vpack.c.b16 %v6391, %v6383
    %v7016 = vpack.c.b16 %v6392, %v6384
    %v7017 = vpack.c.b16 %v6393, %v6385
    %v7018 = vpack.c.b16 %v6402, %v6394
    %v7019 = vpack.c.b16 %v6403, %v6395
    %v7020 = vpack.c.b16 %v6404, %v6396
    %v7021 = vpack.c.b16 %v6405, %v6397
    %v7022 = vpack.c.b16 %v6406, %v6398
    %v7023 = vpack.c.b16 %v6407, %v6399
    %v7024 = vpack.c.b16 %v6408, %v6400
    %v7025 = vpack.c.b16 %v6409, %v6401
    %v7026 = vpack.c.b16 %v6418, %v6410
    %v7027 = vpack.c.b16 %v6419, %v6411
    %v7028 = vpack.c.b16 %v6420, %v6412
    %v7029 = vpack.c.b16 %v6421, %v6413
    %v7030 = vpack.c.b16 %v6422, %v6414
    %v7031 = vpack.c.b16 %v6423, %v6415
    %v7032 = vpack.c.b16 %v6424, %v6416
    %v7033 = vpack.c.b16 %v6425, %v6417
    %v7034 = vpack.c.b16 %v6434, %v6426
    %v7035 = vpack.c.b16 %v6435, %v6427
    %v7036 = vpack.c.b16 %v6436, %v6428
    %v7037 = vpack.c.b16 %v6437, %v6429
    %v7038 = vpack.c.b16 %v6438, %v6430
    %v7039 = vpack.c.b16 %v6439, %v6431
    %v7040 = vpack.c.b16 %v6440, %v6432
    %v7041 = vpack.c.b16 %v6441, %v6433
    %v7042 = vpack.c.b16 %v6450, %v6442
    %v7043 = vpack.c.b16 %v6451, %v6443
    %v7044 = vpack.c.b16 %v6452, %v6444
    %v7045 = vpack.c.b16 %v6453, %v6445
    %v7046 = vpack.c.b16 %v6454, %v6446
    %v7047 = vpack.c.b16 %v6455, %v6447
    %v7048 = vpack.c.b16 %v6456, %v6448
    %v7049 = vpack.c.b16 %v6457, %v6449
    %v7050 = vpack.c.b16 %v6466, %v6458
    %v7051 = vpack.c.b16 %v6467, %v6459
    %v7052 = vpack.c.b16 %v6468, %v6460
    %v7053 = vpack.c.b16 %v6469, %v6461
    %v7054 = vpack.c.b16 %v6470, %v6462
    %v7055 = vpack.c.b16 %v6471, %v6463
    %v7056 = vpack.c.b16 %v6472, %v6464
    %v7057 = vpack.c.b16 %v6473, %v6465
    %v7058 = vpack.c.b16 %v6482, %v6474
    %v7059 = vpack.c.b16 %v6483, %v6475
    %v7060 = vpack.c.b16 %v6484, %v6476
    %v7061 = vpack.c.b16 %v6485, %v6477
    %v7062 = vpack.c.b16 %v6486, %v6478
    %v7063 = vpack.c.b16 %v6487, %v6479
    %v7064 = vpack.c.b16 %v6488, %v6480
    %v7065 = vpack.c.b16 %v6489, %v6481
    %v7066 = vpack.c.b16 %v6498, %v6490
    %v7067 = vpack.c.b16 %v6499, %v6491
    %v7068 = vpack.c.b16 %v6500, %v6492
    %v7069 = vpack.c.b16 %v6501, %v6493
    %v7070 = vpack.c.b16 %v6502, %v6494
    %v7071 = vpack.c.b16 %v6503, %v6495
    %v7072 = vpack.c.b16 %v6504, %v6496
    %v7073 = vpack.c.b16 %v6505, %v6497
    %v7074 = vpack.c.b16 %v6514, %v6506
    %v7075 = vpack.c.b16 %v6515, %v6507
    %v7076 = vpack.c.b16 %v6516, %v6508
    %v7077 = vpack.c.b16 %v6517, %v6509
    %v7078 = vpack.c.b16 %v6518, %v6510
    %v7079 = vpack.c.b16 %v6519, %v6511
    %v7080 = vpack.c.b16 %v6520, %v6512
    %v7081 = vpack.c.b16 %v6521, %v6513
    %v7082 = vpack.c.b16 %v6530, %v6522
    %v7083 = vpack.c.b16 %v6531, %v6523
    %v7084 = vpack.c.b16 %v6532, %v6524
    %v7085 = vpack.c.b16 %v6533, %v6525
    %v7086 = vpack.c.b16 %v6534, %v6526
    %v7087 = vpack.c.b16 %v6535, %v6527
    %v7088 = vpack.c.b16 %v6536, %v6528
    %v7089 = vpack.c.b16 %v6537, %v6529
    %v7090 = vpack.c.b16 %v6546, %v6538
    %v7091 = vpack.c.b16 %v6547, %v6539
    %v7092 = vpack.c.b16 %v6548, %v6540
    %v7093 = vpack.c.b16 %v6549, %v6541
    %v7094 = vpack.c.b16 %v6550, %v6542
    %v7095 = vpack.c.b16 %v6551, %v6543
    %v7096 = vpack.c.b16 %v6552, %v6544
    %v7097 = vpack.c.b16 %v6553, %v6545
    %v7098 = vpack.c.b16 %v6562, %v6554
    %v7099 = vpack.c.b16 %v6563, %v6555
    %v7100 = vpack.c.b16 %v6564, %v6556
    %v7101 = vpack.c.b16 %v6565, %v6557
    %v7102 = vpack.c.b16 %v6566, %v6558
    %v7103 = vpack.c.b16 %v6567, %v6559
    %v7104 = vpack.c.b16 %v6568, %v6560
    %v7105 = vpack.c.b16 %v6569, %v6561
    %v7106 = vpack.c.b16 %v6578, %v6570
    %v7107 = vpack.c.b16 %v6579, %v6571
    %v7108 = vpack.c.b16 %v6580, %v6572
    %v7109 = vpack.c.b16 %v6581, %v6573
    %v7110 = vpack.c.b16 %v6582, %v6574
    %v7111 = vpack.c.b16 %v6583, %v6575
    %v7112 = vpack.c.b16 %v6584, %v6576
    %v7113 = vpack.c.b16 %v6585, %v6577
    %v7114 = vpack.c.b16 %v6594, %v6586
    %v7115 = vpack.c.b16 %v6595, %v6587
    %v7116 = vpack.c.b16 %v6596, %v6588
    %v7117 = vpack.c.b16 %v6597, %v6589
    %v7118 = vpack.c.b16 %v6598, %v6590
    %v7119 = vpack.c.b16 %v6599, %v6591
    %v7120 = vpack.c.b16 %v6600, %v6592
    %v7121 = vpack.c.b16 %v6601, %v6593
    %v7122 = vpack.c.b16 %v6610, %v6602
    %v7123 = vpack.c.b16 %v6611, %v6603
    %v7124 = vpack.c.b16 %v6612, %v6604
    %v7125 = vpack.c.b16 %v6613, %v6605
    %v7126 = vpack.c.b16 %v6614, %v6606
    %v7127 = vpack.c.b16 %v6615, %v6607
    %v7128 = vpack.c.b16 %v6616, %v6608
    %v7129 = vpack.c.b16 %v6617, %v6609
    %7642 = vmatprep.subr.bf16.mxu0 %v6619
    %7643 = vmatpush1.bf16.msra.mxu0 %v6618
    %7644 = vmatprep.subr.bf16.mxu0 %v6627
    %7645 = vmatpush1.bf16.msra.mxu0 %v6626
    %7646 = vmatprep.subr.bf16.mxu0 %v6635
    %7647 = vmatpush1.bf16.msra.mxu0 %v6634
    %7648 = vmatprep.subr.bf16.mxu0 %v6643
    %7649 = vmatpush1.bf16.msra.mxu0 %v6642
    %7650 = vmatprep.subr.bf16.mxu0 %v6651
    %7651 = vmatpush1.bf16.msra.mxu0 %v6650
    %7652 = vmatprep.subr.bf16.mxu0 %v6659
    %7653 = vmatpush1.bf16.msra.mxu0 %v6658
    %7654 = vmatprep.subr.bf16.mxu0 %v6667
    %7655 = vmatpush1.bf16.msra.mxu0 %v6666
    %7656 = vmatprep.subr.bf16.mxu0 %v6675
    %7657 = vmatpush1.bf16.msra.mxu0 %v6674
    %7658 = vmatprep.subr.bf16.mxu0 %v6683
    %7659 = vmatpush1.bf16.msra.mxu0 %v6682
    %7660 = vmatprep.subr.bf16.mxu0 %v6691
    %7661 = vmatpush1.bf16.msra.mxu0 %v6690
    %7662 = vmatprep.subr.bf16.mxu0 %v6699
    %7663 = vmatpush1.bf16.msra.mxu0 %v6698
    %7664 = vmatprep.subr.bf16.mxu0 %v6707
    %7665 = vmatpush1.bf16.msra.mxu0 %v6706
    %7666 = vmatprep.subr.bf16.mxu0 %v6715
    %7667 = vmatpush1.bf16.msra.mxu0 %v6714
    %7668 = vmatprep.subr.bf16.mxu0 %v6723
    %7669 = vmatpush1.bf16.msra.mxu0 %v6722
    %7670 = vmatprep.subr.bf16.mxu0 %v6731
    %7671 = vmatpush1.bf16.msra.mxu0 %v6730
    %7672 = vmatprep.subr.bf16.mxu0 %v6739
    %7673 = vmatpush1.bf16.msra.mxu0 %v6738
    %7674 = vmatprep.mubr.bf16.mxu0 %v4521
    %7675 = vmatmul.mubr.bf16.gmra.mrb[0].mxu0 %v4520
    %v7676 = vpop.f32.mrb[0].mxu0
    %v7677 = vadd.f32 %v5045, %v7676
    %v7678 = vpop.f32.mrb[0].mxu0
    %v7679 = vadd.f32 %v5049, %v7678
    %v7680 = vpop.f32.mrb[0].mxu0
    %v7681 = vpop.f32.mrb[0].mxu0
    %7682 = vdwg.mxu0
    %7683 = vmatprep.subr.bf16.mxu0 %v6747
    %7684 = vmatpush1.bf16.msra.mxu0 %v6746
    %7685 = vmatprep.subr.bf16.mxu0 %v6755
    %7686 = vmatpush1.bf16.msra.mxu0 %v6754
    %7687 = vmatprep.subr.bf16.mxu0 %v6763
    %7688 = vmatpush1.bf16.msra.mxu0 %v6762
    %7689 = vmatprep.subr.bf16.mxu0 %v6771
    %7690 = vmatpush1.bf16.msra.mxu0 %v6770
    %7691 = vmatprep.subr.bf16.mxu0 %v6779
    %7692 = vmatpush1.bf16.msra.mxu0 %v6778
    %7693 = vmatprep.subr.bf16.mxu0 %v6787
    %7694 = vmatpush1.bf16.msra.mxu0 %v6786
    %7695 = vmatprep.subr.bf16.mxu0 %v6795
    %7696 = vmatpush1.bf16.msra.mxu0 %v6794
    %7697 = vmatprep.subr.bf16.mxu0 %v6803
    %7698 = vmatpush1.bf16.msra.mxu0 %v6802
    %7699 = vmatprep.subr.bf16.mxu0 %v6811
    %7700 = vmatpush1.bf16.msra.mxu0 %v6810
    %7701 = vmatprep.subr.bf16.mxu0 %v6819
    %7702 = vmatpush1.bf16.msra.mxu0 %v6818
    %7703 = vmatprep.subr.bf16.mxu0 %v6827
    %7704 = vmatpush1.bf16.msra.mxu0 %v6826
    %7705 = vmatprep.subr.bf16.mxu0 %v6835
    %7706 = vmatpush1.bf16.msra.mxu0 %v6834
    %7707 = vmatprep.subr.bf16.mxu0 %v6843
    %7708 = vmatpush1.bf16.msra.mxu0 %v6842
    %7709 = vmatprep.subr.bf16.mxu0 %v6851
    %7710 = vmatpush1.bf16.msra.mxu0 %v6850
    %7711 = vmatprep.subr.bf16.mxu0 %v6859
    %7712 = vmatpush1.bf16.msra.mxu0 %v6858
    %7713 = vmatprep.subr.bf16.mxu0 %v6867
    %7714 = vmatpush1.bf16.msra.mxu0 %v6866
    %7715 = vmatprep.mubr.bf16.mxu0 %v4523
    %7716 = vmatmul.mubr.bf16.gmra.mrb[0].mxu0 %v4522
    %v7717 = vpop.f32.mrb[0].mxu0
    %v7718 = vadd.f32 %v7677, %v7717
    %v7719 = vpop.f32.mrb[0].mxu0
    %v7720 = vadd.f32 %v7679, %v7719
    %v7721 = vpop.f32.mrb[0].mxu0
    %v7722 = vpop.f32.mrb[0].mxu0
    %7723 = vdwg.mxu0
    %7724 = vmatprep.subr.bf16.mxu0 %v6875
    %7725 = vmatpush1.bf16.msra.mxu0 %v6874
    %7726 = vmatprep.subr.bf16.mxu0 %v6883
    %7727 = vmatpush1.bf16.msra.mxu0 %v6882
    %7728 = vmatprep.subr.bf16.mxu0 %v6891
    %7729 = vmatpush1.bf16.msra.mxu0 %v6890
    %7730 = vmatprep.subr.bf16.mxu0 %v6899
    %7731 = vmatpush1.bf16.msra.mxu0 %v6898
    %7732 = vmatprep.subr.bf16.mxu0 %v6907
    %7733 = vmatpush1.bf16.msra.mxu0 %v6906
    %7734 = vmatprep.subr.bf16.mxu0 %v6915
    %7735 = vmatpush1.bf16.msra.mxu0 %v6914
    %7736 = vmatprep.subr.bf16.mxu0 %v6923
    %7737 = vmatpush1.bf16.msra.mxu0 %v6922
    %7738 = vmatprep.subr.bf16.mxu0 %v6931
    %7739 = vmatpush1.bf16.msra.mxu0 %v6930
    %7740 = vmatprep.subr.bf16.mxu0 %v6939
    %7741 = vmatpush1.bf16.msra.mxu0 %v6938
    %7742 = vmatprep.subr.bf16.mxu0 %v6947
    %7743 = vmatpush1.bf16.msra.mxu0 %v6946
    %7744 = vmatprep.subr.bf16.mxu0 %v6955
    %7745 = vmatpush1.bf16.msra.mxu0 %v6954
    %7746 = vmatprep.subr.bf16.mxu0 %v6963
    %7747 = vmatpush1.bf16.msra.mxu0 %v6962
    %7748 = vmatprep.subr.bf16.mxu0 %v6971
    %7749 = vmatpush1.bf16.msra.mxu0 %v6970
    %7750 = vmatprep.subr.bf16.mxu0 %v6979
    %7751 = vmatpush1.bf16.msra.mxu0 %v6978
    %7752 = vmatprep.subr.bf16.mxu0 %v6987
    %7753 = vmatpush1.bf16.msra.mxu0 %v6986
    %7754 = vmatprep.subr.bf16.mxu0 %v6995
    %7755 = vmatpush1.bf16.msra.mxu0 %v6994
    %7756 = vmatprep.mubr.bf16.mxu0 %v4525
    %7757 = vmatmul.mubr.bf16.gmra.mrb[0].mxu0 %v4524
    %v7758 = vpop.f32.mrb[0].mxu0
    %v7759 = vadd.f32 %v7718, %v7758
    %v7760 = vpop.f32.mrb[0].mxu0
    %v7761 = vadd.f32 %v7720, %v7760
    %v7762 = vpop.f32.mrb[0].mxu0
    %v7763 = vpop.f32.mrb[0].mxu0
    %7764 = vdwg.mxu0
    %7765 = vmatprep.subr.bf16.mxu0 %v7003
    %7766 = vmatpush1.bf16.msra.mxu0 %v7002
    %7767 = vmatprep.subr.bf16.mxu0 %v7011
    %7768 = vmatpush1.bf16.msra.mxu0 %v7010
    %7769 = vmatprep.subr.bf16.mxu0 %v7019
    %7770 = vmatpush1.bf16.msra.mxu0 %v7018
    %7771 = vmatprep.subr.bf16.mxu0 %v7027
    %7772 = vmatpush1.bf16.msra.mxu0 %v7026
    %7773 = vmatprep.subr.bf16.mxu0 %v7035
    %7774 = vmatpush1.bf16.msra.mxu0 %v7034
    %7775 = vmatprep.subr.bf16.mxu0 %v7043
    %7776 = vmatpush1.bf16.msra.mxu0 %v7042
    %7777 = vmatprep.subr.bf16.mxu0 %v7051
    %7778 = vmatpush1.bf16.msra.mxu0 %v7050
    %7779 = vmatprep.subr.bf16.mxu0 %v7059
    %7780 = vmatpush1.bf16.msra.mxu0 %v7058
    %7781 = vmatprep.subr.bf16.mxu0 %v7067
    %7782 = vmatpush1.bf16.msra.mxu0 %v7066
    %7783 = vmatprep.subr.bf16.mxu0 %v7075
    %7784 = vmatpush1.bf16.msra.mxu0 %v7074
    %7785 = vmatprep.subr.bf16.mxu0 %v7083
    %7786 = vmatpush1.bf16.msra.mxu0 %v7082
    %7787 = vmatprep.subr.bf16.mxu0 %v7091
    %7788 = vmatpush1.bf16.msra.mxu0 %v7090
    %7789 = vmatprep.subr.bf16.mxu0 %v7099
    %7790 = vmatpush1.bf16.msra.mxu0 %v7098
    %7791 = vmatprep.subr.bf16.mxu0 %v7107
    %7792 = vmatpush1.bf16.msra.mxu0 %v7106
    %7793 = vmatprep.subr.bf16.mxu0 %v7115
    %7794 = vmatpush1.bf16.msra.mxu0 %v7114
    %7795 = vmatprep.subr.bf16.mxu0 %v7123
    %7796 = vmatpush1.bf16.msra.mxu0 %v7122
    %7797 = vmatprep.mubr.bf16.mxu0 %v4527
    %7798 = vmatmul.mubr.bf16.gmra.mrb[0].mxu0 %v4526
    %v7799 = vpop.f32.mrb[0].mxu0
    %v7800 = vadd.f32 %v7759, %v7799
    %v7801 = vpop.f32.mrb[0].mxu0
    %v7802 = vadd.f32 %v7761, %v7801
    %v7803 = vpop.f32.mrb[0].mxu0
    %v7804 = vpop.f32.mrb[0].mxu0
    %7805 = vdwg.mxu0
    %7806 = vmatprep.subr.bf16.mxu0 %v6621
    %7807 = vmatpush1.bf16.msra.mxu0 %v6620
    %7808 = vmatprep.subr.bf16.mxu0 %v6629
    %7809 = vmatpush1.bf16.msra.mxu0 %v6628
    %7810 = vmatprep.subr.bf16.mxu0 %v6637
    %7811 = vmatpush1.bf16.msra.mxu0 %v6636
    %7812 = vmatprep.subr.bf16.mxu0 %v6645
    %7813 = vmatpush1.bf16.msra.mxu0 %v6644
    %7814 = vmatprep.subr.bf16.mxu0 %v6653
    %7815 = vmatpush1.bf16.msra.mxu0 %v6652
    %7816 = vmatprep.subr.bf16.mxu0 %v6661
    %7817 = vmatpush1.bf16.msra.mxu0 %v6660
    %7818 = vmatprep.subr.bf16.mxu0 %v6669
    %7819 = vmatpush1.bf16.msra.mxu0 %v6668
    %7820 = vmatprep.subr.bf16.mxu0 %v6677
    %7821 = vmatpush1.bf16.msra.mxu0 %v6676
    %7822 = vmatprep.subr.bf16.mxu0 %v6685
    %7823 = vmatpush1.bf16.msra.mxu0 %v6684
    %7824 = vmatprep.subr.bf16.mxu0 %v6693
    %7825 = vmatpush1.bf16.msra.mxu0 %v6692
    %7826 = vmatprep.subr.bf16.mxu0 %v6701
    %7827 = vmatpush1.bf16.msra.mxu0 %v6700
    %7828 = vmatprep.subr.bf16.mxu0 %v6709
    %7829 = vmatpush1.bf16.msra.mxu0 %v6708
    %7830 = vmatprep.subr.bf16.mxu0 %v6717
    %7831 = vmatpush1.bf16.msra.mxu0 %v6716
    %7832 = vmatprep.subr.bf16.mxu0 %v6725
    %7833 = vmatpush1.bf16.msra.mxu0 %v6724
    %7834 = vmatprep.subr.bf16.mxu0 %v6733
    %7835 = vmatpush1.bf16.msra.mxu0 %v6732
    %7836 = vmatprep.subr.bf16.mxu0 %v6741
    %7837 = vmatpush1.bf16.msra.mxu0 %v6740
    %7838 = vmatprep.mubr.bf16.mxu0 %v4521
    %7839 = vmatmul.mubr.bf16.gmra.mrb[0].mxu0 %v4520
    %v7840 = vpop.f32.mrb[0].mxu0
    %v7841 = vadd.f32 %v5053, %v7840
    %v7842 = vpop.f32.mrb[0].mxu0
    %v7843 = vadd.f32 %v5057, %v7842
    %v7844 = vpop.f32.mrb[0].mxu0
    %v7845 = vpop.f32.mrb[0].mxu0
    %7846 = vdwg.mxu0
    %7847 = vmatprep.subr.bf16.mxu0 %v6749
    %7848 = vmatpush1.bf16.msra.mxu0 %v6748
    %7849 = vmatprep.subr.bf16.mxu0 %v6757
    %7850 = vmatpush1.bf16.msra.mxu0 %v6756
    %7851 = vmatprep.subr.bf16.mxu0 %v6765
    %7852 = vmatpush1.bf16.msra.mxu0 %v6764
    %7853 = vmatprep.subr.bf16.mxu0 %v6773
    %7854 = vmatpush1.bf16.msra.mxu0 %v6772
    %7855 = vmatprep.subr.bf16.mxu0 %v6781
    %7856 = vmatpush1.bf16.msra.mxu0 %v6780
    %7857 = vmatprep.subr.bf16.mxu0 %v6789
    %7858 = vmatpush1.bf16.msra.mxu0 %v6788
    %7859 = vmatprep.subr.bf16.mxu0 %v6797
    %7860 = vmatpush1.bf16.msra.mxu0 %v6796
    %7861 = vmatprep.subr.bf16.mxu0 %v6805
    %7862 = vmatpush1.bf16.msra.mxu0 %v6804
    %7863 = vmatprep.subr.bf16.mxu0 %v6813
    %7864 = vmatpush1.bf16.msra.mxu0 %v6812
    %7865 = vmatprep.subr.bf16.mxu0 %v6821
    %7866 = vmatpush1.bf16.msra.mxu0 %v6820
    %7867 = vmatprep.subr.bf16.mxu0 %v6829
    %7868 = vmatpush1.bf16.msra.mxu0 %v6828
    %7869 = vmatprep.subr.bf16.mxu0 %v6837
    %7870 = vmatpush1.bf16.msra.mxu0 %v6836
    %7871 = vmatprep.subr.bf16.mxu0 %v6845
    %7872 = vmatpush1.bf16.msra.mxu0 %v6844
    %7873 = vmatprep.subr.bf16.mxu0 %v6853
    %7874 = vmatpush1.bf16.msra.mxu0 %v6852
    %7875 = vmatprep.subr.bf16.mxu0 %v6861
    %7876 = vmatpush1.bf16.msra.mxu0 %v6860
    %7877 = vmatprep.subr.bf16.mxu0 %v6869
    %7878 = vmatpush1.bf16.msra.mxu0 %v6868
    %7879 = vmatprep.mubr.bf16.mxu0 %v4523
    %7880 = vmatmul.mubr.bf16.gmra.mrb[0].mxu0 %v4522
    %v7881 = vpop.f32.mrb[0].mxu0
    %v7882 = vadd.f32 %v7841, %v7881
    %v7883 = vpop.f32.mrb[0].mxu0
    %v7884 = vadd.f32 %v7843, %v7883
    %v7885 = vpop.f32.mrb[0].mxu0
    %v7886 = vpop.f32.mrb[0].mxu0
    %7887 = vdwg.mxu0
    %7888 = vmatprep.subr.bf16.mxu0 %v6877
    %7889 = vmatpush1.bf16.msra.mxu0 %v6876
    %7890 = vmatprep.subr.bf16.mxu0 %v6885
    %7891 = vmatpush1.bf16.msra.mxu0 %v6884
    %7892 = vmatprep.subr.bf16.mxu0 %v6893
    %7893 = vmatpush1.bf16.msra.mxu0 %v6892
    %7894 = vmatprep.subr.bf16.mxu0 %v6901
    %7895 = vmatpush1.bf16.msra.mxu0 %v6900
    %7896 = vmatprep.subr.bf16.mxu0 %v6909
    %7897 = vmatpush1.bf16.msra.mxu0 %v6908
    %7898 = vmatprep.subr.bf16.mxu0 %v6917
    %7899 = vmatpush1.bf16.msra.mxu0 %v6916
    %7900 = vmatprep.subr.bf16.mxu0 %v6925
    %7901 = vmatpush1.bf16.msra.mxu0 %v6924
    %7902 = vmatprep.subr.bf16.mxu0 %v6933
    %7903 = vmatpush1.bf16.msra.mxu0 %v6932
    %7904 = vmatprep.subr.bf16.mxu0 %v6941
    %7905 = vmatpush1.bf16.msra.mxu0 %v6940
    %7906 = vmatprep.subr.bf16.mxu0 %v6949
    %7907 = vmatpush1.bf16.msra.mxu0 %v6948
    %7908 = vmatprep.subr.bf16.mxu0 %v6957
    %7909 = vmatpush1.bf16.msra.mxu0 %v6956
    %7910 = vmatprep.subr.bf16.mxu0 %v6965
    %7911 = vmatpush1.bf16.msra.mxu0 %v6964
    %7912 = vmatprep.subr.bf16.mxu0 %v6973
    %7913 = vmatpush1.bf16.msra.mxu0 %v6972
    %7914 = vmatprep.subr.bf16.mxu0 %v6981
    %7915 = vmatpush1.bf16.msra.mxu0 %v6980
    %7916 = vmatprep.subr.bf16.mxu0 %v6989
    %7917 = vmatpush1.bf16.msra.mxu0 %v6988
    %7918 = vmatprep.subr.bf16.mxu0 %v6997
    %7919 = vmatpush1.bf16.msra.mxu0 %v6996
    %7920 = vmatprep.mubr.bf16.mxu0 %v4525
    %7921 = vmatmul.mubr.bf16.gmra.mrb[0].mxu0 %v4524
    %v7922 = vpop.f32.mrb[0].mxu0
    %v7923 = vadd.f32 %v7882, %v7922
    %v7924 = vpop.f32.mrb[0].mxu0
    %v7925 = vadd.f32 %v7884, %v7924
    %v7926 = vpop.f32.mrb[0].mxu0
    %v7927 = vpop.f32.mrb[0].mxu0
    %7928 = vdwg.mxu0
    %7929 = vmatprep.subr.bf16.mxu0 %v7005
    %7930 = vmatpush1.bf16.msra.mxu0 %v7004
    %7931 = vmatprep.subr.bf16.mxu0 %v7013
    %7932 = vmatpush1.bf16.msra.mxu0 %v7012
    %7933 = vmatprep.subr.bf16.mxu0 %v7021
    %7934 = vmatpush1.bf16.msra.mxu0 %v7020
    %7935 = vmatprep.subr.bf16.mxu0 %v7029
    %7936 = vmatpush1.bf16.msra.mxu0 %v7028
    %7937 = vmatprep.subr.bf16.mxu0 %v7037
    %7938 = vmatpush1.bf16.msra.mxu0 %v7036
    %7939 = vmatprep.subr.bf16.mxu0 %v7045
    %7940 = vmatpush1.bf16.msra.mxu0 %v7044
    %7941 = vmatprep.subr.bf16.mxu0 %v7053
    %7942 = vmatpush1.bf16.msra.mxu0 %v7052
    %7943 = vmatprep.subr.bf16.mxu0 %v7061
    %7944 = vmatpush1.bf16.msra.mxu0 %v7060
    %7945 = vmatprep.subr.bf16.mxu0 %v7069
    %7946 = vmatpush1.bf16.msra.mxu0 %v7068
    %7947 = vmatprep.subr.bf16.mxu0 %v7077
    %7948 = vmatpush1.bf16.msra.mxu0 %v7076
    %7949 = vmatprep.subr.bf16.mxu0 %v7085
    %7950 = vmatpush1.bf16.msra.mxu0 %v7084
    %7951 = vmatprep.subr.bf16.mxu0 %v7093
    %7952 = vmatpush1.bf16.msra.mxu0 %v7092
    %7953 = vmatprep.subr.bf16.mxu0 %v7101
    %7954 = vmatpush1.bf16.msra.mxu0 %v7100
    %7955 = vmatprep.subr.bf16.mxu0 %v7109
    %7956 = vmatpush1.bf16.msra.mxu0 %v7108
    %7957 = vmatprep.subr.bf16.mxu0 %v7117
    %7958 = vmatpush1.bf16.msra.mxu0 %v7116
    %7959 = vmatprep.subr.bf16.mxu0 %v7125
    %7960 = vmatpush1.bf16.msra.mxu0 %v7124
    %7961 = vmatprep.mubr.bf16.mxu0 %v4527
    %7962 = vmatmul.mubr.bf16.gmra.mrb[0].mxu0 %v4526
    %v7963 = vpop.f32.mrb[0].mxu0
    %v7964 = vadd.f32 %v7923, %v7963
    %v7965 = vpop.f32.mrb[0].mxu0
    %v7966 = vadd.f32 %v7925, %v7965
    %v7967 = vpop.f32.mrb[0].mxu0
    %v7968 = vpop.f32.mrb[0].mxu0
    %7969 = vdwg.mxu0
    %7970 = vmatprep.subr.bf16.mxu0 %v6623
    %7971 = vmatpush1.bf16.msra.mxu0 %v6622
    %7972 = vmatprep.subr.bf16.mxu0 %v6631
    %7973 = vmatpush1.bf16.msra.mxu0 %v6630
    %7974 = vmatprep.subr.bf16.mxu0 %v6639
    %7975 = vmatpush1.bf16.msra.mxu0 %v6638
    %7976 = vmatprep.subr.bf16.mxu0 %v6647
    %7977 = vmatpush1.bf16.msra.mxu0 %v6646
    %7978 = vmatprep.subr.bf16.mxu0 %v6655
    %7979 = vmatpush1.bf16.msra.mxu0 %v6654
    %7980 = vmatprep.subr.bf16.mxu0 %v6663
    %7981 = vmatpush1.bf16.msra.mxu0 %v6662
    %7982 = vmatprep.subr.bf16.mxu0 %v6671
    %7983 = vmatpush1.bf16.msra.mxu0 %v6670
    %7984 = vmatprep.subr.bf16.mxu0 %v6679
    %7985 = vmatpush1.bf16.msra.mxu0 %v6678
    %7986 = vmatprep.subr.bf16.mxu0 %v6687
    %7987 = vmatpush1.bf16.msra.mxu0 %v6686
    %7988 = vmatprep.subr.bf16.mxu0 %v6695
    %7989 = vmatpush1.bf16.msra.mxu0 %v6694
    %7990 = vmatprep.subr.bf16.mxu0 %v6703
    %7991 = vmatpush1.bf16.msra.mxu0 %v6702
    %7992 = vmatprep.subr.bf16.mxu0 %v6711
    %7993 = vmatpush1.bf16.msra.mxu0 %v6710
    %7994 = vmatprep.subr.bf16.mxu0 %v6719
    %7995 = vmatpush1.bf16.msra.mxu0 %v6718
    %7996 = vmatprep.subr.bf16.mxu0 %v6727
    %7997 = vmatpush1.bf16.msra.mxu0 %v6726
    %7998 = vmatprep.subr.bf16.mxu0 %v6735
    %7999 = vmatpush1.bf16.msra.mxu0 %v6734
    %8000 = vmatprep.subr.bf16.mxu0 %v6743
    %8001 = vmatpush1.bf16.msra.mxu0 %v6742
    %8002 = vmatprep.mubr.bf16.mxu0 %v4521
    %8003 = vmatmul.mubr.bf16.gmra.mrb[0].mxu0 %v4520
    %v8004 = vpop.f32.mrb[0].mxu0
    %v8005 = vadd.f32 %v5061, %v8004
    %v8006 = vpop.f32.mrb[0].mxu0
    %v8007 = vadd.f32 %v5065, %v8006
    %v8008 = vpop.f32.mrb[0].mxu0
    %v8009 = vpop.f32.mrb[0].mxu0
    %8010 = vdwg.mxu0
    %8011 = vmatprep.subr.bf16.mxu0 %v6751
    %8012 = vmatpush1.bf16.msra.mxu0 %v6750
    %8013 = vmatprep.subr.bf16.mxu0 %v6759
    %8014 = vmatpush1.bf16.msra.mxu0 %v6758
    %8015 = vmatprep.subr.bf16.mxu0 %v6767
    %8016 = vmatpush1.bf16.msra.mxu0 %v6766
    %8017 = vmatprep.subr.bf16.mxu0 %v6775
    %8018 = vmatpush1.bf16.msra.mxu0 %v6774
    %8019 = vmatprep.subr.bf16.mxu0 %v6783
    %8020 = vmatpush1.bf16.msra.mxu0 %v6782
    %8021 = vmatprep.subr.bf16.mxu0 %v6791
    %8022 = vmatpush1.bf16.msra.mxu0 %v6790
    %8023 = vmatprep.subr.bf16.mxu0 %v6799
    %8024 = vmatpush1.bf16.msra.mxu0 %v6798
    %8025 = vmatprep.subr.bf16.mxu0 %v6807
    %8026 = vmatpush1.bf16.msra.mxu0 %v6806
    %8027 = vmatprep.subr.bf16.mxu0 %v6815
    %8028 = vmatpush1.bf16.msra.mxu0 %v6814
    %8029 = vmatprep.subr.bf16.mxu0 %v6823
    %8030 = vmatpush1.bf16.msra.mxu0 %v6822
    %8031 = vmatprep.subr.bf16.mxu0 %v6831
    %8032 = vmatpush1.bf16.msra.mxu0 %v6830
    %8033 = vmatprep.subr.bf16.mxu0 %v6839
    %8034 = vmatpush1.bf16.msra.mxu0 %v6838
    %8035 = vmatprep.subr.bf16.mxu0 %v6847
    %8036 = vmatpush1.bf16.msra.mxu0 %v6846
    %8037 = vmatprep.subr.bf16.mxu0 %v6855
    %8038 = vmatpush1.bf16.msra.mxu0 %v6854
    %8039 = vmatprep.subr.bf16.mxu0 %v6863
    %8040 = vmatpush1.bf16.msra.mxu0 %v6862
    %8041 = vmatprep.subr.bf16.mxu0 %v6871
    %8042 = vmatpush1.bf16.msra.mxu0 %v6870
    %8043 = vmatprep.mubr.bf16.mxu0 %v4523
    %8044 = vmatmul.mubr.bf16.gmra.mrb[0].mxu0 %v4522
    %v8045 = vpop.f32.mrb[0].mxu0
    %v8046 = vadd.f32 %v8005, %v8045
    %v8047 = vpop.f32.mrb[0].mxu0
    %v8048 = vadd.f32 %v8007, %v8047
    %v8049 = vpop.f32.mrb[0].mxu0
    %v8050 = vpop.f32.mrb[0].mxu0
    %8051 = vdwg.mxu0
    %8052 = vmatprep.subr.bf16.mxu0 %v6879
    %8053 = vmatpush1.bf16.msra.mxu0 %v6878
    %8054 = vmatprep.subr.bf16.mxu0 %v6887
    %8055 = vmatpush1.bf16.msra.mxu0 %v6886
    %8056 = vmatprep.subr.bf16.mxu0 %v6895
    %8057 = vmatpush1.bf16.msra.mxu0 %v6894
    %8058 = vmatprep.subr.bf16.mxu0 %v6903
    %8059 = vmatpush1.bf16.msra.mxu0 %v6902
    %8060 = vmatprep.subr.bf16.mxu0 %v6911
    %8061 = vmatpush1.bf16.msra.mxu0 %v6910
    %8062 = vmatprep.subr.bf16.mxu0 %v6919
    %8063 = vmatpush1.bf16.msra.mxu0 %v6918
    %8064 = vmatprep.subr.bf16.mxu0 %v6927
    %8065 = vmatpush1.bf16.msra.mxu0 %v6926
    %8066 = vmatprep.subr.bf16.mxu0 %v6935
    %8067 = vmatpush1.bf16.msra.mxu0 %v6934
    %8068 = vmatprep.subr.bf16.mxu0 %v6943
    %8069 = vmatpush1.bf16.msra.mxu0 %v6942
    %8070 = vmatprep.subr.bf16.mxu0 %v6951
    %8071 = vmatpush1.bf16.msra.mxu0 %v6950
    %8072 = vmatprep.subr.bf16.mxu0 %v6959
    %8073 = vmatpush1.bf16.msra.mxu0 %v6958
    %8074 = vmatprep.subr.bf16.mxu0 %v6967
    %8075 = vmatpush1.bf16.msra.mxu0 %v6966
    %8076 = vmatprep.subr.bf16.mxu0 %v6975
    %8077 = vmatpush1.bf16.msra.mxu0 %v6974
    %8078 = vmatprep.subr.bf16.mxu0 %v6983
    %8079 = vmatpush1.bf16.msra.mxu0 %v6982
    %8080 = vmatprep.subr.bf16.mxu0 %v6991
    %8081 = vmatpush1.bf16.msra.mxu0 %v6990
    %8082 = vmatprep.subr.bf16.mxu0 %v6999
    %8083 = vmatpush1.bf16.msra.mxu0 %v6998
    %8084 = vmatprep.mubr.bf16.mxu0 %v4525
    %8085 = vmatmul.mubr.bf16.gmra.mrb[0].mxu0 %v4524
    %v8086 = vpop.f32.mrb[0].mxu0
    %v8087 = vadd.f32 %v8046, %v8086
    %v8088 = vpop.f32.mrb[0].mxu0
    %v8089 = vadd.f32 %v8048, %v8088
    %v8090 = vpop.f32.mrb[0].mxu0
    %v8091 = vpop.f32.mrb[0].mxu0
    %8092 = vdwg.mxu0
    %8093 = vmatprep.subr.bf16.mxu0 %v7007
    %8094 = vmatpush1.bf16.msra.mxu0 %v7006
    %8095 = vmatprep.subr.bf16.mxu0 %v7015
    %8096 = vmatpush1.bf16.msra.mxu0 %v7014
    %8097 = vmatprep.subr.bf16.mxu0 %v7023
    %8098 = vmatpush1.bf16.msra.mxu0 %v7022
    %8099 = vmatprep.subr.bf16.mxu0 %v7031
    %8100 = vmatpush1.bf16.msra.mxu0 %v7030
    %8101 = vmatprep.subr.bf16.mxu0 %v7039
    %8102 = vmatpush1.bf16.msra.mxu0 %v7038
    %8103 = vmatprep.subr.bf16.mxu0 %v7047
    %8104 = vmatpush1.bf16.msra.mxu0 %v7046
    %8105 = vmatprep.subr.bf16.mxu0 %v7055
    %8106 = vmatpush1.bf16.msra.mxu0 %v7054
    %8107 = vmatprep.subr.bf16.mxu0 %v7063
    %8108 = vmatpush1.bf16.msra.mxu0 %v7062
    %8109 = vmatprep.subr.bf16.mxu0 %v7071
    %8110 = vmatpush1.bf16.msra.mxu0 %v7070
    %8111 = vmatprep.subr.bf16.mxu0 %v7079
    %8112 = vmatpush1.bf16.msra.mxu0 %v7078
    %8113 = vmatprep.subr.bf16.mxu0 %v7087
    %8114 = vmatpush1.bf16.msra.mxu0 %v7086
    %8115 = vmatprep.subr.bf16.mxu0 %v7095
    %8116 = vmatpush1.bf16.msra.mxu0 %v7094
    %8117 = vmatprep.subr.bf16.mxu0 %v7103
    %8118 = vmatpush1.bf16.msra.mxu0 %v7102
    %8119 = vmatprep.subr.bf16.mxu0 %v7111
    %8120 = vmatpush1.bf16.msra.mxu0 %v7110
    %8121 = vmatprep.subr.bf16.mxu0 %v7119
    %8122 = vmatpush1.bf16.msra.mxu0 %v7118
    %8123 = vmatprep.subr.bf16.mxu0 %v7127
    %8124 = vmatpush1.bf16.msra.mxu0 %v7126
    %8125 = vmatprep.mubr.bf16.mxu0 %v4527
    %8126 = vmatmul.mubr.bf16.gmra.mrb[0].mxu0 %v4526
    %v8127 = vpop.f32.mrb[0].mxu0
    %v8128 = vadd.f32 %v8087, %v8127
    %v8129 = vpop.f32.mrb[0].mxu0
    %v8130 = vadd.f32 %v8089, %v8129
    %v8131 = vpop.f32.mrb[0].mxu0
    %v8132 = vpop.f32.mrb[0].mxu0
    %8133 = vdwg.mxu0
    %8134 = vmatprep.subr.bf16.mxu0 %v6625
    %8135 = vmatpush1.bf16.msra.mxu0 %v6624
    %8136 = vmatprep.subr.bf16.mxu0 %v6633
    %8137 = vmatpush1.bf16.msra.mxu0 %v6632
    %8138 = vmatprep.subr.bf16.mxu0 %v6641
    %8139 = vmatpush1.bf16.msra.mxu0 %v6640
    %8140 = vmatprep.subr.bf16.mxu0 %v6649
    %8141 = vmatpush1.bf16.msra.mxu0 %v6648
    %8142 = vmatprep.subr.bf16.mxu0 %v6657
    %8143 = vmatpush1.bf16.msra.mxu0 %v6656
    %8144 = vmatprep.subr.bf16.mxu0 %v6665
    %8145 = vmatpush1.bf16.msra.mxu0 %v6664
    %8146 = vmatprep.subr.bf16.mxu0 %v6673
    %8147 = vmatpush1.bf16.msra.mxu0 %v6672
    %8148 = vmatprep.subr.bf16.mxu0 %v6681
    %8149 = vmatpush1.bf16.msra.mxu0 %v6680
    %8150 = vmatprep.subr.bf16.mxu0 %v6689
    %8151 = vmatpush1.bf16.msra.mxu0 %v6688
    %8152 = vmatprep.subr.bf16.mxu0 %v6697
    %8153 = vmatpush1.bf16.msra.mxu0 %v6696
    %8154 = vmatprep.subr.bf16.mxu0 %v6705
    %8155 = vmatpush1.bf16.msra.mxu0 %v6704
    %8156 = vmatprep.subr.bf16.mxu0 %v6713
    %8157 = vmatpush1.bf16.msra.mxu0 %v6712
    %8158 = vmatprep.subr.bf16.mxu0 %v6721
    %8159 = vmatpush1.bf16.msra.mxu0 %v6720
    %8160 = vmatprep.subr.bf16.mxu0 %v6729
    %8161 = vmatpush1.bf16.msra.mxu0 %v6728
    %8162 = vmatprep.subr.bf16.mxu0 %v6737
    %8163 = vmatpush1.bf16.msra.mxu0 %v6736
    %8164 = vmatprep.subr.bf16.mxu0 %v6745
    %8165 = vmatpush1.bf16.msra.mxu0 %v6744
    %8166 = vmatprep.mubr.bf16.mxu0 %v4521
    %8167 = vmatmul.mubr.bf16.gmra.mrb[0].mxu0 %v4520
    %v8168 = vpop.f32.mrb[0].mxu0
    %v8169 = vadd.f32 %v5069, %v8168
    %v8170 = vpop.f32.mrb[0].mxu0
    %v8171 = vadd.f32 %v5073, %v8170
    %v8172 = vpop.f32.mrb[0].mxu0
    %v8173 = vpop.f32.mrb[0].mxu0
    %8174 = vdwg.mxu0
    %8175 = vmatprep.subr.bf16.mxu0 %v6753
    %8176 = vmatpush1.bf16.msra.mxu0 %v6752
    %8177 = vmatprep.subr.bf16.mxu0 %v6761
    %8178 = vmatpush1.bf16.msra.mxu0 %v6760
    %8179 = vmatprep.subr.bf16.mxu0 %v6769
    %8180 = vmatpush1.bf16.msra.mxu0 %v6768
    %8181 = vmatprep.subr.bf16.mxu0 %v6777
    %8182 = vmatpush1.bf16.msra.mxu0 %v6776
    %8183 = vmatprep.subr.bf16.mxu0 %v6785
    %8184 = vmatpush1.bf16.msra.mxu0 %v6784
    %8185 = vmatprep.subr.bf16.mxu0 %v6793
    %8186 = vmatpush1.bf16.msra.mxu0 %v6792
    %8187 = vmatprep.subr.bf16.mxu0 %v6801
    %8188 = vmatpush1.bf16.msra.mxu0 %v6800
    %8189 = vmatprep.subr.bf16.mxu0 %v6809
    %8190 = vmatpush1.bf16.msra.mxu0 %v6808
    %8191 = vmatprep.subr.bf16.mxu0 %v6817
    %8192 = vmatpush1.bf16.msra.mxu0 %v6816
    %8193 = vmatprep.subr.bf16.mxu0 %v6825
    %8194 = vmatpush1.bf16.msra.mxu0 %v6824
    %8195 = vmatprep.subr.bf16.mxu0 %v6833
    %8196 = vmatpush1.bf16.msra.mxu0 %v6832
    %8197 = vmatprep.subr.bf16.mxu0 %v6841
    %8198 = vmatpush1.bf16.msra.mxu0 %v6840
    %8199 = vmatprep.subr.bf16.mxu0 %v6849
    %8200 = vmatpush1.bf16.msra.mxu0 %v6848
    %8201 = vmatprep.subr.bf16.mxu0 %v6857
    %8202 = vmatpush1.bf16.msra.mxu0 %v6856
    %8203 = vmatprep.subr.bf16.mxu0 %v6865
    %8204 = vmatpush1.bf16.msra.mxu0 %v6864
    %8205 = vmatprep.subr.bf16.mxu0 %v6873
    %8206 = vmatpush1.bf16.msra.mxu0 %v6872
    %8207 = vmatprep.mubr.bf16.mxu0 %v4523
    %8208 = vmatmul.mubr.bf16.gmra.mrb[0].mxu0 %v4522
    %v8209 = vpop.f32.mrb[0].mxu0
    %v8210 = vadd.f32 %v8169, %v8209
    %v8211 = vpop.f32.mrb[0].mxu0
    %v8212 = vadd.f32 %v8171, %v8211
    %v8213 = vpop.f32.mrb[0].mxu0
    %v8214 = vpop.f32.mrb[0].mxu0
    %8215 = vdwg.mxu0
    %8216 = vmatprep.subr.bf16.mxu0 %v6881
    %8217 = vmatpush1.bf16.msra.mxu0 %v6880
    %8218 = vmatprep.subr.bf16.mxu0 %v6889
    %8219 = vmatpush1.bf16.msra.mxu0 %v6888
    %8220 = vmatprep.subr.bf16.mxu0 %v6897
    %8221 = vmatpush1.bf16.msra.mxu0 %v6896
    %8222 = vmatprep.subr.bf16.mxu0 %v6905
    %8223 = vmatpush1.bf16.msra.mxu0 %v6904
    %8224 = vmatprep.subr.bf16.mxu0 %v6913
    %8225 = vmatpush1.bf16.msra.mxu0 %v6912
    %8226 = vmatprep.subr.bf16.mxu0 %v6921
    %8227 = vmatpush1.bf16.msra.mxu0 %v6920
    %8228 = vmatprep.subr.bf16.mxu0 %v6929
    %8229 = vmatpush1.bf16.msra.mxu0 %v6928
    %8230 = vmatprep.subr.bf16.mxu0 %v6937
    %8231 = vmatpush1.bf16.msra.mxu0 %v6936
    %8232 = vmatprep.subr.bf16.mxu0 %v6945
    %8233 = vmatpush1.bf16.msra.mxu0 %v6944
    %8234 = vmatprep.subr.bf16.mxu0 %v6953
    %8235 = vmatpush1.bf16.msra.mxu0 %v6952
    %8236 = vmatprep.subr.bf16.mxu0 %v6961
    %8237 = vmatpush1.bf16.msra.mxu0 %v6960
    %8238 = vmatprep.subr.bf16.mxu0 %v6969
    %8239 = vmatpush1.bf16.msra.mxu0 %v6968
    %8240 = vmatprep.subr.bf16.mxu0 %v6977
    %8241 = vmatpush1.bf16.msra.mxu0 %v6976
    %8242 = vmatprep.subr.bf16.mxu0 %v6985
    %8243 = vmatpush1.bf16.msra.mxu0 %v6984
    %8244 = vmatprep.subr.bf16.mxu0 %v6993
    %8245 = vmatpush1.bf16.msra.mxu0 %v6992
    %8246 = vmatprep.subr.bf16.mxu0 %v7001
    %8247 = vmatpush1.bf16.msra.mxu0 %v7000
    %8248 = vmatprep.mubr.bf16.mxu0 %v4525
    %8249 = vmatmul.mubr.bf16.gmra.mrb[0].mxu0 %v4524
    %v8250 = vpop.f32.mrb[0].mxu0
    %v8251 = vadd.f32 %v8210, %v8250
    %v8252 = vpop.f32.mrb[0].mxu0
    %v8253 = vadd.f32 %v8212, %v8252
    %v8254 = vpop.f32.mrb[0].mxu0
    %v8255 = vpop.f32.mrb[0].mxu0
    %8256 = vdwg.mxu0
    %8257 = vmatprep.subr.bf16.mxu0 %v7009
    %8258 = vmatpush1.bf16.msra.mxu0 %v7008
    %8259 = vmatprep.subr.bf16.mxu0 %v7017
    %8260 = vmatpush1.bf16.msra.mxu0 %v7016
    %8261 = vmatprep.subr.bf16.mxu0 %v7025
    %8262 = vmatpush1.bf16.msra.mxu0 %v7024
    %8263 = vmatprep.subr.bf16.mxu0 %v7033
    %8264 = vmatpush1.bf16.msra.mxu0 %v7032
    %8265 = vmatprep.subr.bf16.mxu0 %v7041
    %8266 = vmatpush1.bf16.msra.mxu0 %v7040
    %8267 = vmatprep.subr.bf16.mxu0 %v7049
    %8268 = vmatpush1.bf16.msra.mxu0 %v7048
    %8269 = vmatprep.subr.bf16.mxu0 %v7057
    %8270 = vmatpush1.bf16.msra.mxu0 %v7056
    %8271 = vmatprep.subr.bf16.mxu0 %v7065
    %8272 = vmatpush1.bf16.msra.mxu0 %v7064
    %8273 = vmatprep.subr.bf16.mxu0 %v7073
    %8274 = vmatpush1.bf16.msra.mxu0 %v7072
    %8275 = vmatprep.subr.bf16.mxu0 %v7081
    %8276 = vmatpush1.bf16.msra.mxu0 %v7080
    %8277 = vmatprep.subr.bf16.mxu0 %v7089
    %8278 = vmatpush1.bf16.msra.mxu0 %v7088
    %8279 = vmatprep.subr.bf16.mxu0 %v7097
    %8280 = vmatpush1.bf16.msra.mxu0 %v7096
    %8281 = vmatprep.subr.bf16.mxu0 %v7105
    %8282 = vmatpush1.bf16.msra.mxu0 %v7104
    %8283 = vmatprep.subr.bf16.mxu0 %v7113
    %8284 = vmatpush1.bf16.msra.mxu0 %v7112
    %8285 = vmatprep.subr.bf16.mxu0 %v7121
    %8286 = vmatpush1.bf16.msra.mxu0 %v7120
    %8287 = vmatprep.subr.bf16.mxu0 %v7129
    %8288 = vmatpush1.bf16.msra.mxu0 %v7128
    %8289 = vmatprep.mubr.bf16.mxu0 %v4527
    %8290 = vmatmul.mubr.bf16.gmra.mrb[0].mxu0 %v4526
    %v8291 = vpop.f32.mrb[0].mxu0
    %v8292 = vadd.f32 %v8251, %v8291
    %v8293 = vpop.f32.mrb[0].mxu0
    %v8294 = vadd.f32 %v8253, %v8293
    %v8295 = vpop.f32.mrb[0].mxu0
    %v8296 = vpop.f32.mrb[0].mxu0
    %8297 = vdwg.mxu0
    %v8298 = vmax.f32 %v7800, 0.0
    %v8299 = vmax.f32 %v7802, 0.0
    %v8300 = vmax.f32 %v7964, 0.0
    %v8301 = vmax.f32 %v7966, 0.0
    %v8302 = vmax.f32 %v8128, 0.0
    %v8303 = vmax.f32 %v8130, 0.0
    %v8304 = vmax.f32 %v8292, 0.0
    %v8305 = vmax.f32 %v8294, 0.0
    %v8306 = vpack.c.bf16 %v8298, %v8298
    %v8307 = vpack.c.bf16 %v8299, %v8299
    %v8308 = vpack.c.bf16 %v8300, %v8300
    %v8309 = vpack.c.bf16 %v8301, %v8301
    %v8310 = vpack.c.bf16 %v8302, %v8302
    %v8311 = vpack.c.bf16 %v8303, %v8303
    %v8312 = vpack.c.bf16 %v8304, %v8304
    %v8313 = vpack.c.bf16 %v8305, %v8305
    %v8314 = vld [vmem:[#allocation13] sm:$0xf]
    %v8315 = vld [vmem:[#allocation13 + $0x4] sm:$0xf]
    %v8316 = vld [vmem:[#allocation13 + $0x8] sm:$0xf]
    %v8317 = vld [vmem:[#allocation13 + $0xc] sm:$0xf]
    %v8318 = vld [vmem:[#allocation13 + $0x10] sm:$0xf]
    %v8319 = vld [vmem:[#allocation13 + $0x14] sm:$0xf]
    %v8320 = vld [vmem:[#allocation13 + $0x18] sm:$0xf]
    %v8321 = vld [vmem:[#allocation13 + $0x1c] sm:$0xf]
    %v8322 = vld [vmem:[#allocation13 + $0x20] sm:$0xf]
    %v8323 = vld [vmem:[#allocation13 + $0x24] sm:$0xf]
    %v8324 = vld [vmem:[#allocation13 + $0x28] sm:$0xf]
    %v8325 = vld [vmem:[#allocation13 + $0x2c] sm:$0xf]
    %v8326 = vld [vmem:[#allocation13 + $0x30] sm:$0xf]
    %v8327 = vld [vmem:[#allocation13 + $0x34] sm:$0xf]
    %v8328 = vld [vmem:[#allocation13 + $0x38] sm:$0xf]
    %v8329 = vld [vmem:[#allocation13 + $0x3c] sm:$0xf]
    %v8330 = vld [vmem:[#allocation13 + $0x40] sm:$0xf]
    %v8331 = vld [vmem:[#allocation13 + $0x44] sm:$0xf]
    %v8332 = vld [vmem:[#allocation13 + $0x48] sm:$0xf]
    %v8333 = vld [vmem:[#allocation13 + $0x4c] sm:$0xf]
    %v8334 = vld [vmem:[#allocation13 + $0x50] sm:$0xf]
    %v8335 = vld [vmem:[#allocation13 + $0x54] sm:$0xf]
    %v8336 = vld [vmem:[#allocation13 + $0x58] sm:$0xf]
    %v8337 = vld [vmem:[#allocation13 + $0x5c] sm:$0xf]
    %v8338 = vld [vmem:[#allocation13 + $0x60] sm:$0xf]
    %v8339 = vld [vmem:[#allocation13 + $0x64] sm:$0xf]
    %v8340 = vld [vmem:[#allocation13 + $0x68] sm:$0xf]
    %v8341 = vld [vmem:[#allocation13 + $0x6c] sm:$0xf]
    %v8342 = vld [vmem:[#allocation13 + $0x70] sm:$0xf]
    %v8343 = vld [vmem:[#allocation13 + $0x74] sm:$0xf]
    %v8344 = vld [vmem:[#allocation13 + $0x78] sm:$0xf]
    %v8345 = vld [vmem:[#allocation13 + $0x7c] sm:$0xf]
    %v8346 = vld [vmem:[#allocation13 + $0x80] sm:$0xf]
    %v8347 = vld [vmem:[#allocation13 + $0x84] sm:$0xf]
    %v8348 = vld [vmem:[#allocation13 + $0x88] sm:$0xf]
    %v8349 = vld [vmem:[#allocation13 + $0x8c] sm:$0xf]
    %v8350 = vld [vmem:[#allocation13 + $0x90] sm:$0xf]
    %v8351 = vld [vmem:[#allocation13 + $0x94] sm:$0xf]
    %v8352 = vld [vmem:[#allocation13 + $0x98] sm:$0xf]
    %v8353 = vld [vmem:[#allocation13 + $0x9c] sm:$0xf]
    %v8354 = vld [vmem:[#allocation13 + $0xa0] sm:$0xf]
    %v8355 = vld [vmem:[#allocation13 + $0xa4] sm:$0xf]
    %v8356 = vld [vmem:[#allocation13 + $0xa8] sm:$0xf]
    %v8357 = vld [vmem:[#allocation13 + $0xac] sm:$0xf]
    %v8358 = vld [vmem:[#allocation13 + $0xb0] sm:$0xf]
    %v8359 = vld [vmem:[#allocation13 + $0xb4] sm:$0xf]
    %v8360 = vld [vmem:[#allocation13 + $0xb8] sm:$0xf]
    %v8361 = vld [vmem:[#allocation13 + $0xbc] sm:$0xf]
    %v8362 = vld [vmem:[#allocation13 + $0xc0] sm:$0xf]
    %v8363 = vld [vmem:[#allocation13 + $0xc4] sm:$0xf]
    %v8364 = vld [vmem:[#allocation13 + $0xc8] sm:$0xf]
    %v8365 = vld [vmem:[#allocation13 + $0xcc] sm:$0xf]
    %v8366 = vld [vmem:[#allocation13 + $0xd0] sm:$0xf]
    %v8367 = vld [vmem:[#allocation13 + $0xd4] sm:$0xf]
    %v8368 = vld [vmem:[#allocation13 + $0xd8] sm:$0xf]
    %v8369 = vld [vmem:[#allocation13 + $0xdc] sm:$0xf]
    %v8370 = vld [vmem:[#allocation13 + $0xe0] sm:$0xf]
    %v8371 = vld [vmem:[#allocation13 + $0xe4] sm:$0xf]
    %v8372 = vld [vmem:[#allocation13 + $0xe8] sm:$0xf]
    %v8373 = vld [vmem:[#allocation13 + $0xec] sm:$0xf]
    %v8374 = vld [vmem:[#allocation13 + $0xf0] sm:$0xf]
    %v8375 = vld [vmem:[#allocation13 + $0xf4] sm:$0xf]
    %v8376 = vld [vmem:[#allocation13 + $0xf8] sm:$0xf]
    %v8377 = vld [vmem:[#allocation13 + $0xfc] sm:$0xf]
    %v8378 = vld [vmem:[#allocation13 + $0x100] sm:$0xf]
    %v8379 = vld [vmem:[#allocation13 + $0x104] sm:$0xf]
    %v8380 = vld [vmem:[#allocation13 + $0x108] sm:$0xf]
    %v8381 = vld [vmem:[#allocation13 + $0x10c] sm:$0xf]
    %v8382 = vld [vmem:[#allocation13 + $0x110] sm:$0xf]
    %v8383 = vld [vmem:[#allocation13 + $0x114] sm:$0xf]
    %v8384 = vld [vmem:[#allocation13 + $0x118] sm:$0xf]
    %v8385 = vld [vmem:[#allocation13 + $0x11c] sm:$0xf]
    %v8386 = vld [vmem:[#allocation13 + $0x120] sm:$0xf]
    %v8387 = vld [vmem:[#allocation13 + $0x124] sm:$0xf]
    %v8388 = vld [vmem:[#allocation13 + $0x128] sm:$0xf]
    %v8389 = vld [vmem:[#allocation13 + $0x12c] sm:$0xf]
    %v8390 = vld [vmem:[#allocation13 + $0x130] sm:$0xf]
    %v8391 = vld [vmem:[#allocation13 + $0x134] sm:$0xf]
    %v8392 = vld [vmem:[#allocation13 + $0x138] sm:$0xf]
    %v8393 = vld [vmem:[#allocation13 + $0x13c] sm:$0xf]
    %v8394 = vld [vmem:[#allocation13 + $0x140] sm:$0xf]
    %v8395 = vld [vmem:[#allocation13 + $0x144] sm:$0xf]
    %v8396 = vld [vmem:[#allocation13 + $0x148] sm:$0xf]
    %v8397 = vld [vmem:[#allocation13 + $0x14c] sm:$0xf]
    %v8398 = vld [vmem:[#allocation13 + $0x150] sm:$0xf]
    %v8399 = vld [vmem:[#allocation13 + $0x154] sm:$0xf]
    %v8400 = vld [vmem:[#allocation13 + $0x158] sm:$0xf]
    %v8401 = vld [vmem:[#allocation13 + $0x15c] sm:$0xf]
    %v8402 = vld [vmem:[#allocation13 + $0x160] sm:$0xf]
    %v8403 = vld [vmem:[#allocation13 + $0x164] sm:$0xf]
    %v8404 = vld [vmem:[#allocation13 + $0x168] sm:$0xf]
    %v8405 = vld [vmem:[#allocation13 + $0x16c] sm:$0xf]
    %v8406 = vld [vmem:[#allocation13 + $0x170] sm:$0xf]
    %v8407 = vld [vmem:[#allocation13 + $0x174] sm:$0xf]
    %v8408 = vld [vmem:[#allocation13 + $0x178] sm:$0xf]
    %v8409 = vld [vmem:[#allocation13 + $0x17c] sm:$0xf]
    %v8410 = vld [vmem:[#allocation13 + $0x180] sm:$0xf]
    %v8411 = vld [vmem:[#allocation13 + $0x184] sm:$0xf]
    %v8412 = vld [vmem:[#allocation13 + $0x188] sm:$0xf]
    %v8413 = vld [vmem:[#allocation13 + $0x18c] sm:$0xf]
    %v8414 = vld [vmem:[#allocation13 + $0x190] sm:$0xf]
    %v8415 = vld [vmem:[#allocation13 + $0x194] sm:$0xf]
    %v8416 = vld [vmem:[#allocation13 + $0x198] sm:$0xf]
    %v8417 = vld [vmem:[#allocation13 + $0x19c] sm:$0xf]
    %v8418 = vld [vmem:[#allocation13 + $0x1a0] sm:$0xf]
    %v8419 = vld [vmem:[#allocation13 + $0x1a4] sm:$0xf]
    %v8420 = vld [vmem:[#allocation13 + $0x1a8] sm:$0xf]
    %v8421 = vld [vmem:[#allocation13 + $0x1ac] sm:$0xf]
    %v8422 = vld [vmem:[#allocation13 + $0x1b0] sm:$0xf]
    %v8423 = vld [vmem:[#allocation13 + $0x1b4] sm:$0xf]
    %v8424 = vld [vmem:[#allocation13 + $0x1b8] sm:$0xf]
    %v8425 = vld [vmem:[#allocation13 + $0x1bc] sm:$0xf]
    %v8426 = vld [vmem:[#allocation13 + $0x1c0] sm:$0xf]
    %v8427 = vld [vmem:[#allocation13 + $0x1c4] sm:$0xf]
    %v8428 = vld [vmem:[#allocation13 + $0x1c8] sm:$0xf]
    %v8429 = vld [vmem:[#allocation13 + $0x1cc] sm:$0xf]
    %v8430 = vld [vmem:[#allocation13 + $0x1d0] sm:$0xf]
    %v8431 = vld [vmem:[#allocation13 + $0x1d4] sm:$0xf]
    %v8432 = vld [vmem:[#allocation13 + $0x1d8] sm:$0xf]
    %v8433 = vld [vmem:[#allocation13 + $0x1dc] sm:$0xf]
    %v8434 = vld [vmem:[#allocation13 + $0x1e0] sm:$0xf]
    %v8435 = vld [vmem:[#allocation13 + $0x1e4] sm:$0xf]
    %v8436 = vld [vmem:[#allocation13 + $0x1e8] sm:$0xf]
    %v8437 = vld [vmem:[#allocation13 + $0x1ec] sm:$0xf]
    %v8438 = vld [vmem:[#allocation13 + $0x1f0] sm:$0xf]
    %v8439 = vld [vmem:[#allocation13 + $0x1f4] sm:$0xf]
    %v8440 = vld [vmem:[#allocation13 + $0x1f8] sm:$0xf]
    %v8441 = vld [vmem:[#allocation13 + $0x1fc] sm:$0xf]
    %v8442 = vld [vmem:[#allocation14] sm:$0x1]
    %v8444 = vlaneseq
    %v8445 = vshrl.u32 %v8444, 7
    %v8446 = vsub.s32 0, %v8445
    %v8447 = vrot.slane %v8442, %v8446
    %v8577 = vunpack.c.l.b16 %v8314
    %v8578 = vunpack.c.l.b16 %v8315
    %v8579 = vunpack.c.l.b16 %v8316
    %v8580 = vunpack.c.l.b16 %v8317
    %v8581 = vunpack.c.l.b16 %v8318
    %v8582 = vunpack.c.l.b16 %v8319
    %v8583 = vunpack.c.l.b16 %v8320
    %v8584 = vunpack.c.l.b16 %v8321
    %v8585 = vunpack.c.l.b16 %v8322
    %v8586 = vunpack.c.l.b16 %v8323
    %v8587 = vunpack.c.l.b16 %v8324
    %v8588 = vunpack.c.l.b16 %v8325
    %v8589 = vunpack.c.l.b16 %v8326
    %v8590 = vunpack.c.l.b16 %v8327
    %v8591 = vunpack.c.l.b16 %v8328
    %v8592 = vunpack.c.l.b16 %v8329
    %v8593 = vunpack.c.l.b16 %v8330
    %v8594 = vunpack.c.l.b16 %v8331
    %v8595 = vunpack.c.l.b16 %v8332
    %v8596 = vunpack.c.l.b16 %v8333
    %v8597 = vunpack.c.l.b16 %v8334
    %v8598 = vunpack.c.l.b16 %v8335
    %v8599 = vunpack.c.l.b16 %v8336
    %v8600 = vunpack.c.l.b16 %v8337
    %v8601 = vunpack.c.l.b16 %v8338
    %v8602 = vunpack.c.l.b16 %v8339
    %v8603 = vunpack.c.l.b16 %v8340
    %v8604 = vunpack.c.l.b16 %v8341
    %v8605 = vunpack.c.l.b16 %v8342
    %v8606 = vunpack.c.l.b16 %v8343
    %v8607 = vunpack.c.l.b16 %v8344
    %v8608 = vunpack.c.l.b16 %v8345
    %v8609 = vunpack.c.l.b16 %v8346
    %v8610 = vunpack.c.l.b16 %v8347
    %v8611 = vunpack.c.l.b16 %v8348
    %v8612 = vunpack.c.l.b16 %v8349
    %v8613 = vunpack.c.l.b16 %v8350
    %v8614 = vunpack.c.l.b16 %v8351
    %v8615 = vunpack.c.l.b16 %v8352
    %v8616 = vunpack.c.l.b16 %v8353
    %v8617 = vunpack.c.l.b16 %v8354
    %v8618 = vunpack.c.l.b16 %v8355
    %v8619 = vunpack.c.l.b16 %v8356
    %v8620 = vunpack.c.l.b16 %v8357
    %v8621 = vunpack.c.l.b16 %v8358
    %v8622 = vunpack.c.l.b16 %v8359
    %v8623 = vunpack.c.l.b16 %v8360
    %v8624 = vunpack.c.l.b16 %v8361
    %v8625 = vunpack.c.l.b16 %v8362
    %v8626 = vunpack.c.l.b16 %v8363
    %v8627 = vunpack.c.l.b16 %v8364
    %v8628 = vunpack.c.l.b16 %v8365
    %v8629 = vunpack.c.l.b16 %v8366
    %v8630 = vunpack.c.l.b16 %v8367
    %v8631 = vunpack.c.l.b16 %v8368
    %v8632 = vunpack.c.l.b16 %v8369
    %v8633 = vunpack.c.l.b16 %v8370
    %v8634 = vunpack.c.l.b16 %v8371
    %v8635 = vunpack.c.l.b16 %v8372
    %v8636 = vunpack.c.l.b16 %v8373
    %v8637 = vunpack.c.l.b16 %v8374
    %v8638 = vunpack.c.l.b16 %v8375
    %v8639 = vunpack.c.l.b16 %v8376
    %v8640 = vunpack.c.l.b16 %v8377
    %v8641 = vunpack.c.l.b16 %v8378
    %v8642 = vunpack.c.l.b16 %v8379
    %v8643 = vunpack.c.l.b16 %v8380
    %v8644 = vunpack.c.l.b16 %v8381
    %v8645 = vunpack.c.l.b16 %v8382
    %v8646 = vunpack.c.l.b16 %v8383
    %v8647 = vunpack.c.l.b16 %v8384
    %v8648 = vunpack.c.l.b16 %v8385
    %v8649 = vunpack.c.l.b16 %v8386
    %v8650 = vunpack.c.l.b16 %v8387
    %v8651 = vunpack.c.l.b16 %v8388
    %v8652 = vunpack.c.l.b16 %v8389
    %v8653 = vunpack.c.l.b16 %v8390
    %v8654 = vunpack.c.l.b16 %v8391
    %v8655 = vunpack.c.l.b16 %v8392
    %v8656 = vunpack.c.l.b16 %v8393
    %v8657 = vunpack.c.l.b16 %v8394
    %v8658 = vunpack.c.l.b16 %v8395
    %v8659 = vunpack.c.l.b16 %v8396
    %v8660 = vunpack.c.l.b16 %v8397
    %v8661 = vunpack.c.l.b16 %v8398
    %v8662 = vunpack.c.l.b16 %v8399
    %v8663 = vunpack.c.l.b16 %v8400
    %v8664 = vunpack.c.l.b16 %v8401
    %v8665 = vunpack.c.l.b16 %v8402
    %v8666 = vunpack.c.l.b16 %v8403
    %v8667 = vunpack.c.l.b16 %v8404
    %v8668 = vunpack.c.l.b16 %v8405
    %v8669 = vunpack.c.l.b16 %v8406
    %v8670 = vunpack.c.l.b16 %v8407
    %v8671 = vunpack.c.l.b16 %v8408
    %v8672 = vunpack.c.l.b16 %v8409
    %v8673 = vunpack.c.l.b16 %v8410
    %v8674 = vunpack.c.l.b16 %v8411
    %v8675 = vunpack.c.l.b16 %v8412
    %v8676 = vunpack.c.l.b16 %v8413
    %v8677 = vunpack.c.l.b16 %v8414
    %v8678 = vunpack.c.l.b16 %v8415
    %v8679 = vunpack.c.l.b16 %v8416
    %v8680 = vunpack.c.l.b16 %v8417
    %v8681 = vunpack.c.l.b16 %v8418
    %v8682 = vunpack.c.l.b16 %v8419
    %v8683 = vunpack.c.l.b16 %v8420
    %v8684 = vunpack.c.l.b16 %v8421
    %v8685 = vunpack.c.l.b16 %v8422
    %v8686 = vunpack.c.l.b16 %v8423
    %v8687 = vunpack.c.l.b16 %v8424
    %v8688 = vunpack.c.l.b16 %v8425
    %v8689 = vunpack.c.l.b16 %v8426
    %v8690 = vunpack.c.l.b16 %v8427
    %v8691 = vunpack.c.l.b16 %v8428
    %v8692 = vunpack.c.l.b16 %v8429
    %v8693 = vunpack.c.l.b16 %v8430
    %v8694 = vunpack.c.l.b16 %v8431
    %v8695 = vunpack.c.l.b16 %v8432
    %v8696 = vunpack.c.l.b16 %v8433
    %v8697 = vunpack.c.l.b16 %v8434
    %v8698 = vunpack.c.l.b16 %v8435
    %v8699 = vunpack.c.l.b16 %v8436
    %v8700 = vunpack.c.l.b16 %v8437
    %v8701 = vunpack.c.l.b16 %v8438
    %v8702 = vunpack.c.l.b16 %v8439
    %v8703 = vunpack.c.l.b16 %v8440
    %v8704 = vunpack.c.l.b16 %v8441
    %v8705 = vpack.c.b16 %v8578, %v8577
    %v8706 = vpack.c.b16 %v8580, %v8579
    %v8707 = vpack.c.b16 %v8582, %v8581
    %v8708 = vpack.c.b16 %v8584, %v8583
    %v8709 = vpack.c.b16 %v8586, %v8585
    %v8710 = vpack.c.b16 %v8588, %v8587
    %v8711 = vpack.c.b16 %v8590, %v8589
    %v8712 = vpack.c.b16 %v8592, %v8591
    %v8713 = vpack.c.b16 %v8594, %v8593
    %v8714 = vpack.c.b16 %v8596, %v8595
    %v8715 = vpack.c.b16 %v8598, %v8597
    %v8716 = vpack.c.b16 %v8600, %v8599
    %v8717 = vpack.c.b16 %v8602, %v8601
    %v8718 = vpack.c.b16 %v8604, %v8603
    %v8719 = vpack.c.b16 %v8606, %v8605
    %v8720 = vpack.c.b16 %v8608, %v8607
    %v8721 = vpack.c.b16 %v8610, %v8609
    %v8722 = vpack.c.b16 %v8612, %v8611
    %v8723 = vpack.c.b16 %v8614, %v8613
    %v8724 = vpack.c.b16 %v8616, %v8615
    %v8725 = vpack.c.b16 %v8618, %v8617
    %v8726 = vpack.c.b16 %v8620, %v8619
    %v8727 = vpack.c.b16 %v8622, %v8621
    %v8728 = vpack.c.b16 %v8624, %v8623
    %v8729 = vpack.c.b16 %v8626, %v8625
    %v8730 = vpack.c.b16 %v8628, %v8627
    %v8731 = vpack.c.b16 %v8630, %v8629
    %v8732 = vpack.c.b16 %v8632, %v8631
    %v8733 = vpack.c.b16 %v8634, %v8633
    %v8734 = vpack.c.b16 %v8636, %v8635
    %v8735 = vpack.c.b16 %v8638, %v8637
    %v8736 = vpack.c.b16 %v8640, %v8639
    %v8737 = vpack.c.b16 %v8642, %v8641
    %v8738 = vpack.c.b16 %v8644, %v8643
    %v8739 = vpack.c.b16 %v8646, %v8645
    %v8740 = vpack.c.b16 %v8648, %v8647
    %v8741 = vpack.c.b16 %v8650, %v8649
    %v8742 = vpack.c.b16 %v8652, %v8651
    %v8743 = vpack.c.b16 %v8654, %v8653
    %v8744 = vpack.c.b16 %v8656, %v8655
    %v8745 = vpack.c.b16 %v8658, %v8657
    %v8746 = vpack.c.b16 %v8660, %v8659
    %v8747 = vpack.c.b16 %v8662, %v8661
    %v8748 = vpack.c.b16 %v8664, %v8663
    %v8749 = vpack.c.b16 %v8666, %v8665
    %v8750 = vpack.c.b16 %v8668, %v8667
    %v8751 = vpack.c.b16 %v8670, %v8669
    %v8752 = vpack.c.b16 %v8672, %v8671
    %v8753 = vpack.c.b16 %v8674, %v8673
    %v8754 = vpack.c.b16 %v8676, %v8675
    %v8755 = vpack.c.b16 %v8678, %v8677
    %v8756 = vpack.c.b16 %v8680, %v8679
    %v8757 = vpack.c.b16 %v8682, %v8681
    %v8758 = vpack.c.b16 %v8684, %v8683
    %v8759 = vpack.c.b16 %v8686, %v8685
    %v8760 = vpack.c.b16 %v8688, %v8687
    %v8761 = vpack.c.b16 %v8690, %v8689
    %v8762 = vpack.c.b16 %v8692, %v8691
    %v8763 = vpack.c.b16 %v8694, %v8693
    %v8764 = vpack.c.b16 %v8696, %v8695
    %v8765 = vpack.c.b16 %v8698, %v8697
    %v8766 = vpack.c.b16 %v8700, %v8699
    %v8767 = vpack.c.b16 %v8702, %v8701
    %v8768 = vpack.c.b16 %v8704, %v8703
    %8833 = vmatprep.subr.bf16.mxu0 0
    %8834 = vmatpush1.bf16.msra.mxu0 %v8705
    %8835 = vmatprep.subr.bf16.mxu0 0
    %8836 = vmatpush1.bf16.msra.mxu0 %v8706
    %8837 = vmatprep.subr.bf16.mxu0 0
    %8838 = vmatpush1.bf16.msra.mxu0 %v8707
    %8839 = vmatprep.subr.bf16.mxu0 0
    %8840 = vmatpush1.bf16.msra.mxu0 %v8708
    %8841 = vmatprep.subr.bf16.mxu0 0
    %8842 = vmatpush1.bf16.msra.mxu0 %v8709
    %8843 = vmatprep.subr.bf16.mxu0 0
    %8844 = vmatpush1.bf16.msra.mxu0 %v8710
    %8845 = vmatprep.subr.bf16.mxu0 0
    %8846 = vmatpush1.bf16.msra.mxu0 %v8711
    %8847 = vmatprep.subr.bf16.mxu0 0
    %8848 = vmatpush1.bf16.msra.mxu0 %v8712
    %8849 = vmatprep.subr.bf16.mxu0 0
    %8850 = vmatpush1.bf16.msra.mxu0 %v8713
    %8851 = vmatprep.subr.bf16.mxu0 0
    %8852 = vmatpush1.bf16.msra.mxu0 %v8714
    %8853 = vmatprep.subr.bf16.mxu0 0
    %8854 = vmatpush1.bf16.msra.mxu0 %v8715
    %8855 = vmatprep.subr.bf16.mxu0 0
    %8856 = vmatpush1.bf16.msra.mxu0 %v8716
    %8857 = vmatprep.subr.bf16.mxu0 0
    %8858 = vmatpush1.bf16.msra.mxu0 %v8717
    %8859 = vmatprep.subr.bf16.mxu0 0
    %8860 = vmatpush1.bf16.msra.mxu0 %v8718
    %8861 = vmatprep.subr.bf16.mxu0 0
    %8862 = vmatpush1.bf16.msra.mxu0 %v8719
    %8863 = vmatprep.subr.bf16.mxu0 0
    %8864 = vmatpush1.bf16.msra.mxu0 %v8720
    %8865 = vmatprep.mubr.bf16.mxu0 %v8307
    %8866 = vmatmul.mubr.bf16.gmra.mrb[0].mxu0 %v8306
    %v8867 = vpop.f32.mrb[0].mxu0
    %v8868 = vadd.f32 %v8447, %v8867
    %v8869 = vpop.f32.mrb[0].mxu0
    %v8870 = vpop.f32.mrb[0].mxu0
    %v8871 = vpop.f32.mrb[0].mxu0
    %8872 = vdwg.mxu0
    %8873 = vmatprep.subr.bf16.mxu0 0
    %8874 = vmatpush1.bf16.msra.mxu0 %v8721
    %8875 = vmatprep.subr.bf16.mxu0 0
    %8876 = vmatpush1.bf16.msra.mxu0 %v8722
    %8877 = vmatprep.subr.bf16.mxu0 0
    %8878 = vmatpush1.bf16.msra.mxu0 %v8723
    %8879 = vmatprep.subr.bf16.mxu0 0
    %8880 = vmatpush1.bf16.msra.mxu0 %v8724
    %8881 = vmatprep.subr.bf16.mxu0 0
    %8882 = vmatpush1.bf16.msra.mxu0 %v8725
    %8883 = vmatprep.subr.bf16.mxu0 0
    %8884 = vmatpush1.bf16.msra.mxu0 %v8726
    %8885 = vmatprep.subr.bf16.mxu0 0
    %8886 = vmatpush1.bf16.msra.mxu0 %v8727
    %8887 = vmatprep.subr.bf16.mxu0 0
    %8888 = vmatpush1.bf16.msra.mxu0 %v8728
    %8889 = vmatprep.subr.bf16.mxu0 0
    %8890 = vmatpush1.bf16.msra.mxu0 %v8729
    %8891 = vmatprep.subr.bf16.mxu0 0
    %8892 = vmatpush1.bf16.msra.mxu0 %v8730
    %8893 = vmatprep.subr.bf16.mxu0 0
    %8894 = vmatpush1.bf16.msra.mxu0 %v8731
    %8895 = vmatprep.subr.bf16.mxu0 0
    %8896 = vmatpush1.bf16.msra.mxu0 %v8732
    %8897 = vmatprep.subr.bf16.mxu0 0
    %8898 = vmatpush1.bf16.msra.mxu0 %v8733
    %8899 = vmatprep.subr.bf16.mxu0 0
    %8900 = vmatpush1.bf16.msra.mxu0 %v8734
    %8901 = vmatprep.subr.bf16.mxu0 0
    %8902 = vmatpush1.bf16.msra.mxu0 %v8735
    %8903 = vmatprep.subr.bf16.mxu0 0
    %8904 = vmatpush1.bf16.msra.mxu0 %v8736
    %8905 = vmatprep.mubr.bf16.mxu0 %v8309
    %8906 = vmatmul.mubr.bf16.gmra.mrb[0].mxu0 %v8308
    %v8907 = vpop.f32.mrb[0].mxu0
    %v8908 = vadd.f32 %v8868, %v8907
    %v8909 = vpop.f32.mrb[0].mxu0
    %v8910 = vpop.f32.mrb[0].mxu0
    %v8911 = vpop.f32.mrb[0].mxu0
    %8912 = vdwg.mxu0
    %8913 = vmatprep.subr.bf16.mxu0 0
    %8914 = vmatpush1.bf16.msra.mxu0 %v8737
    %8915 = vmatprep.subr.bf16.mxu0 0
    %8916 = vmatpush1.bf16.msra.mxu0 %v8738
    %8917 = vmatprep.subr.bf16.mxu0 0
    %8918 = vmatpush1.bf16.msra.mxu0 %v8739
    %8919 = vmatprep.subr.bf16.mxu0 0
    %8920 = vmatpush1.bf16.msra.mxu0 %v8740
    %8921 = vmatprep.subr.bf16.mxu0 0
    %8922 = vmatpush1.bf16.msra.mxu0 %v8741
    %8923 = vmatprep.subr.bf16.mxu0 0
    %8924 = vmatpush1.bf16.msra.mxu0 %v8742
    %8925 = vmatprep.subr.bf16.mxu0 0
    %8926 = vmatpush1.bf16.msra.mxu0 %v8743
    %8927 = vmatprep.subr.bf16.mxu0 0
    %8928 = vmatpush1.bf16.msra.mxu0 %v8744
    %8929 = vmatprep.subr.bf16.mxu0 0
    %8930 = vmatpush1.bf16.msra.mxu0 %v8745
    %8931 = vmatprep.subr.bf16.mxu0 0
    %8932 = vmatpush1.bf16.msra.mxu0 %v8746
    %8933 = vmatprep.subr.bf16.mxu0 0
    %8934 = vmatpush1.bf16.msra.mxu0 %v8747
    %8935 = vmatprep.subr.bf16.mxu0 0
    %8936 = vmatpush1.bf16.msra.mxu0 %v8748
    %8937 = vmatprep.subr.bf16.mxu0 0
    %8938 = vmatpush1.bf16.msra.mxu0 %v8749
    %8939 = vmatprep.subr.bf16.mxu0 0
    %8940 = vmatpush1.bf16.msra.mxu0 %v8750
    %8941 = vmatprep.subr.bf16.mxu0 0
    %8942 = vmatpush1.bf16.msra.mxu0 %v8751
    %8943 = vmatprep.subr.bf16.mxu0 0
    %8944 = vmatpush1.bf16.msra.mxu0 %v8752
    %8945 = vmatprep.mubr.bf16.mxu0 %v8311
    %8946 = vmatmul.mubr.bf16.gmra.mrb[0].mxu0 %v8310
    %v8947 = vpop.f32.mrb[0].mxu0
    %v8948 = vadd.f32 %v8908, %v8947
    %v8949 = vpop.f32.mrb[0].mxu0
    %v8950 = vpop.f32.mrb[0].mxu0
    %v8951 = vpop.f32.mrb[0].mxu0
    %8952 = vdwg.mxu0
    %8953 = vmatprep.subr.bf16.mxu0 0
    %8954 = vmatpush1.bf16.msra.mxu0 %v8753
    %8955 = vmatprep.subr.bf16.mxu0 0
    %8956 = vmatpush1.bf16.msra.mxu0 %v8754
    %8957 = vmatprep.subr.bf16.mxu0 0
    %8958 = vmatpush1.bf16.msra.mxu0 %v8755
    %8959 = vmatprep.subr.bf16.mxu0 0
    %8960 = vmatpush1.bf16.msra.mxu0 %v8756
    %8961 = vmatprep.subr.bf16.mxu0 0
    %8962 = vmatpush1.bf16.msra.mxu0 %v8757
    %8963 = vmatprep.subr.bf16.mxu0 0
    %8964 = vmatpush1.bf16.msra.mxu0 %v8758
    %8965 = vmatprep.subr.bf16.mxu0 0
    %8966 = vmatpush1.bf16.msra.mxu0 %v8759
    %8967 = vmatprep.subr.bf16.mxu0 0
    %8968 = vmatpush1.bf16.msra.mxu0 %v8760
    %8969 = vmatprep.subr.bf16.mxu0 0
    %8970 = vmatpush1.bf16.msra.mxu0 %v8761
    %8971 = vmatprep.subr.bf16.mxu0 0
    %8972 = vmatpush1.bf16.msra.mxu0 %v8762
    %8973 = vmatprep.subr.bf16.mxu0 0
    %8974 = vmatpush1.bf16.msra.mxu0 %v8763
    %8975 = vmatprep.subr.bf16.mxu0 0
    %8976 = vmatpush1.bf16.msra.mxu0 %v8764
    %8977 = vmatprep.subr.bf16.mxu0 0
    %8978 = vmatpush1.bf16.msra.mxu0 %v8765
    %8979 = vmatprep.subr.bf16.mxu0 0
    %8980 = vmatpush1.bf16.msra.mxu0 %v8766
    %8981 = vmatprep.subr.bf16.mxu0 0
    %8982 = vmatpush1.bf16.msra.mxu0 %v8767
    %8983 = vmatprep.subr.bf16.mxu0 0
    %8984 = vmatpush1.bf16.msra.mxu0 %v8768
    %8985 = vmatprep.mubr.bf16.mxu0 %v8313
    %8986 = vmatmul.mubr.bf16.gmra.mrb[0].mxu0 %v8312
    %v8987 = vpop.f32.mrb[0].mxu0
    %v8988 = vadd.f32 %v8948, %v8987
    %v8989 = vpop.f32.mrb[0].mxu0
    %v8990 = vpop.f32.mrb[0].mxu0
    %v8991 = vpop.f32.mrb[0].mxu0
    %8992 = vdwg.mxu0
    %8993 = vst [vmem:[#allocation16] sm:$0xff] %v8988
    // Predicated region
    $region70: #{mlp_forward.1} parent=1 // pred_check
      _
    $region71: #{mlp_forward.1} parent=1 // pred_check_branch
      %8995 = sbr.rel (0) target = $region73
    $region72: #{mlp_forward.1} parent=1 // pred_region
      %s8997 = ssub.s32 128, 128
      %8998 = vsyncadd [#allocation4], %s8997
      %s9000 = sshll.u32 [#allocation16], 4
      %s9001 = int_to_ptr.vmem [resolvable:$true] %s9000
      %9003 = dma.vmem_to_hbm [thread:$0]  %s9001, 128, %s9, [#allocation4]
    $region73: #{mlp_forward.1} parent=1 // pred_fallthru
      _
    // Predicated region
    $region74: #{mlp_forward.1} parent=1 // pred_check
      _
    $region75: #{mlp_forward.1} parent=1 // pred_check_branch
      %9005 = sbr.rel (0) target = $region77
    $region76: #{mlp_forward.1} parent=1 // pred_region
      %9006 = dma.done [#allocation4], 128
    $region77: #{mlp_forward.1} parent=1 // pred_fallthru
      _
    %9007 = vsyncpa [#allocation3], 1
    %9008 = vsyncpa [#allocation6], 1
    %9009 = vsyncpa [#allocation9], 1
    %9010 = vsyncpa [#allocation12], 1
    %9011 = vsyncpa [#allocation15], 1
    %9012 = vsyncpa [#allocation4], 1

</llo_original>
